<compile_context>
chip_gen: v5e
topology: v5e:2x2
jax: 0.10.0
libtpu: 0.0.40
codegen_flags: <defaults>
</compile_context>

<pallas_src>
import functools

import jax
import jax.numpy as jnp
from jax import lax
from jax.experimental import pallas as pl
from jax.experimental.pallas import tpu as pltpu

# ----------------------------- model config (small) --------------------------
BATCH = 2
NUM_HISTORY = 7
IMG = 9
PATCH = 3
IN_CH = 3
EMBED = 32
HEADS = 4
NUM_LAYERS = 2
MLP_RATIO = 4.0
FFN = int(EMBED * MLP_RATIO)          # 128
LN_EPS = 1e-5                         # PyTorch TransformerEncoderLayer default

PADDED = (IMG + PATCH - 1) // PATCH * PATCH
PGRID = PADDED // PATCH
TOTAL_PATCHES = NUM_HISTORY * PGRID * PGRID   # 63
SEQ = TOTAL_PATCHES + 1                       # 64  (cls + patches)
HEAD_DIM = EMBED // HEADS                     # 8
TOKENS = BATCH * SEQ                          # 128 -> full MXU / vreg width
POL_PAD = -(-(IMG * IMG) // 128) * 128        # 128 (lane-dense policy store)
NEG_INF = -1e30


# ------------------------------ fused Pallas kernel ---------------------------
def _govit_kernel(patches_ref, add_ref, bias_ref, cls_mask_ref, pmean_mask_ref,
                  w_pe_ref,
                  w_qkv_ref, b_qkv_ref, w_out_ref, b_out_ref,
                  g1_ref, beta1_ref, w1_ref, b1_ref, w2_ref, b2_ref,
                  g2_ref, beta2_ref,
                  w_pol_ref, b_pol_ref, w_val_ref, b_val_ref,
                  policy_ref, value_ref,
                  *, num_layers, heads, eps):
    f32 = jnp.float32
    bf16 = jnp.bfloat16
    tokens, emb = add_ref.shape               # (B*S, E) = (128, 32)
    hd = emb // heads
    scale = 1.0 / (hd ** 0.5)

    def layer_norm(t, gamma, beta):            # biased variance, like torch
        mu = jnp.mean(t, axis=-1, keepdims=True)
        var = jnp.mean((t - mu) ** 2, axis=-1, keepdims=True)
        return (t - mu) * lax.rsqrt(var + eps) * gamma + beta

    # block-diagonal attention bias: -1e30 on cross-batch (query,key) pairs
    bias = bias_ref[...]                       # (tokens, tokens) f32

    # ---- patch embedding (+ folded cls token / pos embedding / conv bias) ----
    x = jnp.dot(patches_ref[...], w_pe_ref[...],
                preferred_element_type=f32) + add_ref[...]          # (128, E) f32

    # ---- transformer encoder layers (post-norm, ReLU FFN, dropout = eval) ----
    for l in range(num_layers):
        # packed QKV projection: (128,32)@(32,96), f32 accumulation
        qkv = jnp.dot(x.astype(bf16), w_qkv_ref[l],
                      preferred_element_type=f32) + b_qkv_ref[l]    # (128, 3E)
        qkv = qkv.astype(bf16)

        o_heads = []
        for h in range(heads):
            q = qkv[:, h * hd:(h + 1) * hd]                         # (128, hd)
            k = qkv[:, emb + h * hd:emb + (h + 1) * hd]
            v = qkv[:, 2 * emb + h * hd:2 * emb + (h + 1) * hd]
            # full-width (128,128) scores; mask applied BEFORE max/exp
            s = lax.dot_general(q, k, (((1,), (1,)), ((), ())),
                                preferred_element_type=f32) * scale + bias
            s = s - jnp.max(s, axis=-1, keepdims=True)
            e = jnp.exp(s)
            p = e * pl.reciprocal(jnp.sum(e, axis=-1, keepdims=True),
                                  approx=True)
            o_heads.append(jnp.dot(p.astype(bf16), v,
                                   preferred_element_type=f32))     # (128, hd)

        # head merge + single dense out-projection (128,32)@(32,32)
        o = jnp.concatenate(o_heads, axis=-1)                       # (128, E)
        attn = jnp.dot(o.astype(bf16), w_out_ref[l],
                       preferred_element_type=f32) + b_out_ref[l]
        x = layer_norm(x + attn, g1_ref[l], beta1_ref[l])

        hid = jnp.maximum(
            jnp.dot(x.astype(bf16), w1_ref[l],
                    preferred_element_type=f32) + b1_ref[l], 0.0)   # (128, F)
        ffn = jnp.dot(hid.astype(bf16), w2_ref[l],
                      preferred_element_type=f32) + b2_ref[l]
        x = layer_norm(x + ffn, g2_ref[l], beta2_ref[l])

    # ---- heads: cls token -> value, mean of patch tokens -> policy ----------
    # Token selection via precomputed mask matmuls (no gathers / reshapes).
    cls_out = jnp.dot(cls_mask_ref[...], x, preferred_element_type=f32)    # (B, E)
    patch_mean = jnp.dot(pmean_mask_ref[...], x, preferred_element_type=f32)

    value_ref[...] = jnp.tanh(
        jnp.sum(cls_out * w_val_ref[...], axis=-1, keepdims=True) + b_val_ref[...])
    policy_ref[...] = (jnp.dot(patch_mean, w_pol_ref[...],
                               preferred_element_type=f32) + b_pol_ref[...])


# ------------------------- one-time parameter relayout ------------------------
def prepare_params(params, batch):
    """Hoisted out of the per-call forward: bf16 weight casts, folded
    cls+pos+conv-bias add matrix, lane-dense policy-head padding,
    block-diagonal attention bias and token-selection masks."""
    E = EMBED
    bf16 = jnp.bfloat16
    kp = IN_CH * PATCH * PATCH
    kpad = -(-kp // 8) * 8               # round contraction dim up to sublane mult

    w_pe = jnp.pad(params["w_pe"], ((0, kpad - kp), (0, 0))).astype(bf16)

    # fold cls token + positional embedding + conv bias into one add matrix
    add_seq = jnp.concatenate(
        [params["cls"] + params["pos"][:1],
         params["b_pe"] + params["pos"][1:]], axis=0)                  # (S, E)
    add = jnp.broadcast_to(add_seq[None], (batch, SEQ, E)).reshape(batch * SEQ, E)

    # block-diagonal additive attention bias (cross-batch keys masked out)
    tokens = batch * SEQ
    bid = jnp.arange(tokens) // SEQ
    bias = jnp.where(bid[:, None] == bid[None, :], 0.0, NEG_INF).astype(jnp.float32)

    # token-selection masks: cls row per batch / mean over the patch tokens
    tok = jnp.arange(tokens)
    batch_of = tok // SEQ
    is_cls = (tok % SEQ) == 0
    b_ids = jnp.arange(batch)
    same_b = batch_of[None, :] == b_ids[:, None]
    cls_mask = (same_b & is_cls[None, :]).astype(jnp.float32)          # (B, tokens)
    pmean_mask = ((same_b & jnp.logical_not(is_cls)[None, :])
                  .astype(jnp.float32)) / float(SEQ - 1)

    # lane-dense policy head: pad 81 -> 128 output columns
    w_pol = jnp.pad(params["w_pol"], ((0, 0), (0, POL_PAD - IMG * IMG)))
    b_pol = jnp.pad(params["b_pol"], ((0, 0), (0, POL_PAD - IMG * IMG)))

    return dict(
        add=add, bias=bias, cls_mask=cls_mask, pmean_mask=pmean_mask,
        w_pe=w_pe,
        w_qkv=params["w_qkv"].astype(bf16), b_qkv=params["b_qkv"],
        w_out=params["w_out"].astype(bf16), b_out=params["b_out"],
        g1=params["g1"], beta1=params["beta1"],
        w1=params["w1"].astype(bf16), b1=params["b1"],
        w2=params["w2"].astype(bf16), b2=params["b2"],
        g2=params["g2"], beta2=params["beta2"],
        w_pol=w_pol, b_pol=b_pol,
        w_val=params["w_val"], b_val=params["b_val"],
    )


# ------------------------------ wrapper ---------------------------------------
def _full_block(a):
    nd = a.ndim
    return pl.BlockSpec(a.shape, lambda i, _nd=nd: (0,) * _nd)


def govit_forward(x, pp):
    """x: (B, num_history, C, img, img) f32 -> (policy (B, img*img), value (B, 1))."""
    B, nh, C, img, _ = x.shape
    ps = PATCH
    padded = (img + ps - 1) // ps * ps
    pgrid = padded // ps
    T = nh * pgrid * pgrid
    S = T + 1
    kp = C * ps * ps
    kpad = pp["w_pe"].shape[0]

    # ---- patch extraction: im2col of the stride==kernel Conv2d ----
    # TODO(synk): stays in the JAX wrapper as pure layout prep.
    xp = jnp.pad(x, ((0, 0), (0, 0), (0, 0),
                     (0, padded - img), (0, padded - img)))
    xp = xp.reshape(B * nh, C, pgrid, ps, pgrid, ps).transpose(0, 2, 4, 1, 3, 5)
    patches = xp.reshape(B, T, kp)
    # zero "patch" per batch for the cls position so the whole (cls + patches)
    # sequence comes out of one matmul inside the kernel
    patches = jnp.concatenate(
        [jnp.zeros((B, 1, kp), patches.dtype), patches], axis=1)      # (B, S, kp)
    patches = jnp.pad(patches.reshape(B * S, kp),
                      ((0, 0), (0, kpad - kp))).astype(jnp.bfloat16)

    inputs = (patches, pp["add"], pp["bias"], pp["cls_mask"], pp["pmean_mask"],
              pp["w_pe"],
              pp["w_qkv"], pp["b_qkv"], pp["w_out"], pp["b_out"],
              pp["g1"], pp["beta1"], pp["w1"], pp["b1"], pp["w2"], pp["b2"],
              pp["g2"], pp["beta2"],
              pp["w_pol"], pp["b_pol"], pp["w_val"], pp["b_val"])

    kernel = functools.partial(_govit_kernel, num_layers=NUM_LAYERS,
                               heads=HEADS, eps=LN_EPS)

    # grid=(1,): whole forward in one invocation; working set < 0.5 MiB so
    # full residency beats any pipelining at this size.  (At real model sizes:
    # add a 'parallel' batch/query axis for v7x's 2 TCs and a layer axis.)
    policy_pad, value = pl.pallas_call(
        kernel,
        out_shape=(jax.ShapeDtypeStruct((B, POL_PAD), jnp.float32),
                   jax.ShapeDtypeStruct((B, 1), jnp.float32)),
        grid=(1,),
        in_specs=[_full_block(a) for a in inputs],
        out_specs=(pl.BlockSpec((B, POL_PAD), lambda i: (0, 0)),
                   pl.BlockSpec((B, 1), lambda i: (0, 0))),
        compiler_params=pltpu.CompilerParams(
            dimension_semantics=("arbitrary",)),
    )(*inputs)
    return policy_pad[:, :img * img], value


# ------------------------------ parameters ------------------------------------
def init_params(key):
    E, H, L, F = EMBED, HEADS, NUM_LAYERS, FFN
    kp = IN_CH * PATCH * PATCH
    ks = jax.random.split(key, 16)
    std = 0.02

    def w(k, shape):
        return (std * jax.random.normal(k, shape)).astype(jnp.float32)

    return dict(
        # patch embedding: Conv2d(k=s=patch) as a (C*ps*ps, E) matmul
        w_pe=w(ks[0], (kp, E)), b_pe=w(ks[1], (1, E)),
        cls=w(ks[2], (1, E)), pos=w(ks[3], (SEQ, E)),
        # per-layer attention in/out projections (packed q|k|v along columns)
        w_qkv=w(ks[4], (L, E, 3 * E)), b_qkv=w(ks[5], (L, 1, 3 * E)),
        w_out=w(ks[6], (L, E, E)), b_out=w(ks[7], (L, 1, E)),
        # layer norms
        g1=jnp.ones((L, 1, E), jnp.float32), beta1=jnp.zeros((L, 1, E), jnp.float32),
        g2=jnp.ones((L, 1, E), jnp.float32), beta2=jnp.zeros((L, 1, E), jnp.float32),
        # FFN
        w1=w(ks[8], (L, E, F)), b1=w(ks[9], (L, 1, F)),
        w2=w(ks[10], (L, F, E)), b2=w(ks[11], (L, 1, E)),
        # output heads
        w_pol=w(ks[12], (E, IMG * IMG)), b_pol=w(ks[13], (1, IMG * IMG)),
        w_val=w(ks[14], (1, E)), b_val=w(ks[15], (1, 1)),
    )


# ------------------------------ reference (plain JAX, f32) ---------------------
def govit_ref(x, p):
    B, nh, C, img, _ = x.shape
    ps = PATCH
    padded = (img + ps - 1) // ps * ps
    pgrid = padded // ps
    T = nh * pgrid * pgrid
    S = T + 1
    E, H, L = EMBED, HEADS, NUM_LAYERS
    hd = E // H

    xp = jnp.pad(x, ((0, 0), (0, 0), (0, 0),
                     (0, padded - img), (0, padded - img)))
    xp = xp.reshape(B * nh, C, pgrid, ps, pgrid, ps).transpose(0, 2, 4, 1, 3, 5)
    patches = xp.reshape(B, T, C * ps * ps)
    emb = patches @ p["w_pe"] + p["b_pe"]
    cls = jnp.broadcast_to(p["cls"][None], (B, 1, E))
    h = jnp.concatenate([cls, emb], axis=1) + p["pos"][None]

    def ln(t, g, b):
        mu = t.mean(-1, keepdims=True)
        var = ((t - mu) ** 2).mean(-1, keepdims=True)
        return (t - mu) * lax.rsqrt(var + LN_EPS) * g + b

    for l in range(L):
        qkv = h @ p["w_qkv"][l] + p["b_qkv"][l]
        q, k, v = jnp.split(qkv, 3, axis=-1)

        def heads_(t):
            return t.reshape(B, S, H, hd).transpose(0, 2, 1, 3)

        qh, kh, vh = heads_(q), heads_(k), heads_(v)
        s = jnp.einsum("bhqd,bhkd->bhqk", qh, kh) / (hd ** 0.5)
        a = jax.nn.softmax(s, axis=-1)
        o = jnp.einsum("bhqk,bhkd->bhqd", a, vh).transpose(0, 2, 1, 3).reshape(B, S, E)
        attn = o @ p["w_out"][l] + p["b_out"][l]
        h = ln(h + attn, p["g1"][l], p["beta1"][l])
        f = jnp.maximum(h @ p["w1"][l] + p["b1"][l], 0.0) @ p["w2"][l] + p["b2"][l]
        h = ln(h + f, p["g2"][l], p["beta2"][l])

    cls_out = h[:, 0]
    value = jnp.tanh(cls_out @ p["w_val"].T + p["b_val"])
    patch_mean = h[:, 1:].mean(axis=1)
    policy = patch_mean @ p["w_pol"] + p["b_pol"]
    return policy, value


# ------------------------------ main -------------------------------------------
if __name__ == "__main__":
    key = jax.random.PRNGKey(0)
    k_x, k_p = jax.random.split(key)
    x = jax.random.normal(k_x, (BATCH, NUM_HISTORY, IN_CH, IMG, IMG), jnp.float32)
    params = init_params(k_p)

    prepped = prepare_params(params, BATCH)          # one-time relayout
    policy, value = jax.jit(govit_forward)(x, prepped)
    jax.block_until_ready((policy, value))

    pol_ref, val_ref = govit_ref(x, params)
    assert policy.shape == (BATCH, IMG * IMG)
    assert value.shape == (BATCH, 1)
    # tolerance accounts for bf16 MXU operands (f32 accumulation) and the EUP
    # approximate reciprocal in the softmax
    assert jnp.allclose(policy, pol_ref, atol=2e-2, rtol=2e-2), "policy mismatch"
    assert jnp.allclose(value, val_ref, atol=2e-2, rtol=2e-2), "value mismatch"

    print("KERNEL_OK")
</pallas_src>

<mosaic_0001>
module attributes {stable_mosaic.version = 11 : i64} {
  func.func @_govit_kernel(%arg0: i32, %arg1: memref<128x32xbf16, #tpu.memory_space<vmem>>, %arg2: memref<128x32xf32, #tpu.memory_space<vmem>>, %arg3: memref<128x128xf32, #tpu.memory_space<vmem>>, %arg4: memref<2x128xf32, #tpu.memory_space<vmem>>, %arg5: memref<2x128xf32, #tpu.memory_space<vmem>>, %arg6: memref<32x32xbf16, #tpu.memory_space<vmem>>, %arg7: memref<2x32x96xbf16, #tpu.memory_space<vmem>>, %arg8: memref<2x1x96xf32, #tpu.memory_space<vmem>>, %arg9: memref<2x32x32xbf16, #tpu.memory_space<vmem>>, %arg10: memref<2x1x32xf32, #tpu.memory_space<vmem>>, %arg11: memref<2x1x32xf32, #tpu.memory_space<vmem>>, %arg12: memref<2x1x32xf32, #tpu.memory_space<vmem>>, %arg13: memref<2x32x128xbf16, #tpu.memory_space<vmem>>, %arg14: memref<2x1x128xf32, #tpu.memory_space<vmem>>, %arg15: memref<2x128x32xbf16, #tpu.memory_space<vmem>>, %arg16: memref<2x1x32xf32, #tpu.memory_space<vmem>>, %arg17: memref<2x1x32xf32, #tpu.memory_space<vmem>>, %arg18: memref<2x1x32xf32, #tpu.memory_space<vmem>>, %arg19: memref<32x128xf32, #tpu.memory_space<vmem>>, %arg20: memref<1x128xf32, #tpu.memory_space<vmem>>, %arg21: memref<1x32xf32, #tpu.memory_space<vmem>>, %arg22: memref<1x1xf32, #tpu.memory_space<vmem>>, %arg23: memref<2x128xf32, #tpu.memory_space<vmem>>, %arg24: memref<2x1xf32, #tpu.memory_space<vmem>>) attributes {dimension_semantics = [#tpu.dimension_semantics<arbitrary>], iteration_bounds = array<i64: 1>, scalar_prefetch = 0 : i64, scratch_operands = 0 : i64, tpu.core_type = #tpu.core_type<tc>, window_params = [{pipeline_mode = #tpu.pipeline_mode<synchronous>, transform_indices = @transform_0, window_bounds = array<i64: 128, 32>}, {pipeline_mode = #tpu.pipeline_mode<synchronous>, transform_indices = @transform_1, window_bounds = array<i64: 128, 32>}, {pipeline_mode = #tpu.pipeline_mode<synchronous>, transform_indices = @transform_2, window_bounds = array<i64: 128, 128>}, {pipeline_mode = #tpu.pipeline_mode<synchronous>, transform_indices = @transform_3, window_bounds = array<i64: 2, 128>}, {pipeline_mode = #tpu.pipeline_mode<synchronous>, transform_indices = @transform_4, window_bounds = array<i64: 2, 128>}, {pipeline_mode = #tpu.pipeline_mode<synchronous>, transform_indices = @transform_5, window_bounds = array<i64: 32, 32>}, {pipeline_mode = #tpu.pipeline_mode<synchronous>, transform_indices = @transform_6, window_bounds = array<i64: 2, 32, 96>}, {pipeline_mode = #tpu.pipeline_mode<synchronous>, transform_indices = @transform_7, window_bounds = array<i64: 2, 1, 96>}, {pipeline_mode = #tpu.pipeline_mode<synchronous>, transform_indices = @transform_8, window_bounds = array<i64: 2, 32, 32>}, {pipeline_mode = #tpu.pipeline_mode<synchronous>, transform_indices = @transform_9, window_bounds = array<i64: 2, 1, 32>}, {pipeline_mode = #tpu.pipeline_mode<synchronous>, transform_indices = @transform_10, window_bounds = array<i64: 2, 1, 32>}, {pipeline_mode = #tpu.pipeline_mode<synchronous>, transform_indices = @transform_11, window_bounds = array<i64: 2, 1, 32>}, {pipeline_mode = #tpu.pipeline_mode<synchronous>, transform_indices = @transform_12, window_bounds = array<i64: 2, 32, 128>}, {pipeline_mode = #tpu.pipeline_mode<synchronous>, transform_indices = @transform_13, window_bounds = array<i64: 2, 1, 128>}, {pipeline_mode = #tpu.pipeline_mode<synchronous>, transform_indices = @transform_14, window_bounds = array<i64: 2, 128, 32>}, {pipeline_mode = #tpu.pipeline_mode<synchronous>, transform_indices = @transform_15, window_bounds = array<i64: 2, 1, 32>}, {pipeline_mode = #tpu.pipeline_mode<synchronous>, transform_indices = @transform_16, window_bounds = array<i64: 2, 1, 32>}, {pipeline_mode = #tpu.pipeline_mode<synchronous>, transform_indices = @transform_17, window_bounds = array<i64: 2, 1, 32>}, {pipeline_mode = #tpu.pipeline_mode<synchronous>, transform_indices = @transform_18, window_bounds = array<i64: 32, 128>}, {pipeline_mode = #tpu.pipeline_mode<synchronous>, transform_indices = @transform_19, window_bounds = array<i64: 1, 128>}, {pipeline_mode = #tpu.pipeline_mode<synchronous>, transform_indices = @transform_20, window_bounds = array<i64: 1, 32>}, {pipeline_mode = #tpu.pipeline_mode<synchronous>, transform_indices = @transform_21, window_bounds = array<i64: 1, 1>}, {pipeline_mode = #tpu.pipeline_mode<synchronous>, transform_indices = @transform_22, window_bounds = array<i64: 2, 128>}, {pipeline_mode = #tpu.pipeline_mode<synchronous>, transform_indices = @transform_23, window_bounds = array<i64: 2, 1>}]} {
    %c0 = arith.constant 0 : index
    %c0_0 = arith.constant 0 : index
    %0 = vector.load %arg3[%c0, %c0_0] : memref<128x128xf32, #tpu.memory_space<vmem>>, vector<128x128xf32>
    %c0_1 = arith.constant 0 : index
    %c0_2 = arith.constant 0 : index
    %1 = vector.load %arg1[%c0_1, %c0_2] : memref<128x32xbf16, #tpu.memory_space<vmem>>, vector<128x32xbf16>
    %c0_3 = arith.constant 0 : index
    %c0_4 = arith.constant 0 : index
    %2 = vector.load %arg6[%c0_3, %c0_4] : memref<32x32xbf16, #tpu.memory_space<vmem>>, vector<32x32xbf16>
    %cst = arith.constant dense<0.000000e+00> : vector<128x32xf32>
    %3 = tpu.matmul %1, %2, %cst {dimension_numbers = #tpu.dot_dimension_numbers<[1], [0], [0], [1], [0, 0, 1, 1], [], []>} : vector<128x32xbf16>, vector<32x32xbf16>, vector<128x32xf32> -> vector<128x32xf32>
    %c0_5 = arith.constant 0 : index
    %c0_6 = arith.constant 0 : index
    %4 = vector.load %arg2[%c0_5, %c0_6] : memref<128x32xf32, #tpu.memory_space<vmem>>, vector<128x32xf32>
    %5 = arith.addf %3, %4 : vector<128x32xf32>
    %6 = arith.truncf %5 : vector<128x32xf32> to vector<128x32xbf16>
    %c0_7 = arith.constant 0 : index
    %c0_8 = arith.constant 0 : index
    %c0_9 = arith.constant 0 : index
    %7 = vector.load %arg7[%c0_7, %c0_8, %c0_9] : memref<2x32x96xbf16, #tpu.memory_space<vmem>>, vector<1x32x96xbf16>
    %8 = vector.shape_cast %7 : vector<1x32x96xbf16> to vector<32x96xbf16>
    %cst_10 = arith.constant dense<0.000000e+00> : vector<128x96xf32>
    %9 = tpu.matmul %6, %8, %cst_10 {dimension_numbers = #tpu.dot_dimension_numbers<[1], [0], [0], [1], [0, 0, 1, 1], [], []>} : vector<128x32xbf16>, vector<32x96xbf16>, vector<128x96xf32> -> vector<128x96xf32>
    %c0_11 = arith.constant 0 : index
    %c0_12 = arith.constant 0 : index
    %c0_13 = arith.constant 0 : index
    %10 = vector.load %arg8[%c0_11, %c0_12, %c0_13] : memref<2x1x96xf32, #tpu.memory_space<vmem>>, vector<1x1x96xf32>
    %11 = vector.shape_cast %10 : vector<1x1x96xf32> to vector<1x96xf32>
    %12 = vector.broadcast %11 : vector<1x96xf32> to vector<128x96xf32>
    %13 = arith.addf %9, %12 : vector<128x96xf32>
    %14 = arith.truncf %13 : vector<128x96xf32> to vector<128x96xbf16>
    %15 = vector.extract_strided_slice %14 {offsets = [0, 0], sizes = [128, 8], strides = [1, 1]} : vector<128x96xbf16> to vector<128x8xbf16>
    %16 = vector.extract_strided_slice %14 {offsets = [0, 32], sizes = [128, 8], strides = [1, 1]} : vector<128x96xbf16> to vector<128x8xbf16>
    %17 = vector.extract_strided_slice %14 {offsets = [0, 64], sizes = [128, 8], strides = [1, 1]} : vector<128x96xbf16> to vector<128x8xbf16>
    %cst_14 = arith.constant dense<0.000000e+00> : vector<128x128xf32>
    %18 = tpu.matmul %15, %16, %cst_14 {dimension_numbers = #tpu.dot_dimension_numbers<[1], [1], [0], [0], [0, 0, 1, 0], [], []>} : vector<128x8xbf16>, vector<128x8xbf16>, vector<128x128xf32> -> vector<128x128xf32>
    %cst_15 = arith.constant 0.353553385 : f32
    %19 = vector.broadcast %cst_15 : f32 to vector<128x128xf32>
    %20 = arith.mulf %18, %19 : vector<128x128xf32>
    %21 = arith.addf %20, %0 : vector<128x128xf32>
    %cst_16 = arith.constant dense<0xFF800000> : vector<128xf32>
    %22 = vector.multi_reduction <maximumf>, %21, %cst_16 [1] : vector<128x128xf32> to vector<128xf32>
    %23 = vector.shape_cast %22 : vector<128xf32> to vector<128x1xf32>
    %24 = vector.broadcast %23 : vector<128x1xf32> to vector<128x128xf32>
    %25 = arith.subf %21, %24 : vector<128x128xf32>
    %26 = math.exp %25 : vector<128x128xf32>
    %cst_17 = arith.constant dense<0.000000e+00> : vector<128xf32>
    %27 = vector.multi_reduction <add>, %26, %cst_17 [1] : vector<128x128xf32> to vector<128xf32>
    %28 = vector.shape_cast %27 : vector<128xf32> to vector<128x1xf32>
    %29 = tpu.reciprocal %28 {approx = true} : vector<128x1xf32> -> vector<128x1xf32>
    %30 = vector.broadcast %29 : vector<128x1xf32> to vector<128x128xf32>
    %31 = arith.mulf %26, %30 : vector<128x128xf32>
    %32 = arith.truncf %31 : vector<128x128xf32> to vector<128x128xbf16>
    %cst_18 = arith.constant dense<0.000000e+00> : vector<128x8xf32>
    %33 = tpu.matmul %32, %17, %cst_18 {dimension_numbers = #tpu.dot_dimension_numbers<[1], [0], [0], [1], [0, 0, 1, 1], [], []>} : vector<128x128xbf16>, vector<128x8xbf16>, vector<128x8xf32> -> vector<128x8xf32>
    %34 = vector.extract_strided_slice %14 {offsets = [0, 8], sizes = [128, 8], strides = [1, 1]} : vector<128x96xbf16> to vector<128x8xbf16>
    %35 = vector.extract_strided_slice %14 {offsets = [0, 40], sizes = [128, 8], strides = [1, 1]} : vector<128x96xbf16> to vector<128x8xbf16>
    %36 = vector.extract_strided_slice %14 {offsets = [0, 72], sizes = [128, 8], strides = [1, 1]} : vector<128x96xbf16> to vector<128x8xbf16>
    %cst_19 = arith.constant dense<0.000000e+00> : vector<128x128xf32>
    %37 = tpu.matmul %34, %35, %cst_19 {dimension_numbers = #tpu.dot_dimension_numbers<[1], [1], [0], [0], [0, 0, 1, 0], [], []>} : vector<128x8xbf16>, vector<128x8xbf16>, vector<128x128xf32> -> vector<128x128xf32>
    %cst_20 = arith.constant 0.353553385 : f32
    %38 = vector.broadcast %cst_20 : f32 to vector<128x128xf32>
    %39 = arith.mulf %37, %38 : vector<128x128xf32>
    %40 = arith.addf %39, %0 : vector<128x128xf32>
    %cst_21 = arith.constant dense<0xFF800000> : vector<128xf32>
    %41 = vector.multi_reduction <maximumf>, %40, %cst_21 [1] : vector<128x128xf32> to vector<128xf32>
    %42 = vector.shape_cast %41 : vector<128xf32> to vector<128x1xf32>
    %43 = vector.broadcast %42 : vector<128x1xf32> to vector<128x128xf32>
    %44 = arith.subf %40, %43 : vector<128x128xf32>
    %45 = math.exp %44 : vector<128x128xf32>
    %cst_22 = arith.constant dense<0.000000e+00> : vector<128xf32>
    %46 = vector.multi_reduction <add>, %45, %cst_22 [1] : vector<128x128xf32> to vector<128xf32>
    %47 = vector.shape_cast %46 : vector<128xf32> to vector<128x1xf32>
    %48 = tpu.reciprocal %47 {approx = true} : vector<128x1xf32> -> vector<128x1xf32>
    %49 = vector.broadcast %48 : vector<128x1xf32> to vector<128x128xf32>
    %50 = arith.mulf %45, %49 : vector<128x128xf32>
    %51 = arith.truncf %50 : vector<128x128xf32> to vector<128x128xbf16>
    %cst_23 = arith.constant dense<0.000000e+00> : vector<128x8xf32>
    %52 = tpu.matmul %51, %36, %cst_23 {dimension_numbers = #tpu.dot_dimension_numbers<[1], [0], [0], [1], [0, 0, 1, 1], [], []>} : vector<128x128xbf16>, vector<128x8xbf16>, vector<128x8xf32> -> vector<128x8xf32>
    %53 = vector.extract_strided_slice %14 {offsets = [0, 16], sizes = [128, 8], strides = [1, 1]} : vector<128x96xbf16> to vector<128x8xbf16>
    %54 = vector.extract_strided_slice %14 {offsets = [0, 48], sizes = [128, 8], strides = [1, 1]} : vector<128x96xbf16> to vector<128x8xbf16>
    %55 = vector.extract_strided_slice %14 {offsets = [0, 80], sizes = [128, 8], strides = [1, 1]} : vector<128x96xbf16> to vector<128x8xbf16>
    %cst_24 = arith.constant dense<0.000000e+00> : vector<128x128xf32>
    %56 = tpu.matmul %53, %54, %cst_24 {dimension_numbers = #tpu.dot_dimension_numbers<[1], [1], [0], [0], [0, 0, 1, 0], [], []>} : vector<128x8xbf16>, vector<128x8xbf16>, vector<128x128xf32> -> vector<128x128xf32>
    %cst_25 = arith.constant 0.353553385 : f32
    %57 = vector.broadcast %cst_25 : f32 to vector<128x128xf32>
    %58 = arith.mulf %56, %57 : vector<128x128xf32>
    %59 = arith.addf %58, %0 : vector<128x128xf32>
    %cst_26 = arith.constant dense<0xFF800000> : vector<128xf32>
    %60 = vector.multi_reduction <maximumf>, %59, %cst_26 [1] : vector<128x128xf32> to vector<128xf32>
    %61 = vector.shape_cast %60 : vector<128xf32> to vector<128x1xf32>
    %62 = vector.broadcast %61 : vector<128x1xf32> to vector<128x128xf32>
    %63 = arith.subf %59, %62 : vector<128x128xf32>
    %64 = math.exp %63 : vector<128x128xf32>
    %cst_27 = arith.constant dense<0.000000e+00> : vector<128xf32>
    %65 = vector.multi_reduction <add>, %64, %cst_27 [1] : vector<128x128xf32> to vector<128xf32>
    %66 = vector.shape_cast %65 : vector<128xf32> to vector<128x1xf32>
    %67 = tpu.reciprocal %66 {approx = true} : vector<128x1xf32> -> vector<128x1xf32>
    %68 = vector.broadcast %67 : vector<128x1xf32> to vector<128x128xf32>
    %69 = arith.mulf %64, %68 : vector<128x128xf32>
    %70 = arith.truncf %69 : vector<128x128xf32> to vector<128x128xbf16>
    %cst_28 = arith.constant dense<0.000000e+00> : vector<128x8xf32>
    %71 = tpu.matmul %70, %55, %cst_28 {dimension_numbers = #tpu.dot_dimension_numbers<[1], [0], [0], [1], [0, 0, 1, 1], [], []>} : vector<128x128xbf16>, vector<128x8xbf16>, vector<128x8xf32> -> vector<128x8xf32>
    %72 = vector.extract_strided_slice %14 {offsets = [0, 24], sizes = [128, 8], strides = [1, 1]} : vector<128x96xbf16> to vector<128x8xbf16>
    %73 = vector.extract_strided_slice %14 {offsets = [0, 56], sizes = [128, 8], strides = [1, 1]} : vector<128x96xbf16> to vector<128x8xbf16>
    %74 = vector.extract_strided_slice %14 {offsets = [0, 88], sizes = [128, 8], strides = [1, 1]} : vector<128x96xbf16> to vector<128x8xbf16>
    %cst_29 = arith.constant dense<0.000000e+00> : vector<128x128xf32>
    %75 = tpu.matmul %72, %73, %cst_29 {dimension_numbers = #tpu.dot_dimension_numbers<[1], [1], [0], [0], [0, 0, 1, 0], [], []>} : vector<128x8xbf16>, vector<128x8xbf16>, vector<128x128xf32> -> vector<128x128xf32>
    %cst_30 = arith.constant 0.353553385 : f32
    %76 = vector.broadcast %cst_30 : f32 to vector<128x128xf32>
    %77 = arith.mulf %75, %76 : vector<128x128xf32>
    %78 = arith.addf %77, %0 : vector<128x128xf32>
    %cst_31 = arith.constant dense<0xFF800000> : vector<128xf32>
    %79 = vector.multi_reduction <maximumf>, %78, %cst_31 [1] : vector<128x128xf32> to vector<128xf32>
    %80 = vector.shape_cast %79 : vector<128xf32> to vector<128x1xf32>
    %81 = vector.broadcast %80 : vector<128x1xf32> to vector<128x128xf32>
    %82 = arith.subf %78, %81 : vector<128x128xf32>
    %83 = math.exp %82 : vector<128x128xf32>
    %cst_32 = arith.constant dense<0.000000e+00> : vector<128xf32>
    %84 = vector.multi_reduction <add>, %83, %cst_32 [1] : vector<128x128xf32> to vector<128xf32>
    %85 = vector.shape_cast %84 : vector<128xf32> to vector<128x1xf32>
    %86 = tpu.reciprocal %85 {approx = true} : vector<128x1xf32> -> vector<128x1xf32>
    %87 = vector.broadcast %86 : vector<128x1xf32> to vector<128x128xf32>
    %88 = arith.mulf %83, %87 : vector<128x128xf32>
    %89 = arith.truncf %88 : vector<128x128xf32> to vector<128x128xbf16>
    %cst_33 = arith.constant dense<0.000000e+00> : vector<128x8xf32>
    %90 = tpu.matmul %89, %74, %cst_33 {dimension_numbers = #tpu.dot_dimension_numbers<[1], [0], [0], [1], [0, 0, 1, 1], [], []>} : vector<128x128xbf16>, vector<128x8xbf16>, vector<128x8xf32> -> vector<128x8xf32>
    %91 = tpu.concatenate %33, %52, %71, %90 in 1 : vector<128x8xf32>, vector<128x8xf32>, vector<128x8xf32>, vector<128x8xf32> -> vector<128x32xf32>
    %92 = arith.truncf %91 : vector<128x32xf32> to vector<128x32xbf16>
    %c0_34 = arith.constant 0 : index
    %c0_35 = arith.constant 0 : index
    %c0_36 = arith.constant 0 : index
    %93 = vector.load %arg9[%c0_34, %c0_35, %c0_36] : memref<2x32x32xbf16, #tpu.memory_space<vmem>>, vector<1x32x32xbf16>
    %94 = vector.shape_cast %93 : vector<1x32x32xbf16> to vector<32x32xbf16>
    %cst_37 = arith.constant dense<0.000000e+00> : vector<128x32xf32>
    %95 = tpu.matmul %92, %94, %cst_37 {dimension_numbers = #tpu.dot_dimension_numbers<[1], [0], [0], [1], [0, 0, 1, 1], [], []>} : vector<128x32xbf16>, vector<32x32xbf16>, vector<128x32xf32> -> vector<128x32xf32>
    %c0_38 = arith.constant 0 : index
    %c0_39 = arith.constant 0 : index
    %c0_40 = arith.constant 0 : index
    %96 = vector.load %arg10[%c0_38, %c0_39, %c0_40] : memref<2x1x32xf32, #tpu.memory_space<vmem>>, vector<1x1x32xf32>
    %97 = vector.shape_cast %96 : vector<1x1x32xf32> to vector<1x32xf32>
    %98 = vector.broadcast %97 : vector<1x32xf32> to vector<128x32xf32>
    %99 = arith.addf %95, %98 : vector<128x32xf32>
    %100 = arith.addf %5, %99 : vector<128x32xf32>
    %c0_41 = arith.constant 0 : index
    %c0_42 = arith.constant 0 : index
    %c0_43 = arith.constant 0 : index
    %101 = vector.load %arg11[%c0_41, %c0_42, %c0_43] : memref<2x1x32xf32, #tpu.memory_space<vmem>>, vector<1x1x32xf32>
    %102 = vector.shape_cast %101 : vector<1x1x32xf32> to vector<1x32xf32>
    %c0_44 = arith.constant 0 : index
    %c0_45 = arith.constant 0 : index
    %c0_46 = arith.constant 0 : index
    %103 = vector.load %arg12[%c0_44, %c0_45, %c0_46] : memref<2x1x32xf32, #tpu.memory_space<vmem>>, vector<1x1x32xf32>
    %104 = vector.shape_cast %103 : vector<1x1x32xf32> to vector<1x32xf32>
    %cst_47 = arith.constant dense<0.000000e+00> : vector<128xf32>
    %105 = vector.multi_reduction <add>, %100, %cst_47 [1] : vector<128x32xf32> to vector<128xf32>
    %106 = vector.shape_cast %105 : vector<128xf32> to vector<128x1xf32>
    %cst_48 = arith.constant 3.200000e+01 : f32
    %107 = vector.broadcast %cst_48 : f32 to vector<128x1xf32>
    %108 = arith.divf %106, %107 : vector<128x1xf32>
    %109 = vector.broadcast %108 : vector<128x1xf32> to vector<128x32xf32>
    %110 = arith.subf %100, %109 : vector<128x32xf32>
    %111 = arith.mulf %110, %110 : vector<128x32xf32>
    %cst_49 = arith.constant dense<0.000000e+00> : vector<128xf32>
    %112 = vector.multi_reduction <add>, %111, %cst_49 [1] : vector<128x32xf32> to vector<128xf32>
    %113 = vector.shape_cast %112 : vector<128xf32> to vector<128x1xf32>
    %cst_50 = arith.constant 3.200000e+01 : f32
    %114 = vector.broadcast %cst_50 : f32 to vector<128x1xf32>
    %115 = arith.divf %113, %114 : vector<128x1xf32>
    %116 = vector.broadcast %108 : vector<128x1xf32> to vector<128x32xf32>
    %117 = arith.subf %100, %116 : vector<128x32xf32>
    %cst_51 = arith.constant 9.99999974E-6 : f32
    %118 = vector.broadcast %cst_51 : f32 to vector<128x1xf32>
    %119 = arith.addf %115, %118 : vector<128x1xf32>
    %120 = math.rsqrt %119 : vector<128x1xf32>
    %121 = vector.broadcast %120 : vector<128x1xf32> to vector<128x32xf32>
    %122 = arith.mulf %117, %121 : vector<128x32xf32>
    %123 = vector.broadcast %102 : vector<1x32xf32> to vector<128x32xf32>
    %124 = arith.mulf %122, %123 : vector<128x32xf32>
    %125 = vector.broadcast %104 : vector<1x32xf32> to vector<128x32xf32>
    %126 = arith.addf %124, %125 : vector<128x32xf32>
    %127 = arith.truncf %126 : vector<128x32xf32> to vector<128x32xbf16>
    %c0_52 = arith.constant 0 : index
    %c0_53 = arith.constant 0 : index
    %c0_54 = arith.constant 0 : index
    %128 = vector.load %arg13[%c0_52, %c0_53, %c0_54] : memref<2x32x128xbf16, #tpu.memory_space<vmem>>, vector<1x32x128xbf16>
    %129 = vector.shape_cast %128 : vector<1x32x128xbf16> to vector<32x128xbf16>
    %cst_55 = arith.constant dense<0.000000e+00> : vector<128x128xf32>
    %130 = tpu.matmul %127, %129, %cst_55 {dimension_numbers = #tpu.dot_dimension_numbers<[1], [0], [0], [1], [0, 0, 1, 1], [], []>} : vector<128x32xbf16>, vector<32x128xbf16>, vector<128x128xf32> -> vector<128x128xf32>
    %c0_56 = arith.constant 0 : index
    %c0_57 = arith.constant 0 : index
    %c0_58 = arith.constant 0 : index
    %131 = vector.load %arg14[%c0_56, %c0_57, %c0_58] : memref<2x1x128xf32, #tpu.memory_space<vmem>>, vector<1x1x128xf32>
    %132 = vector.shape_cast %131 : vector<1x1x128xf32> to vector<1x128xf32>
    %133 = vector.broadcast %132 : vector<1x128xf32> to vector<128x128xf32>
    %134 = arith.addf %130, %133 : vector<128x128xf32>
    %cst_59 = arith.constant 0.000000e+00 : f32
    %135 = vector.broadcast %cst_59 : f32 to vector<128x128xf32>
    %136 = arith.maximumf %134, %135 : vector<128x128xf32>
    %137 = arith.truncf %136 : vector<128x128xf32> to vector<128x128xbf16>
    %c0_60 = arith.constant 0 : index
    %c0_61 = arith.constant 0 : index
    %c0_62 = arith.constant 0 : index
    %138 = vector.load %arg15[%c0_60, %c0_61, %c0_62] : memref<2x128x32xbf16, #tpu.memory_space<vmem>>, vector<1x128x32xbf16>
    %139 = vector.shape_cast %138 : vector<1x128x32xbf16> to vector<128x32xbf16>
    %cst_63 = arith.constant dense<0.000000e+00> : vector<128x32xf32>
    %140 = tpu.matmul %137, %139, %cst_63 {dimension_numbers = #tpu.dot_dimension_numbers<[1], [0], [0], [1], [0, 0, 1, 1], [], []>} : vector<128x128xbf16>, vector<128x32xbf16>, vector<128x32xf32> -> vector<128x32xf32>
    %c0_64 = arith.constant 0 : index
    %c0_65 = arith.constant 0 : index
    %c0_66 = arith.constant 0 : index
    %141 = vector.load %arg16[%c0_64, %c0_65, %c0_66] : memref<2x1x32xf32, #tpu.memory_space<vmem>>, vector<1x1x32xf32>
    %142 = vector.shape_cast %141 : vector<1x1x32xf32> to vector<1x32xf32>
    %143 = vector.broadcast %142 : vector<1x32xf32> to vector<128x32xf32>
    %144 = arith.addf %140, %143 : vector<128x32xf32>
    %145 = arith.addf %126, %144 : vector<128x32xf32>
    %c0_67 = arith.constant 0 : index
    %c0_68 = arith.constant 0 : index
    %c0_69 = arith.constant 0 : index
    %146 = vector.load %arg17[%c0_67, %c0_68, %c0_69] : memref<2x1x32xf32, #tpu.memory_space<vmem>>, vector<1x1x32xf32>
    %147 = vector.shape_cast %146 : vector<1x1x32xf32> to vector<1x32xf32>
    %c0_70 = arith.constant 0 : index
    %c0_71 = arith.constant 0 : index
    %c0_72 = arith.constant 0 : index
    %148 = vector.load %arg18[%c0_70, %c0_71, %c0_72] : memref<2x1x32xf32, #tpu.memory_space<vmem>>, vector<1x1x32xf32>
    %149 = vector.shape_cast %148 : vector<1x1x32xf32> to vector<1x32xf32>
    %cst_73 = arith.constant dense<0.000000e+00> : vector<128xf32>
    %150 = vector.multi_reduction <add>, %145, %cst_73 [1] : vector<128x32xf32> to vector<128xf32>
    %151 = vector.shape_cast %150 : vector<128xf32> to vector<128x1xf32>
    %cst_74 = arith.constant 3.200000e+01 : f32
    %152 = vector.broadcast %cst_74 : f32 to vector<128x1xf32>
    %153 = arith.divf %151, %152 : vector<128x1xf32>
    %154 = vector.broadcast %153 : vector<128x1xf32> to vector<128x32xf32>
    %155 = arith.subf %145, %154 : vector<128x32xf32>
    %156 = arith.mulf %155, %155 : vector<128x32xf32>
    %cst_75 = arith.constant dense<0.000000e+00> : vector<128xf32>
    %157 = vector.multi_reduction <add>, %156, %cst_75 [1] : vector<128x32xf32> to vector<128xf32>
    %158 = vector.shape_cast %157 : vector<128xf32> to vector<128x1xf32>
    %cst_76 = arith.constant 3.200000e+01 : f32
    %159 = vector.broadcast %cst_76 : f32 to vector<128x1xf32>
    %160 = arith.divf %158, %159 : vector<128x1xf32>
    %161 = vector.broadcast %153 : vector<128x1xf32> to vector<128x32xf32>
    %162 = arith.subf %145, %161 : vector<128x32xf32>
    %cst_77 = arith.constant 9.99999974E-6 : f32
    %163 = vector.broadcast %cst_77 : f32 to vector<128x1xf32>
    %164 = arith.addf %160, %163 : vector<128x1xf32>
    %165 = math.rsqrt %164 : vector<128x1xf32>
    %166 = vector.broadcast %165 : vector<128x1xf32> to vector<128x32xf32>
    %167 = arith.mulf %162, %166 : vector<128x32xf32>
    %168 = vector.broadcast %147 : vector<1x32xf32> to vector<128x32xf32>
    %169 = arith.mulf %167, %168 : vector<128x32xf32>
    %170 = vector.broadcast %149 : vector<1x32xf32> to vector<128x32xf32>
    %171 = arith.addf %169, %170 : vector<128x32xf32>
    %172 = arith.truncf %171 : vector<128x32xf32> to vector<128x32xbf16>
    %c1 = arith.constant 1 : index
    %c0_78 = arith.constant 0 : index
    %c0_79 = arith.constant 0 : index
    %173 = vector.load %arg7[%c1, %c0_78, %c0_79] : memref<2x32x96xbf16, #tpu.memory_space<vmem>>, vector<1x32x96xbf16>
    %174 = vector.shape_cast %173 : vector<1x32x96xbf16> to vector<32x96xbf16>
    %cst_80 = arith.constant dense<0.000000e+00> : vector<128x96xf32>
    %175 = tpu.matmul %172, %174, %cst_80 {dimension_numbers = #tpu.dot_dimension_numbers<[1], [0], [0], [1], [0, 0, 1, 1], [], []>} : vector<128x32xbf16>, vector<32x96xbf16>, vector<128x96xf32> -> vector<128x96xf32>
    %c1_81 = arith.constant 1 : index
    %c0_82 = arith.constant 0 : index
    %c0_83 = arith.constant 0 : index
    %176 = vector.load %arg8[%c1_81, %c0_82, %c0_83] : memref<2x1x96xf32, #tpu.memory_space<vmem>>, vector<1x1x96xf32>
    %177 = vector.shape_cast %176 : vector<1x1x96xf32> to vector<1x96xf32>
    %178 = vector.broadcast %177 : vector<1x96xf32> to vector<128x96xf32>
    %179 = arith.addf %175, %178 : vector<128x96xf32>
    %180 = arith.truncf %179 : vector<128x96xf32> to vector<128x96xbf16>
    %181 = vector.extract_strided_slice %180 {offsets = [0, 0], sizes = [128, 8], strides = [1, 1]} : vector<128x96xbf16> to vector<128x8xbf16>
    %182 = vector.extract_strided_slice %180 {offsets = [0, 32], sizes = [128, 8], strides = [1, 1]} : vector<128x96xbf16> to vector<128x8xbf16>
    %183 = vector.extract_strided_slice %180 {offsets = [0, 64], sizes = [128, 8], strides = [1, 1]} : vector<128x96xbf16> to vector<128x8xbf16>
    %cst_84 = arith.constant dense<0.000000e+00> : vector<128x128xf32>
    %184 = tpu.matmul %181, %182, %cst_84 {dimension_numbers = #tpu.dot_dimension_numbers<[1], [1], [0], [0], [0, 0, 1, 0], [], []>} : vector<128x8xbf16>, vector<128x8xbf16>, vector<128x128xf32> -> vector<128x128xf32>
    %cst_85 = arith.constant 0.353553385 : f32
    %185 = vector.broadcast %cst_85 : f32 to vector<128x128xf32>
    %186 = arith.mulf %184, %185 : vector<128x128xf32>
    %187 = arith.addf %186, %0 : vector<128x128xf32>
    %cst_86 = arith.constant dense<0xFF800000> : vector<128xf32>
    %188 = vector.multi_reduction <maximumf>, %187, %cst_86 [1] : vector<128x128xf32> to vector<128xf32>
    %189 = vector.shape_cast %188 : vector<128xf32> to vector<128x1xf32>
    %190 = vector.broadcast %189 : vector<128x1xf32> to vector<128x128xf32>
    %191 = arith.subf %187, %190 : vector<128x128xf32>
    %192 = math.exp %191 : vector<128x128xf32>
    %cst_87 = arith.constant dense<0.000000e+00> : vector<128xf32>
    %193 = vector.multi_reduction <add>, %192, %cst_87 [1] : vector<128x128xf32> to vector<128xf32>
    %194 = vector.shape_cast %193 : vector<128xf32> to vector<128x1xf32>
    %195 = tpu.reciprocal %194 {approx = true} : vector<128x1xf32> -> vector<128x1xf32>
    %196 = vector.broadcast %195 : vector<128x1xf32> to vector<128x128xf32>
    %197 = arith.mulf %192, %196 : vector<128x128xf32>
    %198 = arith.truncf %197 : vector<128x128xf32> to vector<128x128xbf16>
    %cst_88 = arith.constant dense<0.000000e+00> : vector<128x8xf32>
    %199 = tpu.matmul %198, %183, %cst_88 {dimension_numbers = #tpu.dot_dimension_numbers<[1], [0], [0], [1], [0, 0, 1, 1], [], []>} : vector<128x128xbf16>, vector<128x8xbf16>, vector<128x8xf32> -> vector<128x8xf32>
    %200 = vector.extract_strided_slice %180 {offsets = [0, 8], sizes = [128, 8], strides = [1, 1]} : vector<128x96xbf16> to vector<128x8xbf16>
    %201 = vector.extract_strided_slice %180 {offsets = [0, 40], sizes = [128, 8], strides = [1, 1]} : vector<128x96xbf16> to vector<128x8xbf16>
    %202 = vector.extract_strided_slice %180 {offsets = [0, 72], sizes = [128, 8], strides = [1, 1]} : vector<128x96xbf16> to vector<128x8xbf16>
    %cst_89 = arith.constant dense<0.000000e+00> : vector<128x128xf32>
    %203 = tpu.matmul %200, %201, %cst_89 {dimension_numbers = #tpu.dot_dimension_numbers<[1], [1], [0], [0], [0, 0, 1, 0], [], []>} : vector<128x8xbf16>, vector<128x8xbf16>, vector<128x128xf32> -> vector<128x128xf32>
    %cst_90 = arith.constant 0.353553385 : f32
    %204 = vector.broadcast %cst_90 : f32 to vector<128x128xf32>
    %205 = arith.mulf %203, %204 : vector<128x128xf32>
    %206 = arith.addf %205, %0 : vector<128x128xf32>
    %cst_91 = arith.constant dense<0xFF800000> : vector<128xf32>
    %207 = vector.multi_reduction <maximumf>, %206, %cst_91 [1] : vector<128x128xf32> to vector<128xf32>
    %208 = vector.shape_cast %207 : vector<128xf32> to vector<128x1xf32>
    %209 = vector.broadcast %208 : vector<128x1xf32> to vector<128x128xf32>
    %210 = arith.subf %206, %209 : vector<128x128xf32>
    %211 = math.exp %210 : vector<128x128xf32>
    %cst_92 = arith.constant dense<0.000000e+00> : vector<128xf32>
    %212 = vector.multi_reduction <add>, %211, %cst_92 [1] : vector<128x128xf32> to vector<128xf32>
    %213 = vector.shape_cast %212 : vector<128xf32> to vector<128x1xf32>
    %214 = tpu.reciprocal %213 {approx = true} : vector<128x1xf32> -> vector<128x1xf32>
    %215 = vector.broadcast %214 : vector<128x1xf32> to vector<128x128xf32>
    %216 = arith.mulf %211, %215 : vector<128x128xf32>
    %217 = arith.truncf %216 : vector<128x128xf32> to vector<128x128xbf16>
    %cst_93 = arith.constant dense<0.000000e+00> : vector<128x8xf32>
    %218 = tpu.matmul %217, %202, %cst_93 {dimension_numbers = #tpu.dot_dimension_numbers<[1], [0], [0], [1], [0, 0, 1, 1], [], []>} : vector<128x128xbf16>, vector<128x8xbf16>, vector<128x8xf32> -> vector<128x8xf32>
    %219 = vector.extract_strided_slice %180 {offsets = [0, 16], sizes = [128, 8], strides = [1, 1]} : vector<128x96xbf16> to vector<128x8xbf16>
    %220 = vector.extract_strided_slice %180 {offsets = [0, 48], sizes = [128, 8], strides = [1, 1]} : vector<128x96xbf16> to vector<128x8xbf16>
    %221 = vector.extract_strided_slice %180 {offsets = [0, 80], sizes = [128, 8], strides = [1, 1]} : vector<128x96xbf16> to vector<128x8xbf16>
    %cst_94 = arith.constant dense<0.000000e+00> : vector<128x128xf32>
    %222 = tpu.matmul %219, %220, %cst_94 {dimension_numbers = #tpu.dot_dimension_numbers<[1], [1], [0], [0], [0, 0, 1, 0], [], []>} : vector<128x8xbf16>, vector<128x8xbf16>, vector<128x128xf32> -> vector<128x128xf32>
    %cst_95 = arith.constant 0.353553385 : f32
    %223 = vector.broadcast %cst_95 : f32 to vector<128x128xf32>
    %224 = arith.mulf %222, %223 : vector<128x128xf32>
    %225 = arith.addf %224, %0 : vector<128x128xf32>
    %cst_96 = arith.constant dense<0xFF800000> : vector<128xf32>
    %226 = vector.multi_reduction <maximumf>, %225, %cst_96 [1] : vector<128x128xf32> to vector<128xf32>
    %227 = vector.shape_cast %226 : vector<128xf32> to vector<128x1xf32>
    %228 = vector.broadcast %227 : vector<128x1xf32> to vector<128x128xf32>
    %229 = arith.subf %225, %228 : vector<128x128xf32>
    %230 = math.exp %229 : vector<128x128xf32>
    %cst_97 = arith.constant dense<0.000000e+00> : vector<128xf32>
    %231 = vector.multi_reduction <add>, %230, %cst_97 [1] : vector<128x128xf32> to vector<128xf32>
    %232 = vector.shape_cast %231 : vector<128xf32> to vector<128x1xf32>
    %233 = tpu.reciprocal %232 {approx = true} : vector<128x1xf32> -> vector<128x1xf32>
    %234 = vector.broadcast %233 : vector<128x1xf32> to vector<128x128xf32>
    %235 = arith.mulf %230, %234 : vector<128x128xf32>
    %236 = arith.truncf %235 : vector<128x128xf32> to vector<128x128xbf16>
    %cst_98 = arith.constant dense<0.000000e+00> : vector<128x8xf32>
    %237 = tpu.matmul %236, %221, %cst_98 {dimension_numbers = #tpu.dot_dimension_numbers<[1], [0], [0], [1], [0, 0, 1, 1], [], []>} : vector<128x128xbf16>, vector<128x8xbf16>, vector<128x8xf32> -> vector<128x8xf32>
    %238 = vector.extract_strided_slice %180 {offsets = [0, 24], sizes = [128, 8], strides = [1, 1]} : vector<128x96xbf16> to vector<128x8xbf16>
    %239 = vector.extract_strided_slice %180 {offsets = [0, 56], sizes = [128, 8], strides = [1, 1]} : vector<128x96xbf16> to vector<128x8xbf16>
    %240 = vector.extract_strided_slice %180 {offsets = [0, 88], sizes = [128, 8], strides = [1, 1]} : vector<128x96xbf16> to vector<128x8xbf16>
    %cst_99 = arith.constant dense<0.000000e+00> : vector<128x128xf32>
    %241 = tpu.matmul %238, %239, %cst_99 {dimension_numbers = #tpu.dot_dimension_numbers<[1], [1], [0], [0], [0, 0, 1, 0], [], []>} : vector<128x8xbf16>, vector<128x8xbf16>, vector<128x128xf32> -> vector<128x128xf32>
    %cst_100 = arith.constant 0.353553385 : f32
    %242 = vector.broadcast %cst_100 : f32 to vector<128x128xf32>
    %243 = arith.mulf %241, %242 : vector<128x128xf32>
    %244 = arith.addf %243, %0 : vector<128x128xf32>
    %cst_101 = arith.constant dense<0xFF800000> : vector<128xf32>
    %245 = vector.multi_reduction <maximumf>, %244, %cst_101 [1] : vector<128x128xf32> to vector<128xf32>
    %246 = vector.shape_cast %245 : vector<128xf32> to vector<128x1xf32>
    %247 = vector.broadcast %246 : vector<128x1xf32> to vector<128x128xf32>
    %248 = arith.subf %244, %247 : vector<128x128xf32>
    %249 = math.exp %248 : vector<128x128xf32>
    %cst_102 = arith.constant dense<0.000000e+00> : vector<128xf32>
    %250 = vector.multi_reduction <add>, %249, %cst_102 [1] : vector<128x128xf32> to vector<128xf32>
    %251 = vector.shape_cast %250 : vector<128xf32> to vector<128x1xf32>
    %252 = tpu.reciprocal %251 {approx = true} : vector<128x1xf32> -> vector<128x1xf32>
    %253 = vector.broadcast %252 : vector<128x1xf32> to vector<128x128xf32>
    %254 = arith.mulf %249, %253 : vector<128x128xf32>
    %255 = arith.truncf %254 : vector<128x128xf32> to vector<128x128xbf16>
    %cst_103 = arith.constant dense<0.000000e+00> : vector<128x8xf32>
    %256 = tpu.matmul %255, %240, %cst_103 {dimension_numbers = #tpu.dot_dimension_numbers<[1], [0], [0], [1], [0, 0, 1, 1], [], []>} : vector<128x128xbf16>, vector<128x8xbf16>, vector<128x8xf32> -> vector<128x8xf32>
    %257 = tpu.concatenate %199, %218, %237, %256 in 1 : vector<128x8xf32>, vector<128x8xf32>, vector<128x8xf32>, vector<128x8xf32> -> vector<128x32xf32>
    %258 = arith.truncf %257 : vector<128x32xf32> to vector<128x32xbf16>
    %c1_104 = arith.constant 1 : index
    %c0_105 = arith.constant 0 : index
    %c0_106 = arith.constant 0 : index
    %259 = vector.load %arg9[%c1_104, %c0_105, %c0_106] : memref<2x32x32xbf16, #tpu.memory_space<vmem>>, vector<1x32x32xbf16>
    %260 = vector.shape_cast %259 : vector<1x32x32xbf16> to vector<32x32xbf16>
    %cst_107 = arith.constant dense<0.000000e+00> : vector<128x32xf32>
    %261 = tpu.matmul %258, %260, %cst_107 {dimension_numbers = #tpu.dot_dimension_numbers<[1], [0], [0], [1], [0, 0, 1, 1], [], []>} : vector<128x32xbf16>, vector<32x32xbf16>, vector<128x32xf32> -> vector<128x32xf32>
    %c1_108 = arith.constant 1 : index
    %c0_109 = arith.constant 0 : index
    %c0_110 = arith.constant 0 : index
    %262 = vector.load %arg10[%c1_108, %c0_109, %c0_110] : memref<2x1x32xf32, #tpu.memory_space<vmem>>, vector<1x1x32xf32>
    %263 = vector.shape_cast %262 : vector<1x1x32xf32> to vector<1x32xf32>
    %264 = vector.broadcast %263 : vector<1x32xf32> to vector<128x32xf32>
    %265 = arith.addf %261, %264 : vector<128x32xf32>
    %266 = arith.addf %171, %265 : vector<128x32xf32>
    %c1_111 = arith.constant 1 : index
    %c0_112 = arith.constant 0 : index
    %c0_113 = arith.constant 0 : index
    %267 = vector.load %arg11[%c1_111, %c0_112, %c0_113] : memref<2x1x32xf32, #tpu.memory_space<vmem>>, vector<1x1x32xf32>
    %268 = vector.shape_cast %267 : vector<1x1x32xf32> to vector<1x32xf32>
    %c1_114 = arith.constant 1 : index
    %c0_115 = arith.constant 0 : index
    %c0_116 = arith.constant 0 : index
    %269 = vector.load %arg12[%c1_114, %c0_115, %c0_116] : memref<2x1x32xf32, #tpu.memory_space<vmem>>, vector<1x1x32xf32>
    %270 = vector.shape_cast %269 : vector<1x1x32xf32> to vector<1x32xf32>
    %cst_117 = arith.constant dense<0.000000e+00> : vector<128xf32>
    %271 = vector.multi_reduction <add>, %266, %cst_117 [1] : vector<128x32xf32> to vector<128xf32>
    %272 = vector.shape_cast %271 : vector<128xf32> to vector<128x1xf32>
    %cst_118 = arith.constant 3.200000e+01 : f32
    %273 = vector.broadcast %cst_118 : f32 to vector<128x1xf32>
    %274 = arith.divf %272, %273 : vector<128x1xf32>
    %275 = vector.broadcast %274 : vector<128x1xf32> to vector<128x32xf32>
    %276 = arith.subf %266, %275 : vector<128x32xf32>
    %277 = arith.mulf %276, %276 : vector<128x32xf32>
    %cst_119 = arith.constant dense<0.000000e+00> : vector<128xf32>
    %278 = vector.multi_reduction <add>, %277, %cst_119 [1] : vector<128x32xf32> to vector<128xf32>
    %279 = vector.shape_cast %278 : vector<128xf32> to vector<128x1xf32>
    %cst_120 = arith.constant 3.200000e+01 : f32
    %280 = vector.broadcast %cst_120 : f32 to vector<128x1xf32>
    %281 = arith.divf %279, %280 : vector<128x1xf32>
    %282 = vector.broadcast %274 : vector<128x1xf32> to vector<128x32xf32>
    %283 = arith.subf %266, %282 : vector<128x32xf32>
    %cst_121 = arith.constant 9.99999974E-6 : f32
    %284 = vector.broadcast %cst_121 : f32 to vector<128x1xf32>
    %285 = arith.addf %281, %284 : vector<128x1xf32>
    %286 = math.rsqrt %285 : vector<128x1xf32>
    %287 = vector.broadcast %286 : vector<128x1xf32> to vector<128x32xf32>
    %288 = arith.mulf %283, %287 : vector<128x32xf32>
    %289 = vector.broadcast %268 : vector<1x32xf32> to vector<128x32xf32>
    %290 = arith.mulf %288, %289 : vector<128x32xf32>
    %291 = vector.broadcast %270 : vector<1x32xf32> to vector<128x32xf32>
    %292 = arith.addf %290, %291 : vector<128x32xf32>
    %293 = arith.truncf %292 : vector<128x32xf32> to vector<128x32xbf16>
    %c1_122 = arith.constant 1 : index
    %c0_123 = arith.constant 0 : index
    %c0_124 = arith.constant 0 : index
    %294 = vector.load %arg13[%c1_122, %c0_123, %c0_124] : memref<2x32x128xbf16, #tpu.memory_space<vmem>>, vector<1x32x128xbf16>
    %295 = vector.shape_cast %294 : vector<1x32x128xbf16> to vector<32x128xbf16>
    %cst_125 = arith.constant dense<0.000000e+00> : vector<128x128xf32>
    %296 = tpu.matmul %293, %295, %cst_125 {dimension_numbers = #tpu.dot_dimension_numbers<[1], [0], [0], [1], [0, 0, 1, 1], [], []>} : vector<128x32xbf16>, vector<32x128xbf16>, vector<128x128xf32> -> vector<128x128xf32>
    %c1_126 = arith.constant 1 : index
    %c0_127 = arith.constant 0 : index
    %c0_128 = arith.constant 0 : index
    %297 = vector.load %arg14[%c1_126, %c0_127, %c0_128] : memref<2x1x128xf32, #tpu.memory_space<vmem>>, vector<1x1x128xf32>
    %298 = vector.shape_cast %297 : vector<1x1x128xf32> to vector<1x128xf32>
    %299 = vector.broadcast %298 : vector<1x128xf32> to vector<128x128xf32>
    %300 = arith.addf %296, %299 : vector<128x128xf32>
    %cst_129 = arith.constant 0.000000e+00 : f32
    %301 = vector.broadcast %cst_129 : f32 to vector<128x128xf32>
    %302 = arith.maximumf %300, %301 : vector<128x128xf32>
    %303 = arith.truncf %302 : vector<128x128xf32> to vector<128x128xbf16>
    %c1_130 = arith.constant 1 : index
    %c0_131 = arith.constant 0 : index
    %c0_132 = arith.constant 0 : index
    %304 = vector.load %arg15[%c1_130, %c0_131, %c0_132] : memref<2x128x32xbf16, #tpu.memory_space<vmem>>, vector<1x128x32xbf16>
    %305 = vector.shape_cast %304 : vector<1x128x32xbf16> to vector<128x32xbf16>
    %cst_133 = arith.constant dense<0.000000e+00> : vector<128x32xf32>
    %306 = tpu.matmul %303, %305, %cst_133 {dimension_numbers = #tpu.dot_dimension_numbers<[1], [0], [0], [1], [0, 0, 1, 1], [], []>} : vector<128x128xbf16>, vector<128x32xbf16>, vector<128x32xf32> -> vector<128x32xf32>
    %c1_134 = arith.constant 1 : index
    %c0_135 = arith.constant 0 : index
    %c0_136 = arith.constant 0 : index
    %307 = vector.load %arg16[%c1_134, %c0_135, %c0_136] : memref<2x1x32xf32, #tpu.memory_space<vmem>>, vector<1x1x32xf32>
    %308 = vector.shape_cast %307 : vector<1x1x32xf32> to vector<1x32xf32>
    %309 = vector.broadcast %308 : vector<1x32xf32> to vector<128x32xf32>
    %310 = arith.addf %306, %309 : vector<128x32xf32>
    %311 = arith.addf %292, %310 : vector<128x32xf32>
    %c1_137 = arith.constant 1 : index
    %c0_138 = arith.constant 0 : index
    %c0_139 = arith.constant 0 : index
    %312 = vector.load %arg17[%c1_137, %c0_138, %c0_139] : memref<2x1x32xf32, #tpu.memory_space<vmem>>, vector<1x1x32xf32>
    %313 = vector.shape_cast %312 : vector<1x1x32xf32> to vector<1x32xf32>
    %c1_140 = arith.constant 1 : index
    %c0_141 = arith.constant 0 : index
    %c0_142 = arith.constant 0 : index
    %314 = vector.load %arg18[%c1_140, %c0_141, %c0_142] : memref<2x1x32xf32, #tpu.memory_space<vmem>>, vector<1x1x32xf32>
    %315 = vector.shape_cast %314 : vector<1x1x32xf32> to vector<1x32xf32>
    %cst_143 = arith.constant dense<0.000000e+00> : vector<128xf32>
    %316 = vector.multi_reduction <add>, %311, %cst_143 [1] : vector<128x32xf32> to vector<128xf32>
    %317 = vector.shape_cast %316 : vector<128xf32> to vector<128x1xf32>
    %cst_144 = arith.constant 3.200000e+01 : f32
    %318 = vector.broadcast %cst_144 : f32 to vector<128x1xf32>
    %319 = arith.divf %317, %318 : vector<128x1xf32>
    %320 = vector.broadcast %319 : vector<128x1xf32> to vector<128x32xf32>
    %321 = arith.subf %311, %320 : vector<128x32xf32>
    %322 = arith.mulf %321, %321 : vector<128x32xf32>
    %cst_145 = arith.constant dense<0.000000e+00> : vector<128xf32>
    %323 = vector.multi_reduction <add>, %322, %cst_145 [1] : vector<128x32xf32> to vector<128xf32>
    %324 = vector.shape_cast %323 : vector<128xf32> to vector<128x1xf32>
    %cst_146 = arith.constant 3.200000e+01 : f32
    %325 = vector.broadcast %cst_146 : f32 to vector<128x1xf32>
    %326 = arith.divf %324, %325 : vector<128x1xf32>
    %327 = vector.broadcast %319 : vector<128x1xf32> to vector<128x32xf32>
    %328 = arith.subf %311, %327 : vector<128x32xf32>
    %cst_147 = arith.constant 9.99999974E-6 : f32
    %329 = vector.broadcast %cst_147 : f32 to vector<128x1xf32>
    %330 = arith.addf %326, %329 : vector<128x1xf32>
    %331 = math.rsqrt %330 : vector<128x1xf32>
    %332 = vector.broadcast %331 : vector<128x1xf32> to vector<128x32xf32>
    %333 = arith.mulf %328, %332 : vector<128x32xf32>
    %334 = vector.broadcast %313 : vector<1x32xf32> to vector<128x32xf32>
    %335 = arith.mulf %333, %334 : vector<128x32xf32>
    %336 = vector.broadcast %315 : vector<1x32xf32> to vector<128x32xf32>
    %337 = arith.addf %335, %336 : vector<128x32xf32>
    %c0_148 = arith.constant 0 : index
    %c0_149 = arith.constant 0 : index
    %338 = vector.load %arg4[%c0_148, %c0_149] : memref<2x128xf32, #tpu.memory_space<vmem>>, vector<2x128xf32>
    %cst_150 = arith.constant dense<0.000000e+00> : vector<2x32xf32>
    %339 = tpu.matmul %338, %337, %cst_150 {dimension_numbers = #tpu.dot_dimension_numbers<[1], [0], [0], [1], [0, 0, 1, 1], [], []>} : vector<2x128xf32>, vector<128x32xf32>, vector<2x32xf32> -> vector<2x32xf32>
    %c0_151 = arith.constant 0 : index
    %c0_152 = arith.constant 0 : index
    %340 = vector.load %arg5[%c0_151, %c0_152] : memref<2x128xf32, #tpu.memory_space<vmem>>, vector<2x128xf32>
    %cst_153 = arith.constant dense<0.000000e+00> : vector<2x32xf32>
    %341 = tpu.matmul %340, %337, %cst_153 {dimension_numbers = #tpu.dot_dimension_numbers<[1], [0], [0], [1], [0, 0, 1, 1], [], []>} : vector<2x128xf32>, vector<128x32xf32>, vector<2x32xf32> -> vector<2x32xf32>
    %c0_154 = arith.constant 0 : index
    %c0_155 = arith.constant 0 : index
    %342 = vector.load %arg21[%c0_154, %c0_155] : memref<1x32xf32, #tpu.memory_space<vmem>>, vector<1x32xf32>
    %343 = vector.broadcast %342 : vector<1x32xf32> to vector<2x32xf32>
    %344 = arith.mulf %339, %343 : vector<2x32xf32>
    %cst_156 = arith.constant dense<0.000000e+00> : vector<2xf32>
    %345 = vector.multi_reduction <add>, %344, %cst_156 [1] : vector<2x32xf32> to vector<2xf32>
    %346 = vector.shape_cast %345 : vector<2xf32> to vector<2x1xf32>
    %c0_157 = arith.constant 0 : index
    %c0_158 = arith.constant 0 : index
    %347 = vector.load %arg22[%c0_157, %c0_158] : memref<1x1xf32, #tpu.memory_space<vmem>>, vector<1x1xf32>
    %348 = vector.broadcast %347 : vector<1x1xf32> to vector<2x1xf32>
    %349 = arith.addf %346, %348 : vector<2x1xf32>
    %350 = math.tanh %349 : vector<2x1xf32>
    %c0_159 = arith.constant 0 : index
    %c0_160 = arith.constant 0 : index
    %351 = vector.load %arg24[%c0_159, %c0_160] : memref<2x1xf32, #tpu.memory_space<vmem>>, vector<2x1xf32>
    tpu.vector_store %arg24[%c0_159, %c0_160], %350 {strides = array<i32>} : memref<2x1xf32, #tpu.memory_space<vmem>>, vector<2x1xf32>,
    %c0_161 = arith.constant 0 : index
    %c0_162 = arith.constant 0 : index
    %352 = vector.load %arg19[%c0_161, %c0_162] : memref<32x128xf32, #tpu.memory_space<vmem>>, vector<32x128xf32>
    %cst_163 = arith.constant dense<0.000000e+00> : vector<2x128xf32>
    %353 = tpu.matmul %341, %352, %cst_163 {dimension_numbers = #tpu.dot_dimension_numbers<[1], [0], [0], [1], [0, 0, 1, 1], [], []>} : vector<2x32xf32>, vector<32x128xf32>, vector<2x128xf32> -> vector<2x128xf32>
    %c0_164 = arith.constant 0 : index
    %c0_165 = arith.constant 0 : index
    %354 = vector.load %arg20[%c0_164, %c0_165] : memref<1x128xf32, #tpu.memory_space<vmem>>, vector<1x128xf32>
    %355 = vector.broadcast %354 : vector<1x128xf32> to vector<2x128xf32>
    %356 = arith.addf %353, %355 : vector<2x128xf32>
    %c0_166 = arith.constant 0 : index
    %c0_167 = arith.constant 0 : index
    %357 = vector.load %arg23[%c0_166, %c0_167] : memref<2x128xf32, #tpu.memory_space<vmem>>, vector<2x128xf32>
    tpu.vector_store %arg23[%c0_166, %c0_167], %356 {strides = array<i32>} : memref<2x128xf32, #tpu.memory_space<vmem>>, vector<2x128xf32>,
    return
  }
  func.func @transform_0(%arg0: i32) -> (i32, i32) {
    %c0_i32 = arith.constant 0 : i32
    %c0_i32_0 = arith.constant 0 : i32
    %c0_i32_1 = arith.constant 0 : i32
    return %c0_i32, %c0_i32_0 : i32, i32
  }
  func.func @transform_1(%arg0: i32) -> (i32, i32) {
    %c0_i32 = arith.constant 0 : i32
    %c0_i32_0 = arith.constant 0 : i32
    %c0_i32_1 = arith.constant 0 : i32
    return %c0_i32, %c0_i32_0 : i32, i32
  }
  func.func @transform_2(%arg0: i32) -> (i32, i32) {
    %c0_i32 = arith.constant 0 : i32
    %c0_i32_0 = arith.constant 0 : i32
    %c0_i32_1 = arith.constant 0 : i32
    return %c0_i32, %c0_i32_0 : i32, i32
  }
  func.func @transform_3(%arg0: i32) -> (i32, i32) {
    %c0_i32 = arith.constant 0 : i32
    %c0_i32_0 = arith.constant 0 : i32
    %c0_i32_1 = arith.constant 0 : i32
    return %c0_i32, %c0_i32_0 : i32, i32
  }
  func.func @transform_4(%arg0: i32) -> (i32, i32) {
    %c0_i32 = arith.constant 0 : i32
    %c0_i32_0 = arith.constant 0 : i32
    %c0_i32_1 = arith.constant 0 : i32
    return %c0_i32, %c0_i32_0 : i32, i32
  }
  func.func @transform_5(%arg0: i32) -> (i32, i32) {
    %c0_i32 = arith.constant 0 : i32
    %c0_i32_0 = arith.constant 0 : i32
    %c0_i32_1 = arith.constant 0 : i32
    return %c0_i32, %c0_i32_0 : i32, i32
  }
  func.func @transform_6(%arg0: i32) -> (i32, i32, i32) {
    %c0_i32 = arith.constant 0 : i32
    %c0_i32_0 = arith.constant 0 : i32
    %c0_i32_1 = arith.constant 0 : i32
    %c0_i32_2 = arith.constant 0 : i32
    return %c0_i32, %c0_i32_0, %c0_i32_1 : i32, i32, i32
  }
  func.func @transform_7(%arg0: i32) -> (i32, i32, i32) {
    %c0_i32 = arith.constant 0 : i32
    %c0_i32_0 = arith.constant 0 : i32
    %c0_i32_1 = arith.constant 0 : i32
    %c0_i32_2 = arith.constant 0 : i32
    return %c0_i32, %c0_i32_0, %c0_i32_1 : i32, i32, i32
  }
  func.func @transform_8(%arg0: i32) -> (i32, i32, i32) {
    %c0_i32 = arith.constant 0 : i32
    %c0_i32_0 = arith.constant 0 : i32
    %c0_i32_1 = arith.constant 0 : i32
    %c0_i32_2 = arith.constant 0 : i32
    return %c0_i32, %c0_i32_0, %c0_i32_1 : i32, i32, i32
  }
  func.func @transform_9(%arg0: i32) -> (i32, i32, i32) {
    %c0_i32 = arith.constant 0 : i32
    %c0_i32_0 = arith.constant 0 : i32
    %c0_i32_1 = arith.constant 0 : i32
    %c0_i32_2 = arith.constant 0 : i32
    return %c0_i32, %c0_i32_0, %c0_i32_1 : i32, i32, i32
  }
  func.func @transform_10(%arg0: i32) -> (i32, i32, i32) {
    %c0_i32 = arith.constant 0 : i32
    %c0_i32_0 = arith.constant 0 : i32
    %c0_i32_1 = arith.constant 0 : i32
    %c0_i32_2 = arith.constant 0 : i32
    return %c0_i32, %c0_i32_0, %c0_i32_1 : i32, i32, i32
  }
  func.func @transform_11(%arg0: i32) -> (i32, i32, i32) {
    %c0_i32 = arith.constant 0 : i32
    %c0_i32_0 = arith.constant 0 : i32
    %c0_i32_1 = arith.constant 0 : i32
    %c0_i32_2 = arith.constant 0 : i32
    return %c0_i32, %c0_i32_0, %c0_i32_1 : i32, i32, i32
  }
  func.func @transform_12(%arg0: i32) -> (i32, i32, i32) {
    %c0_i32 = arith.constant 0 : i32
    %c0_i32_0 = arith.constant 0 : i32
    %c0_i32_1 = arith.constant 0 : i32
    %c0_i32_2 = arith.constant 0 : i32
    return %c0_i32, %c0_i32_0, %c0_i32_1 : i32, i32, i32
  }
  func.func @transform_13(%arg0: i32) -> (i32, i32, i32) {
    %c0_i32 = arith.constant 0 : i32
    %c0_i32_0 = arith.constant 0 : i32
    %c0_i32_1 = arith.constant 0 : i32
    %c0_i32_2 = arith.constant 0 : i32
    return %c0_i32, %c0_i32_0, %c0_i32_1 : i32, i32, i32
  }
  func.func @transform_14(%arg0: i32) -> (i32, i32, i32) {
    %c0_i32 = arith.constant 0 : i32
    %c0_i32_0 = arith.constant 0 : i32
    %c0_i32_1 = arith.constant 0 : i32
    %c0_i32_2 = arith.constant 0 : i32
    return %c0_i32, %c0_i32_0, %c0_i32_1 : i32, i32, i32
  }
  func.func @transform_15(%arg0: i32) -> (i32, i32, i32) {
    %c0_i32 = arith.constant 0 : i32
    %c0_i32_0 = arith.constant 0 : i32
    %c0_i32_1 = arith.constant 0 : i32
    %c0_i32_2 = arith.constant 0 : i32
    return %c0_i32, %c0_i32_0, %c0_i32_1 : i32, i32, i32
  }
  func.func @transform_16(%arg0: i32) -> (i32, i32, i32) {
    %c0_i32 = arith.constant 0 : i32
    %c0_i32_0 = arith.constant 0 : i32
    %c0_i32_1 = arith.constant 0 : i32
    %c0_i32_2 = arith.constant 0 : i32
    return %c0_i32, %c0_i32_0, %c0_i32_1 : i32, i32, i32
  }
  func.func @transform_17(%arg0: i32) -> (i32, i32, i32) {
    %c0_i32 = arith.constant 0 : i32
    %c0_i32_0 = arith.constant 0 : i32
    %c0_i32_1 = arith.constant 0 : i32
    %c0_i32_2 = arith.constant 0 : i32
    return %c0_i32, %c0_i32_0, %c0_i32_1 : i32, i32, i32
  }
  func.func @transform_18(%arg0: i32) -> (i32, i32) {
    %c0_i32 = arith.constant 0 : i32
    %c0_i32_0 = arith.constant 0 : i32
    %c0_i32_1 = arith.constant 0 : i32
    return %c0_i32, %c0_i32_0 : i32, i32
  }
  func.func @transform_19(%arg0: i32) -> (i32, i32) {
    %c0_i32 = arith.constant 0 : i32
    %c0_i32_0 = arith.constant 0 : i32
    %c0_i32_1 = arith.constant 0 : i32
    return %c0_i32, %c0_i32_0 : i32, i32
  }
  func.func @transform_20(%arg0: i32) -> (i32, i32) {
    %c0_i32 = arith.constant 0 : i32
    %c0_i32_0 = arith.constant 0 : i32
    %c0_i32_1 = arith.constant 0 : i32
    return %c0_i32, %c0_i32_0 : i32, i32
  }
  func.func @transform_21(%arg0: i32) -> (i32, i32) {
    %c0_i32 = arith.constant 0 : i32
    %c0_i32_0 = arith.constant 0 : i32
    %c0_i32_1 = arith.constant 0 : i32
    return %c0_i32, %c0_i32_0 : i32, i32
  }
  func.func @transform_22(%arg0: i32) -> (i32, i32) {
    %c0_i32 = arith.constant 0 : i32
    %c0_i32_0 = arith.constant 0 : i32
    %c0_i32_1 = arith.constant 0 : i32
    return %c0_i32, %c0_i32_0 : i32, i32
  }
  func.func @transform_23(%arg0: i32) -> (i32, i32) {
    %c0_i32 = arith.constant 0 : i32
    %c0_i32_0 = arith.constant 0 : i32
    %c0_i32_1 = arith.constant 0 : i32
    return %c0_i32, %c0_i32_0 : i32, i32
  }
}

</mosaic_0001>

<llo_original>
// kernel: govit_forward.1
$region0: #{govit_forward.1}
  #allocation0 [shape = 'u32[]', space=smem, size = 0x4, offset = 0x4, fixed_abs, tag = 'smem constant byte address 0x4 - core index']
  #allocation1 [shape = 'u32[72,128]{1,0:T(1,128)}', space=vmem, size = 0x9000, scoped, tag = 'internal scratch']
  #allocation2 [shape = 'f32[1,1]{1,0:T(1,128)S(1)}', space=vmem, size = 0x200, scoped, tag = 'scoped memory for govit_forward.1']
  %s0 = inlined_call_operand.vmem [shape: bf16[128,32], index: 0, kind: input, shape index: {}]
  %s1 = inlined_call_operand.vmem [shape: f32[128,32], index: 1, kind: input, shape index: {}]
  %s2 = inlined_call_operand.vmem [shape: f32[128,128], index: 2, kind: input, shape index: {}]
  %s3 = inlined_call_operand.vmem [shape: f32[2,128], index: 3, kind: input, shape index: {}]
  %s4 = inlined_call_operand.vmem [shape: f32[2,128], index: 4, kind: input, shape index: {}]
  %s5 = inlined_call_operand.vmem [shape: bf16[32,32], index: 5, kind: input, shape index: {}]
  %s6 = inlined_call_operand.vmem [shape: bf16[2,32,96], index: 6, kind: input, shape index: {}]
  %s7 = inlined_call_operand.vmem [shape: f32[2,1,96], index: 7, kind: input, shape index: {}]
  %s8 = inlined_call_operand.vmem [shape: bf16[2,32,32], index: 8, kind: input, shape index: {}]
  %s9 = inlined_call_operand.vmem [shape: f32[2,1,32], index: 9, kind: input, shape index: {}]
  %s10 = inlined_call_operand.vmem [shape: f32[2,1,32], index: 10, kind: input, shape index: {}]
  %s11 = inlined_call_operand.vmem [shape: f32[2,1,32], index: 11, kind: input, shape index: {}]
  %s12 = inlined_call_operand.vmem [shape: bf16[2,32,128], index: 12, kind: input, shape index: {}]
  %s13 = inlined_call_operand.vmem [shape: f32[2,1,128], index: 13, kind: input, shape index: {}]
  %s14 = inlined_call_operand.vmem [shape: bf16[2,128,32], index: 14, kind: input, shape index: {}]
  %s15 = inlined_call_operand.vmem [shape: f32[2,1,32], index: 15, kind: input, shape index: {}]
  %s16 = inlined_call_operand.vmem [shape: f32[2,1,32], index: 16, kind: input, shape index: {}]
  %s17 = inlined_call_operand.vmem [shape: f32[2,1,32], index: 17, kind: input, shape index: {}]
  %s18 = inlined_call_operand.vmem [shape: f32[32,128], index: 18, kind: input, shape index: {}]
  %s19 = inlined_call_operand.vmem [shape: f32[1,128], index: 19, kind: input, shape index: {}]
  %s20 = inlined_call_operand.vmem [shape: f32[1,32], index: 20, kind: input, shape index: {}]
  %s21 = inlined_call_operand.<no memory space> [shape: f32[1,1], index: 21, kind: input, shape index: {}]
  %s22 = inlined_call_operand.hbm [shape: f32[2,128], index: 22, kind: output, shape index: {0}]
  %s23 = inlined_call_operand.vmem [shape: f32[2,1], index: 23, kind: output, shape index: {1}]
  %24 = xla_tuple %s22, %s23
  %s25 = sld [smem:[#allocation0]]
  $region106: #{govit_forward.1} parent=0
    _
  %s27 = ssub.s32 1, %s25
  %s28 = scalar_select 0, %s27, %s25
  %v29 = vstv %s21
  %30 = vst [vmem:[#allocation2] sm:$0x1] %v29
  $region1: #{govit_forward.1} parent=0
    #allocation3 [shape = 'u8[1024]{0}', space=vmem, size = 0x400, scoped, tag = 'output window, operand 0, single buffered']
    #allocation4 [shape = 's32[1]{0}', space=sflag, size = 0x4, scoped, tag = 'scoped memory for govit_forward.1']
    %31 = vsyncpa [#allocation4], 0
    // Predicated region
    $region2: #{govit_forward.1} parent=1 // pred_check
      _
    $region3: #{govit_forward.1} parent=1 // pred_check_branch
      %33 = sbr.rel (0) target = $region5
    $region4: #{govit_forward.1} parent=1 // pred_region
      _
    $region5: #{govit_forward.1} parent=1 // pred_fallthru
      _
    // Predicated region
    $region6: #{govit_forward.1} parent=1 // pred_check
      _
    $region7: #{govit_forward.1} parent=1 // pred_check_branch
      %35 = sbr.rel (0) target = $region9
    $region8: #{govit_forward.1} parent=1 // pred_region
      _
    $region9: #{govit_forward.1} parent=1 // pred_fallthru
      _
    // Predicated region
    $region10: #{govit_forward.1} parent=1 // pred_check
      _
    $region11: #{govit_forward.1} parent=1 // pred_check_branch
      %37 = sbr.rel (0) target = $region13
    $region12: #{govit_forward.1} parent=1 // pred_region
      _
    $region13: #{govit_forward.1} parent=1 // pred_fallthru
      _
    // Predicated region
    $region14: #{govit_forward.1} parent=1 // pred_check
      _
    $region15: #{govit_forward.1} parent=1 // pred_check_branch
      %39 = sbr.rel (0) target = $region17
    $region16: #{govit_forward.1} parent=1 // pred_region
      _
    $region17: #{govit_forward.1} parent=1 // pred_fallthru
      _
    // Predicated region
    $region18: #{govit_forward.1} parent=1 // pred_check
      _
    $region19: #{govit_forward.1} parent=1 // pred_check_branch
      %41 = sbr.rel (0) target = $region21
    $region20: #{govit_forward.1} parent=1 // pred_region
      _
    $region21: #{govit_forward.1} parent=1 // pred_fallthru
      _
    // Predicated region
    $region22: #{govit_forward.1} parent=1 // pred_check
      _
    $region23: #{govit_forward.1} parent=1 // pred_check_branch
      %43 = sbr.rel (0) target = $region25
    $region24: #{govit_forward.1} parent=1 // pred_region
      _
    $region25: #{govit_forward.1} parent=1 // pred_fallthru
      _
    // Predicated region
    $region26: #{govit_forward.1} parent=1 // pred_check
      _
    $region27: #{govit_forward.1} parent=1 // pred_check_branch
      %45 = sbr.rel (0) target = $region29
    $region28: #{govit_forward.1} parent=1 // pred_region
      _
    $region29: #{govit_forward.1} parent=1 // pred_fallthru
      _
    // Predicated region
    $region30: #{govit_forward.1} parent=1 // pred_check
      _
    $region31: #{govit_forward.1} parent=1 // pred_check_branch
      %47 = sbr.rel (0) target = $region33
    $region32: #{govit_forward.1} parent=1 // pred_region
      _
    $region33: #{govit_forward.1} parent=1 // pred_fallthru
      _
    // Predicated region
    $region34: #{govit_forward.1} parent=1 // pred_check
      _
    $region35: #{govit_forward.1} parent=1 // pred_check_branch
      %49 = sbr.rel (0) target = $region37
    $region36: #{govit_forward.1} parent=1 // pred_region
      _
    $region37: #{govit_forward.1} parent=1 // pred_fallthru
      _
    // Predicated region
    $region38: #{govit_forward.1} parent=1 // pred_check
      _
    $region39: #{govit_forward.1} parent=1 // pred_check_branch
      %51 = sbr.rel (0) target = $region41
    $region40: #{govit_forward.1} parent=1 // pred_region
      _
    $region41: #{govit_forward.1} parent=1 // pred_fallthru
      _
    // Predicated region
    $region42: #{govit_forward.1} parent=1 // pred_check
      _
    $region43: #{govit_forward.1} parent=1 // pred_check_branch
      %53 = sbr.rel (0) target = $region45
    $region44: #{govit_forward.1} parent=1 // pred_region
      _
    $region45: #{govit_forward.1} parent=1 // pred_fallthru
      _
    // Predicated region
    $region46: #{govit_forward.1} parent=1 // pred_check
      _
    $region47: #{govit_forward.1} parent=1 // pred_check_branch
      %55 = sbr.rel (0) target = $region49
    $region48: #{govit_forward.1} parent=1 // pred_region
      _
    $region49: #{govit_forward.1} parent=1 // pred_fallthru
      _
    // Predicated region
    $region50: #{govit_forward.1} parent=1 // pred_check
      _
    $region51: #{govit_forward.1} parent=1 // pred_check_branch
      %57 = sbr.rel (0) target = $region53
    $region52: #{govit_forward.1} parent=1 // pred_region
      _
    $region53: #{govit_forward.1} parent=1 // pred_fallthru
      _
    // Predicated region
    $region54: #{govit_forward.1} parent=1 // pred_check
      _
    $region55: #{govit_forward.1} parent=1 // pred_check_branch
      %59 = sbr.rel (0) target = $region57
    $region56: #{govit_forward.1} parent=1 // pred_region
      _
    $region57: #{govit_forward.1} parent=1 // pred_fallthru
      _
    // Predicated region
    $region58: #{govit_forward.1} parent=1 // pred_check
      _
    $region59: #{govit_forward.1} parent=1 // pred_check_branch
      %61 = sbr.rel (0) target = $region61
    $region60: #{govit_forward.1} parent=1 // pred_region
      _
    $region61: #{govit_forward.1} parent=1 // pred_fallthru
      _
    // Predicated region
    $region62: #{govit_forward.1} parent=1 // pred_check
      _
    $region63: #{govit_forward.1} parent=1 // pred_check_branch
      %63 = sbr.rel (0) target = $region65
    $region64: #{govit_forward.1} parent=1 // pred_region
      _
    $region65: #{govit_forward.1} parent=1 // pred_fallthru
      _
    // Predicated region
    $region66: #{govit_forward.1} parent=1 // pred_check
      _
    $region67: #{govit_forward.1} parent=1 // pred_check_branch
      %65 = sbr.rel (0) target = $region69
    $region68: #{govit_forward.1} parent=1 // pred_region
      _
    $region69: #{govit_forward.1} parent=1 // pred_fallthru
      _
    // Predicated region
    $region70: #{govit_forward.1} parent=1 // pred_check
      _
    $region71: #{govit_forward.1} parent=1 // pred_check_branch
      %67 = sbr.rel (0) target = $region73
    $region72: #{govit_forward.1} parent=1 // pred_region
      _
    $region73: #{govit_forward.1} parent=1 // pred_fallthru
      _
    // Predicated region
    $region74: #{govit_forward.1} parent=1 // pred_check
      _
    $region75: #{govit_forward.1} parent=1 // pred_check_branch
      %69 = sbr.rel (0) target = $region77
    $region76: #{govit_forward.1} parent=1 // pred_region
      _
    $region77: #{govit_forward.1} parent=1 // pred_fallthru
      _
    // Predicated region
    $region78: #{govit_forward.1} parent=1 // pred_check
      _
    $region79: #{govit_forward.1} parent=1 // pred_check_branch
      %71 = sbr.rel (0) target = $region81
    $region80: #{govit_forward.1} parent=1 // pred_region
      _
    $region81: #{govit_forward.1} parent=1 // pred_fallthru
      _
    // Predicated region
    $region82: #{govit_forward.1} parent=1 // pred_check
      _
    $region83: #{govit_forward.1} parent=1 // pred_check_branch
      %73 = sbr.rel (0) target = $region85
    $region84: #{govit_forward.1} parent=1 // pred_region
      _
    $region85: #{govit_forward.1} parent=1 // pred_fallthru
      _
    // Predicated region
    $region86: #{govit_forward.1} parent=1 // pred_check
      _
    $region87: #{govit_forward.1} parent=1 // pred_check_branch
      %75 = sbr.rel (0) target = $region89
    $region88: #{govit_forward.1} parent=1 // pred_region
      _
    $region89: #{govit_forward.1} parent=1 // pred_fallthru
      _
    %v77 = vld [vmem:[%s2] sm:$0xff]
    %v78 = vld [vmem:[%s2 + $0x8] sm:$0xff]
    %v79 = vld [vmem:[%s2 + $0x10] sm:$0xff]
    %v80 = vld [vmem:[%s2 + $0x18] sm:$0xff]
    %v81 = vld [vmem:[%s2 + $0x20] sm:$0xff]
    %v82 = vld [vmem:[%s2 + $0x28] sm:$0xff]
    %v83 = vld [vmem:[%s2 + $0x30] sm:$0xff]
    %v84 = vld [vmem:[%s2 + $0x38] sm:$0xff]
    %v85 = vld [vmem:[%s2 + $0x40] sm:$0xff]
    %v86 = vld [vmem:[%s2 + $0x48] sm:$0xff]
    %v87 = vld [vmem:[%s2 + $0x50] sm:$0xff]
    %v88 = vld [vmem:[%s2 + $0x58] sm:$0xff]
    %v89 = vld [vmem:[%s2 + $0x60] sm:$0xff]
    %v90 = vld [vmem:[%s2 + $0x68] sm:$0xff]
    %v91 = vld [vmem:[%s2 + $0x70] sm:$0xff]
    %v92 = vld [vmem:[%s2 + $0x78] sm:$0xff]
    %v93 = vld [vmem:[%s0] sm:$0xf]
    %v94 = vld [vmem:[%s0 + $0x4] sm:$0xf]
    %v95 = vld [vmem:[%s0 + $0x8] sm:$0xf]
    %v96 = vld [vmem:[%s0 + $0xc] sm:$0xf]
    %v97 = vld [vmem:[%s0 + $0x10] sm:$0xf]
    %v98 = vld [vmem:[%s0 + $0x14] sm:$0xf]
    %v99 = vld [vmem:[%s0 + $0x18] sm:$0xf]
    %v100 = vld [vmem:[%s0 + $0x1c] sm:$0xf]
    %v101 = vld [vmem:[%s0 + $0x20] sm:$0xf]
    %v102 = vld [vmem:[%s0 + $0x24] sm:$0xf]
    %v103 = vld [vmem:[%s0 + $0x28] sm:$0xf]
    %v104 = vld [vmem:[%s0 + $0x2c] sm:$0xf]
    %v105 = vld [vmem:[%s0 + $0x30] sm:$0xf]
    %v106 = vld [vmem:[%s0 + $0x34] sm:$0xf]
    %v107 = vld [vmem:[%s0 + $0x38] sm:$0xf]
    %v108 = vld [vmem:[%s0 + $0x3c] sm:$0xf]
    %v109 = vld [vmem:[%s5] sm:$0xf]
    %v110 = vld [vmem:[%s5 + $0x4] sm:$0xf]
    %v111 = vld [vmem:[%s5 + $0x8] sm:$0xf]
    %v112 = vld [vmem:[%s5 + $0xc] sm:$0xf]
    %v113 = vld [vmem:[%s1] sm:$0xff]
    %v114 = vld [vmem:[%s1 + $0x8] sm:$0xff]
    %v115 = vld [vmem:[%s1 + $0x10] sm:$0xff]
    %v116 = vld [vmem:[%s1 + $0x18] sm:$0xff]
    %v117 = vld [vmem:[%s1 + $0x20] sm:$0xff]
    %v118 = vld [vmem:[%s1 + $0x28] sm:$0xff]
    %v119 = vld [vmem:[%s1 + $0x30] sm:$0xff]
    %v120 = vld [vmem:[%s1 + $0x38] sm:$0xff]
    %v121 = vld [vmem:[%s1 + $0x40] sm:$0xff]
    %v122 = vld [vmem:[%s1 + $0x48] sm:$0xff]
    %v123 = vld [vmem:[%s1 + $0x50] sm:$0xff]
    %v124 = vld [vmem:[%s1 + $0x58] sm:$0xff]
    %v125 = vld [vmem:[%s1 + $0x60] sm:$0xff]
    %v126 = vld [vmem:[%s1 + $0x68] sm:$0xff]
    %v127 = vld [vmem:[%s1 + $0x70] sm:$0xff]
    %v128 = vld [vmem:[%s1 + $0x78] sm:$0xff]
    %v145 = vunpack.c.l.b16 %v93
    %v146 = vunpack.c.l.b16 %v94
    %v147 = vunpack.c.l.b16 %v95
    %v148 = vunpack.c.l.b16 %v96
    %v149 = vunpack.c.l.b16 %v97
    %v150 = vunpack.c.l.b16 %v98
    %v151 = vunpack.c.l.b16 %v99
    %v152 = vunpack.c.l.b16 %v100
    %v153 = vunpack.c.l.b16 %v101
    %v154 = vunpack.c.l.b16 %v102
    %v155 = vunpack.c.l.b16 %v103
    %v156 = vunpack.c.l.b16 %v104
    %v157 = vunpack.c.l.b16 %v105
    %v158 = vunpack.c.l.b16 %v106
    %v159 = vunpack.c.l.b16 %v107
    %v160 = vunpack.c.l.b16 %v108
    %v161 = vpack.c.b16 %v146, %v145
    %v162 = vpack.c.b16 %v148, %v147
    %v163 = vpack.c.b16 %v150, %v149
    %v164 = vpack.c.b16 %v152, %v151
    %v165 = vpack.c.b16 %v154, %v153
    %v166 = vpack.c.b16 %v156, %v155
    %v167 = vpack.c.b16 %v158, %v157
    %v168 = vpack.c.b16 %v160, %v159
    %v173 = vunpack.c.l.b16 %v109
    %v174 = vunpack.c.l.b16 %v110
    %v175 = vunpack.c.l.b16 %v111
    %v176 = vunpack.c.l.b16 %v112
    %v177 = vpack.c.b16 %v174, %v173
    %v178 = vpack.c.b16 %v176, %v175
    %vm181 = vcmask 261120
    %v183 = vsel %vm181, %v161, 0
    %v186 = vsel %vm181, %v162, 0
    %v189 = vsel %vm181, %v163, 0
    %v192 = vsel %vm181, %v164, 0
    %v195 = vsel %vm181, %v165, 0
    %v198 = vsel %vm181, %v166, 0
    %v201 = vsel %vm181, %v167, 0
    %v204 = vsel %vm181, %v168, 0
    %206 = vmatpush.bf16.msra.mxu0 0
    %207 = vmatpush.bf16.msra.mxu0 0
    %208 = vmatpush.bf16.msra.mxu0 0
    %209 = vmatpush.bf16.msra.mxu0 0
    %210 = vmatpush.bf16.msra.mxu0 0
    %211 = vmatpush.bf16.msra.mxu0 0
    %212 = vmatpush.bf16.msra.mxu0 %v178
    %213 = vmatpush.bf16.msra.mxu0 %v177
    %214 = vmatmul.bf16.gmra.mxu0 %v183
    %v215 = vpop.f32.mrf.mxu0
    %v216 = vadd.f32 %v113, %v215
    %v217 = vpop.f32.mrf.mxu0
    %v218 = vadd.f32 %v114, %v217
    %219 = vmatmul.bf16.gmra.mxu0 %v186
    %v220 = vpop.f32.mrf.mxu0
    %v221 = vadd.f32 %v115, %v220
    %v222 = vpop.f32.mrf.mxu0
    %v223 = vadd.f32 %v116, %v222
    %224 = vmatmul.bf16.gmra.mxu0 %v189
    %v225 = vpop.f32.mrf.mxu0
    %v226 = vadd.f32 %v117, %v225
    %v227 = vpop.f32.mrf.mxu0
    %v228 = vadd.f32 %v118, %v227
    %229 = vmatmul.bf16.gmra.mxu0 %v192
    %v230 = vpop.f32.mrf.mxu0
    %v231 = vadd.f32 %v119, %v230
    %v232 = vpop.f32.mrf.mxu0
    %v233 = vadd.f32 %v120, %v232
    %234 = vmatmul.bf16.gmra.mxu0 %v195
    %v235 = vpop.f32.mrf.mxu0
    %v236 = vadd.f32 %v121, %v235
    %v237 = vpop.f32.mrf.mxu0
    %v238 = vadd.f32 %v122, %v237
    %239 = vmatmul.bf16.gmra.mxu0 %v198
    %v240 = vpop.f32.mrf.mxu0
    %v241 = vadd.f32 %v123, %v240
    %v242 = vpop.f32.mrf.mxu0
    %v243 = vadd.f32 %v124, %v242
    %244 = vmatmul.bf16.gmra.mxu0 %v201
    %v245 = vpop.f32.mrf.mxu0
    %v246 = vadd.f32 %v125, %v245
    %v247 = vpop.f32.mrf.mxu0
    %v248 = vadd.f32 %v126, %v247
    %249 = vmatmul.bf16.gmra.mxu0 %v204
    %v250 = vpop.f32.mrf.mxu0
    %v251 = vadd.f32 %v127, %v250
    %v252 = vpop.f32.mrf.mxu0
    %v253 = vadd.f32 %v128, %v252
    %254 = vdwg.mxu0
    %v255 = vpack.c.bf16 %v218, %v216
    %v256 = vpack.c.bf16 %v223, %v221
    %v257 = vpack.c.bf16 %v228, %v226
    %v258 = vpack.c.bf16 %v233, %v231
    %v259 = vpack.c.bf16 %v238, %v236
    %v260 = vpack.c.bf16 %v243, %v241
    %v261 = vpack.c.bf16 %v248, %v246
    %v262 = vpack.c.bf16 %v253, %v251
    %v263 = vld [vmem:[%s6] sm:$0xf]
    %v264 = vld [vmem:[%s6 + $0x4] sm:$0xf]
    %v265 = vld [vmem:[%s6 + $0x8] sm:$0xf]
    %v266 = vld [vmem:[%s6 + $0xc] sm:$0xf]
    %v267 = vld [vmem:[%s7] sm:$0x1]
    %v269 = vperm.slane %v267, 0
    %v275 = vunpack.c.l.b16 %v263
    %v276 = vunpack.c.l.b16 %v264
    %v277 = vunpack.c.l.b16 %v265
    %v278 = vunpack.c.l.b16 %v266
    %v279 = vpack.c.b16 %v276, %v275
    %v280 = vpack.c.b16 %v278, %v277
    %v284 = vsel %vm181, %v255, 0
    %v287 = vsel %vm181, %v256, 0
    %v290 = vsel %vm181, %v257, 0
    %v293 = vsel %vm181, %v258, 0
    %v296 = vsel %vm181, %v259, 0
    %v299 = vsel %vm181, %v260, 0
    %v302 = vsel %vm181, %v261, 0
    %v305 = vsel %vm181, %v262, 0
    %307 = vmatpush.bf16.msra.mxu0 0
    %308 = vmatpush.bf16.msra.mxu0 0
    %309 = vmatpush.bf16.msra.mxu0 0
    %310 = vmatpush.bf16.msra.mxu0 0
    %311 = vmatpush.bf16.msra.mxu0 0
    %312 = vmatpush.bf16.msra.mxu0 0
    %313 = vmatpush.bf16.msra.mxu0 %v280
    %314 = vmatpush.bf16.msra.mxu0 %v279
    %315 = vmatmul.bf16.gmra.mxu0 %v284
    %v316 = vpop.f32.mrf.mxu0
    %v317 = vadd.f32 %v269, %v316
    %v318 = vpop.f32.mrf.mxu0
    %v319 = vadd.f32 %v269, %v318
    %320 = vmatmul.bf16.gmra.mxu0 %v287
    %v321 = vpop.f32.mrf.mxu0
    %v322 = vadd.f32 %v269, %v321
    %v323 = vpop.f32.mrf.mxu0
    %v324 = vadd.f32 %v269, %v323
    %325 = vmatmul.bf16.gmra.mxu0 %v290
    %v326 = vpop.f32.mrf.mxu0
    %v327 = vadd.f32 %v269, %v326
    %v328 = vpop.f32.mrf.mxu0
    %v329 = vadd.f32 %v269, %v328
    %330 = vmatmul.bf16.gmra.mxu0 %v293
    %v331 = vpop.f32.mrf.mxu0
    %v332 = vadd.f32 %v269, %v331
    %v333 = vpop.f32.mrf.mxu0
    %v334 = vadd.f32 %v269, %v333
    %335 = vmatmul.bf16.gmra.mxu0 %v296
    %v336 = vpop.f32.mrf.mxu0
    %v337 = vadd.f32 %v269, %v336
    %v338 = vpop.f32.mrf.mxu0
    %v339 = vadd.f32 %v269, %v338
    %340 = vmatmul.bf16.gmra.mxu0 %v299
    %v341 = vpop.f32.mrf.mxu0
    %v342 = vadd.f32 %v269, %v341
    %v343 = vpop.f32.mrf.mxu0
    %v344 = vadd.f32 %v269, %v343
    %345 = vmatmul.bf16.gmra.mxu0 %v302
    %v346 = vpop.f32.mrf.mxu0
    %v347 = vadd.f32 %v269, %v346
    %v348 = vpop.f32.mrf.mxu0
    %v349 = vadd.f32 %v269, %v348
    %350 = vmatmul.bf16.gmra.mxu0 %v305
    %v351 = vpop.f32.mrf.mxu0
    %v352 = vadd.f32 %v269, %v351
    %v353 = vpop.f32.mrf.mxu0
    %v354 = vadd.f32 %v269, %v353
    %355 = vdwg.mxu0
    %v356 = vpack.c.bf16 %v317, %v317
    %v357 = vpack.c.bf16 %v319, %v319
    %v358 = vpack.c.bf16 %v322, %v322
    %v359 = vpack.c.bf16 %v324, %v324
    %v360 = vpack.c.bf16 %v327, %v327
    %v361 = vpack.c.bf16 %v329, %v329
    %v362 = vpack.c.bf16 %v332, %v332
    %v363 = vpack.c.bf16 %v334, %v334
    %v364 = vpack.c.bf16 %v337, %v337
    %v365 = vpack.c.bf16 %v339, %v339
    %v366 = vpack.c.bf16 %v342, %v342
    %v367 = vpack.c.bf16 %v344, %v344
    %v368 = vpack.c.bf16 %v347, %v347
    %v369 = vpack.c.bf16 %v349, %v349
    %v370 = vpack.c.bf16 %v352, %v352
    %v371 = vpack.c.bf16 %v354, %v354
    %v388 = vunpack.c.l.b16 %v356
    %v389 = vunpack.c.l.b16 %v357
    %v390 = vunpack.c.l.b16 %v358
    %v391 = vunpack.c.l.b16 %v359
    %v392 = vunpack.c.l.b16 %v360
    %v393 = vunpack.c.l.b16 %v361
    %v394 = vunpack.c.l.b16 %v362
    %v395 = vunpack.c.l.b16 %v363
    %v396 = vunpack.c.l.b16 %v364
    %v397 = vunpack.c.l.b16 %v365
    %v398 = vunpack.c.l.b16 %v366
    %v399 = vunpack.c.l.b16 %v367
    %v400 = vunpack.c.l.b16 %v368
    %v401 = vunpack.c.l.b16 %v369
    %v402 = vunpack.c.l.b16 %v370
    %v403 = vunpack.c.l.b16 %v371
    %v404 = vpack.c.b16 %v389, %v388
    %v405 = vpack.c.b16 %v391, %v390
    %v406 = vpack.c.b16 %v393, %v392
    %v407 = vpack.c.b16 %v395, %v394
    %v408 = vpack.c.b16 %v397, %v396
    %v409 = vpack.c.b16 %v399, %v398
    %v410 = vpack.c.b16 %v401, %v400
    %v411 = vpack.c.b16 %v403, %v402
    %412 = vrot.lane.b32.xlu0 %v404, 96
    %v413 = vpop.permute.xlu0 %412
    %414 = vrot.lane.b32.xlu0 %v405, 96
    %v415 = vpop.permute.xlu0 %414
    %416 = vrot.lane.b32.xlu0 %v406, 96
    %v417 = vpop.permute.xlu0 %416
    %418 = vrot.lane.b32.xlu0 %v407, 96
    %v419 = vpop.permute.xlu0 %418
    %420 = vrot.lane.b32.xlu0 %v408, 96
    %v421 = vpop.permute.xlu0 %420
    %422 = vrot.lane.b32.xlu0 %v409, 96
    %v423 = vpop.permute.xlu0 %422
    %424 = vrot.lane.b32.xlu0 %v410, 96
    %v425 = vpop.permute.xlu0 %424
    %426 = vrot.lane.b32.xlu0 %v411, 96
    %v427 = vpop.permute.xlu0 %426
    %vm428 = vcmask 64512
    %v430 = vsel %vm428, %v404, 0
    %v433 = vsel %vm428, %v405, 0
    %v436 = vsel %vm428, %v406, 0
    %v439 = vsel %vm428, %v407, 0
    %v442 = vsel %vm428, %v408, 0
    %v445 = vsel %vm428, %v409, 0
    %v448 = vsel %vm428, %v410, 0
    %v451 = vsel %vm428, %v411, 0
    %v454 = vsel %vm428, %v413, 0
    %v457 = vsel %vm428, %v415, 0
    %v460 = vsel %vm428, %v417, 0
    %v463 = vsel %vm428, %v419, 0
    %v466 = vsel %vm428, %v421, 0
    %v469 = vsel %vm428, %v423, 0
    %v472 = vsel %vm428, %v425, 0
    %v475 = vsel %vm428, %v427, 0
    %477 = vmatpush.bf16.xpose.msra.mxu0 %v475
    %478 = vmatpush.bf16.xpose.msra.mxu0 %v472
    %479 = vmatpush.bf16.xpose.msra.mxu0 %v469
    %480 = vmatpush.bf16.xpose.msra.mxu0 %v466
    %481 = vmatpush.bf16.xpose.msra.mxu0 %v463
    %482 = vmatpush.bf16.xpose.msra.mxu0 %v460
    %483 = vmatpush.bf16.xpose.msra.mxu0 %v457
    %484 = vmatpush.bf16.xpose.msra.mxu0 %v454
    %485 = vmatmul.bf16.gmra.mxu0 %v430
    %v486 = vpop.f32.mrf.mxu0
    %v487 = vadd.f32 0.0, %v486
    %v488 = vpop.f32.mrf.mxu0
    %v489 = vadd.f32 0.0, %v488
    %490 = vmatmul.bf16.gmra.mxu0 %v433
    %v491 = vpop.f32.mrf.mxu0
    %v492 = vadd.f32 0.0, %v491
    %v493 = vpop.f32.mrf.mxu0
    %v494 = vadd.f32 0.0, %v493
    %495 = vmatmul.bf16.gmra.mxu0 %v436
    %v496 = vpop.f32.mrf.mxu0
    %v497 = vadd.f32 0.0, %v496
    %v498 = vpop.f32.mrf.mxu0
    %v499 = vadd.f32 0.0, %v498
    %500 = vmatmul.bf16.gmra.mxu0 %v439
    %v501 = vpop.f32.mrf.mxu0
    %v502 = vadd.f32 0.0, %v501
    %v503 = vpop.f32.mrf.mxu0
    %v504 = vadd.f32 0.0, %v503
    %505 = vmatmul.bf16.gmra.mxu0 %v442
    %v506 = vpop.f32.mrf.mxu0
    %v507 = vadd.f32 0.0, %v506
    %v508 = vpop.f32.mrf.mxu0
    %v509 = vadd.f32 0.0, %v508
    %510 = vmatmul.bf16.gmra.mxu0 %v445
    %v511 = vpop.f32.mrf.mxu0
    %v512 = vadd.f32 0.0, %v511
    %v513 = vpop.f32.mrf.mxu0
    %v514 = vadd.f32 0.0, %v513
    %515 = vmatmul.bf16.gmra.mxu0 %v448
    %v516 = vpop.f32.mrf.mxu0
    %v517 = vadd.f32 0.0, %v516
    %v518 = vpop.f32.mrf.mxu0
    %v519 = vadd.f32 0.0, %v518
    %520 = vmatmul.bf16.gmra.mxu0 %v451
    %v521 = vpop.f32.mrf.mxu0
    %v522 = vadd.f32 0.0, %v521
    %v523 = vpop.f32.mrf.mxu0
    %v524 = vadd.f32 0.0, %v523
    %525 = vdwg.mxu0
    %v526 = vmul.f32 %v487, 0.35355338
    %v527 = vmul.f32 %v489, 0.35355338
    %v528 = vmul.f32 %v492, 0.35355338
    %v529 = vmul.f32 %v494, 0.35355338
    %v530 = vmul.f32 %v497, 0.35355338
    %v531 = vmul.f32 %v499, 0.35355338
    %v532 = vmul.f32 %v502, 0.35355338
    %v533 = vmul.f32 %v504, 0.35355338
    %v534 = vmul.f32 %v507, 0.35355338
    %v535 = vmul.f32 %v509, 0.35355338
    %v536 = vmul.f32 %v512, 0.35355338
    %v537 = vmul.f32 %v514, 0.35355338
    %v538 = vmul.f32 %v517, 0.35355338
    %v539 = vmul.f32 %v519, 0.35355338
    %v540 = vmul.f32 %v522, 0.35355338
    %v541 = vmul.f32 %v524, 0.35355338
    %v542 = vadd.f32 %v526, %v77
    %v543 = vadd.f32 %v527, %v78
    %v544 = vadd.f32 %v528, %v79
    %v545 = vadd.f32 %v529, %v80
    %v546 = vadd.f32 %v530, %v81
    %v547 = vadd.f32 %v531, %v82
    %v548 = vadd.f32 %v532, %v83
    %v549 = vadd.f32 %v533, %v84
    %v550 = vadd.f32 %v534, %v85
    %v551 = vadd.f32 %v535, %v86
    %v552 = vadd.f32 %v536, %v87
    %v553 = vadd.f32 %v537, %v88
    %v554 = vadd.f32 %v538, %v89
    %v555 = vadd.f32 %v539, %v90
    %v556 = vadd.f32 %v540, %v91
    %v557 = vadd.f32 %v541, %v92
    %558 = vmax.xlane.f32.xlu0 %v542
    %v559 = vpop.xlane.xlu0 %558
    %560 = vmax.xlane.f32.xlu0 %v543
    %v561 = vpop.xlane.xlu0 %560
    %562 = vmax.xlane.f32.xlu0 %v544
    %v563 = vpop.xlane.xlu0 %562
    %564 = vmax.xlane.f32.xlu0 %v545
    %v565 = vpop.xlane.xlu0 %564
    %566 = vmax.xlane.f32.xlu0 %v546
    %v567 = vpop.xlane.xlu0 %566
    %568 = vmax.xlane.f32.xlu0 %v547
    %v569 = vpop.xlane.xlu0 %568
    %570 = vmax.xlane.f32.xlu0 %v548
    %v571 = vpop.xlane.xlu0 %570
    %572 = vmax.xlane.f32.xlu0 %v549
    %v573 = vpop.xlane.xlu0 %572
    %574 = vmax.xlane.f32.xlu0 %v550
    %v575 = vpop.xlane.xlu0 %574
    %576 = vmax.xlane.f32.xlu0 %v551
    %v577 = vpop.xlane.xlu0 %576
    %578 = vmax.xlane.f32.xlu0 %v552
    %v579 = vpop.xlane.xlu0 %578
    %580 = vmax.xlane.f32.xlu0 %v553
    %v581 = vpop.xlane.xlu0 %580
    %582 = vmax.xlane.f32.xlu0 %v554
    %v583 = vpop.xlane.xlu0 %582
    %584 = vmax.xlane.f32.xlu0 %v555
    %v585 = vpop.xlane.xlu0 %584
    %586 = vmax.xlane.f32.xlu0 %v556
    %v587 = vpop.xlane.xlu0 %586
    %588 = vmax.xlane.f32.xlu0 %v557
    %v589 = vpop.xlane.xlu0 %588
    %v590 = vsub.f32 %v542, %v559
    %v591 = vsub.f32 %v543, %v561
    %v592 = vsub.f32 %v544, %v563
    %v593 = vsub.f32 %v545, %v565
    %v594 = vsub.f32 %v546, %v567
    %v595 = vsub.f32 %v547, %v569
    %v596 = vsub.f32 %v548, %v571
    %v597 = vsub.f32 %v549, %v573
    %v598 = vsub.f32 %v550, %v575
    %v599 = vsub.f32 %v551, %v577
    %v600 = vsub.f32 %v552, %v579
    %v601 = vsub.f32 %v553, %v581
    %v602 = vsub.f32 %v554, %v583
    %v603 = vsub.f32 %v555, %v585
    %v604 = vsub.f32 %v556, %v587
    %v605 = vsub.f32 %v557, %v589
    %v606 = vmul.f32 %v590, 1.442695
    %v607 = vpow.pop %v606
    %v608 = vmul.f32 %v591, 1.442695
    %v609 = vpow.pop %v608
    %v610 = vmul.f32 %v592, 1.442695
    %v611 = vpow.pop %v610
    %v612 = vmul.f32 %v593, 1.442695
    %v613 = vpow.pop %v612
    %v614 = vmul.f32 %v594, 1.442695
    %v615 = vpow.pop %v614
    %v616 = vmul.f32 %v595, 1.442695
    %v617 = vpow.pop %v616
    %v618 = vmul.f32 %v596, 1.442695
    %v619 = vpow.pop %v618
    %v620 = vmul.f32 %v597, 1.442695
    %v621 = vpow.pop %v620
    %v622 = vmul.f32 %v598, 1.442695
    %v623 = vpow.pop %v622
    %v624 = vmul.f32 %v599, 1.442695
    %v625 = vpow.pop %v624
    %v626 = vmul.f32 %v600, 1.442695
    %v627 = vpow.pop %v626
    %v628 = vmul.f32 %v601, 1.442695
    %v629 = vpow.pop %v628
    %v630 = vmul.f32 %v602, 1.442695
    %v631 = vpow.pop %v630
    %v632 = vmul.f32 %v603, 1.442695
    %v633 = vpow.pop %v632
    %v634 = vmul.f32 %v604, 1.442695
    %v635 = vpow.pop %v634
    %v636 = vmul.f32 %v605, 1.442695
    %v637 = vpow.pop %v636
    %638 = vadd.xlane.f32.xlu0 %v607
    %v639 = vpop.xlane.xlu0 %638
    %640 = vadd.xlane.f32.xlu0 %v609
    %v641 = vpop.xlane.xlu0 %640
    %642 = vadd.xlane.f32.xlu0 %v611
    %v643 = vpop.xlane.xlu0 %642
    %644 = vadd.xlane.f32.xlu0 %v613
    %v645 = vpop.xlane.xlu0 %644
    %646 = vadd.xlane.f32.xlu0 %v615
    %v647 = vpop.xlane.xlu0 %646
    %648 = vadd.xlane.f32.xlu0 %v617
    %v649 = vpop.xlane.xlu0 %648
    %650 = vadd.xlane.f32.xlu0 %v619
    %v651 = vpop.xlane.xlu0 %650
    %652 = vadd.xlane.f32.xlu0 %v621
    %v653 = vpop.xlane.xlu0 %652
    %654 = vadd.xlane.f32.xlu0 %v623
    %v655 = vpop.xlane.xlu0 %654
    %656 = vadd.xlane.f32.xlu0 %v625
    %v657 = vpop.xlane.xlu0 %656
    %658 = vadd.xlane.f32.xlu0 %v627
    %v659 = vpop.xlane.xlu0 %658
    %660 = vadd.xlane.f32.xlu0 %v629
    %v661 = vpop.xlane.xlu0 %660
    %662 = vadd.xlane.f32.xlu0 %v631
    %v663 = vpop.xlane.xlu0 %662
    %664 = vadd.xlane.f32.xlu0 %v633
    %v665 = vpop.xlane.xlu0 %664
    %666 = vadd.xlane.f32.xlu0 %v635
    %v667 = vpop.xlane.xlu0 %666
    %668 = vadd.xlane.f32.xlu0 %v637
    %v669 = vpop.xlane.xlu0 %668
    %v670 = vrcp.pop %v639
    %v671 = vrcp.pop %v641
    %v672 = vrcp.pop %v643
    %v673 = vrcp.pop %v645
    %v674 = vrcp.pop %v647
    %v675 = vrcp.pop %v649
    %v676 = vrcp.pop %v651
    %v677 = vrcp.pop %v653
    %v678 = vrcp.pop %v655
    %v679 = vrcp.pop %v657
    %v680 = vrcp.pop %v659
    %v681 = vrcp.pop %v661
    %v682 = vrcp.pop %v663
    %v683 = vrcp.pop %v665
    %v684 = vrcp.pop %v667
    %v685 = vrcp.pop %v669
    %v686 = vmul.f32 %v607, %v670
    %v687 = vmul.f32 %v609, %v671
    %v688 = vmul.f32 %v611, %v672
    %v689 = vmul.f32 %v613, %v673
    %v690 = vmul.f32 %v615, %v674
    %v691 = vmul.f32 %v617, %v675
    %v692 = vmul.f32 %v619, %v676
    %v693 = vmul.f32 %v621, %v677
    %v694 = vmul.f32 %v623, %v678
    %v695 = vmul.f32 %v625, %v679
    %v696 = vmul.f32 %v627, %v680
    %v697 = vmul.f32 %v629, %v681
    %v698 = vmul.f32 %v631, %v682
    %v699 = vmul.f32 %v633, %v683
    %v700 = vmul.f32 %v635, %v684
    %v701 = vmul.f32 %v637, %v685
    %v702 = vpack.c.bf16 %v687, %v686
    %v703 = vpack.c.bf16 %v689, %v688
    %v704 = vpack.c.bf16 %v691, %v690
    %v705 = vpack.c.bf16 %v693, %v692
    %v706 = vpack.c.bf16 %v695, %v694
    %v707 = vpack.c.bf16 %v697, %v696
    %v708 = vpack.c.bf16 %v699, %v698
    %v709 = vpack.c.bf16 %v701, %v700
    %710 = vrot.lane.b32.xlu0 %v404, 64
    %v711 = vpop.permute.xlu0 %710
    %712 = vrot.lane.b32.xlu0 %v405, 64
    %v713 = vpop.permute.xlu0 %712
    %714 = vrot.lane.b32.xlu0 %v406, 64
    %v715 = vpop.permute.xlu0 %714
    %716 = vrot.lane.b32.xlu0 %v407, 64
    %v717 = vpop.permute.xlu0 %716
    %718 = vrot.lane.b32.xlu0 %v408, 64
    %v719 = vpop.permute.xlu0 %718
    %720 = vrot.lane.b32.xlu0 %v409, 64
    %v721 = vpop.permute.xlu0 %720
    %722 = vrot.lane.b32.xlu0 %v410, 64
    %v723 = vpop.permute.xlu0 %722
    %724 = vrot.lane.b32.xlu0 %v411, 64
    %v725 = vpop.permute.xlu0 %724
    %734 = vmatpush.bf16.msra.mxu0 %v725
    %735 = vmatpush.bf16.msra.mxu0 %v723
    %736 = vmatpush.bf16.msra.mxu0 %v721
    %737 = vmatpush.bf16.msra.mxu0 %v719
    %738 = vmatpush.bf16.msra.mxu0 %v717
    %739 = vmatpush.bf16.msra.mxu0 %v715
    %740 = vmatpush.bf16.msra.mxu0 %v713
    %741 = vmatpush.bf16.msra.mxu0 %v711
    %742 = vmatmul.bf16.gmra.mxu0 %v702
    %v743 = vpop.f32.mrf.mxu0
    %v744 = vadd.f32 0.0, %v743
    %v745 = vpop.f32.mrf.mxu0
    %v746 = vadd.f32 0.0, %v745
    %747 = vmatmul.bf16.gmra.mxu0 %v703
    %v748 = vpop.f32.mrf.mxu0
    %v749 = vadd.f32 0.0, %v748
    %v750 = vpop.f32.mrf.mxu0
    %v751 = vadd.f32 0.0, %v750
    %752 = vmatmul.bf16.gmra.mxu0 %v704
    %v753 = vpop.f32.mrf.mxu0
    %v754 = vadd.f32 0.0, %v753
    %v755 = vpop.f32.mrf.mxu0
    %v756 = vadd.f32 0.0, %v755
    %757 = vmatmul.bf16.gmra.mxu0 %v705
    %v758 = vpop.f32.mrf.mxu0
    %v759 = vadd.f32 0.0, %v758
    %v760 = vpop.f32.mrf.mxu0
    %v761 = vadd.f32 0.0, %v760
    %762 = vmatmul.bf16.gmra.mxu0 %v706
    %v763 = vpop.f32.mrf.mxu0
    %v764 = vadd.f32 0.0, %v763
    %v765 = vpop.f32.mrf.mxu0
    %v766 = vadd.f32 0.0, %v765
    %767 = vmatmul.bf16.gmra.mxu0 %v707
    %v768 = vpop.f32.mrf.mxu0
    %v769 = vadd.f32 0.0, %v768
    %v770 = vpop.f32.mrf.mxu0
    %v771 = vadd.f32 0.0, %v770
    %772 = vmatmul.bf16.gmra.mxu0 %v708
    %v773 = vpop.f32.mrf.mxu0
    %v774 = vadd.f32 0.0, %v773
    %v775 = vpop.f32.mrf.mxu0
    %v776 = vadd.f32 0.0, %v775
    %777 = vmatmul.bf16.gmra.mxu0 %v709
    %v778 = vpop.f32.mrf.mxu0
    %v779 = vadd.f32 0.0, %v778
    %v780 = vpop.f32.mrf.mxu0
    %v781 = vadd.f32 0.0, %v780
    %782 = vdwg.mxu0
    %783 = vrot.lane.b32.xlu0 %v404, 120
    %v784 = vpop.permute.xlu0 %783
    %785 = vrot.lane.b32.xlu0 %v405, 120
    %v786 = vpop.permute.xlu0 %785
    %787 = vrot.lane.b32.xlu0 %v406, 120
    %v788 = vpop.permute.xlu0 %787
    %789 = vrot.lane.b32.xlu0 %v407, 120
    %v790 = vpop.permute.xlu0 %789
    %791 = vrot.lane.b32.xlu0 %v408, 120
    %v792 = vpop.permute.xlu0 %791
    %793 = vrot.lane.b32.xlu0 %v409, 120
    %v794 = vpop.permute.xlu0 %793
    %795 = vrot.lane.b32.xlu0 %v410, 120
    %v796 = vpop.permute.xlu0 %795
    %797 = vrot.lane.b32.xlu0 %v411, 120
    %v798 = vpop.permute.xlu0 %797
    %799 = vrot.lane.b32.xlu0 %v404, 88
    %v800 = vpop.permute.xlu0 %799
    %801 = vrot.lane.b32.xlu0 %v405, 88
    %v802 = vpop.permute.xlu0 %801
    %803 = vrot.lane.b32.xlu0 %v406, 88
    %v804 = vpop.permute.xlu0 %803
    %805 = vrot.lane.b32.xlu0 %v407, 88
    %v806 = vpop.permute.xlu0 %805
    %807 = vrot.lane.b32.xlu0 %v408, 88
    %v808 = vpop.permute.xlu0 %807
    %809 = vrot.lane.b32.xlu0 %v409, 88
    %v810 = vpop.permute.xlu0 %809
    %811 = vrot.lane.b32.xlu0 %v410, 88
    %v812 = vpop.permute.xlu0 %811
    %813 = vrot.lane.b32.xlu0 %v411, 88
    %v814 = vpop.permute.xlu0 %813
    %v816 = vsel %vm428, %v784, 0
    %v819 = vsel %vm428, %v786, 0
    %v822 = vsel %vm428, %v788, 0
    %v825 = vsel %vm428, %v790, 0
    %v828 = vsel %vm428, %v792, 0
    %v831 = vsel %vm428, %v794, 0
    %v834 = vsel %vm428, %v796, 0
    %v837 = vsel %vm428, %v798, 0
    %v840 = vsel %vm428, %v800, 0
    %v843 = vsel %vm428, %v802, 0
    %v846 = vsel %vm428, %v804, 0
    %v849 = vsel %vm428, %v806, 0
    %v852 = vsel %vm428, %v808, 0
    %v855 = vsel %vm428, %v810, 0
    %v858 = vsel %vm428, %v812, 0
    %v861 = vsel %vm428, %v814, 0
    %863 = vmatpush.bf16.xpose.msra.mxu0 %v861
    %864 = vmatpush.bf16.xpose.msra.mxu0 %v858
    %865 = vmatpush.bf16.xpose.msra.mxu0 %v855
    %866 = vmatpush.bf16.xpose.msra.mxu0 %v852
    %867 = vmatpush.bf16.xpose.msra.mxu0 %v849
    %868 = vmatpush.bf16.xpose.msra.mxu0 %v846
    %869 = vmatpush.bf16.xpose.msra.mxu0 %v843
    %870 = vmatpush.bf16.xpose.msra.mxu0 %v840
    %871 = vmatmul.bf16.gmra.mxu0 %v816
    %v872 = vpop.f32.mrf.mxu0
    %v873 = vadd.f32 0.0, %v872
    %v874 = vpop.f32.mrf.mxu0
    %v875 = vadd.f32 0.0, %v874
    %876 = vmatmul.bf16.gmra.mxu0 %v819
    %v877 = vpop.f32.mrf.mxu0
    %v878 = vadd.f32 0.0, %v877
    %v879 = vpop.f32.mrf.mxu0
    %v880 = vadd.f32 0.0, %v879
    %881 = vmatmul.bf16.gmra.mxu0 %v822
    %v882 = vpop.f32.mrf.mxu0
    %v883 = vadd.f32 0.0, %v882
    %v884 = vpop.f32.mrf.mxu0
    %v885 = vadd.f32 0.0, %v884
    %886 = vmatmul.bf16.gmra.mxu0 %v825
    %v887 = vpop.f32.mrf.mxu0
    %v888 = vadd.f32 0.0, %v887
    %v889 = vpop.f32.mrf.mxu0
    %v890 = vadd.f32 0.0, %v889
    %891 = vmatmul.bf16.gmra.mxu0 %v828
    %v892 = vpop.f32.mrf.mxu0
    %v893 = vadd.f32 0.0, %v892
    %v894 = vpop.f32.mrf.mxu0
    %v895 = vadd.f32 0.0, %v894
    %896 = vmatmul.bf16.gmra.mxu0 %v831
    %v897 = vpop.f32.mrf.mxu0
    %v898 = vadd.f32 0.0, %v897
    %v899 = vpop.f32.mrf.mxu0
    %v900 = vadd.f32 0.0, %v899
    %901 = vmatmul.bf16.gmra.mxu0 %v834
    %v902 = vpop.f32.mrf.mxu0
    %v903 = vadd.f32 0.0, %v902
    %v904 = vpop.f32.mrf.mxu0
    %v905 = vadd.f32 0.0, %v904
    %906 = vmatmul.bf16.gmra.mxu0 %v837
    %v907 = vpop.f32.mrf.mxu0
    %v908 = vadd.f32 0.0, %v907
    %v909 = vpop.f32.mrf.mxu0
    %v910 = vadd.f32 0.0, %v909
    %911 = vdwg.mxu0
    %v912 = vmul.f32 %v873, 0.35355338
    %v913 = vmul.f32 %v875, 0.35355338
    %v914 = vmul.f32 %v878, 0.35355338
    %v915 = vmul.f32 %v880, 0.35355338
    %v916 = vmul.f32 %v883, 0.35355338
    %v917 = vmul.f32 %v885, 0.35355338
    %v918 = vmul.f32 %v888, 0.35355338
    %v919 = vmul.f32 %v890, 0.35355338
    %v920 = vmul.f32 %v893, 0.35355338
    %v921 = vmul.f32 %v895, 0.35355338
    %v922 = vmul.f32 %v898, 0.35355338
    %v923 = vmul.f32 %v900, 0.35355338
    %v924 = vmul.f32 %v903, 0.35355338
    %v925 = vmul.f32 %v905, 0.35355338
    %v926 = vmul.f32 %v908, 0.35355338
    %v927 = vmul.f32 %v910, 0.35355338
    %v928 = vadd.f32 %v912, %v77
    %v929 = vadd.f32 %v913, %v78
    %v930 = vadd.f32 %v914, %v79
    %v931 = vadd.f32 %v915, %v80
    %v932 = vadd.f32 %v916, %v81
    %v933 = vadd.f32 %v917, %v82
    %v934 = vadd.f32 %v918, %v83
    %v935 = vadd.f32 %v919, %v84
    %v936 = vadd.f32 %v920, %v85
    %v937 = vadd.f32 %v921, %v86
    %v938 = vadd.f32 %v922, %v87
    %v939 = vadd.f32 %v923, %v88
    %v940 = vadd.f32 %v924, %v89
    %v941 = vadd.f32 %v925, %v90
    %v942 = vadd.f32 %v926, %v91
    %v943 = vadd.f32 %v927, %v92
    %944 = vmax.xlane.f32.xlu0 %v928
    %v945 = vpop.xlane.xlu0 %944
    %946 = vmax.xlane.f32.xlu0 %v929
    %v947 = vpop.xlane.xlu0 %946
    %948 = vmax.xlane.f32.xlu0 %v930
    %v949 = vpop.xlane.xlu0 %948
    %950 = vmax.xlane.f32.xlu0 %v931
    %v951 = vpop.xlane.xlu0 %950
    %952 = vmax.xlane.f32.xlu0 %v932
    %v953 = vpop.xlane.xlu0 %952
    %954 = vmax.xlane.f32.xlu0 %v933
    %v955 = vpop.xlane.xlu0 %954
    %956 = vmax.xlane.f32.xlu0 %v934
    %v957 = vpop.xlane.xlu0 %956
    %958 = vmax.xlane.f32.xlu0 %v935
    %v959 = vpop.xlane.xlu0 %958
    %960 = vmax.xlane.f32.xlu0 %v936
    %v961 = vpop.xlane.xlu0 %960
    %962 = vmax.xlane.f32.xlu0 %v937
    %v963 = vpop.xlane.xlu0 %962
    %964 = vmax.xlane.f32.xlu0 %v938
    %v965 = vpop.xlane.xlu0 %964
    %966 = vmax.xlane.f32.xlu0 %v939
    %v967 = vpop.xlane.xlu0 %966
    %968 = vmax.xlane.f32.xlu0 %v940
    %v969 = vpop.xlane.xlu0 %968
    %970 = vmax.xlane.f32.xlu0 %v941
    %v971 = vpop.xlane.xlu0 %970
    %972 = vmax.xlane.f32.xlu0 %v942
    %v973 = vpop.xlane.xlu0 %972
    %974 = vmax.xlane.f32.xlu0 %v943
    %v975 = vpop.xlane.xlu0 %974
    %v976 = vsub.f32 %v928, %v945
    %v977 = vsub.f32 %v929, %v947
    %v978 = vsub.f32 %v930, %v949
    %v979 = vsub.f32 %v931, %v951
    %v980 = vsub.f32 %v932, %v953
    %v981 = vsub.f32 %v933, %v955
    %v982 = vsub.f32 %v934, %v957
    %v983 = vsub.f32 %v935, %v959
    %v984 = vsub.f32 %v936, %v961
    %v985 = vsub.f32 %v937, %v963
    %v986 = vsub.f32 %v938, %v965
    %v987 = vsub.f32 %v939, %v967
    %v988 = vsub.f32 %v940, %v969
    %v989 = vsub.f32 %v941, %v971
    %v990 = vsub.f32 %v942, %v973
    %v991 = vsub.f32 %v943, %v975
    %v992 = vmul.f32 %v976, 1.442695
    %v993 = vpow.pop %v992
    %v994 = vmul.f32 %v977, 1.442695
    %v995 = vpow.pop %v994
    %v996 = vmul.f32 %v978, 1.442695
    %v997 = vpow.pop %v996
    %v998 = vmul.f32 %v979, 1.442695
    %v999 = vpow.pop %v998
    %v1000 = vmul.f32 %v980, 1.442695
    %v1001 = vpow.pop %v1000
    %v1002 = vmul.f32 %v981, 1.442695
    %v1003 = vpow.pop %v1002
    %v1004 = vmul.f32 %v982, 1.442695
    %v1005 = vpow.pop %v1004
    %v1006 = vmul.f32 %v983, 1.442695
    %v1007 = vpow.pop %v1006
    %v1008 = vmul.f32 %v984, 1.442695
    %v1009 = vpow.pop %v1008
    %v1010 = vmul.f32 %v985, 1.442695
    %v1011 = vpow.pop %v1010
    %v1012 = vmul.f32 %v986, 1.442695
    %v1013 = vpow.pop %v1012
    %v1014 = vmul.f32 %v987, 1.442695
    %v1015 = vpow.pop %v1014
    %v1016 = vmul.f32 %v988, 1.442695
    %v1017 = vpow.pop %v1016
    %v1018 = vmul.f32 %v989, 1.442695
    %v1019 = vpow.pop %v1018
    %v1020 = vmul.f32 %v990, 1.442695
    %v1021 = vpow.pop %v1020
    %v1022 = vmul.f32 %v991, 1.442695
    %v1023 = vpow.pop %v1022
    %1024 = vadd.xlane.f32.xlu0 %v993
    %v1025 = vpop.xlane.xlu0 %1024
    %1026 = vadd.xlane.f32.xlu0 %v995
    %v1027 = vpop.xlane.xlu0 %1026
    %1028 = vadd.xlane.f32.xlu0 %v997
    %v1029 = vpop.xlane.xlu0 %1028
    %1030 = vadd.xlane.f32.xlu0 %v999
    %v1031 = vpop.xlane.xlu0 %1030
    %1032 = vadd.xlane.f32.xlu0 %v1001
    %v1033 = vpop.xlane.xlu0 %1032
    %1034 = vadd.xlane.f32.xlu0 %v1003
    %v1035 = vpop.xlane.xlu0 %1034
    %1036 = vadd.xlane.f32.xlu0 %v1005
    %v1037 = vpop.xlane.xlu0 %1036
    %1038 = vadd.xlane.f32.xlu0 %v1007
    %v1039 = vpop.xlane.xlu0 %1038
    %1040 = vadd.xlane.f32.xlu0 %v1009
    %v1041 = vpop.xlane.xlu0 %1040
    %1042 = vadd.xlane.f32.xlu0 %v1011
    %v1043 = vpop.xlane.xlu0 %1042
    %1044 = vadd.xlane.f32.xlu0 %v1013
    %v1045 = vpop.xlane.xlu0 %1044
    %1046 = vadd.xlane.f32.xlu0 %v1015
    %v1047 = vpop.xlane.xlu0 %1046
    %1048 = vadd.xlane.f32.xlu0 %v1017
    %v1049 = vpop.xlane.xlu0 %1048
    %1050 = vadd.xlane.f32.xlu0 %v1019
    %v1051 = vpop.xlane.xlu0 %1050
    %1052 = vadd.xlane.f32.xlu0 %v1021
    %v1053 = vpop.xlane.xlu0 %1052
    %1054 = vadd.xlane.f32.xlu0 %v1023
    %v1055 = vpop.xlane.xlu0 %1054
    %v1056 = vrcp.pop %v1025
    %v1057 = vrcp.pop %v1027
    %v1058 = vrcp.pop %v1029
    %v1059 = vrcp.pop %v1031
    %v1060 = vrcp.pop %v1033
    %v1061 = vrcp.pop %v1035
    %v1062 = vrcp.pop %v1037
    %v1063 = vrcp.pop %v1039
    %v1064 = vrcp.pop %v1041
    %v1065 = vrcp.pop %v1043
    %v1066 = vrcp.pop %v1045
    %v1067 = vrcp.pop %v1047
    %v1068 = vrcp.pop %v1049
    %v1069 = vrcp.pop %v1051
    %v1070 = vrcp.pop %v1053
    %v1071 = vrcp.pop %v1055
    %v1072 = vmul.f32 %v993, %v1056
    %v1073 = vmul.f32 %v995, %v1057
    %v1074 = vmul.f32 %v997, %v1058
    %v1075 = vmul.f32 %v999, %v1059
    %v1076 = vmul.f32 %v1001, %v1060
    %v1077 = vmul.f32 %v1003, %v1061
    %v1078 = vmul.f32 %v1005, %v1062
    %v1079 = vmul.f32 %v1007, %v1063
    %v1080 = vmul.f32 %v1009, %v1064
    %v1081 = vmul.f32 %v1011, %v1065
    %v1082 = vmul.f32 %v1013, %v1066
    %v1083 = vmul.f32 %v1015, %v1067
    %v1084 = vmul.f32 %v1017, %v1068
    %v1085 = vmul.f32 %v1019, %v1069
    %v1086 = vmul.f32 %v1021, %v1070
    %v1087 = vmul.f32 %v1023, %v1071
    %v1088 = vpack.c.bf16 %v1073, %v1072
    %v1089 = vpack.c.bf16 %v1075, %v1074
    %v1090 = vpack.c.bf16 %v1077, %v1076
    %v1091 = vpack.c.bf16 %v1079, %v1078
    %v1092 = vpack.c.bf16 %v1081, %v1080
    %v1093 = vpack.c.bf16 %v1083, %v1082
    %v1094 = vpack.c.bf16 %v1085, %v1084
    %v1095 = vpack.c.bf16 %v1087, %v1086
    %1096 = vrot.lane.b32.xlu0 %v404, 56
    %v1097 = vpop.permute.xlu0 %1096
    %1098 = vrot.lane.b32.xlu0 %v405, 56
    %v1099 = vpop.permute.xlu0 %1098
    %1100 = vrot.lane.b32.xlu0 %v406, 56
    %v1101 = vpop.permute.xlu0 %1100
    %1102 = vrot.lane.b32.xlu0 %v407, 56
    %v1103 = vpop.permute.xlu0 %1102
    %1104 = vrot.lane.b32.xlu0 %v408, 56
    %v1105 = vpop.permute.xlu0 %1104
    %1106 = vrot.lane.b32.xlu0 %v409, 56
    %v1107 = vpop.permute.xlu0 %1106
    %1108 = vrot.lane.b32.xlu0 %v410, 56
    %v1109 = vpop.permute.xlu0 %1108
    %1110 = vrot.lane.b32.xlu0 %v411, 56
    %v1111 = vpop.permute.xlu0 %1110
    %1120 = vmatpush.bf16.msra.mxu0 %v1111
    %1121 = vmatpush.bf16.msra.mxu0 %v1109
    %1122 = vmatpush.bf16.msra.mxu0 %v1107
    %1123 = vmatpush.bf16.msra.mxu0 %v1105
    %1124 = vmatpush.bf16.msra.mxu0 %v1103
    %1125 = vmatpush.bf16.msra.mxu0 %v1101
    %1126 = vmatpush.bf16.msra.mxu0 %v1099
    %1127 = vmatpush.bf16.msra.mxu0 %v1097
    %1128 = vmatmul.bf16.gmra.mxu0 %v1088
    %v1129 = vpop.f32.mrf.mxu0
    %v1130 = vadd.f32 0.0, %v1129
    %v1131 = vpop.f32.mrf.mxu0
    %v1132 = vadd.f32 0.0, %v1131
    %1133 = vmatmul.bf16.gmra.mxu0 %v1089
    %v1134 = vpop.f32.mrf.mxu0
    %v1135 = vadd.f32 0.0, %v1134
    %v1136 = vpop.f32.mrf.mxu0
    %v1137 = vadd.f32 0.0, %v1136
    %1138 = vmatmul.bf16.gmra.mxu0 %v1090
    %v1139 = vpop.f32.mrf.mxu0
    %v1140 = vadd.f32 0.0, %v1139
    %v1141 = vpop.f32.mrf.mxu0
    %v1142 = vadd.f32 0.0, %v1141
    %1143 = vmatmul.bf16.gmra.mxu0 %v1091
    %v1144 = vpop.f32.mrf.mxu0
    %v1145 = vadd.f32 0.0, %v1144
    %v1146 = vpop.f32.mrf.mxu0
    %v1147 = vadd.f32 0.0, %v1146
    %1148 = vmatmul.bf16.gmra.mxu0 %v1092
    %v1149 = vpop.f32.mrf.mxu0
    %v1150 = vadd.f32 0.0, %v1149
    %v1151 = vpop.f32.mrf.mxu0
    %v1152 = vadd.f32 0.0, %v1151
    %1153 = vmatmul.bf16.gmra.mxu0 %v1093
    %v1154 = vpop.f32.mrf.mxu0
    %v1155 = vadd.f32 0.0, %v1154
    %v1156 = vpop.f32.mrf.mxu0
    %v1157 = vadd.f32 0.0, %v1156
    %1158 = vmatmul.bf16.gmra.mxu0 %v1094
    %v1159 = vpop.f32.mrf.mxu0
    %v1160 = vadd.f32 0.0, %v1159
    %v1161 = vpop.f32.mrf.mxu0
    %v1162 = vadd.f32 0.0, %v1161
    %1163 = vmatmul.bf16.gmra.mxu0 %v1095
    %v1164 = vpop.f32.mrf.mxu0
    %v1165 = vadd.f32 0.0, %v1164
    %v1166 = vpop.f32.mrf.mxu0
    %v1167 = vadd.f32 0.0, %v1166
    %1168 = vdwg.mxu0
    %1169 = vrot.lane.b32.xlu0 %v404, 112
    %v1170 = vpop.permute.xlu0 %1169
    %1171 = vrot.lane.b32.xlu0 %v405, 112
    %v1172 = vpop.permute.xlu0 %1171
    %1173 = vrot.lane.b32.xlu0 %v406, 112
    %v1174 = vpop.permute.xlu0 %1173
    %1175 = vrot.lane.b32.xlu0 %v407, 112
    %v1176 = vpop.permute.xlu0 %1175
    %1177 = vrot.lane.b32.xlu0 %v408, 112
    %v1178 = vpop.permute.xlu0 %1177
    %1179 = vrot.lane.b32.xlu0 %v409, 112
    %v1180 = vpop.permute.xlu0 %1179
    %1181 = vrot.lane.b32.xlu0 %v410, 112
    %v1182 = vpop.permute.xlu0 %1181
    %1183 = vrot.lane.b32.xlu0 %v411, 112
    %v1184 = vpop.permute.xlu0 %1183
    %1185 = vrot.lane.b32.xlu0 %v404, 80
    %v1186 = vpop.permute.xlu0 %1185
    %1187 = vrot.lane.b32.xlu0 %v405, 80
    %v1188 = vpop.permute.xlu0 %1187
    %1189 = vrot.lane.b32.xlu0 %v406, 80
    %v1190 = vpop.permute.xlu0 %1189
    %1191 = vrot.lane.b32.xlu0 %v407, 80
    %v1192 = vpop.permute.xlu0 %1191
    %1193 = vrot.lane.b32.xlu0 %v408, 80
    %v1194 = vpop.permute.xlu0 %1193
    %1195 = vrot.lane.b32.xlu0 %v409, 80
    %v1196 = vpop.permute.xlu0 %1195
    %1197 = vrot.lane.b32.xlu0 %v410, 80
    %v1198 = vpop.permute.xlu0 %1197
    %1199 = vrot.lane.b32.xlu0 %v411, 80
    %v1200 = vpop.permute.xlu0 %1199
    %v1202 = vsel %vm428, %v1170, 0
    %v1205 = vsel %vm428, %v1172, 0
    %v1208 = vsel %vm428, %v1174, 0
    %v1211 = vsel %vm428, %v1176, 0
    %v1214 = vsel %vm428, %v1178, 0
    %v1217 = vsel %vm428, %v1180, 0
    %v1220 = vsel %vm428, %v1182, 0
    %v1223 = vsel %vm428, %v1184, 0
    %v1226 = vsel %vm428, %v1186, 0
    %v1229 = vsel %vm428, %v1188, 0
    %v1232 = vsel %vm428, %v1190, 0
    %v1235 = vsel %vm428, %v1192, 0
    %v1238 = vsel %vm428, %v1194, 0
    %v1241 = vsel %vm428, %v1196, 0
    %v1244 = vsel %vm428, %v1198, 0
    %v1247 = vsel %vm428, %v1200, 0
    %1249 = vmatpush.bf16.xpose.msra.mxu0 %v1247
    %1250 = vmatpush.bf16.xpose.msra.mxu0 %v1244
    %1251 = vmatpush.bf16.xpose.msra.mxu0 %v1241
    %1252 = vmatpush.bf16.xpose.msra.mxu0 %v1238
    %1253 = vmatpush.bf16.xpose.msra.mxu0 %v1235
    %1254 = vmatpush.bf16.xpose.msra.mxu0 %v1232
    %1255 = vmatpush.bf16.xpose.msra.mxu0 %v1229
    %1256 = vmatpush.bf16.xpose.msra.mxu0 %v1226
    %1257 = vmatmul.bf16.gmra.mxu0 %v1202
    %v1258 = vpop.f32.mrf.mxu0
    %v1259 = vadd.f32 0.0, %v1258
    %v1260 = vpop.f32.mrf.mxu0
    %v1261 = vadd.f32 0.0, %v1260
    %1262 = vmatmul.bf16.gmra.mxu0 %v1205
    %v1263 = vpop.f32.mrf.mxu0
    %v1264 = vadd.f32 0.0, %v1263
    %v1265 = vpop.f32.mrf.mxu0
    %v1266 = vadd.f32 0.0, %v1265
    %1267 = vmatmul.bf16.gmra.mxu0 %v1208
    %v1268 = vpop.f32.mrf.mxu0
    %v1269 = vadd.f32 0.0, %v1268
    %v1270 = vpop.f32.mrf.mxu0
    %v1271 = vadd.f32 0.0, %v1270
    %1272 = vmatmul.bf16.gmra.mxu0 %v1211
    %v1273 = vpop.f32.mrf.mxu0
    %v1274 = vadd.f32 0.0, %v1273
    %v1275 = vpop.f32.mrf.mxu0
    %v1276 = vadd.f32 0.0, %v1275
    %1277 = vmatmul.bf16.gmra.mxu0 %v1214
    %v1278 = vpop.f32.mrf.mxu0
    %v1279 = vadd.f32 0.0, %v1278
    %v1280 = vpop.f32.mrf.mxu0
    %v1281 = vadd.f32 0.0, %v1280
    %1282 = vmatmul.bf16.gmra.mxu0 %v1217
    %v1283 = vpop.f32.mrf.mxu0
    %v1284 = vadd.f32 0.0, %v1283
    %v1285 = vpop.f32.mrf.mxu0
    %v1286 = vadd.f32 0.0, %v1285
    %1287 = vmatmul.bf16.gmra.mxu0 %v1220
    %v1288 = vpop.f32.mrf.mxu0
    %v1289 = vadd.f32 0.0, %v1288
    %v1290 = vpop.f32.mrf.mxu0
    %v1291 = vadd.f32 0.0, %v1290
    %1292 = vmatmul.bf16.gmra.mxu0 %v1223
    %v1293 = vpop.f32.mrf.mxu0
    %v1294 = vadd.f32 0.0, %v1293
    %v1295 = vpop.f32.mrf.mxu0
    %v1296 = vadd.f32 0.0, %v1295
    %1297 = vdwg.mxu0
    %v1298 = vmul.f32 %v1259, 0.35355338
    %v1299 = vmul.f32 %v1261, 0.35355338
    %v1300 = vmul.f32 %v1264, 0.35355338
    %v1301 = vmul.f32 %v1266, 0.35355338
    %v1302 = vmul.f32 %v1269, 0.35355338
    %v1303 = vmul.f32 %v1271, 0.35355338
    %v1304 = vmul.f32 %v1274, 0.35355338
    %v1305 = vmul.f32 %v1276, 0.35355338
    %v1306 = vmul.f32 %v1279, 0.35355338
    %v1307 = vmul.f32 %v1281, 0.35355338
    %v1308 = vmul.f32 %v1284, 0.35355338
    %v1309 = vmul.f32 %v1286, 0.35355338
    %v1310 = vmul.f32 %v1289, 0.35355338
    %v1311 = vmul.f32 %v1291, 0.35355338
    %v1312 = vmul.f32 %v1294, 0.35355338
    %v1313 = vmul.f32 %v1296, 0.35355338
    %v1314 = vadd.f32 %v1298, %v77
    %v1315 = vadd.f32 %v1299, %v78
    %v1316 = vadd.f32 %v1300, %v79
    %v1317 = vadd.f32 %v1301, %v80
    %v1318 = vadd.f32 %v1302, %v81
    %v1319 = vadd.f32 %v1303, %v82
    %v1320 = vadd.f32 %v1304, %v83
    %v1321 = vadd.f32 %v1305, %v84
    %v1322 = vadd.f32 %v1306, %v85
    %v1323 = vadd.f32 %v1307, %v86
    %v1324 = vadd.f32 %v1308, %v87
    %v1325 = vadd.f32 %v1309, %v88
    %v1326 = vadd.f32 %v1310, %v89
    %v1327 = vadd.f32 %v1311, %v90
    %v1328 = vadd.f32 %v1312, %v91
    %v1329 = vadd.f32 %v1313, %v92
    %1330 = vmax.xlane.f32.xlu0 %v1314
    %v1331 = vpop.xlane.xlu0 %1330
    %1332 = vmax.xlane.f32.xlu0 %v1315
    %v1333 = vpop.xlane.xlu0 %1332
    %1334 = vmax.xlane.f32.xlu0 %v1316
    %v1335 = vpop.xlane.xlu0 %1334
    %1336 = vmax.xlane.f32.xlu0 %v1317
    %v1337 = vpop.xlane.xlu0 %1336
    %1338 = vmax.xlane.f32.xlu0 %v1318
    %v1339 = vpop.xlane.xlu0 %1338
    %1340 = vmax.xlane.f32.xlu0 %v1319
    %v1341 = vpop.xlane.xlu0 %1340
    %1342 = vmax.xlane.f32.xlu0 %v1320
    %v1343 = vpop.xlane.xlu0 %1342
    %1344 = vmax.xlane.f32.xlu0 %v1321
    %v1345 = vpop.xlane.xlu0 %1344
    %1346 = vmax.xlane.f32.xlu0 %v1322
    %v1347 = vpop.xlane.xlu0 %1346
    %1348 = vmax.xlane.f32.xlu0 %v1323
    %v1349 = vpop.xlane.xlu0 %1348
    %1350 = vmax.xlane.f32.xlu0 %v1324
    %v1351 = vpop.xlane.xlu0 %1350
    %1352 = vmax.xlane.f32.xlu0 %v1325
    %v1353 = vpop.xlane.xlu0 %1352
    %1354 = vmax.xlane.f32.xlu0 %v1326
    %v1355 = vpop.xlane.xlu0 %1354
    %1356 = vmax.xlane.f32.xlu0 %v1327
    %v1357 = vpop.xlane.xlu0 %1356
    %1358 = vmax.xlane.f32.xlu0 %v1328
    %v1359 = vpop.xlane.xlu0 %1358
    %1360 = vmax.xlane.f32.xlu0 %v1329
    %v1361 = vpop.xlane.xlu0 %1360
    %v1362 = vsub.f32 %v1314, %v1331
    %v1363 = vsub.f32 %v1315, %v1333
    %v1364 = vsub.f32 %v1316, %v1335
    %v1365 = vsub.f32 %v1317, %v1337
    %v1366 = vsub.f32 %v1318, %v1339
    %v1367 = vsub.f32 %v1319, %v1341
    %v1368 = vsub.f32 %v1320, %v1343
    %v1369 = vsub.f32 %v1321, %v1345
    %v1370 = vsub.f32 %v1322, %v1347
    %v1371 = vsub.f32 %v1323, %v1349
    %v1372 = vsub.f32 %v1324, %v1351
    %v1373 = vsub.f32 %v1325, %v1353
    %v1374 = vsub.f32 %v1326, %v1355
    %v1375 = vsub.f32 %v1327, %v1357
    %v1376 = vsub.f32 %v1328, %v1359
    %v1377 = vsub.f32 %v1329, %v1361
    %v1378 = vmul.f32 %v1362, 1.442695
    %v1379 = vpow.pop %v1378
    %v1380 = vmul.f32 %v1363, 1.442695
    %v1381 = vpow.pop %v1380
    %v1382 = vmul.f32 %v1364, 1.442695
    %v1383 = vpow.pop %v1382
    %v1384 = vmul.f32 %v1365, 1.442695
    %v1385 = vpow.pop %v1384
    %v1386 = vmul.f32 %v1366, 1.442695
    %v1387 = vpow.pop %v1386
    %v1388 = vmul.f32 %v1367, 1.442695
    %v1389 = vpow.pop %v1388
    %v1390 = vmul.f32 %v1368, 1.442695
    %v1391 = vpow.pop %v1390
    %v1392 = vmul.f32 %v1369, 1.442695
    %v1393 = vpow.pop %v1392
    %v1394 = vmul.f32 %v1370, 1.442695
    %v1395 = vpow.pop %v1394
    %v1396 = vmul.f32 %v1371, 1.442695
    %v1397 = vpow.pop %v1396
    %v1398 = vmul.f32 %v1372, 1.442695
    %v1399 = vpow.pop %v1398
    %v1400 = vmul.f32 %v1373, 1.442695
    %v1401 = vpow.pop %v1400
    %v1402 = vmul.f32 %v1374, 1.442695
    %v1403 = vpow.pop %v1402
    %v1404 = vmul.f32 %v1375, 1.442695
    %v1405 = vpow.pop %v1404
    %v1406 = vmul.f32 %v1376, 1.442695
    %v1407 = vpow.pop %v1406
    %v1408 = vmul.f32 %v1377, 1.442695
    %v1409 = vpow.pop %v1408
    %1410 = vadd.xlane.f32.xlu0 %v1379
    %v1411 = vpop.xlane.xlu0 %1410
    %1412 = vadd.xlane.f32.xlu0 %v1381
    %v1413 = vpop.xlane.xlu0 %1412
    %1414 = vadd.xlane.f32.xlu0 %v1383
    %v1415 = vpop.xlane.xlu0 %1414
    %1416 = vadd.xlane.f32.xlu0 %v1385
    %v1417 = vpop.xlane.xlu0 %1416
    %1418 = vadd.xlane.f32.xlu0 %v1387
    %v1419 = vpop.xlane.xlu0 %1418
    %1420 = vadd.xlane.f32.xlu0 %v1389
    %v1421 = vpop.xlane.xlu0 %1420
    %1422 = vadd.xlane.f32.xlu0 %v1391
    %v1423 = vpop.xlane.xlu0 %1422
    %1424 = vadd.xlane.f32.xlu0 %v1393
    %v1425 = vpop.xlane.xlu0 %1424
    %1426 = vadd.xlane.f32.xlu0 %v1395
    %v1427 = vpop.xlane.xlu0 %1426
    %1428 = vadd.xlane.f32.xlu0 %v1397
    %v1429 = vpop.xlane.xlu0 %1428
    %1430 = vadd.xlane.f32.xlu0 %v1399
    %v1431 = vpop.xlane.xlu0 %1430
    %1432 = vadd.xlane.f32.xlu0 %v1401
    %v1433 = vpop.xlane.xlu0 %1432
    %1434 = vadd.xlane.f32.xlu0 %v1403
    %v1435 = vpop.xlane.xlu0 %1434
    %1436 = vadd.xlane.f32.xlu0 %v1405
    %v1437 = vpop.xlane.xlu0 %1436
    %1438 = vadd.xlane.f32.xlu0 %v1407
    %v1439 = vpop.xlane.xlu0 %1438
    %1440 = vadd.xlane.f32.xlu0 %v1409
    %v1441 = vpop.xlane.xlu0 %1440
    %v1442 = vrcp.pop %v1411
    %v1443 = vrcp.pop %v1413
    %v1444 = vrcp.pop %v1415
    %v1445 = vrcp.pop %v1417
    %v1446 = vrcp.pop %v1419
    %v1447 = vrcp.pop %v1421
    %v1448 = vrcp.pop %v1423
    %v1449 = vrcp.pop %v1425
    %v1450 = vrcp.pop %v1427
    %v1451 = vrcp.pop %v1429
    %v1452 = vrcp.pop %v1431
    %v1453 = vrcp.pop %v1433
    %v1454 = vrcp.pop %v1435
    %v1455 = vrcp.pop %v1437
    %v1456 = vrcp.pop %v1439
    %v1457 = vrcp.pop %v1441
    %v1458 = vmul.f32 %v1379, %v1442
    %v1459 = vmul.f32 %v1381, %v1443
    %v1460 = vmul.f32 %v1383, %v1444
    %v1461 = vmul.f32 %v1385, %v1445
    %v1462 = vmul.f32 %v1387, %v1446
    %v1463 = vmul.f32 %v1389, %v1447
    %v1464 = vmul.f32 %v1391, %v1448
    %v1465 = vmul.f32 %v1393, %v1449
    %v1466 = vmul.f32 %v1395, %v1450
    %v1467 = vmul.f32 %v1397, %v1451
    %v1468 = vmul.f32 %v1399, %v1452
    %v1469 = vmul.f32 %v1401, %v1453
    %v1470 = vmul.f32 %v1403, %v1454
    %v1471 = vmul.f32 %v1405, %v1455
    %v1472 = vmul.f32 %v1407, %v1456
    %v1473 = vmul.f32 %v1409, %v1457
    %v1474 = vpack.c.bf16 %v1459, %v1458
    %v1475 = vpack.c.bf16 %v1461, %v1460
    %v1476 = vpack.c.bf16 %v1463, %v1462
    %v1477 = vpack.c.bf16 %v1465, %v1464
    %v1478 = vpack.c.bf16 %v1467, %v1466
    %v1479 = vpack.c.bf16 %v1469, %v1468
    %v1480 = vpack.c.bf16 %v1471, %v1470
    %v1481 = vpack.c.bf16 %v1473, %v1472
    %1482 = vrot.lane.b32.xlu0 %v404, 48
    %v1483 = vpop.permute.xlu0 %1482
    %1484 = vrot.lane.b32.xlu0 %v405, 48
    %v1485 = vpop.permute.xlu0 %1484
    %1486 = vrot.lane.b32.xlu0 %v406, 48
    %v1487 = vpop.permute.xlu0 %1486
    %1488 = vrot.lane.b32.xlu0 %v407, 48
    %v1489 = vpop.permute.xlu0 %1488
    %1490 = vrot.lane.b32.xlu0 %v408, 48
    %v1491 = vpop.permute.xlu0 %1490
    %1492 = vrot.lane.b32.xlu0 %v409, 48
    %v1493 = vpop.permute.xlu0 %1492
    %1494 = vrot.lane.b32.xlu0 %v410, 48
    %v1495 = vpop.permute.xlu0 %1494
    %1496 = vrot.lane.b32.xlu0 %v411, 48
    %v1497 = vpop.permute.xlu0 %1496
    %1506 = vmatpush.bf16.msra.mxu0 %v1497
    %1507 = vmatpush.bf16.msra.mxu0 %v1495
    %1508 = vmatpush.bf16.msra.mxu0 %v1493
    %1509 = vmatpush.bf16.msra.mxu0 %v1491
    %1510 = vmatpush.bf16.msra.mxu0 %v1489
    %1511 = vmatpush.bf16.msra.mxu0 %v1487
    %1512 = vmatpush.bf16.msra.mxu0 %v1485
    %1513 = vmatpush.bf16.msra.mxu0 %v1483
    %1514 = vmatmul.bf16.gmra.mxu0 %v1474
    %v1515 = vpop.f32.mrf.mxu0
    %v1516 = vadd.f32 0.0, %v1515
    %v1517 = vpop.f32.mrf.mxu0
    %v1518 = vadd.f32 0.0, %v1517
    %1519 = vmatmul.bf16.gmra.mxu0 %v1475
    %v1520 = vpop.f32.mrf.mxu0
    %v1521 = vadd.f32 0.0, %v1520
    %v1522 = vpop.f32.mrf.mxu0
    %v1523 = vadd.f32 0.0, %v1522
    %1524 = vmatmul.bf16.gmra.mxu0 %v1476
    %v1525 = vpop.f32.mrf.mxu0
    %v1526 = vadd.f32 0.0, %v1525
    %v1527 = vpop.f32.mrf.mxu0
    %v1528 = vadd.f32 0.0, %v1527
    %1529 = vmatmul.bf16.gmra.mxu0 %v1477
    %v1530 = vpop.f32.mrf.mxu0
    %v1531 = vadd.f32 0.0, %v1530
    %v1532 = vpop.f32.mrf.mxu0
    %v1533 = vadd.f32 0.0, %v1532
    %1534 = vmatmul.bf16.gmra.mxu0 %v1478
    %v1535 = vpop.f32.mrf.mxu0
    %v1536 = vadd.f32 0.0, %v1535
    %v1537 = vpop.f32.mrf.mxu0
    %v1538 = vadd.f32 0.0, %v1537
    %1539 = vmatmul.bf16.gmra.mxu0 %v1479
    %v1540 = vpop.f32.mrf.mxu0
    %v1541 = vadd.f32 0.0, %v1540
    %v1542 = vpop.f32.mrf.mxu0
    %v1543 = vadd.f32 0.0, %v1542
    %1544 = vmatmul.bf16.gmra.mxu0 %v1480
    %v1545 = vpop.f32.mrf.mxu0
    %v1546 = vadd.f32 0.0, %v1545
    %v1547 = vpop.f32.mrf.mxu0
    %v1548 = vadd.f32 0.0, %v1547
    %1549 = vmatmul.bf16.gmra.mxu0 %v1481
    %v1550 = vpop.f32.mrf.mxu0
    %v1551 = vadd.f32 0.0, %v1550
    %v1552 = vpop.f32.mrf.mxu0
    %v1553 = vadd.f32 0.0, %v1552
    %1554 = vdwg.mxu0
    %1555 = vrot.lane.b32.xlu0 %v404, 104
    %v1556 = vpop.permute.xlu0 %1555
    %1557 = vrot.lane.b32.xlu0 %v405, 104
    %v1558 = vpop.permute.xlu0 %1557
    %1559 = vrot.lane.b32.xlu0 %v406, 104
    %v1560 = vpop.permute.xlu0 %1559
    %1561 = vrot.lane.b32.xlu0 %v407, 104
    %v1562 = vpop.permute.xlu0 %1561
    %1563 = vrot.lane.b32.xlu0 %v408, 104
    %v1564 = vpop.permute.xlu0 %1563
    %1565 = vrot.lane.b32.xlu0 %v409, 104
    %v1566 = vpop.permute.xlu0 %1565
    %1567 = vrot.lane.b32.xlu0 %v410, 104
    %v1568 = vpop.permute.xlu0 %1567
    %1569 = vrot.lane.b32.xlu0 %v411, 104
    %v1570 = vpop.permute.xlu0 %1569
    %1571 = vrot.lane.b32.xlu0 %v404, 72
    %v1572 = vpop.permute.xlu0 %1571
    %1573 = vrot.lane.b32.xlu0 %v405, 72
    %v1574 = vpop.permute.xlu0 %1573
    %1575 = vrot.lane.b32.xlu0 %v406, 72
    %v1576 = vpop.permute.xlu0 %1575
    %1577 = vrot.lane.b32.xlu0 %v407, 72
    %v1578 = vpop.permute.xlu0 %1577
    %1579 = vrot.lane.b32.xlu0 %v408, 72
    %v1580 = vpop.permute.xlu0 %1579
    %1581 = vrot.lane.b32.xlu0 %v409, 72
    %v1582 = vpop.permute.xlu0 %1581
    %1583 = vrot.lane.b32.xlu0 %v410, 72
    %v1584 = vpop.permute.xlu0 %1583
    %1585 = vrot.lane.b32.xlu0 %v411, 72
    %v1586 = vpop.permute.xlu0 %1585
    %v1588 = vsel %vm428, %v1556, 0
    %v1591 = vsel %vm428, %v1558, 0
    %v1594 = vsel %vm428, %v1560, 0
    %v1597 = vsel %vm428, %v1562, 0
    %v1600 = vsel %vm428, %v1564, 0
    %v1603 = vsel %vm428, %v1566, 0
    %v1606 = vsel %vm428, %v1568, 0
    %v1609 = vsel %vm428, %v1570, 0
    %v1612 = vsel %vm428, %v1572, 0
    %v1615 = vsel %vm428, %v1574, 0
    %v1618 = vsel %vm428, %v1576, 0
    %v1621 = vsel %vm428, %v1578, 0
    %v1624 = vsel %vm428, %v1580, 0
    %v1627 = vsel %vm428, %v1582, 0
    %v1630 = vsel %vm428, %v1584, 0
    %v1633 = vsel %vm428, %v1586, 0
    %1635 = vmatpush.bf16.xpose.msra.mxu0 %v1633
    %1636 = vmatpush.bf16.xpose.msra.mxu0 %v1630
    %1637 = vmatpush.bf16.xpose.msra.mxu0 %v1627
    %1638 = vmatpush.bf16.xpose.msra.mxu0 %v1624
    %1639 = vmatpush.bf16.xpose.msra.mxu0 %v1621
    %1640 = vmatpush.bf16.xpose.msra.mxu0 %v1618
    %1641 = vmatpush.bf16.xpose.msra.mxu0 %v1615
    %1642 = vmatpush.bf16.xpose.msra.mxu0 %v1612
    %1643 = vmatmul.bf16.gmra.mxu0 %v1588
    %v1644 = vpop.f32.mrf.mxu0
    %v1645 = vadd.f32 0.0, %v1644
    %v1646 = vpop.f32.mrf.mxu0
    %v1647 = vadd.f32 0.0, %v1646
    %1648 = vmatmul.bf16.gmra.mxu0 %v1591
    %v1649 = vpop.f32.mrf.mxu0
    %v1650 = vadd.f32 0.0, %v1649
    %v1651 = vpop.f32.mrf.mxu0
    %v1652 = vadd.f32 0.0, %v1651
    %1653 = vmatmul.bf16.gmra.mxu0 %v1594
    %v1654 = vpop.f32.mrf.mxu0
    %v1655 = vadd.f32 0.0, %v1654
    %v1656 = vpop.f32.mrf.mxu0
    %v1657 = vadd.f32 0.0, %v1656
    %1658 = vmatmul.bf16.gmra.mxu0 %v1597
    %v1659 = vpop.f32.mrf.mxu0
    %v1660 = vadd.f32 0.0, %v1659
    %v1661 = vpop.f32.mrf.mxu0
    %v1662 = vadd.f32 0.0, %v1661
    %1663 = vmatmul.bf16.gmra.mxu0 %v1600
    %v1664 = vpop.f32.mrf.mxu0
    %v1665 = vadd.f32 0.0, %v1664
    %v1666 = vpop.f32.mrf.mxu0
    %v1667 = vadd.f32 0.0, %v1666
    %1668 = vmatmul.bf16.gmra.mxu0 %v1603
    %v1669 = vpop.f32.mrf.mxu0
    %v1670 = vadd.f32 0.0, %v1669
    %v1671 = vpop.f32.mrf.mxu0
    %v1672 = vadd.f32 0.0, %v1671
    %1673 = vmatmul.bf16.gmra.mxu0 %v1606
    %v1674 = vpop.f32.mrf.mxu0
    %v1675 = vadd.f32 0.0, %v1674
    %v1676 = vpop.f32.mrf.mxu0
    %v1677 = vadd.f32 0.0, %v1676
    %1678 = vmatmul.bf16.gmra.mxu0 %v1609
    %v1679 = vpop.f32.mrf.mxu0
    %v1680 = vadd.f32 0.0, %v1679
    %v1681 = vpop.f32.mrf.mxu0
    %v1682 = vadd.f32 0.0, %v1681
    %1683 = vdwg.mxu0
    %v1684 = vmul.f32 %v1645, 0.35355338
    %v1685 = vmul.f32 %v1647, 0.35355338
    %v1686 = vmul.f32 %v1650, 0.35355338
    %v1687 = vmul.f32 %v1652, 0.35355338
    %v1688 = vmul.f32 %v1655, 0.35355338
    %v1689 = vmul.f32 %v1657, 0.35355338
    %v1690 = vmul.f32 %v1660, 0.35355338
    %v1691 = vmul.f32 %v1662, 0.35355338
    %v1692 = vmul.f32 %v1665, 0.35355338
    %v1693 = vmul.f32 %v1667, 0.35355338
    %v1694 = vmul.f32 %v1670, 0.35355338
    %v1695 = vmul.f32 %v1672, 0.35355338
    %v1696 = vmul.f32 %v1675, 0.35355338
    %v1697 = vmul.f32 %v1677, 0.35355338
    %v1698 = vmul.f32 %v1680, 0.35355338
    %v1699 = vmul.f32 %v1682, 0.35355338
    %v1700 = vadd.f32 %v1684, %v77
    %v1701 = vadd.f32 %v1685, %v78
    %v1702 = vadd.f32 %v1686, %v79
    %v1703 = vadd.f32 %v1687, %v80
    %v1704 = vadd.f32 %v1688, %v81
    %v1705 = vadd.f32 %v1689, %v82
    %v1706 = vadd.f32 %v1690, %v83
    %v1707 = vadd.f32 %v1691, %v84
    %v1708 = vadd.f32 %v1692, %v85
    %v1709 = vadd.f32 %v1693, %v86
    %v1710 = vadd.f32 %v1694, %v87
    %v1711 = vadd.f32 %v1695, %v88
    %v1712 = vadd.f32 %v1696, %v89
    %v1713 = vadd.f32 %v1697, %v90
    %v1714 = vadd.f32 %v1698, %v91
    %v1715 = vadd.f32 %v1699, %v92
    %1716 = vmax.xlane.f32.xlu0 %v1700
    %v1717 = vpop.xlane.xlu0 %1716
    %1718 = vmax.xlane.f32.xlu0 %v1701
    %v1719 = vpop.xlane.xlu0 %1718
    %1720 = vmax.xlane.f32.xlu0 %v1702
    %v1721 = vpop.xlane.xlu0 %1720
    %1722 = vmax.xlane.f32.xlu0 %v1703
    %v1723 = vpop.xlane.xlu0 %1722
    %1724 = vmax.xlane.f32.xlu0 %v1704
    %v1725 = vpop.xlane.xlu0 %1724
    %1726 = vmax.xlane.f32.xlu0 %v1705
    %v1727 = vpop.xlane.xlu0 %1726
    %1728 = vmax.xlane.f32.xlu0 %v1706
    %v1729 = vpop.xlane.xlu0 %1728
    %1730 = vmax.xlane.f32.xlu0 %v1707
    %v1731 = vpop.xlane.xlu0 %1730
    %1732 = vmax.xlane.f32.xlu0 %v1708
    %v1733 = vpop.xlane.xlu0 %1732
    %1734 = vmax.xlane.f32.xlu0 %v1709
    %v1735 = vpop.xlane.xlu0 %1734
    %1736 = vmax.xlane.f32.xlu0 %v1710
    %v1737 = vpop.xlane.xlu0 %1736
    %1738 = vmax.xlane.f32.xlu0 %v1711
    %v1739 = vpop.xlane.xlu0 %1738
    %1740 = vmax.xlane.f32.xlu0 %v1712
    %v1741 = vpop.xlane.xlu0 %1740
    %1742 = vmax.xlane.f32.xlu0 %v1713
    %v1743 = vpop.xlane.xlu0 %1742
    %1744 = vmax.xlane.f32.xlu0 %v1714
    %v1745 = vpop.xlane.xlu0 %1744
    %1746 = vmax.xlane.f32.xlu0 %v1715
    %v1747 = vpop.xlane.xlu0 %1746
    %v1748 = vsub.f32 %v1700, %v1717
    %v1749 = vsub.f32 %v1701, %v1719
    %v1750 = vsub.f32 %v1702, %v1721
    %v1751 = vsub.f32 %v1703, %v1723
    %v1752 = vsub.f32 %v1704, %v1725
    %v1753 = vsub.f32 %v1705, %v1727
    %v1754 = vsub.f32 %v1706, %v1729
    %v1755 = vsub.f32 %v1707, %v1731
    %v1756 = vsub.f32 %v1708, %v1733
    %v1757 = vsub.f32 %v1709, %v1735
    %v1758 = vsub.f32 %v1710, %v1737
    %v1759 = vsub.f32 %v1711, %v1739
    %v1760 = vsub.f32 %v1712, %v1741
    %v1761 = vsub.f32 %v1713, %v1743
    %v1762 = vsub.f32 %v1714, %v1745
    %v1763 = vsub.f32 %v1715, %v1747
    %v1764 = vmul.f32 %v1748, 1.442695
    %v1765 = vpow.pop %v1764
    %v1766 = vmul.f32 %v1749, 1.442695
    %v1767 = vpow.pop %v1766
    %v1768 = vmul.f32 %v1750, 1.442695
    %v1769 = vpow.pop %v1768
    %v1770 = vmul.f32 %v1751, 1.442695
    %v1771 = vpow.pop %v1770
    %v1772 = vmul.f32 %v1752, 1.442695
    %v1773 = vpow.pop %v1772
    %v1774 = vmul.f32 %v1753, 1.442695
    %v1775 = vpow.pop %v1774
    %v1776 = vmul.f32 %v1754, 1.442695
    %v1777 = vpow.pop %v1776
    %v1778 = vmul.f32 %v1755, 1.442695
    %v1779 = vpow.pop %v1778
    %v1780 = vmul.f32 %v1756, 1.442695
    %v1781 = vpow.pop %v1780
    %v1782 = vmul.f32 %v1757, 1.442695
    %v1783 = vpow.pop %v1782
    %v1784 = vmul.f32 %v1758, 1.442695
    %v1785 = vpow.pop %v1784
    %v1786 = vmul.f32 %v1759, 1.442695
    %v1787 = vpow.pop %v1786
    %v1788 = vmul.f32 %v1760, 1.442695
    %v1789 = vpow.pop %v1788
    %v1790 = vmul.f32 %v1761, 1.442695
    %v1791 = vpow.pop %v1790
    %v1792 = vmul.f32 %v1762, 1.442695
    %v1793 = vpow.pop %v1792
    %v1794 = vmul.f32 %v1763, 1.442695
    %v1795 = vpow.pop %v1794
    %1796 = vadd.xlane.f32.xlu0 %v1765
    %v1797 = vpop.xlane.xlu0 %1796
    %1798 = vadd.xlane.f32.xlu0 %v1767
    %v1799 = vpop.xlane.xlu0 %1798
    %1800 = vadd.xlane.f32.xlu0 %v1769
    %v1801 = vpop.xlane.xlu0 %1800
    %1802 = vadd.xlane.f32.xlu0 %v1771
    %v1803 = vpop.xlane.xlu0 %1802
    %1804 = vadd.xlane.f32.xlu0 %v1773
    %v1805 = vpop.xlane.xlu0 %1804
    %1806 = vadd.xlane.f32.xlu0 %v1775
    %v1807 = vpop.xlane.xlu0 %1806
    %1808 = vadd.xlane.f32.xlu0 %v1777
    %v1809 = vpop.xlane.xlu0 %1808
    %1810 = vadd.xlane.f32.xlu0 %v1779
    %v1811 = vpop.xlane.xlu0 %1810
    %1812 = vadd.xlane.f32.xlu0 %v1781
    %v1813 = vpop.xlane.xlu0 %1812
    %1814 = vadd.xlane.f32.xlu0 %v1783
    %v1815 = vpop.xlane.xlu0 %1814
    %1816 = vadd.xlane.f32.xlu0 %v1785
    %v1817 = vpop.xlane.xlu0 %1816
    %1818 = vadd.xlane.f32.xlu0 %v1787
    %v1819 = vpop.xlane.xlu0 %1818
    %1820 = vadd.xlane.f32.xlu0 %v1789
    %v1821 = vpop.xlane.xlu0 %1820
    %1822 = vadd.xlane.f32.xlu0 %v1791
    %v1823 = vpop.xlane.xlu0 %1822
    %1824 = vadd.xlane.f32.xlu0 %v1793
    %v1825 = vpop.xlane.xlu0 %1824
    %1826 = vadd.xlane.f32.xlu0 %v1795
    %v1827 = vpop.xlane.xlu0 %1826
    %v1828 = vrcp.pop %v1797
    %v1829 = vrcp.pop %v1799
    %v1830 = vrcp.pop %v1801
    %v1831 = vrcp.pop %v1803
    %v1832 = vrcp.pop %v1805
    %v1833 = vrcp.pop %v1807
    %v1834 = vrcp.pop %v1809
    %v1835 = vrcp.pop %v1811
    %v1836 = vrcp.pop %v1813
    %v1837 = vrcp.pop %v1815
    %v1838 = vrcp.pop %v1817
    %v1839 = vrcp.pop %v1819
    %v1840 = vrcp.pop %v1821
    %v1841 = vrcp.pop %v1823
    %v1842 = vrcp.pop %v1825
    %v1843 = vrcp.pop %v1827
    %v1844 = vmul.f32 %v1765, %v1828
    %v1845 = vmul.f32 %v1767, %v1829
    %v1846 = vmul.f32 %v1769, %v1830
    %v1847 = vmul.f32 %v1771, %v1831
    %v1848 = vmul.f32 %v1773, %v1832
    %v1849 = vmul.f32 %v1775, %v1833
    %v1850 = vmul.f32 %v1777, %v1834
    %v1851 = vmul.f32 %v1779, %v1835
    %v1852 = vmul.f32 %v1781, %v1836
    %v1853 = vmul.f32 %v1783, %v1837
    %v1854 = vmul.f32 %v1785, %v1838
    %v1855 = vmul.f32 %v1787, %v1839
    %v1856 = vmul.f32 %v1789, %v1840
    %v1857 = vmul.f32 %v1791, %v1841
    %v1858 = vmul.f32 %v1793, %v1842
    %v1859 = vmul.f32 %v1795, %v1843
    %v1860 = vpack.c.bf16 %v1845, %v1844
    %v1861 = vpack.c.bf16 %v1847, %v1846
    %v1862 = vpack.c.bf16 %v1849, %v1848
    %v1863 = vpack.c.bf16 %v1851, %v1850
    %v1864 = vpack.c.bf16 %v1853, %v1852
    %v1865 = vpack.c.bf16 %v1855, %v1854
    %v1866 = vpack.c.bf16 %v1857, %v1856
    %v1867 = vpack.c.bf16 %v1859, %v1858
    %1868 = vrot.lane.b32.xlu0 %v404, 40
    %v1869 = vpop.permute.xlu0 %1868
    %1870 = vrot.lane.b32.xlu0 %v405, 40
    %v1871 = vpop.permute.xlu0 %1870
    %1872 = vrot.lane.b32.xlu0 %v406, 40
    %v1873 = vpop.permute.xlu0 %1872
    %1874 = vrot.lane.b32.xlu0 %v407, 40
    %v1875 = vpop.permute.xlu0 %1874
    %1876 = vrot.lane.b32.xlu0 %v408, 40
    %v1877 = vpop.permute.xlu0 %1876
    %1878 = vrot.lane.b32.xlu0 %v409, 40
    %v1879 = vpop.permute.xlu0 %1878
    %1880 = vrot.lane.b32.xlu0 %v410, 40
    %v1881 = vpop.permute.xlu0 %1880
    %1882 = vrot.lane.b32.xlu0 %v411, 40
    %v1883 = vpop.permute.xlu0 %1882
    %1892 = vmatpush.bf16.msra.mxu0 %v1883
    %1893 = vmatpush.bf16.msra.mxu0 %v1881
    %1894 = vmatpush.bf16.msra.mxu0 %v1879
    %1895 = vmatpush.bf16.msra.mxu0 %v1877
    %1896 = vmatpush.bf16.msra.mxu0 %v1875
    %1897 = vmatpush.bf16.msra.mxu0 %v1873
    %1898 = vmatpush.bf16.msra.mxu0 %v1871
    %1899 = vmatpush.bf16.msra.mxu0 %v1869
    %1900 = vmatmul.bf16.gmra.mxu0 %v1860
    %v1901 = vpop.f32.mrf.mxu0
    %v1902 = vadd.f32 0.0, %v1901
    %v1903 = vpop.f32.mrf.mxu0
    %v1904 = vadd.f32 0.0, %v1903
    %1905 = vmatmul.bf16.gmra.mxu0 %v1861
    %v1906 = vpop.f32.mrf.mxu0
    %v1907 = vadd.f32 0.0, %v1906
    %v1908 = vpop.f32.mrf.mxu0
    %v1909 = vadd.f32 0.0, %v1908
    %1910 = vmatmul.bf16.gmra.mxu0 %v1862
    %v1911 = vpop.f32.mrf.mxu0
    %v1912 = vadd.f32 0.0, %v1911
    %v1913 = vpop.f32.mrf.mxu0
    %v1914 = vadd.f32 0.0, %v1913
    %1915 = vmatmul.bf16.gmra.mxu0 %v1863
    %v1916 = vpop.f32.mrf.mxu0
    %v1917 = vadd.f32 0.0, %v1916
    %v1918 = vpop.f32.mrf.mxu0
    %v1919 = vadd.f32 0.0, %v1918
    %1920 = vmatmul.bf16.gmra.mxu0 %v1864
    %v1921 = vpop.f32.mrf.mxu0
    %v1922 = vadd.f32 0.0, %v1921
    %v1923 = vpop.f32.mrf.mxu0
    %v1924 = vadd.f32 0.0, %v1923
    %1925 = vmatmul.bf16.gmra.mxu0 %v1865
    %v1926 = vpop.f32.mrf.mxu0
    %v1927 = vadd.f32 0.0, %v1926
    %v1928 = vpop.f32.mrf.mxu0
    %v1929 = vadd.f32 0.0, %v1928
    %1930 = vmatmul.bf16.gmra.mxu0 %v1866
    %v1931 = vpop.f32.mrf.mxu0
    %v1932 = vadd.f32 0.0, %v1931
    %v1933 = vpop.f32.mrf.mxu0
    %v1934 = vadd.f32 0.0, %v1933
    %1935 = vmatmul.bf16.gmra.mxu0 %v1867
    %v1936 = vpop.f32.mrf.mxu0
    %v1937 = vadd.f32 0.0, %v1936
    %v1938 = vpop.f32.mrf.mxu0
    %v1939 = vadd.f32 0.0, %v1938
    %1940 = vdwg.mxu0
    %1957 = vrot.lane.b32.xlu0 %v1130, 8
    %v1958 = vpop.permute.xlu0 %1957
    %1959 = vrot.lane.b32.xlu0 %v1132, 8
    %v1960 = vpop.permute.xlu0 %1959
    %1961 = vrot.lane.b32.xlu0 %v1135, 8
    %v1962 = vpop.permute.xlu0 %1961
    %1963 = vrot.lane.b32.xlu0 %v1137, 8
    %v1964 = vpop.permute.xlu0 %1963
    %1965 = vrot.lane.b32.xlu0 %v1140, 8
    %v1966 = vpop.permute.xlu0 %1965
    %1967 = vrot.lane.b32.xlu0 %v1142, 8
    %v1968 = vpop.permute.xlu0 %1967
    %1969 = vrot.lane.b32.xlu0 %v1145, 8
    %v1970 = vpop.permute.xlu0 %1969
    %1971 = vrot.lane.b32.xlu0 %v1147, 8
    %v1972 = vpop.permute.xlu0 %1971
    %1973 = vrot.lane.b32.xlu0 %v1150, 8
    %v1974 = vpop.permute.xlu0 %1973
    %1975 = vrot.lane.b32.xlu0 %v1152, 8
    %v1976 = vpop.permute.xlu0 %1975
    %1977 = vrot.lane.b32.xlu0 %v1155, 8
    %v1978 = vpop.permute.xlu0 %1977
    %1979 = vrot.lane.b32.xlu0 %v1157, 8
    %v1980 = vpop.permute.xlu0 %1979
    %1981 = vrot.lane.b32.xlu0 %v1160, 8
    %v1982 = vpop.permute.xlu0 %1981
    %1983 = vrot.lane.b32.xlu0 %v1162, 8
    %v1984 = vpop.permute.xlu0 %1983
    %1985 = vrot.lane.b32.xlu0 %v1165, 8
    %v1986 = vpop.permute.xlu0 %1985
    %1987 = vrot.lane.b32.xlu0 %v1167, 8
    %v1988 = vpop.permute.xlu0 %1987
    %2021 = vrot.lane.b32.xlu0 %v1516, 16
    %v2022 = vpop.permute.xlu0 %2021
    %2023 = vrot.lane.b32.xlu0 %v1518, 16
    %v2024 = vpop.permute.xlu0 %2023
    %2025 = vrot.lane.b32.xlu0 %v1521, 16
    %v2026 = vpop.permute.xlu0 %2025
    %2027 = vrot.lane.b32.xlu0 %v1523, 16
    %v2028 = vpop.permute.xlu0 %2027
    %2029 = vrot.lane.b32.xlu0 %v1526, 16
    %v2030 = vpop.permute.xlu0 %2029
    %2031 = vrot.lane.b32.xlu0 %v1528, 16
    %v2032 = vpop.permute.xlu0 %2031
    %2033 = vrot.lane.b32.xlu0 %v1531, 16
    %v2034 = vpop.permute.xlu0 %2033
    %2035 = vrot.lane.b32.xlu0 %v1533, 16
    %v2036 = vpop.permute.xlu0 %2035
    %2037 = vrot.lane.b32.xlu0 %v1536, 16
    %v2038 = vpop.permute.xlu0 %2037
    %2039 = vrot.lane.b32.xlu0 %v1538, 16
    %v2040 = vpop.permute.xlu0 %2039
    %2041 = vrot.lane.b32.xlu0 %v1541, 16
    %v2042 = vpop.permute.xlu0 %2041
    %2043 = vrot.lane.b32.xlu0 %v1543, 16
    %v2044 = vpop.permute.xlu0 %2043
    %2045 = vrot.lane.b32.xlu0 %v1546, 16
    %v2046 = vpop.permute.xlu0 %2045
    %2047 = vrot.lane.b32.xlu0 %v1548, 16
    %v2048 = vpop.permute.xlu0 %2047
    %2049 = vrot.lane.b32.xlu0 %v1551, 16
    %v2050 = vpop.permute.xlu0 %2049
    %2051 = vrot.lane.b32.xlu0 %v1553, 16
    %v2052 = vpop.permute.xlu0 %2051
    %2085 = vrot.lane.b32.xlu0 %v1902, 24
    %v2086 = vpop.permute.xlu0 %2085
    %2087 = vrot.lane.b32.xlu0 %v1904, 24
    %v2088 = vpop.permute.xlu0 %2087
    %2089 = vrot.lane.b32.xlu0 %v1907, 24
    %v2090 = vpop.permute.xlu0 %2089
    %2091 = vrot.lane.b32.xlu0 %v1909, 24
    %v2092 = vpop.permute.xlu0 %2091
    %2093 = vrot.lane.b32.xlu0 %v1912, 24
    %v2094 = vpop.permute.xlu0 %2093
    %2095 = vrot.lane.b32.xlu0 %v1914, 24
    %v2096 = vpop.permute.xlu0 %2095
    %2097 = vrot.lane.b32.xlu0 %v1917, 24
    %v2098 = vpop.permute.xlu0 %2097
    %2099 = vrot.lane.b32.xlu0 %v1919, 24
    %v2100 = vpop.permute.xlu0 %2099
    %2101 = vrot.lane.b32.xlu0 %v1922, 24
    %v2102 = vpop.permute.xlu0 %2101
    %2103 = vrot.lane.b32.xlu0 %v1924, 24
    %v2104 = vpop.permute.xlu0 %2103
    %2105 = vrot.lane.b32.xlu0 %v1927, 24
    %v2106 = vpop.permute.xlu0 %2105
    %2107 = vrot.lane.b32.xlu0 %v1929, 24
    %v2108 = vpop.permute.xlu0 %2107
    %2109 = vrot.lane.b32.xlu0 %v1932, 24
    %v2110 = vpop.permute.xlu0 %2109
    %2111 = vrot.lane.b32.xlu0 %v1934, 24
    %v2112 = vpop.permute.xlu0 %2111
    %2113 = vrot.lane.b32.xlu0 %v1937, 24
    %v2114 = vpop.permute.xlu0 %2113
    %2115 = vrot.lane.b32.xlu0 %v1939, 24
    %v2116 = vpop.permute.xlu0 %2115
    %v2133 = vsel %vm428, %v744, %v1958
    %v2134 = vsel %vm428, %v746, %v1960
    %v2135 = vsel %vm428, %v749, %v1962
    %v2136 = vsel %vm428, %v751, %v1964
    %v2137 = vsel %vm428, %v754, %v1966
    %v2138 = vsel %vm428, %v756, %v1968
    %v2139 = vsel %vm428, %v759, %v1970
    %v2140 = vsel %vm428, %v761, %v1972
    %v2141 = vsel %vm428, %v764, %v1974
    %v2142 = vsel %vm428, %v766, %v1976
    %v2143 = vsel %vm428, %v769, %v1978
    %v2144 = vsel %vm428, %v771, %v1980
    %v2145 = vsel %vm428, %v774, %v1982
    %v2146 = vsel %vm428, %v776, %v1984
    %v2147 = vsel %vm428, %v779, %v1986
    %v2148 = vsel %vm428, %v781, %v1988
    %vm2149 = vcmask 130048
    %v2150 = vsel %vm2149, %v2133, %v2022
    %v2151 = vsel %vm2149, %v2134, %v2024
    %v2152 = vsel %vm2149, %v2135, %v2026
    %v2153 = vsel %vm2149, %v2136, %v2028
    %v2154 = vsel %vm2149, %v2137, %v2030
    %v2155 = vsel %vm2149, %v2138, %v2032
    %v2156 = vsel %vm2149, %v2139, %v2034
    %v2157 = vsel %vm2149, %v2140, %v2036
    %v2158 = vsel %vm2149, %v2141, %v2038
    %v2159 = vsel %vm2149, %v2142, %v2040
    %v2160 = vsel %vm2149, %v2143, %v2042
    %v2161 = vsel %vm2149, %v2144, %v2044
    %v2162 = vsel %vm2149, %v2145, %v2046
    %v2163 = vsel %vm2149, %v2146, %v2048
    %v2164 = vsel %vm2149, %v2147, %v2050
    %v2165 = vsel %vm2149, %v2148, %v2052
    %vm2166 = vcmask 195584
    %v2167 = vsel %vm2166, %v2150, %v2086
    %v2168 = vsel %vm2166, %v2151, %v2088
    %v2169 = vsel %vm2166, %v2152, %v2090
    %v2170 = vsel %vm2166, %v2153, %v2092
    %v2171 = vsel %vm2166, %v2154, %v2094
    %v2172 = vsel %vm2166, %v2155, %v2096
    %v2173 = vsel %vm2166, %v2156, %v2098
    %v2174 = vsel %vm2166, %v2157, %v2100
    %v2175 = vsel %vm2166, %v2158, %v2102
    %v2176 = vsel %vm2166, %v2159, %v2104
    %v2177 = vsel %vm2166, %v2160, %v2106
    %v2178 = vsel %vm2166, %v2161, %v2108
    %v2179 = vsel %vm2166, %v2162, %v2110
    %v2180 = vsel %vm2166, %v2163, %v2112
    %v2181 = vsel %vm2166, %v2164, %v2114
    %v2182 = vsel %vm2166, %v2165, %v2116
    %v2183 = vpack.c.bf16 %v2168, %v2167
    %v2184 = vpack.c.bf16 %v2170, %v2169
    %v2185 = vpack.c.bf16 %v2172, %v2171
    %v2186 = vpack.c.bf16 %v2174, %v2173
    %v2187 = vpack.c.bf16 %v2176, %v2175
    %v2188 = vpack.c.bf16 %v2178, %v2177
    %v2189 = vpack.c.bf16 %v2180, %v2179
    %v2190 = vpack.c.bf16 %v2182, %v2181
    %v2191 = vld [vmem:[%s8] sm:$0xf]
    %v2192 = vld [vmem:[%s8 + $0x4] sm:$0xf]
    %v2193 = vld [vmem:[%s8 + $0x8] sm:$0xf]
    %v2194 = vld [vmem:[%s8 + $0xc] sm:$0xf]
    %v2195 = vld [vmem:[%s9] sm:$0x1]
    %v2197 = vperm.slane %v2195, 0
    %v2203 = vunpack.c.l.b16 %v2191
    %v2204 = vunpack.c.l.b16 %v2192
    %v2205 = vunpack.c.l.b16 %v2193
    %v2206 = vunpack.c.l.b16 %v2194
    %v2207 = vpack.c.b16 %v2204, %v2203
    %v2208 = vpack.c.b16 %v2206, %v2205
    %v2212 = vsel %vm181, %v2183, 0
    %v2215 = vsel %vm181, %v2184, 0
    %v2218 = vsel %vm181, %v2185, 0
    %v2221 = vsel %vm181, %v2186, 0
    %v2224 = vsel %vm181, %v2187, 0
    %v2227 = vsel %vm181, %v2188, 0
    %v2230 = vsel %vm181, %v2189, 0
    %v2233 = vsel %vm181, %v2190, 0
    %2235 = vmatpush.bf16.msra.mxu0 0
    %2236 = vmatpush.bf16.msra.mxu0 0
    %2237 = vmatpush.bf16.msra.mxu0 0
    %2238 = vmatpush.bf16.msra.mxu0 0
    %2239 = vmatpush.bf16.msra.mxu0 0
    %2240 = vmatpush.bf16.msra.mxu0 0
    %2241 = vmatpush.bf16.msra.mxu0 %v2208
    %2242 = vmatpush.bf16.msra.mxu0 %v2207
    %2243 = vmatmul.bf16.gmra.mxu0 %v2212
    %v2244 = vpop.f32.mrf.mxu0
    %v2245 = vadd.f32 %v2197, %v2244
    %v2246 = vpop.f32.mrf.mxu0
    %v2247 = vadd.f32 %v2197, %v2246
    %2248 = vmatmul.bf16.gmra.mxu0 %v2215
    %v2249 = vpop.f32.mrf.mxu0
    %v2250 = vadd.f32 %v2197, %v2249
    %v2251 = vpop.f32.mrf.mxu0
    %v2252 = vadd.f32 %v2197, %v2251
    %2253 = vmatmul.bf16.gmra.mxu0 %v2218
    %v2254 = vpop.f32.mrf.mxu0
    %v2255 = vadd.f32 %v2197, %v2254
    %v2256 = vpop.f32.mrf.mxu0
    %v2257 = vadd.f32 %v2197, %v2256
    %2258 = vmatmul.bf16.gmra.mxu0 %v2221
    %v2259 = vpop.f32.mrf.mxu0
    %v2260 = vadd.f32 %v2197, %v2259
    %v2261 = vpop.f32.mrf.mxu0
    %v2262 = vadd.f32 %v2197, %v2261
    %2263 = vmatmul.bf16.gmra.mxu0 %v2224
    %v2264 = vpop.f32.mrf.mxu0
    %v2265 = vadd.f32 %v2197, %v2264
    %v2266 = vpop.f32.mrf.mxu0
    %v2267 = vadd.f32 %v2197, %v2266
    %2268 = vmatmul.bf16.gmra.mxu0 %v2227
    %v2269 = vpop.f32.mrf.mxu0
    %v2270 = vadd.f32 %v2197, %v2269
    %v2271 = vpop.f32.mrf.mxu0
    %v2272 = vadd.f32 %v2197, %v2271
    %2273 = vmatmul.bf16.gmra.mxu0 %v2230
    %v2274 = vpop.f32.mrf.mxu0
    %v2275 = vadd.f32 %v2197, %v2274
    %v2276 = vpop.f32.mrf.mxu0
    %v2277 = vadd.f32 %v2197, %v2276
    %2278 = vmatmul.bf16.gmra.mxu0 %v2233
    %v2279 = vpop.f32.mrf.mxu0
    %v2280 = vadd.f32 %v2197, %v2279
    %v2281 = vpop.f32.mrf.mxu0
    %v2282 = vadd.f32 %v2197, %v2281
    %2283 = vdwg.mxu0
    %v2284 = vadd.f32 %v216, %v2245
    %v2285 = vadd.f32 %v218, %v2247
    %v2286 = vadd.f32 %v221, %v2250
    %v2287 = vadd.f32 %v223, %v2252
    %v2288 = vadd.f32 %v226, %v2255
    %v2289 = vadd.f32 %v228, %v2257
    %v2290 = vadd.f32 %v231, %v2260
    %v2291 = vadd.f32 %v233, %v2262
    %v2292 = vadd.f32 %v236, %v2265
    %v2293 = vadd.f32 %v238, %v2267
    %v2294 = vadd.f32 %v241, %v2270
    %v2295 = vadd.f32 %v243, %v2272
    %v2296 = vadd.f32 %v246, %v2275
    %v2297 = vadd.f32 %v248, %v2277
    %v2298 = vadd.f32 %v251, %v2280
    %v2299 = vadd.f32 %v253, %v2282
    %v2300 = vld [vmem:[%s10] sm:$0x1]
    %v2301 = vld [vmem:[%s11] sm:$0x1]
    %v2302 = vsel %vm181, %v2284, 0.0
    %2303 = vadd.xlane.f32.xlu0 %v2302
    %v2304 = vpop.xlane.xlu0 %2303
    %v2305 = vsel %vm181, %v2285, 0.0
    %2306 = vadd.xlane.f32.xlu0 %v2305
    %v2307 = vpop.xlane.xlu0 %2306
    %v2308 = vsel %vm181, %v2286, 0.0
    %2309 = vadd.xlane.f32.xlu0 %v2308
    %v2310 = vpop.xlane.xlu0 %2309
    %v2311 = vsel %vm181, %v2287, 0.0
    %2312 = vadd.xlane.f32.xlu0 %v2311
    %v2313 = vpop.xlane.xlu0 %2312
    %v2314 = vsel %vm181, %v2288, 0.0
    %2315 = vadd.xlane.f32.xlu0 %v2314
    %v2316 = vpop.xlane.xlu0 %2315
    %v2317 = vsel %vm181, %v2289, 0.0
    %2318 = vadd.xlane.f32.xlu0 %v2317
    %v2319 = vpop.xlane.xlu0 %2318
    %v2320 = vsel %vm181, %v2290, 0.0
    %2321 = vadd.xlane.f32.xlu0 %v2320
    %v2322 = vpop.xlane.xlu0 %2321
    %v2323 = vsel %vm181, %v2291, 0.0
    %2324 = vadd.xlane.f32.xlu0 %v2323
    %v2325 = vpop.xlane.xlu0 %2324
    %v2326 = vsel %vm181, %v2292, 0.0
    %2327 = vadd.xlane.f32.xlu0 %v2326
    %v2328 = vpop.xlane.xlu0 %2327
    %v2329 = vsel %vm181, %v2293, 0.0
    %2330 = vadd.xlane.f32.xlu0 %v2329
    %v2331 = vpop.xlane.xlu0 %2330
    %v2332 = vsel %vm181, %v2294, 0.0
    %2333 = vadd.xlane.f32.xlu0 %v2332
    %v2334 = vpop.xlane.xlu0 %2333
    %v2335 = vsel %vm181, %v2295, 0.0
    %2336 = vadd.xlane.f32.xlu0 %v2335
    %v2337 = vpop.xlane.xlu0 %2336
    %v2338 = vsel %vm181, %v2296, 0.0
    %2339 = vadd.xlane.f32.xlu0 %v2338
    %v2340 = vpop.xlane.xlu0 %2339
    %v2341 = vsel %vm181, %v2297, 0.0
    %2342 = vadd.xlane.f32.xlu0 %v2341
    %v2343 = vpop.xlane.xlu0 %2342
    %v2344 = vsel %vm181, %v2298, 0.0
    %2345 = vadd.xlane.f32.xlu0 %v2344
    %v2346 = vpop.xlane.xlu0 %2345
    %v2347 = vsel %vm181, %v2299, 0.0
    %2348 = vadd.xlane.f32.xlu0 %v2347
    %v2349 = vpop.xlane.xlu0 %2348
    %v2350 = vrcp.pop 32.0
    %v2351 = vmul.f32 32.0, %v2350
    %v2352 = vsub.f32 1.0, %v2351
    %v2353 = vmul.f32 %v2350, %v2352
    %v2354 = vadd.f32 %v2350, %v2353
    %vm2355 = vweird.f32 %v2350
    %v2356 = vsel %vm2355, %v2350, %v2354
    %v2357 = vmul.f32 %v2304, %v2356
    %v2358 = vmul.f32 %v2307, %v2356
    %v2359 = vmul.f32 %v2310, %v2356
    %v2360 = vmul.f32 %v2313, %v2356
    %v2361 = vmul.f32 %v2316, %v2356
    %v2362 = vmul.f32 %v2319, %v2356
    %v2363 = vmul.f32 %v2322, %v2356
    %v2364 = vmul.f32 %v2325, %v2356
    %v2365 = vmul.f32 %v2328, %v2356
    %v2366 = vmul.f32 %v2331, %v2356
    %v2367 = vmul.f32 %v2334, %v2356
    %v2368 = vmul.f32 %v2337, %v2356
    %v2369 = vmul.f32 %v2340, %v2356
    %v2370 = vmul.f32 %v2343, %v2356
    %v2371 = vmul.f32 %v2346, %v2356
    %v2372 = vmul.f32 %v2349, %v2356
    %v2373 = vsub.f32 %v2284, %v2357
    %v2374 = vsub.f32 %v2285, %v2358
    %v2375 = vsub.f32 %v2286, %v2359
    %v2376 = vsub.f32 %v2287, %v2360
    %v2377 = vsub.f32 %v2288, %v2361
    %v2378 = vsub.f32 %v2289, %v2362
    %v2379 = vsub.f32 %v2290, %v2363
    %v2380 = vsub.f32 %v2291, %v2364
    %v2381 = vsub.f32 %v2292, %v2365
    %v2382 = vsub.f32 %v2293, %v2366
    %v2383 = vsub.f32 %v2294, %v2367
    %v2384 = vsub.f32 %v2295, %v2368
    %v2385 = vsub.f32 %v2296, %v2369
    %v2386 = vsub.f32 %v2297, %v2370
    %v2387 = vsub.f32 %v2298, %v2371
    %v2388 = vsub.f32 %v2299, %v2372
    %v2389 = vmul.f32 %v2373, %v2373
    %v2390 = vmul.f32 %v2374, %v2374
    %v2391 = vmul.f32 %v2375, %v2375
    %v2392 = vmul.f32 %v2376, %v2376
    %v2393 = vmul.f32 %v2377, %v2377
    %v2394 = vmul.f32 %v2378, %v2378
    %v2395 = vmul.f32 %v2379, %v2379
    %v2396 = vmul.f32 %v2380, %v2380
    %v2397 = vmul.f32 %v2381, %v2381
    %v2398 = vmul.f32 %v2382, %v2382
    %v2399 = vmul.f32 %v2383, %v2383
    %v2400 = vmul.f32 %v2384, %v2384
    %v2401 = vmul.f32 %v2385, %v2385
    %v2402 = vmul.f32 %v2386, %v2386
    %v2403 = vmul.f32 %v2387, %v2387
    %v2404 = vmul.f32 %v2388, %v2388
    %v2405 = vsel %vm181, %v2389, 0.0
    %2406 = vadd.xlane.f32.xlu0 %v2405
    %v2407 = vpop.xlane.xlu0 %2406
    %v2408 = vsel %vm181, %v2390, 0.0
    %2409 = vadd.xlane.f32.xlu0 %v2408
    %v2410 = vpop.xlane.xlu0 %2409
    %v2411 = vsel %vm181, %v2391, 0.0
    %2412 = vadd.xlane.f32.xlu0 %v2411
    %v2413 = vpop.xlane.xlu0 %2412
    %v2414 = vsel %vm181, %v2392, 0.0
    %2415 = vadd.xlane.f32.xlu0 %v2414
    %v2416 = vpop.xlane.xlu0 %2415
    %v2417 = vsel %vm181, %v2393, 0.0
    %2418 = vadd.xlane.f32.xlu0 %v2417
    %v2419 = vpop.xlane.xlu0 %2418
    %v2420 = vsel %vm181, %v2394, 0.0
    %2421 = vadd.xlane.f32.xlu0 %v2420
    %v2422 = vpop.xlane.xlu0 %2421
    %v2423 = vsel %vm181, %v2395, 0.0
    %2424 = vadd.xlane.f32.xlu0 %v2423
    %v2425 = vpop.xlane.xlu0 %2424
    %v2426 = vsel %vm181, %v2396, 0.0
    %2427 = vadd.xlane.f32.xlu0 %v2426
    %v2428 = vpop.xlane.xlu0 %2427
    %v2429 = vsel %vm181, %v2397, 0.0
    %2430 = vadd.xlane.f32.xlu0 %v2429
    %v2431 = vpop.xlane.xlu0 %2430
    %v2432 = vsel %vm181, %v2398, 0.0
    %2433 = vadd.xlane.f32.xlu0 %v2432
    %v2434 = vpop.xlane.xlu0 %2433
    %v2435 = vsel %vm181, %v2399, 0.0
    %2436 = vadd.xlane.f32.xlu0 %v2435
    %v2437 = vpop.xlane.xlu0 %2436
    %v2438 = vsel %vm181, %v2400, 0.0
    %2439 = vadd.xlane.f32.xlu0 %v2438
    %v2440 = vpop.xlane.xlu0 %2439
    %v2441 = vsel %vm181, %v2401, 0.0
    %2442 = vadd.xlane.f32.xlu0 %v2441
    %v2443 = vpop.xlane.xlu0 %2442
    %v2444 = vsel %vm181, %v2402, 0.0
    %2445 = vadd.xlane.f32.xlu0 %v2444
    %v2446 = vpop.xlane.xlu0 %2445
    %v2447 = vsel %vm181, %v2403, 0.0
    %2448 = vadd.xlane.f32.xlu0 %v2447
    %v2449 = vpop.xlane.xlu0 %2448
    %v2450 = vsel %vm181, %v2404, 0.0
    %2451 = vadd.xlane.f32.xlu0 %v2450
    %v2452 = vpop.xlane.xlu0 %2451
    %v2453 = vmul.f32 %v2407, %v2356
    %v2454 = vmul.f32 %v2410, %v2356
    %v2455 = vmul.f32 %v2413, %v2356
    %v2456 = vmul.f32 %v2416, %v2356
    %v2457 = vmul.f32 %v2419, %v2356
    %v2458 = vmul.f32 %v2422, %v2356
    %v2459 = vmul.f32 %v2425, %v2356
    %v2460 = vmul.f32 %v2428, %v2356
    %v2461 = vmul.f32 %v2431, %v2356
    %v2462 = vmul.f32 %v2434, %v2356
    %v2463 = vmul.f32 %v2437, %v2356
    %v2464 = vmul.f32 %v2440, %v2356
    %v2465 = vmul.f32 %v2443, %v2356
    %v2466 = vmul.f32 %v2446, %v2356
    %v2467 = vmul.f32 %v2449, %v2356
    %v2468 = vmul.f32 %v2452, %v2356
    %v2469 = vadd.f32 %v2453, 1e-05
    %v2470 = vadd.f32 %v2454, 1e-05
    %v2471 = vadd.f32 %v2455, 1e-05
    %v2472 = vadd.f32 %v2456, 1e-05
    %v2473 = vadd.f32 %v2457, 1e-05
    %v2474 = vadd.f32 %v2458, 1e-05
    %v2475 = vadd.f32 %v2459, 1e-05
    %v2476 = vadd.f32 %v2460, 1e-05
    %v2477 = vadd.f32 %v2461, 1e-05
    %v2478 = vadd.f32 %v2462, 1e-05
    %v2479 = vadd.f32 %v2463, 1e-05
    %v2480 = vadd.f32 %v2464, 1e-05
    %v2481 = vadd.f32 %v2465, 1e-05
    %v2482 = vadd.f32 %v2466, 1e-05
    %v2483 = vadd.f32 %v2467, 1e-05
    %v2484 = vadd.f32 %v2468, 1e-05
    %v2485 = vrsqrt.pop %v2469
    %v2486 = vmul.f32 %v2485, %v2469
    %v2487 = vmul.f32 %v2486, %v2485
    %v2488 = vmul.f32 0.5, %v2487
    %v2489 = vsub.f32 1.5, %v2488
    %v2490 = vmul.f32 %v2485, %v2489
    %vm2491 = vweird.f32 %v2469
    %vm2492 = vweird.f32 %v2485
    %vm2493 = vmor %vm2491, %vm2492
    %v2494 = vsel %vm2493, %v2485, %v2490
    %v2495 = vrsqrt.pop %v2470
    %v2496 = vmul.f32 %v2495, %v2470
    %v2497 = vmul.f32 %v2496, %v2495
    %v2498 = vmul.f32 0.5, %v2497
    %v2499 = vsub.f32 1.5, %v2498
    %v2500 = vmul.f32 %v2495, %v2499
    %vm2501 = vweird.f32 %v2470
    %vm2502 = vweird.f32 %v2495
    %vm2503 = vmor %vm2501, %vm2502
    %v2504 = vsel %vm2503, %v2495, %v2500
    %v2505 = vrsqrt.pop %v2471
    %v2506 = vmul.f32 %v2505, %v2471
    %v2507 = vmul.f32 %v2506, %v2505
    %v2508 = vmul.f32 0.5, %v2507
    %v2509 = vsub.f32 1.5, %v2508
    %v2510 = vmul.f32 %v2505, %v2509
    %vm2511 = vweird.f32 %v2471
    %vm2512 = vweird.f32 %v2505
    %vm2513 = vmor %vm2511, %vm2512
    %v2514 = vsel %vm2513, %v2505, %v2510
    %v2515 = vrsqrt.pop %v2472
    %v2516 = vmul.f32 %v2515, %v2472
    %v2517 = vmul.f32 %v2516, %v2515
    %v2518 = vmul.f32 0.5, %v2517
    %v2519 = vsub.f32 1.5, %v2518
    %v2520 = vmul.f32 %v2515, %v2519
    %vm2521 = vweird.f32 %v2472
    %vm2522 = vweird.f32 %v2515
    %vm2523 = vmor %vm2521, %vm2522
    %v2524 = vsel %vm2523, %v2515, %v2520
    %v2525 = vrsqrt.pop %v2473
    %v2526 = vmul.f32 %v2525, %v2473
    %v2527 = vmul.f32 %v2526, %v2525
    %v2528 = vmul.f32 0.5, %v2527
    %v2529 = vsub.f32 1.5, %v2528
    %v2530 = vmul.f32 %v2525, %v2529
    %vm2531 = vweird.f32 %v2473
    %vm2532 = vweird.f32 %v2525
    %vm2533 = vmor %vm2531, %vm2532
    %v2534 = vsel %vm2533, %v2525, %v2530
    %v2535 = vrsqrt.pop %v2474
    %v2536 = vmul.f32 %v2535, %v2474
    %v2537 = vmul.f32 %v2536, %v2535
    %v2538 = vmul.f32 0.5, %v2537
    %v2539 = vsub.f32 1.5, %v2538
    %v2540 = vmul.f32 %v2535, %v2539
    %vm2541 = vweird.f32 %v2474
    %vm2542 = vweird.f32 %v2535
    %vm2543 = vmor %vm2541, %vm2542
    %v2544 = vsel %vm2543, %v2535, %v2540
    %v2545 = vrsqrt.pop %v2475
    %v2546 = vmul.f32 %v2545, %v2475
    %v2547 = vmul.f32 %v2546, %v2545
    %v2548 = vmul.f32 0.5, %v2547
    %v2549 = vsub.f32 1.5, %v2548
    %v2550 = vmul.f32 %v2545, %v2549
    %vm2551 = vweird.f32 %v2475
    %vm2552 = vweird.f32 %v2545
    %vm2553 = vmor %vm2551, %vm2552
    %v2554 = vsel %vm2553, %v2545, %v2550
    %v2555 = vrsqrt.pop %v2476
    %v2556 = vmul.f32 %v2555, %v2476
    %v2557 = vmul.f32 %v2556, %v2555
    %v2558 = vmul.f32 0.5, %v2557
    %v2559 = vsub.f32 1.5, %v2558
    %v2560 = vmul.f32 %v2555, %v2559
    %vm2561 = vweird.f32 %v2476
    %vm2562 = vweird.f32 %v2555
    %vm2563 = vmor %vm2561, %vm2562
    %v2564 = vsel %vm2563, %v2555, %v2560
    %v2565 = vrsqrt.pop %v2477
    %v2566 = vmul.f32 %v2565, %v2477
    %v2567 = vmul.f32 %v2566, %v2565
    %v2568 = vmul.f32 0.5, %v2567
    %v2569 = vsub.f32 1.5, %v2568
    %v2570 = vmul.f32 %v2565, %v2569
    %vm2571 = vweird.f32 %v2477
    %vm2572 = vweird.f32 %v2565
    %vm2573 = vmor %vm2571, %vm2572
    %v2574 = vsel %vm2573, %v2565, %v2570
    %v2575 = vrsqrt.pop %v2478
    %v2576 = vmul.f32 %v2575, %v2478
    %v2577 = vmul.f32 %v2576, %v2575
    %v2578 = vmul.f32 0.5, %v2577
    %v2579 = vsub.f32 1.5, %v2578
    %v2580 = vmul.f32 %v2575, %v2579
    %vm2581 = vweird.f32 %v2478
    %vm2582 = vweird.f32 %v2575
    %vm2583 = vmor %vm2581, %vm2582
    %v2584 = vsel %vm2583, %v2575, %v2580
    %v2585 = vrsqrt.pop %v2479
    %v2586 = vmul.f32 %v2585, %v2479
    %v2587 = vmul.f32 %v2586, %v2585
    %v2588 = vmul.f32 0.5, %v2587
    %v2589 = vsub.f32 1.5, %v2588
    %v2590 = vmul.f32 %v2585, %v2589
    %vm2591 = vweird.f32 %v2479
    %vm2592 = vweird.f32 %v2585
    %vm2593 = vmor %vm2591, %vm2592
    %v2594 = vsel %vm2593, %v2585, %v2590
    %v2595 = vrsqrt.pop %v2480
    %v2596 = vmul.f32 %v2595, %v2480
    %v2597 = vmul.f32 %v2596, %v2595
    %v2598 = vmul.f32 0.5, %v2597
    %v2599 = vsub.f32 1.5, %v2598
    %v2600 = vmul.f32 %v2595, %v2599
    %vm2601 = vweird.f32 %v2480
    %vm2602 = vweird.f32 %v2595
    %vm2603 = vmor %vm2601, %vm2602
    %v2604 = vsel %vm2603, %v2595, %v2600
    %v2605 = vrsqrt.pop %v2481
    %v2606 = vmul.f32 %v2605, %v2481
    %v2607 = vmul.f32 %v2606, %v2605
    %v2608 = vmul.f32 0.5, %v2607
    %v2609 = vsub.f32 1.5, %v2608
    %v2610 = vmul.f32 %v2605, %v2609
    %vm2611 = vweird.f32 %v2481
    %vm2612 = vweird.f32 %v2605
    %vm2613 = vmor %vm2611, %vm2612
    %v2614 = vsel %vm2613, %v2605, %v2610
    %v2615 = vrsqrt.pop %v2482
    %v2616 = vmul.f32 %v2615, %v2482
    %v2617 = vmul.f32 %v2616, %v2615
    %v2618 = vmul.f32 0.5, %v2617
    %v2619 = vsub.f32 1.5, %v2618
    %v2620 = vmul.f32 %v2615, %v2619
    %vm2621 = vweird.f32 %v2482
    %vm2622 = vweird.f32 %v2615
    %vm2623 = vmor %vm2621, %vm2622
    %v2624 = vsel %vm2623, %v2615, %v2620
    %v2625 = vrsqrt.pop %v2483
    %v2626 = vmul.f32 %v2625, %v2483
    %v2627 = vmul.f32 %v2626, %v2625
    %v2628 = vmul.f32 0.5, %v2627
    %v2629 = vsub.f32 1.5, %v2628
    %v2630 = vmul.f32 %v2625, %v2629
    %vm2631 = vweird.f32 %v2483
    %vm2632 = vweird.f32 %v2625
    %vm2633 = vmor %vm2631, %vm2632
    %v2634 = vsel %vm2633, %v2625, %v2630
    %v2635 = vrsqrt.pop %v2484
    %v2636 = vmul.f32 %v2635, %v2484
    %v2637 = vmul.f32 %v2636, %v2635
    %v2638 = vmul.f32 0.5, %v2637
    %v2639 = vsub.f32 1.5, %v2638
    %v2640 = vmul.f32 %v2635, %v2639
    %vm2641 = vweird.f32 %v2484
    %vm2642 = vweird.f32 %v2635
    %vm2643 = vmor %vm2641, %vm2642
    %v2644 = vsel %vm2643, %v2635, %v2640
    %v2645 = vmul.f32 %v2373, %v2494
    %v2646 = vmul.f32 %v2374, %v2504
    %v2647 = vmul.f32 %v2375, %v2514
    %v2648 = vmul.f32 %v2376, %v2524
    %v2649 = vmul.f32 %v2377, %v2534
    %v2650 = vmul.f32 %v2378, %v2544
    %v2651 = vmul.f32 %v2379, %v2554
    %v2652 = vmul.f32 %v2380, %v2564
    %v2653 = vmul.f32 %v2381, %v2574
    %v2654 = vmul.f32 %v2382, %v2584
    %v2655 = vmul.f32 %v2383, %v2594
    %v2656 = vmul.f32 %v2384, %v2604
    %v2657 = vmul.f32 %v2385, %v2614
    %v2658 = vmul.f32 %v2386, %v2624
    %v2659 = vmul.f32 %v2387, %v2634
    %v2660 = vmul.f32 %v2388, %v2644
    %v2662 = vperm.slane %v2300, 0
    %v2664 = vmul.f32 %v2645, %v2662
    %v2665 = vmul.f32 %v2646, %v2662
    %v2666 = vmul.f32 %v2647, %v2662
    %v2667 = vmul.f32 %v2648, %v2662
    %v2668 = vmul.f32 %v2649, %v2662
    %v2669 = vmul.f32 %v2650, %v2662
    %v2670 = vmul.f32 %v2651, %v2662
    %v2671 = vmul.f32 %v2652, %v2662
    %v2672 = vmul.f32 %v2653, %v2662
    %v2673 = vmul.f32 %v2654, %v2662
    %v2674 = vmul.f32 %v2655, %v2662
    %v2675 = vmul.f32 %v2656, %v2662
    %v2676 = vmul.f32 %v2657, %v2662
    %v2677 = vmul.f32 %v2658, %v2662
    %v2678 = vmul.f32 %v2659, %v2662
    %v2679 = vmul.f32 %v2660, %v2662
    %v2681 = vperm.slane %v2301, 0
    %v2683 = vadd.f32 %v2664, %v2681
    %v2684 = vadd.f32 %v2665, %v2681
    %v2685 = vadd.f32 %v2666, %v2681
    %v2686 = vadd.f32 %v2667, %v2681
    %v2687 = vadd.f32 %v2668, %v2681
    %v2688 = vadd.f32 %v2669, %v2681
    %v2689 = vadd.f32 %v2670, %v2681
    %v2690 = vadd.f32 %v2671, %v2681
    %v2691 = vadd.f32 %v2672, %v2681
    %v2692 = vadd.f32 %v2673, %v2681
    %v2693 = vadd.f32 %v2674, %v2681
    %v2694 = vadd.f32 %v2675, %v2681
    %v2695 = vadd.f32 %v2676, %v2681
    %v2696 = vadd.f32 %v2677, %v2681
    %v2697 = vadd.f32 %v2678, %v2681
    %v2698 = vadd.f32 %v2679, %v2681
    %v2699 = vpack.c.bf16 %v2684, %v2683
    %v2700 = vpack.c.bf16 %v2686, %v2685
    %v2701 = vpack.c.bf16 %v2688, %v2687
    %v2702 = vpack.c.bf16 %v2690, %v2689
    %v2703 = vpack.c.bf16 %v2692, %v2691
    %v2704 = vpack.c.bf16 %v2694, %v2693
    %v2705 = vpack.c.bf16 %v2696, %v2695
    %v2706 = vpack.c.bf16 %v2698, %v2697
    %v2707 = vld [vmem:[%s12] sm:$0xf]
    %v2708 = vld [vmem:[%s12 + $0x4] sm:$0xf]
    %v2709 = vld [vmem:[%s12 + $0x8] sm:$0xf]
    %v2710 = vld [vmem:[%s12 + $0xc] sm:$0xf]
    %v2711 = vld [vmem:[%s13] sm:$0x1]
    %v2713 = vperm.slane %v2711, 0
    %v2719 = vunpack.c.l.b16 %v2707
    %v2720 = vunpack.c.l.b16 %v2708
    %v2721 = vunpack.c.l.b16 %v2709
    %v2722 = vunpack.c.l.b16 %v2710
    %v2723 = vpack.c.b16 %v2720, %v2719
    %v2724 = vpack.c.b16 %v2722, %v2721
    %v2728 = vsel %vm181, %v2699, 0
    %v2731 = vsel %vm181, %v2700, 0
    %v2734 = vsel %vm181, %v2701, 0
    %v2737 = vsel %vm181, %v2702, 0
    %v2740 = vsel %vm181, %v2703, 0
    %v2743 = vsel %vm181, %v2704, 0
    %v2746 = vsel %vm181, %v2705, 0
    %v2749 = vsel %vm181, %v2706, 0
    %2751 = vmatpush.bf16.msra.mxu0 0
    %2752 = vmatpush.bf16.msra.mxu0 0
    %2753 = vmatpush.bf16.msra.mxu0 0
    %2754 = vmatpush.bf16.msra.mxu0 0
    %2755 = vmatpush.bf16.msra.mxu0 0
    %2756 = vmatpush.bf16.msra.mxu0 0
    %2757 = vmatpush.bf16.msra.mxu0 %v2724
    %2758 = vmatpush.bf16.msra.mxu0 %v2723
    %2759 = vmatmul.bf16.gmra.mxu0 %v2728
    %v2760 = vpop.f32.mrf.mxu0
    %v2761 = vadd.f32 %v2713, %v2760
    %v2762 = vpop.f32.mrf.mxu0
    %v2763 = vadd.f32 %v2713, %v2762
    %2764 = vmatmul.bf16.gmra.mxu0 %v2731
    %v2765 = vpop.f32.mrf.mxu0
    %v2766 = vadd.f32 %v2713, %v2765
    %v2767 = vpop.f32.mrf.mxu0
    %v2768 = vadd.f32 %v2713, %v2767
    %2769 = vmatmul.bf16.gmra.mxu0 %v2734
    %v2770 = vpop.f32.mrf.mxu0
    %v2771 = vadd.f32 %v2713, %v2770
    %v2772 = vpop.f32.mrf.mxu0
    %v2773 = vadd.f32 %v2713, %v2772
    %2774 = vmatmul.bf16.gmra.mxu0 %v2737
    %v2775 = vpop.f32.mrf.mxu0
    %v2776 = vadd.f32 %v2713, %v2775
    %v2777 = vpop.f32.mrf.mxu0
    %v2778 = vadd.f32 %v2713, %v2777
    %2779 = vmatmul.bf16.gmra.mxu0 %v2740
    %v2780 = vpop.f32.mrf.mxu0
    %v2781 = vadd.f32 %v2713, %v2780
    %v2782 = vpop.f32.mrf.mxu0
    %v2783 = vadd.f32 %v2713, %v2782
    %2784 = vmatmul.bf16.gmra.mxu0 %v2743
    %v2785 = vpop.f32.mrf.mxu0
    %v2786 = vadd.f32 %v2713, %v2785
    %v2787 = vpop.f32.mrf.mxu0
    %v2788 = vadd.f32 %v2713, %v2787
    %2789 = vmatmul.bf16.gmra.mxu0 %v2746
    %v2790 = vpop.f32.mrf.mxu0
    %v2791 = vadd.f32 %v2713, %v2790
    %v2792 = vpop.f32.mrf.mxu0
    %v2793 = vadd.f32 %v2713, %v2792
    %2794 = vmatmul.bf16.gmra.mxu0 %v2749
    %v2795 = vpop.f32.mrf.mxu0
    %v2796 = vadd.f32 %v2713, %v2795
    %v2797 = vpop.f32.mrf.mxu0
    %v2798 = vadd.f32 %v2713, %v2797
    %2799 = vdwg.mxu0
    %v2800 = vmax.f32 %v2761, 0.0
    %v2801 = vmax.f32 %v2763, 0.0
    %v2802 = vmax.f32 %v2766, 0.0
    %v2803 = vmax.f32 %v2768, 0.0
    %v2804 = vmax.f32 %v2771, 0.0
    %v2805 = vmax.f32 %v2773, 0.0
    %v2806 = vmax.f32 %v2776, 0.0
    %v2807 = vmax.f32 %v2778, 0.0
    %v2808 = vmax.f32 %v2781, 0.0
    %v2809 = vmax.f32 %v2783, 0.0
    %v2810 = vmax.f32 %v2786, 0.0
    %v2811 = vmax.f32 %v2788, 0.0
    %v2812 = vmax.f32 %v2791, 0.0
    %v2813 = vmax.f32 %v2793, 0.0
    %v2814 = vmax.f32 %v2796, 0.0
    %v2815 = vmax.f32 %v2798, 0.0
    %v2816 = vpack.c.bf16 %v2801, %v2800
    %v2817 = vpack.c.bf16 %v2803, %v2802
    %v2818 = vpack.c.bf16 %v2805, %v2804
    %v2819 = vpack.c.bf16 %v2807, %v2806
    %v2820 = vpack.c.bf16 %v2809, %v2808
    %v2821 = vpack.c.bf16 %v2811, %v2810
    %v2822 = vpack.c.bf16 %v2813, %v2812
    %v2823 = vpack.c.bf16 %v2815, %v2814
    %v2824 = vld [vmem:[%s14] sm:$0xf]
    %v2825 = vld [vmem:[%s14 + $0x4] sm:$0xf]
    %v2826 = vld [vmem:[%s14 + $0x8] sm:$0xf]
    %v2827 = vld [vmem:[%s14 + $0xc] sm:$0xf]
    %v2828 = vld [vmem:[%s14 + $0x10] sm:$0xf]
    %v2829 = vld [vmem:[%s14 + $0x14] sm:$0xf]
    %v2830 = vld [vmem:[%s14 + $0x18] sm:$0xf]
    %v2831 = vld [vmem:[%s14 + $0x1c] sm:$0xf]
    %v2832 = vld [vmem:[%s14 + $0x20] sm:$0xf]
    %v2833 = vld [vmem:[%s14 + $0x24] sm:$0xf]
    %v2834 = vld [vmem:[%s14 + $0x28] sm:$0xf]
    %v2835 = vld [vmem:[%s14 + $0x2c] sm:$0xf]
    %v2836 = vld [vmem:[%s14 + $0x30] sm:$0xf]
    %v2837 = vld [vmem:[%s14 + $0x34] sm:$0xf]
    %v2838 = vld [vmem:[%s14 + $0x38] sm:$0xf]
    %v2839 = vld [vmem:[%s14 + $0x3c] sm:$0xf]
    %v2840 = vld [vmem:[%s15] sm:$0x1]
    %v2842 = vperm.slane %v2840, 0
    %v2860 = vunpack.c.l.b16 %v2824
    %v2861 = vunpack.c.l.b16 %v2825
    %v2862 = vunpack.c.l.b16 %v2826
    %v2863 = vunpack.c.l.b16 %v2827
    %v2864 = vunpack.c.l.b16 %v2828
    %v2865 = vunpack.c.l.b16 %v2829
    %v2866 = vunpack.c.l.b16 %v2830
    %v2867 = vunpack.c.l.b16 %v2831
    %v2868 = vunpack.c.l.b16 %v2832
    %v2869 = vunpack.c.l.b16 %v2833
    %v2870 = vunpack.c.l.b16 %v2834
    %v2871 = vunpack.c.l.b16 %v2835
    %v2872 = vunpack.c.l.b16 %v2836
    %v2873 = vunpack.c.l.b16 %v2837
    %v2874 = vunpack.c.l.b16 %v2838
    %v2875 = vunpack.c.l.b16 %v2839
    %v2876 = vpack.c.b16 %v2861, %v2860
    %v2877 = vpack.c.b16 %v2863, %v2862
    %v2878 = vpack.c.b16 %v2865, %v2864
    %v2879 = vpack.c.b16 %v2867, %v2866
    %v2880 = vpack.c.b16 %v2869, %v2868
    %v2881 = vpack.c.b16 %v2871, %v2870
    %v2882 = vpack.c.b16 %v2873, %v2872
    %v2883 = vpack.c.b16 %v2875, %v2874
    %2892 = vmatpush.bf16.msra.mxu0 %v2883
    %2893 = vmatpush.bf16.msra.mxu0 %v2882
    %2894 = vmatpush.bf16.msra.mxu0 %v2881
    %2895 = vmatpush.bf16.msra.mxu0 %v2880
    %2896 = vmatpush.bf16.msra.mxu0 %v2879
    %2897 = vmatpush.bf16.msra.mxu0 %v2878
    %2898 = vmatpush.bf16.msra.mxu0 %v2877
    %2899 = vmatpush.bf16.msra.mxu0 %v2876
    %2900 = vmatmul.bf16.gmra.mxu0 %v2816
    %v2901 = vpop.f32.mrf.mxu0
    %v2902 = vadd.f32 %v2842, %v2901
    %v2903 = vpop.f32.mrf.mxu0
    %v2904 = vadd.f32 %v2842, %v2903
    %2905 = vmatmul.bf16.gmra.mxu0 %v2817
    %v2906 = vpop.f32.mrf.mxu0
    %v2907 = vadd.f32 %v2842, %v2906
    %v2908 = vpop.f32.mrf.mxu0
    %v2909 = vadd.f32 %v2842, %v2908
    %2910 = vmatmul.bf16.gmra.mxu0 %v2818
    %v2911 = vpop.f32.mrf.mxu0
    %v2912 = vadd.f32 %v2842, %v2911
    %v2913 = vpop.f32.mrf.mxu0
    %v2914 = vadd.f32 %v2842, %v2913
    %2915 = vmatmul.bf16.gmra.mxu0 %v2819
    %v2916 = vpop.f32.mrf.mxu0
    %v2917 = vadd.f32 %v2842, %v2916
    %v2918 = vpop.f32.mrf.mxu0
    %v2919 = vadd.f32 %v2842, %v2918
    %2920 = vmatmul.bf16.gmra.mxu0 %v2820
    %v2921 = vpop.f32.mrf.mxu0
    %v2922 = vadd.f32 %v2842, %v2921
    %v2923 = vpop.f32.mrf.mxu0
    %v2924 = vadd.f32 %v2842, %v2923
    %2925 = vmatmul.bf16.gmra.mxu0 %v2821
    %v2926 = vpop.f32.mrf.mxu0
    %v2927 = vadd.f32 %v2842, %v2926
    %v2928 = vpop.f32.mrf.mxu0
    %v2929 = vadd.f32 %v2842, %v2928
    %2930 = vmatmul.bf16.gmra.mxu0 %v2822
    %v2931 = vpop.f32.mrf.mxu0
    %v2932 = vadd.f32 %v2842, %v2931
    %v2933 = vpop.f32.mrf.mxu0
    %v2934 = vadd.f32 %v2842, %v2933
    %2935 = vmatmul.bf16.gmra.mxu0 %v2823
    %v2936 = vpop.f32.mrf.mxu0
    %v2937 = vadd.f32 %v2842, %v2936
    %v2938 = vpop.f32.mrf.mxu0
    %v2939 = vadd.f32 %v2842, %v2938
    %2940 = vdwg.mxu0
    %v2941 = vadd.f32 %v2683, %v2902
    %v2942 = vadd.f32 %v2684, %v2904
    %v2943 = vadd.f32 %v2685, %v2907
    %v2944 = vadd.f32 %v2686, %v2909
    %v2945 = vadd.f32 %v2687, %v2912
    %v2946 = vadd.f32 %v2688, %v2914
    %v2947 = vadd.f32 %v2689, %v2917
    %v2948 = vadd.f32 %v2690, %v2919
    %v2949 = vadd.f32 %v2691, %v2922
    %v2950 = vadd.f32 %v2692, %v2924
    %v2951 = vadd.f32 %v2693, %v2927
    %v2952 = vadd.f32 %v2694, %v2929
    %v2953 = vadd.f32 %v2695, %v2932
    %v2954 = vadd.f32 %v2696, %v2934
    %v2955 = vadd.f32 %v2697, %v2937
    %v2956 = vadd.f32 %v2698, %v2939
    %v2957 = vld [vmem:[%s16] sm:$0x1]
    %v2958 = vld [vmem:[%s17] sm:$0x1]
    %v2959 = vsel %vm181, %v2941, 0.0
    %2960 = vadd.xlane.f32.xlu0 %v2959
    %v2961 = vpop.xlane.xlu0 %2960
    %v2962 = vsel %vm181, %v2942, 0.0
    %2963 = vadd.xlane.f32.xlu0 %v2962
    %v2964 = vpop.xlane.xlu0 %2963
    %v2965 = vsel %vm181, %v2943, 0.0
    %2966 = vadd.xlane.f32.xlu0 %v2965
    %v2967 = vpop.xlane.xlu0 %2966
    %v2968 = vsel %vm181, %v2944, 0.0
    %2969 = vadd.xlane.f32.xlu0 %v2968
    %v2970 = vpop.xlane.xlu0 %2969
    %v2971 = vsel %vm181, %v2945, 0.0
    %2972 = vadd.xlane.f32.xlu0 %v2971
    %v2973 = vpop.xlane.xlu0 %2972
    %v2974 = vsel %vm181, %v2946, 0.0
    %2975 = vadd.xlane.f32.xlu0 %v2974
    %v2976 = vpop.xlane.xlu0 %2975
    %v2977 = vsel %vm181, %v2947, 0.0
    %2978 = vadd.xlane.f32.xlu0 %v2977
    %v2979 = vpop.xlane.xlu0 %2978
    %v2980 = vsel %vm181, %v2948, 0.0
    %2981 = vadd.xlane.f32.xlu0 %v2980
    %v2982 = vpop.xlane.xlu0 %2981
    %v2983 = vsel %vm181, %v2949, 0.0
    %2984 = vadd.xlane.f32.xlu0 %v2983
    %v2985 = vpop.xlane.xlu0 %2984
    %v2986 = vsel %vm181, %v2950, 0.0
    %2987 = vadd.xlane.f32.xlu0 %v2986
    %v2988 = vpop.xlane.xlu0 %2987
    %v2989 = vsel %vm181, %v2951, 0.0
    %2990 = vadd.xlane.f32.xlu0 %v2989
    %v2991 = vpop.xlane.xlu0 %2990
    %v2992 = vsel %vm181, %v2952, 0.0
    %2993 = vadd.xlane.f32.xlu0 %v2992
    %v2994 = vpop.xlane.xlu0 %2993
    %v2995 = vsel %vm181, %v2953, 0.0
    %2996 = vadd.xlane.f32.xlu0 %v2995
    %v2997 = vpop.xlane.xlu0 %2996
    %v2998 = vsel %vm181, %v2954, 0.0
    %2999 = vadd.xlane.f32.xlu0 %v2998
    %v3000 = vpop.xlane.xlu0 %2999
    %v3001 = vsel %vm181, %v2955, 0.0
    %3002 = vadd.xlane.f32.xlu0 %v3001
    %v3003 = vpop.xlane.xlu0 %3002
    %v3004 = vsel %vm181, %v2956, 0.0
    %3005 = vadd.xlane.f32.xlu0 %v3004
    %v3006 = vpop.xlane.xlu0 %3005
    %v3007 = vmul.f32 %v2961, %v2356
    %v3008 = vmul.f32 %v2964, %v2356
    %v3009 = vmul.f32 %v2967, %v2356
    %v3010 = vmul.f32 %v2970, %v2356
    %v3011 = vmul.f32 %v2973, %v2356
    %v3012 = vmul.f32 %v2976, %v2356
    %v3013 = vmul.f32 %v2979, %v2356
    %v3014 = vmul.f32 %v2982, %v2356
    %v3015 = vmul.f32 %v2985, %v2356
    %v3016 = vmul.f32 %v2988, %v2356
    %v3017 = vmul.f32 %v2991, %v2356
    %v3018 = vmul.f32 %v2994, %v2356
    %v3019 = vmul.f32 %v2997, %v2356
    %v3020 = vmul.f32 %v3000, %v2356
    %v3021 = vmul.f32 %v3003, %v2356
    %v3022 = vmul.f32 %v3006, %v2356
    %v3023 = vsub.f32 %v2941, %v3007
    %v3024 = vsub.f32 %v2942, %v3008
    %v3025 = vsub.f32 %v2943, %v3009
    %v3026 = vsub.f32 %v2944, %v3010
    %v3027 = vsub.f32 %v2945, %v3011
    %v3028 = vsub.f32 %v2946, %v3012
    %v3029 = vsub.f32 %v2947, %v3013
    %v3030 = vsub.f32 %v2948, %v3014
    %v3031 = vsub.f32 %v2949, %v3015
    %v3032 = vsub.f32 %v2950, %v3016
    %v3033 = vsub.f32 %v2951, %v3017
    %v3034 = vsub.f32 %v2952, %v3018
    %v3035 = vsub.f32 %v2953, %v3019
    %v3036 = vsub.f32 %v2954, %v3020
    %v3037 = vsub.f32 %v2955, %v3021
    %v3038 = vsub.f32 %v2956, %v3022
    %v3039 = vmul.f32 %v3023, %v3023
    %v3040 = vmul.f32 %v3024, %v3024
    %v3041 = vmul.f32 %v3025, %v3025
    %v3042 = vmul.f32 %v3026, %v3026
    %v3043 = vmul.f32 %v3027, %v3027
    %v3044 = vmul.f32 %v3028, %v3028
    %v3045 = vmul.f32 %v3029, %v3029
    %v3046 = vmul.f32 %v3030, %v3030
    %v3047 = vmul.f32 %v3031, %v3031
    %v3048 = vmul.f32 %v3032, %v3032
    %v3049 = vmul.f32 %v3033, %v3033
    %v3050 = vmul.f32 %v3034, %v3034
    %v3051 = vmul.f32 %v3035, %v3035
    %v3052 = vmul.f32 %v3036, %v3036
    %v3053 = vmul.f32 %v3037, %v3037
    %v3054 = vmul.f32 %v3038, %v3038
    %v3055 = vsel %vm181, %v3039, 0.0
    %3056 = vadd.xlane.f32.xlu0 %v3055
    %v3057 = vpop.xlane.xlu0 %3056
    %v3058 = vsel %vm181, %v3040, 0.0
    %3059 = vadd.xlane.f32.xlu0 %v3058
    %v3060 = vpop.xlane.xlu0 %3059
    %v3061 = vsel %vm181, %v3041, 0.0
    %3062 = vadd.xlane.f32.xlu0 %v3061
    %v3063 = vpop.xlane.xlu0 %3062
    %v3064 = vsel %vm181, %v3042, 0.0
    %3065 = vadd.xlane.f32.xlu0 %v3064
    %v3066 = vpop.xlane.xlu0 %3065
    %v3067 = vsel %vm181, %v3043, 0.0
    %3068 = vadd.xlane.f32.xlu0 %v3067
    %v3069 = vpop.xlane.xlu0 %3068
    %v3070 = vsel %vm181, %v3044, 0.0
    %3071 = vadd.xlane.f32.xlu0 %v3070
    %v3072 = vpop.xlane.xlu0 %3071
    %v3073 = vsel %vm181, %v3045, 0.0
    %3074 = vadd.xlane.f32.xlu0 %v3073
    %v3075 = vpop.xlane.xlu0 %3074
    %v3076 = vsel %vm181, %v3046, 0.0
    %3077 = vadd.xlane.f32.xlu0 %v3076
    %v3078 = vpop.xlane.xlu0 %3077
    %v3079 = vsel %vm181, %v3047, 0.0
    %3080 = vadd.xlane.f32.xlu0 %v3079
    %v3081 = vpop.xlane.xlu0 %3080
    %v3082 = vsel %vm181, %v3048, 0.0
    %3083 = vadd.xlane.f32.xlu0 %v3082
    %v3084 = vpop.xlane.xlu0 %3083
    %v3085 = vsel %vm181, %v3049, 0.0
    %3086 = vadd.xlane.f32.xlu0 %v3085
    %v3087 = vpop.xlane.xlu0 %3086
    %v3088 = vsel %vm181, %v3050, 0.0
    %3089 = vadd.xlane.f32.xlu0 %v3088
    %v3090 = vpop.xlane.xlu0 %3089
    %v3091 = vsel %vm181, %v3051, 0.0
    %3092 = vadd.xlane.f32.xlu0 %v3091
    %v3093 = vpop.xlane.xlu0 %3092
    %v3094 = vsel %vm181, %v3052, 0.0
    %3095 = vadd.xlane.f32.xlu0 %v3094
    %v3096 = vpop.xlane.xlu0 %3095
    %v3097 = vsel %vm181, %v3053, 0.0
    %3098 = vadd.xlane.f32.xlu0 %v3097
    %v3099 = vpop.xlane.xlu0 %3098
    %v3100 = vsel %vm181, %v3054, 0.0
    %3101 = vadd.xlane.f32.xlu0 %v3100
    %v3102 = vpop.xlane.xlu0 %3101
    %v3103 = vmul.f32 %v3057, %v2356
    %v3104 = vmul.f32 %v3060, %v2356
    %v3105 = vmul.f32 %v3063, %v2356
    %v3106 = vmul.f32 %v3066, %v2356
    %v3107 = vmul.f32 %v3069, %v2356
    %v3108 = vmul.f32 %v3072, %v2356
    %v3109 = vmul.f32 %v3075, %v2356
    %v3110 = vmul.f32 %v3078, %v2356
    %v3111 = vmul.f32 %v3081, %v2356
    %v3112 = vmul.f32 %v3084, %v2356
    %v3113 = vmul.f32 %v3087, %v2356
    %v3114 = vmul.f32 %v3090, %v2356
    %v3115 = vmul.f32 %v3093, %v2356
    %v3116 = vmul.f32 %v3096, %v2356
    %v3117 = vmul.f32 %v3099, %v2356
    %v3118 = vmul.f32 %v3102, %v2356
    %v3119 = vadd.f32 %v3103, 1e-05
    %v3120 = vadd.f32 %v3104, 1e-05
    %v3121 = vadd.f32 %v3105, 1e-05
    %v3122 = vadd.f32 %v3106, 1e-05
    %v3123 = vadd.f32 %v3107, 1e-05
    %v3124 = vadd.f32 %v3108, 1e-05
    %v3125 = vadd.f32 %v3109, 1e-05
    %v3126 = vadd.f32 %v3110, 1e-05
    %v3127 = vadd.f32 %v3111, 1e-05
    %v3128 = vadd.f32 %v3112, 1e-05
    %v3129 = vadd.f32 %v3113, 1e-05
    %v3130 = vadd.f32 %v3114, 1e-05
    %v3131 = vadd.f32 %v3115, 1e-05
    %v3132 = vadd.f32 %v3116, 1e-05
    %v3133 = vadd.f32 %v3117, 1e-05
    %v3134 = vadd.f32 %v3118, 1e-05
    %v3135 = vrsqrt.pop %v3119
    %v3136 = vmul.f32 %v3135, %v3119
    %v3137 = vmul.f32 %v3136, %v3135
    %v3138 = vmul.f32 0.5, %v3137
    %v3139 = vsub.f32 1.5, %v3138
    %v3140 = vmul.f32 %v3135, %v3139
    %vm3141 = vweird.f32 %v3119
    %vm3142 = vweird.f32 %v3135
    %vm3143 = vmor %vm3141, %vm3142
    %v3144 = vsel %vm3143, %v3135, %v3140
    %v3145 = vrsqrt.pop %v3120
    %v3146 = vmul.f32 %v3145, %v3120
    %v3147 = vmul.f32 %v3146, %v3145
    %v3148 = vmul.f32 0.5, %v3147
    %v3149 = vsub.f32 1.5, %v3148
    %v3150 = vmul.f32 %v3145, %v3149
    %vm3151 = vweird.f32 %v3120
    %vm3152 = vweird.f32 %v3145
    %vm3153 = vmor %vm3151, %vm3152
    %v3154 = vsel %vm3153, %v3145, %v3150
    %v3155 = vrsqrt.pop %v3121
    %v3156 = vmul.f32 %v3155, %v3121
    %v3157 = vmul.f32 %v3156, %v3155
    %v3158 = vmul.f32 0.5, %v3157
    %v3159 = vsub.f32 1.5, %v3158
    %v3160 = vmul.f32 %v3155, %v3159
    %vm3161 = vweird.f32 %v3121
    %vm3162 = vweird.f32 %v3155
    %vm3163 = vmor %vm3161, %vm3162
    %v3164 = vsel %vm3163, %v3155, %v3160
    %v3165 = vrsqrt.pop %v3122
    %v3166 = vmul.f32 %v3165, %v3122
    %v3167 = vmul.f32 %v3166, %v3165
    %v3168 = vmul.f32 0.5, %v3167
    %v3169 = vsub.f32 1.5, %v3168
    %v3170 = vmul.f32 %v3165, %v3169
    %vm3171 = vweird.f32 %v3122
    %vm3172 = vweird.f32 %v3165
    %vm3173 = vmor %vm3171, %vm3172
    %v3174 = vsel %vm3173, %v3165, %v3170
    %v3175 = vrsqrt.pop %v3123
    %v3176 = vmul.f32 %v3175, %v3123
    %v3177 = vmul.f32 %v3176, %v3175
    %v3178 = vmul.f32 0.5, %v3177
    %v3179 = vsub.f32 1.5, %v3178
    %v3180 = vmul.f32 %v3175, %v3179
    %vm3181 = vweird.f32 %v3123
    %vm3182 = vweird.f32 %v3175
    %vm3183 = vmor %vm3181, %vm3182
    %v3184 = vsel %vm3183, %v3175, %v3180
    %v3185 = vrsqrt.pop %v3124
    %v3186 = vmul.f32 %v3185, %v3124
    %v3187 = vmul.f32 %v3186, %v3185
    %v3188 = vmul.f32 0.5, %v3187
    %v3189 = vsub.f32 1.5, %v3188
    %v3190 = vmul.f32 %v3185, %v3189
    %vm3191 = vweird.f32 %v3124
    %vm3192 = vweird.f32 %v3185
    %vm3193 = vmor %vm3191, %vm3192
    %v3194 = vsel %vm3193, %v3185, %v3190
    %v3195 = vrsqrt.pop %v3125
    %v3196 = vmul.f32 %v3195, %v3125
    %v3197 = vmul.f32 %v3196, %v3195
    %v3198 = vmul.f32 0.5, %v3197
    %v3199 = vsub.f32 1.5, %v3198
    %v3200 = vmul.f32 %v3195, %v3199
    %vm3201 = vweird.f32 %v3125
    %vm3202 = vweird.f32 %v3195
    %vm3203 = vmor %vm3201, %vm3202
    %v3204 = vsel %vm3203, %v3195, %v3200
    %v3205 = vrsqrt.pop %v3126
    %v3206 = vmul.f32 %v3205, %v3126
    %v3207 = vmul.f32 %v3206, %v3205
    %v3208 = vmul.f32 0.5, %v3207
    %v3209 = vsub.f32 1.5, %v3208
    %v3210 = vmul.f32 %v3205, %v3209
    %vm3211 = vweird.f32 %v3126
    %vm3212 = vweird.f32 %v3205
    %vm3213 = vmor %vm3211, %vm3212
    %v3214 = vsel %vm3213, %v3205, %v3210
    %v3215 = vrsqrt.pop %v3127
    %v3216 = vmul.f32 %v3215, %v3127
    %v3217 = vmul.f32 %v3216, %v3215
    %v3218 = vmul.f32 0.5, %v3217
    %v3219 = vsub.f32 1.5, %v3218
    %v3220 = vmul.f32 %v3215, %v3219
    %vm3221 = vweird.f32 %v3127
    %vm3222 = vweird.f32 %v3215
    %vm3223 = vmor %vm3221, %vm3222
    %v3224 = vsel %vm3223, %v3215, %v3220
    %v3225 = vrsqrt.pop %v3128
    %v3226 = vmul.f32 %v3225, %v3128
    %v3227 = vmul.f32 %v3226, %v3225
    %v3228 = vmul.f32 0.5, %v3227
    %v3229 = vsub.f32 1.5, %v3228
    %v3230 = vmul.f32 %v3225, %v3229
    %vm3231 = vweird.f32 %v3128
    %vm3232 = vweird.f32 %v3225
    %vm3233 = vmor %vm3231, %vm3232
    %v3234 = vsel %vm3233, %v3225, %v3230
    %v3235 = vrsqrt.pop %v3129
    %v3236 = vmul.f32 %v3235, %v3129
    %v3237 = vmul.f32 %v3236, %v3235
    %v3238 = vmul.f32 0.5, %v3237
    %v3239 = vsub.f32 1.5, %v3238
    %v3240 = vmul.f32 %v3235, %v3239
    %vm3241 = vweird.f32 %v3129
    %vm3242 = vweird.f32 %v3235
    %vm3243 = vmor %vm3241, %vm3242
    %v3244 = vsel %vm3243, %v3235, %v3240
    %v3245 = vrsqrt.pop %v3130
    %v3246 = vmul.f32 %v3245, %v3130
    %v3247 = vmul.f32 %v3246, %v3245
    %v3248 = vmul.f32 0.5, %v3247
    %v3249 = vsub.f32 1.5, %v3248
    %v3250 = vmul.f32 %v3245, %v3249
    %vm3251 = vweird.f32 %v3130
    %vm3252 = vweird.f32 %v3245
    %vm3253 = vmor %vm3251, %vm3252
    %v3254 = vsel %vm3253, %v3245, %v3250
    %v3255 = vrsqrt.pop %v3131
    %v3256 = vmul.f32 %v3255, %v3131
    %v3257 = vmul.f32 %v3256, %v3255
    %v3258 = vmul.f32 0.5, %v3257
    %v3259 = vsub.f32 1.5, %v3258
    %v3260 = vmul.f32 %v3255, %v3259
    %vm3261 = vweird.f32 %v3131
    %vm3262 = vweird.f32 %v3255
    %vm3263 = vmor %vm3261, %vm3262
    %v3264 = vsel %vm3263, %v3255, %v3260
    %v3265 = vrsqrt.pop %v3132
    %v3266 = vmul.f32 %v3265, %v3132
    %v3267 = vmul.f32 %v3266, %v3265
    %v3268 = vmul.f32 0.5, %v3267
    %v3269 = vsub.f32 1.5, %v3268
    %v3270 = vmul.f32 %v3265, %v3269
    %vm3271 = vweird.f32 %v3132
    %vm3272 = vweird.f32 %v3265
    %vm3273 = vmor %vm3271, %vm3272
    %v3274 = vsel %vm3273, %v3265, %v3270
    %v3275 = vrsqrt.pop %v3133
    %v3276 = vmul.f32 %v3275, %v3133
    %v3277 = vmul.f32 %v3276, %v3275
    %v3278 = vmul.f32 0.5, %v3277
    %v3279 = vsub.f32 1.5, %v3278
    %v3280 = vmul.f32 %v3275, %v3279
    %vm3281 = vweird.f32 %v3133
    %vm3282 = vweird.f32 %v3275
    %vm3283 = vmor %vm3281, %vm3282
    %v3284 = vsel %vm3283, %v3275, %v3280
    %v3285 = vrsqrt.pop %v3134
    %v3286 = vmul.f32 %v3285, %v3134
    %v3287 = vmul.f32 %v3286, %v3285
    %v3288 = vmul.f32 0.5, %v3287
    %v3289 = vsub.f32 1.5, %v3288
    %v3290 = vmul.f32 %v3285, %v3289
    %vm3291 = vweird.f32 %v3134
    %vm3292 = vweird.f32 %v3285
    %vm3293 = vmor %vm3291, %vm3292
    %v3294 = vsel %vm3293, %v3285, %v3290
    %v3295 = vmul.f32 %v3023, %v3144
    %v3296 = vmul.f32 %v3024, %v3154
    %v3297 = vmul.f32 %v3025, %v3164
    %v3298 = vmul.f32 %v3026, %v3174
    %v3299 = vmul.f32 %v3027, %v3184
    %v3300 = vmul.f32 %v3028, %v3194
    %v3301 = vmul.f32 %v3029, %v3204
    %v3302 = vmul.f32 %v3030, %v3214
    %v3303 = vmul.f32 %v3031, %v3224
    %v3304 = vmul.f32 %v3032, %v3234
    %v3305 = vmul.f32 %v3033, %v3244
    %v3306 = vmul.f32 %v3034, %v3254
    %v3307 = vmul.f32 %v3035, %v3264
    %v3308 = vmul.f32 %v3036, %v3274
    %v3309 = vmul.f32 %v3037, %v3284
    %v3310 = vmul.f32 %v3038, %v3294
    %v3312 = vperm.slane %v2957, 0
    %v3314 = vmul.f32 %v3295, %v3312
    %v3315 = vmul.f32 %v3296, %v3312
    %v3316 = vmul.f32 %v3297, %v3312
    %v3317 = vmul.f32 %v3298, %v3312
    %v3318 = vmul.f32 %v3299, %v3312
    %v3319 = vmul.f32 %v3300, %v3312
    %v3320 = vmul.f32 %v3301, %v3312
    %v3321 = vmul.f32 %v3302, %v3312
    %v3322 = vmul.f32 %v3303, %v3312
    %v3323 = vmul.f32 %v3304, %v3312
    %v3324 = vmul.f32 %v3305, %v3312
    %v3325 = vmul.f32 %v3306, %v3312
    %v3326 = vmul.f32 %v3307, %v3312
    %v3327 = vmul.f32 %v3308, %v3312
    %v3328 = vmul.f32 %v3309, %v3312
    %v3329 = vmul.f32 %v3310, %v3312
    %v3331 = vperm.slane %v2958, 0
    %v3333 = vadd.f32 %v3314, %v3331
    %v3334 = vadd.f32 %v3315, %v3331
    %v3335 = vadd.f32 %v3316, %v3331
    %v3336 = vadd.f32 %v3317, %v3331
    %v3337 = vadd.f32 %v3318, %v3331
    %v3338 = vadd.f32 %v3319, %v3331
    %v3339 = vadd.f32 %v3320, %v3331
    %v3340 = vadd.f32 %v3321, %v3331
    %v3341 = vadd.f32 %v3322, %v3331
    %v3342 = vadd.f32 %v3323, %v3331
    %v3343 = vadd.f32 %v3324, %v3331
    %v3344 = vadd.f32 %v3325, %v3331
    %v3345 = vadd.f32 %v3326, %v3331
    %v3346 = vadd.f32 %v3327, %v3331
    %v3347 = vadd.f32 %v3328, %v3331
    %v3348 = vadd.f32 %v3329, %v3331
    %v3349 = vpack.c.bf16 %v3334, %v3333
    %v3350 = vpack.c.bf16 %v3336, %v3335
    %v3351 = vpack.c.bf16 %v3338, %v3337
    %v3352 = vpack.c.bf16 %v3340, %v3339
    %v3353 = vpack.c.bf16 %v3342, %v3341
    %v3354 = vpack.c.bf16 %v3344, %v3343
    %v3355 = vpack.c.bf16 %v3346, %v3345
    %v3356 = vpack.c.bf16 %v3348, %v3347
    %s3357 = scalar_lea.vmem %s6, 16
    %v3358 = vld [vmem:[%s3357] sm:$0xf]
    %v3359 = vld [vmem:[%s3357 + $0x4] sm:$0xf]
    %v3360 = vld [vmem:[%s3357 + $0x8] sm:$0xf]
    %v3361 = vld [vmem:[%s3357 + $0xc] sm:$0xf]
    %s3362 = scalar_lea.vmem %s7, 1
    %v3363 = vld [vmem:[%s3362] sm:$0x1]
    %v3365 = vperm.slane %v3363, 0
    %v3371 = vunpack.c.l.b16 %v3358
    %v3372 = vunpack.c.l.b16 %v3359
    %v3373 = vunpack.c.l.b16 %v3360
    %v3374 = vunpack.c.l.b16 %v3361
    %v3375 = vpack.c.b16 %v3372, %v3371
    %v3376 = vpack.c.b16 %v3374, %v3373
    %v3380 = vsel %vm181, %v3349, 0
    %v3383 = vsel %vm181, %v3350, 0
    %v3386 = vsel %vm181, %v3351, 0
    %v3389 = vsel %vm181, %v3352, 0
    %v3392 = vsel %vm181, %v3353, 0
    %v3395 = vsel %vm181, %v3354, 0
    %v3398 = vsel %vm181, %v3355, 0
    %v3401 = vsel %vm181, %v3356, 0
    %3403 = vmatpush.bf16.msra.mxu0 0
    %3404 = vmatpush.bf16.msra.mxu0 0
    %3405 = vmatpush.bf16.msra.mxu0 0
    %3406 = vmatpush.bf16.msra.mxu0 0
    %3407 = vmatpush.bf16.msra.mxu0 0
    %3408 = vmatpush.bf16.msra.mxu0 0
    %3409 = vmatpush.bf16.msra.mxu0 %v3376
    %3410 = vmatpush.bf16.msra.mxu0 %v3375
    %3411 = vmatmul.bf16.gmra.mxu0 %v3380
    %v3412 = vpop.f32.mrf.mxu0
    %v3413 = vadd.f32 %v3365, %v3412
    %v3414 = vpop.f32.mrf.mxu0
    %v3415 = vadd.f32 %v3365, %v3414
    %3416 = vmatmul.bf16.gmra.mxu0 %v3383
    %v3417 = vpop.f32.mrf.mxu0
    %v3418 = vadd.f32 %v3365, %v3417
    %v3419 = vpop.f32.mrf.mxu0
    %v3420 = vadd.f32 %v3365, %v3419
    %3421 = vmatmul.bf16.gmra.mxu0 %v3386
    %v3422 = vpop.f32.mrf.mxu0
    %v3423 = vadd.f32 %v3365, %v3422
    %v3424 = vpop.f32.mrf.mxu0
    %v3425 = vadd.f32 %v3365, %v3424
    %3426 = vmatmul.bf16.gmra.mxu0 %v3389
    %v3427 = vpop.f32.mrf.mxu0
    %v3428 = vadd.f32 %v3365, %v3427
    %v3429 = vpop.f32.mrf.mxu0
    %v3430 = vadd.f32 %v3365, %v3429
    %3431 = vmatmul.bf16.gmra.mxu0 %v3392
    %v3432 = vpop.f32.mrf.mxu0
    %v3433 = vadd.f32 %v3365, %v3432
    %v3434 = vpop.f32.mrf.mxu0
    %v3435 = vadd.f32 %v3365, %v3434
    %3436 = vmatmul.bf16.gmra.mxu0 %v3395
    %v3437 = vpop.f32.mrf.mxu0
    %v3438 = vadd.f32 %v3365, %v3437
    %v3439 = vpop.f32.mrf.mxu0
    %v3440 = vadd.f32 %v3365, %v3439
    %3441 = vmatmul.bf16.gmra.mxu0 %v3398
    %v3442 = vpop.f32.mrf.mxu0
    %v3443 = vadd.f32 %v3365, %v3442
    %v3444 = vpop.f32.mrf.mxu0
    %v3445 = vadd.f32 %v3365, %v3444
    %3446 = vmatmul.bf16.gmra.mxu0 %v3401
    %v3447 = vpop.f32.mrf.mxu0
    %v3448 = vadd.f32 %v3365, %v3447
    %v3449 = vpop.f32.mrf.mxu0
    %v3450 = vadd.f32 %v3365, %v3449
    %3451 = vdwg.mxu0
    %v3452 = vpack.c.bf16 %v3413, %v3413
    %v3453 = vpack.c.bf16 %v3415, %v3415
    %v3454 = vpack.c.bf16 %v3418, %v3418
    %v3455 = vpack.c.bf16 %v3420, %v3420
    %v3456 = vpack.c.bf16 %v3423, %v3423
    %v3457 = vpack.c.bf16 %v3425, %v3425
    %v3458 = vpack.c.bf16 %v3428, %v3428
    %v3459 = vpack.c.bf16 %v3430, %v3430
    %v3460 = vpack.c.bf16 %v3433, %v3433
    %v3461 = vpack.c.bf16 %v3435, %v3435
    %v3462 = vpack.c.bf16 %v3438, %v3438
    %v3463 = vpack.c.bf16 %v3440, %v3440
    %v3464 = vpack.c.bf16 %v3443, %v3443
    %v3465 = vpack.c.bf16 %v3445, %v3445
    %v3466 = vpack.c.bf16 %v3448, %v3448
    %v3467 = vpack.c.bf16 %v3450, %v3450
    %v3484 = vunpack.c.l.b16 %v3452
    %v3485 = vunpack.c.l.b16 %v3453
    %v3486 = vunpack.c.l.b16 %v3454
    %v3487 = vunpack.c.l.b16 %v3455
    %v3488 = vunpack.c.l.b16 %v3456
    %v3489 = vunpack.c.l.b16 %v3457
    %v3490 = vunpack.c.l.b16 %v3458
    %v3491 = vunpack.c.l.b16 %v3459
    %v3492 = vunpack.c.l.b16 %v3460
    %v3493 = vunpack.c.l.b16 %v3461
    %v3494 = vunpack.c.l.b16 %v3462
    %v3495 = vunpack.c.l.b16 %v3463
    %v3496 = vunpack.c.l.b16 %v3464
    %v3497 = vunpack.c.l.b16 %v3465
    %v3498 = vunpack.c.l.b16 %v3466
    %v3499 = vunpack.c.l.b16 %v3467
    %v3500 = vpack.c.b16 %v3485, %v3484
    %v3501 = vpack.c.b16 %v3487, %v3486
    %v3502 = vpack.c.b16 %v3489, %v3488
    %v3503 = vpack.c.b16 %v3491, %v3490
    %v3504 = vpack.c.b16 %v3493, %v3492
    %v3505 = vpack.c.b16 %v3495, %v3494
    %v3506 = vpack.c.b16 %v3497, %v3496
    %v3507 = vpack.c.b16 %v3499, %v3498
    %3508 = vrot.lane.b32.xlu0 %v3500, 96
    %v3509 = vpop.permute.xlu0 %3508
    %3510 = vrot.lane.b32.xlu0 %v3501, 96
    %v3511 = vpop.permute.xlu0 %3510
    %3512 = vrot.lane.b32.xlu0 %v3502, 96
    %v3513 = vpop.permute.xlu0 %3512
    %3514 = vrot.lane.b32.xlu0 %v3503, 96
    %v3515 = vpop.permute.xlu0 %3514
    %3516 = vrot.lane.b32.xlu0 %v3504, 96
    %v3517 = vpop.permute.xlu0 %3516
    %3518 = vrot.lane.b32.xlu0 %v3505, 96
    %v3519 = vpop.permute.xlu0 %3518
    %3520 = vrot.lane.b32.xlu0 %v3506, 96
    %v3521 = vpop.permute.xlu0 %3520
    %3522 = vrot.lane.b32.xlu0 %v3507, 96
    %v3523 = vpop.permute.xlu0 %3522
    %v3525 = vsel %vm428, %v3500, 0
    %v3528 = vsel %vm428, %v3501, 0
    %v3531 = vsel %vm428, %v3502, 0
    %v3534 = vsel %vm428, %v3503, 0
    %v3537 = vsel %vm428, %v3504, 0
    %v3540 = vsel %vm428, %v3505, 0
    %v3543 = vsel %vm428, %v3506, 0
    %v3546 = vsel %vm428, %v3507, 0
    %v3549 = vsel %vm428, %v3509, 0
    %v3552 = vsel %vm428, %v3511, 0
    %v3555 = vsel %vm428, %v3513, 0
    %v3558 = vsel %vm428, %v3515, 0
    %v3561 = vsel %vm428, %v3517, 0
    %v3564 = vsel %vm428, %v3519, 0
    %v3567 = vsel %vm428, %v3521, 0
    %v3570 = vsel %vm428, %v3523, 0
    %3572 = vmatpush.bf16.xpose.msra.mxu0 %v3570
    %3573 = vmatpush.bf16.xpose.msra.mxu0 %v3567
    %3574 = vmatpush.bf16.xpose.msra.mxu0 %v3564
    %3575 = vmatpush.bf16.xpose.msra.mxu0 %v3561
    %3576 = vmatpush.bf16.xpose.msra.mxu0 %v3558
    %3577 = vmatpush.bf16.xpose.msra.mxu0 %v3555
    %3578 = vmatpush.bf16.xpose.msra.mxu0 %v3552
    %3579 = vmatpush.bf16.xpose.msra.mxu0 %v3549
    %3580 = vmatmul.bf16.gmra.mxu0 %v3525
    %v3581 = vpop.f32.mrf.mxu0
    %v3582 = vadd.f32 0.0, %v3581
    %v3583 = vpop.f32.mrf.mxu0
    %v3584 = vadd.f32 0.0, %v3583
    %3585 = vmatmul.bf16.gmra.mxu0 %v3528
    %v3586 = vpop.f32.mrf.mxu0
    %v3587 = vadd.f32 0.0, %v3586
    %v3588 = vpop.f32.mrf.mxu0
    %v3589 = vadd.f32 0.0, %v3588
    %3590 = vmatmul.bf16.gmra.mxu0 %v3531
    %v3591 = vpop.f32.mrf.mxu0
    %v3592 = vadd.f32 0.0, %v3591
    %v3593 = vpop.f32.mrf.mxu0
    %v3594 = vadd.f32 0.0, %v3593
    %3595 = vmatmul.bf16.gmra.mxu0 %v3534
    %v3596 = vpop.f32.mrf.mxu0
    %v3597 = vadd.f32 0.0, %v3596
    %v3598 = vpop.f32.mrf.mxu0
    %v3599 = vadd.f32 0.0, %v3598
    %3600 = vmatmul.bf16.gmra.mxu0 %v3537
    %v3601 = vpop.f32.mrf.mxu0
    %v3602 = vadd.f32 0.0, %v3601
    %v3603 = vpop.f32.mrf.mxu0
    %v3604 = vadd.f32 0.0, %v3603
    %3605 = vmatmul.bf16.gmra.mxu0 %v3540
    %v3606 = vpop.f32.mrf.mxu0
    %v3607 = vadd.f32 0.0, %v3606
    %v3608 = vpop.f32.mrf.mxu0
    %v3609 = vadd.f32 0.0, %v3608
    %3610 = vmatmul.bf16.gmra.mxu0 %v3543
    %v3611 = vpop.f32.mrf.mxu0
    %v3612 = vadd.f32 0.0, %v3611
    %v3613 = vpop.f32.mrf.mxu0
    %v3614 = vadd.f32 0.0, %v3613
    %3615 = vmatmul.bf16.gmra.mxu0 %v3546
    %v3616 = vpop.f32.mrf.mxu0
    %v3617 = vadd.f32 0.0, %v3616
    %v3618 = vpop.f32.mrf.mxu0
    %v3619 = vadd.f32 0.0, %v3618
    %3620 = vdwg.mxu0
    %v3621 = vmul.f32 %v3582, 0.35355338
    %v3622 = vmul.f32 %v3584, 0.35355338
    %v3623 = vmul.f32 %v3587, 0.35355338
    %v3624 = vmul.f32 %v3589, 0.35355338
    %v3625 = vmul.f32 %v3592, 0.35355338
    %v3626 = vmul.f32 %v3594, 0.35355338
    %v3627 = vmul.f32 %v3597, 0.35355338
    %v3628 = vmul.f32 %v3599, 0.35355338
    %v3629 = vmul.f32 %v3602, 0.35355338
    %v3630 = vmul.f32 %v3604, 0.35355338
    %v3631 = vmul.f32 %v3607, 0.35355338
    %v3632 = vmul.f32 %v3609, 0.35355338
    %v3633 = vmul.f32 %v3612, 0.35355338
    %v3634 = vmul.f32 %v3614, 0.35355338
    %v3635 = vmul.f32 %v3617, 0.35355338
    %v3636 = vmul.f32 %v3619, 0.35355338
    %v3637 = vadd.f32 %v3621, %v77
    %v3638 = vadd.f32 %v3622, %v78
    %v3639 = vadd.f32 %v3623, %v79
    %v3640 = vadd.f32 %v3624, %v80
    %v3641 = vadd.f32 %v3625, %v81
    %v3642 = vadd.f32 %v3626, %v82
    %v3643 = vadd.f32 %v3627, %v83
    %v3644 = vadd.f32 %v3628, %v84
    %v3645 = vadd.f32 %v3629, %v85
    %v3646 = vadd.f32 %v3630, %v86
    %v3647 = vadd.f32 %v3631, %v87
    %v3648 = vadd.f32 %v3632, %v88
    %v3649 = vadd.f32 %v3633, %v89
    %v3650 = vadd.f32 %v3634, %v90
    %v3651 = vadd.f32 %v3635, %v91
    %v3652 = vadd.f32 %v3636, %v92
    %3653 = vmax.xlane.f32.xlu0 %v3637
    %v3654 = vpop.xlane.xlu0 %3653
    %3655 = vmax.xlane.f32.xlu0 %v3638
    %v3656 = vpop.xlane.xlu0 %3655
    %3657 = vmax.xlane.f32.xlu0 %v3639
    %v3658 = vpop.xlane.xlu0 %3657
    %3659 = vmax.xlane.f32.xlu0 %v3640
    %v3660 = vpop.xlane.xlu0 %3659
    %3661 = vmax.xlane.f32.xlu0 %v3641
    %v3662 = vpop.xlane.xlu0 %3661
    %3663 = vmax.xlane.f32.xlu0 %v3642
    %v3664 = vpop.xlane.xlu0 %3663
    %3665 = vmax.xlane.f32.xlu0 %v3643
    %v3666 = vpop.xlane.xlu0 %3665
    %3667 = vmax.xlane.f32.xlu0 %v3644
    %v3668 = vpop.xlane.xlu0 %3667
    %3669 = vmax.xlane.f32.xlu0 %v3645
    %v3670 = vpop.xlane.xlu0 %3669
    %3671 = vmax.xlane.f32.xlu0 %v3646
    %v3672 = vpop.xlane.xlu0 %3671
    %3673 = vmax.xlane.f32.xlu0 %v3647
    %v3674 = vpop.xlane.xlu0 %3673
    %3675 = vmax.xlane.f32.xlu0 %v3648
    %v3676 = vpop.xlane.xlu0 %3675
    %3677 = vmax.xlane.f32.xlu0 %v3649
    %v3678 = vpop.xlane.xlu0 %3677
    %3679 = vmax.xlane.f32.xlu0 %v3650
    %v3680 = vpop.xlane.xlu0 %3679
    %3681 = vmax.xlane.f32.xlu0 %v3651
    %v3682 = vpop.xlane.xlu0 %3681
    %3683 = vmax.xlane.f32.xlu0 %v3652
    %v3684 = vpop.xlane.xlu0 %3683
    %v3685 = vsub.f32 %v3637, %v3654
    %v3686 = vsub.f32 %v3638, %v3656
    %v3687 = vsub.f32 %v3639, %v3658
    %v3688 = vsub.f32 %v3640, %v3660
    %v3689 = vsub.f32 %v3641, %v3662
    %v3690 = vsub.f32 %v3642, %v3664
    %v3691 = vsub.f32 %v3643, %v3666
    %v3692 = vsub.f32 %v3644, %v3668
    %v3693 = vsub.f32 %v3645, %v3670
    %v3694 = vsub.f32 %v3646, %v3672
    %v3695 = vsub.f32 %v3647, %v3674
    %v3696 = vsub.f32 %v3648, %v3676
    %v3697 = vsub.f32 %v3649, %v3678
    %v3698 = vsub.f32 %v3650, %v3680
    %v3699 = vsub.f32 %v3651, %v3682
    %v3700 = vsub.f32 %v3652, %v3684
    %v3701 = vmul.f32 %v3685, 1.442695
    %v3702 = vpow.pop %v3701
    %v3703 = vmul.f32 %v3686, 1.442695
    %v3704 = vpow.pop %v3703
    %v3705 = vmul.f32 %v3687, 1.442695
    %v3706 = vpow.pop %v3705
    %v3707 = vmul.f32 %v3688, 1.442695
    %v3708 = vpow.pop %v3707
    %v3709 = vmul.f32 %v3689, 1.442695
    %v3710 = vpow.pop %v3709
    %v3711 = vmul.f32 %v3690, 1.442695
    %v3712 = vpow.pop %v3711
    %v3713 = vmul.f32 %v3691, 1.442695
    %v3714 = vpow.pop %v3713
    %v3715 = vmul.f32 %v3692, 1.442695
    %v3716 = vpow.pop %v3715
    %v3717 = vmul.f32 %v3693, 1.442695
    %v3718 = vpow.pop %v3717
    %v3719 = vmul.f32 %v3694, 1.442695
    %v3720 = vpow.pop %v3719
    %v3721 = vmul.f32 %v3695, 1.442695
    %v3722 = vpow.pop %v3721
    %v3723 = vmul.f32 %v3696, 1.442695
    %v3724 = vpow.pop %v3723
    %v3725 = vmul.f32 %v3697, 1.442695
    %v3726 = vpow.pop %v3725
    %v3727 = vmul.f32 %v3698, 1.442695
    %v3728 = vpow.pop %v3727
    %v3729 = vmul.f32 %v3699, 1.442695
    %v3730 = vpow.pop %v3729
    %v3731 = vmul.f32 %v3700, 1.442695
    %v3732 = vpow.pop %v3731
    %3733 = vadd.xlane.f32.xlu0 %v3702
    %v3734 = vpop.xlane.xlu0 %3733
    %3735 = vadd.xlane.f32.xlu0 %v3704
    %v3736 = vpop.xlane.xlu0 %3735
    %3737 = vadd.xlane.f32.xlu0 %v3706
    %v3738 = vpop.xlane.xlu0 %3737
    %3739 = vadd.xlane.f32.xlu0 %v3708
    %v3740 = vpop.xlane.xlu0 %3739
    %3741 = vadd.xlane.f32.xlu0 %v3710
    %v3742 = vpop.xlane.xlu0 %3741
    %3743 = vadd.xlane.f32.xlu0 %v3712
    %v3744 = vpop.xlane.xlu0 %3743
    %3745 = vadd.xlane.f32.xlu0 %v3714
    %v3746 = vpop.xlane.xlu0 %3745
    %3747 = vadd.xlane.f32.xlu0 %v3716
    %v3748 = vpop.xlane.xlu0 %3747
    %3749 = vadd.xlane.f32.xlu0 %v3718
    %v3750 = vpop.xlane.xlu0 %3749
    %3751 = vadd.xlane.f32.xlu0 %v3720
    %v3752 = vpop.xlane.xlu0 %3751
    %3753 = vadd.xlane.f32.xlu0 %v3722
    %v3754 = vpop.xlane.xlu0 %3753
    %3755 = vadd.xlane.f32.xlu0 %v3724
    %v3756 = vpop.xlane.xlu0 %3755
    %3757 = vadd.xlane.f32.xlu0 %v3726
    %v3758 = vpop.xlane.xlu0 %3757
    %3759 = vadd.xlane.f32.xlu0 %v3728
    %v3760 = vpop.xlane.xlu0 %3759
    %3761 = vadd.xlane.f32.xlu0 %v3730
    %v3762 = vpop.xlane.xlu0 %3761
    %3763 = vadd.xlane.f32.xlu0 %v3732
    %v3764 = vpop.xlane.xlu0 %3763
    %v3765 = vrcp.pop %v3734
    %v3766 = vrcp.pop %v3736
    %v3767 = vrcp.pop %v3738
    %v3768 = vrcp.pop %v3740
    %v3769 = vrcp.pop %v3742
    %v3770 = vrcp.pop %v3744
    %v3771 = vrcp.pop %v3746
    %v3772 = vrcp.pop %v3748
    %v3773 = vrcp.pop %v3750
    %v3774 = vrcp.pop %v3752
    %v3775 = vrcp.pop %v3754
    %v3776 = vrcp.pop %v3756
    %v3777 = vrcp.pop %v3758
    %v3778 = vrcp.pop %v3760
    %v3779 = vrcp.pop %v3762
    %v3780 = vrcp.pop %v3764
    %v3781 = vmul.f32 %v3702, %v3765
    %v3782 = vmul.f32 %v3704, %v3766
    %v3783 = vmul.f32 %v3706, %v3767
    %v3784 = vmul.f32 %v3708, %v3768
    %v3785 = vmul.f32 %v3710, %v3769
    %v3786 = vmul.f32 %v3712, %v3770
    %v3787 = vmul.f32 %v3714, %v3771
    %v3788 = vmul.f32 %v3716, %v3772
    %v3789 = vmul.f32 %v3718, %v3773
    %v3790 = vmul.f32 %v3720, %v3774
    %v3791 = vmul.f32 %v3722, %v3775
    %v3792 = vmul.f32 %v3724, %v3776
    %v3793 = vmul.f32 %v3726, %v3777
    %v3794 = vmul.f32 %v3728, %v3778
    %v3795 = vmul.f32 %v3730, %v3779
    %v3796 = vmul.f32 %v3732, %v3780
    %v3797 = vpack.c.bf16 %v3782, %v3781
    %v3798 = vpack.c.bf16 %v3784, %v3783
    %v3799 = vpack.c.bf16 %v3786, %v3785
    %v3800 = vpack.c.bf16 %v3788, %v3787
    %v3801 = vpack.c.bf16 %v3790, %v3789
    %v3802 = vpack.c.bf16 %v3792, %v3791
    %v3803 = vpack.c.bf16 %v3794, %v3793
    %v3804 = vpack.c.bf16 %v3796, %v3795
    %3805 = vrot.lane.b32.xlu0 %v3500, 64
    %v3806 = vpop.permute.xlu0 %3805
    %3807 = vrot.lane.b32.xlu0 %v3501, 64
    %v3808 = vpop.permute.xlu0 %3807
    %3809 = vrot.lane.b32.xlu0 %v3502, 64
    %v3810 = vpop.permute.xlu0 %3809
    %3811 = vrot.lane.b32.xlu0 %v3503, 64
    %v3812 = vpop.permute.xlu0 %3811
    %3813 = vrot.lane.b32.xlu0 %v3504, 64
    %v3814 = vpop.permute.xlu0 %3813
    %3815 = vrot.lane.b32.xlu0 %v3505, 64
    %v3816 = vpop.permute.xlu0 %3815
    %3817 = vrot.lane.b32.xlu0 %v3506, 64
    %v3818 = vpop.permute.xlu0 %3817
    %3819 = vrot.lane.b32.xlu0 %v3507, 64
    %v3820 = vpop.permute.xlu0 %3819
    %3829 = vmatpush.bf16.msra.mxu0 %v3820
    %3830 = vmatpush.bf16.msra.mxu0 %v3818
    %3831 = vmatpush.bf16.msra.mxu0 %v3816
    %3832 = vmatpush.bf16.msra.mxu0 %v3814
    %3833 = vmatpush.bf16.msra.mxu0 %v3812
    %3834 = vmatpush.bf16.msra.mxu0 %v3810
    %3835 = vmatpush.bf16.msra.mxu0 %v3808
    %3836 = vmatpush.bf16.msra.mxu0 %v3806
    %3837 = vmatmul.bf16.gmra.mxu0 %v3797
    %v3838 = vpop.f32.mrf.mxu0
    %v3839 = vadd.f32 0.0, %v3838
    %v3840 = vpop.f32.mrf.mxu0
    %v3841 = vadd.f32 0.0, %v3840
    %3842 = vmatmul.bf16.gmra.mxu0 %v3798
    %v3843 = vpop.f32.mrf.mxu0
    %v3844 = vadd.f32 0.0, %v3843
    %v3845 = vpop.f32.mrf.mxu0
    %v3846 = vadd.f32 0.0, %v3845
    %3847 = vmatmul.bf16.gmra.mxu0 %v3799
    %v3848 = vpop.f32.mrf.mxu0
    %v3849 = vadd.f32 0.0, %v3848
    %v3850 = vpop.f32.mrf.mxu0
    %v3851 = vadd.f32 0.0, %v3850
    %3852 = vmatmul.bf16.gmra.mxu0 %v3800
    %v3853 = vpop.f32.mrf.mxu0
    %v3854 = vadd.f32 0.0, %v3853
    %v3855 = vpop.f32.mrf.mxu0
    %v3856 = vadd.f32 0.0, %v3855
    %3857 = vmatmul.bf16.gmra.mxu0 %v3801
    %v3858 = vpop.f32.mrf.mxu0
    %v3859 = vadd.f32 0.0, %v3858
    %v3860 = vpop.f32.mrf.mxu0
    %v3861 = vadd.f32 0.0, %v3860
    %3862 = vmatmul.bf16.gmra.mxu0 %v3802
    %v3863 = vpop.f32.mrf.mxu0
    %v3864 = vadd.f32 0.0, %v3863
    %v3865 = vpop.f32.mrf.mxu0
    %v3866 = vadd.f32 0.0, %v3865
    %3867 = vmatmul.bf16.gmra.mxu0 %v3803
    %v3868 = vpop.f32.mrf.mxu0
    %v3869 = vadd.f32 0.0, %v3868
    %v3870 = vpop.f32.mrf.mxu0
    %v3871 = vadd.f32 0.0, %v3870
    %3872 = vmatmul.bf16.gmra.mxu0 %v3804
    %v3873 = vpop.f32.mrf.mxu0
    %v3874 = vadd.f32 0.0, %v3873
    %v3875 = vpop.f32.mrf.mxu0
    %v3876 = vadd.f32 0.0, %v3875
    %3877 = vdwg.mxu0
    %3878 = vrot.lane.b32.xlu0 %v3500, 120
    %v3879 = vpop.permute.xlu0 %3878
    %3880 = vrot.lane.b32.xlu0 %v3501, 120
    %v3881 = vpop.permute.xlu0 %3880
    %3882 = vrot.lane.b32.xlu0 %v3502, 120
    %v3883 = vpop.permute.xlu0 %3882
    %3884 = vrot.lane.b32.xlu0 %v3503, 120
    %v3885 = vpop.permute.xlu0 %3884
    %3886 = vrot.lane.b32.xlu0 %v3504, 120
    %v3887 = vpop.permute.xlu0 %3886
    %3888 = vrot.lane.b32.xlu0 %v3505, 120
    %v3889 = vpop.permute.xlu0 %3888
    %3890 = vrot.lane.b32.xlu0 %v3506, 120
    %v3891 = vpop.permute.xlu0 %3890
    %3892 = vrot.lane.b32.xlu0 %v3507, 120
    %v3893 = vpop.permute.xlu0 %3892
    %3894 = vrot.lane.b32.xlu0 %v3500, 88
    %v3895 = vpop.permute.xlu0 %3894
    %3896 = vrot.lane.b32.xlu0 %v3501, 88
    %v3897 = vpop.permute.xlu0 %3896
    %3898 = vrot.lane.b32.xlu0 %v3502, 88
    %v3899 = vpop.permute.xlu0 %3898
    %3900 = vrot.lane.b32.xlu0 %v3503, 88
    %v3901 = vpop.permute.xlu0 %3900
    %3902 = vrot.lane.b32.xlu0 %v3504, 88
    %v3903 = vpop.permute.xlu0 %3902
    %3904 = vrot.lane.b32.xlu0 %v3505, 88
    %v3905 = vpop.permute.xlu0 %3904
    %3906 = vrot.lane.b32.xlu0 %v3506, 88
    %v3907 = vpop.permute.xlu0 %3906
    %3908 = vrot.lane.b32.xlu0 %v3507, 88
    %v3909 = vpop.permute.xlu0 %3908
    %v3911 = vsel %vm428, %v3879, 0
    %v3914 = vsel %vm428, %v3881, 0
    %v3917 = vsel %vm428, %v3883, 0
    %v3920 = vsel %vm428, %v3885, 0
    %v3923 = vsel %vm428, %v3887, 0
    %v3926 = vsel %vm428, %v3889, 0
    %v3929 = vsel %vm428, %v3891, 0
    %v3932 = vsel %vm428, %v3893, 0
    %v3935 = vsel %vm428, %v3895, 0
    %v3938 = vsel %vm428, %v3897, 0
    %v3941 = vsel %vm428, %v3899, 0
    %v3944 = vsel %vm428, %v3901, 0
    %v3947 = vsel %vm428, %v3903, 0
    %v3950 = vsel %vm428, %v3905, 0
    %v3953 = vsel %vm428, %v3907, 0
    %v3956 = vsel %vm428, %v3909, 0
    %3958 = vmatpush.bf16.xpose.msra.mxu0 %v3956
    %3959 = vmatpush.bf16.xpose.msra.mxu0 %v3953
    %3960 = vmatpush.bf16.xpose.msra.mxu0 %v3950
    %3961 = vmatpush.bf16.xpose.msra.mxu0 %v3947
    %3962 = vmatpush.bf16.xpose.msra.mxu0 %v3944
    %3963 = vmatpush.bf16.xpose.msra.mxu0 %v3941
    %3964 = vmatpush.bf16.xpose.msra.mxu0 %v3938
    %3965 = vmatpush.bf16.xpose.msra.mxu0 %v3935
    %3966 = vmatmul.bf16.gmra.mxu0 %v3911
    %v3967 = vpop.f32.mrf.mxu0
    %v3968 = vadd.f32 0.0, %v3967
    %v3969 = vpop.f32.mrf.mxu0
    %v3970 = vadd.f32 0.0, %v3969
    %3971 = vmatmul.bf16.gmra.mxu0 %v3914
    %v3972 = vpop.f32.mrf.mxu0
    %v3973 = vadd.f32 0.0, %v3972
    %v3974 = vpop.f32.mrf.mxu0
    %v3975 = vadd.f32 0.0, %v3974
    %3976 = vmatmul.bf16.gmra.mxu0 %v3917
    %v3977 = vpop.f32.mrf.mxu0
    %v3978 = vadd.f32 0.0, %v3977
    %v3979 = vpop.f32.mrf.mxu0
    %v3980 = vadd.f32 0.0, %v3979
    %3981 = vmatmul.bf16.gmra.mxu0 %v3920
    %v3982 = vpop.f32.mrf.mxu0
    %v3983 = vadd.f32 0.0, %v3982
    %v3984 = vpop.f32.mrf.mxu0
    %v3985 = vadd.f32 0.0, %v3984
    %3986 = vmatmul.bf16.gmra.mxu0 %v3923
    %v3987 = vpop.f32.mrf.mxu0
    %v3988 = vadd.f32 0.0, %v3987
    %v3989 = vpop.f32.mrf.mxu0
    %v3990 = vadd.f32 0.0, %v3989
    %3991 = vmatmul.bf16.gmra.mxu0 %v3926
    %v3992 = vpop.f32.mrf.mxu0
    %v3993 = vadd.f32 0.0, %v3992
    %v3994 = vpop.f32.mrf.mxu0
    %v3995 = vadd.f32 0.0, %v3994
    %3996 = vmatmul.bf16.gmra.mxu0 %v3929
    %v3997 = vpop.f32.mrf.mxu0
    %v3998 = vadd.f32 0.0, %v3997
    %v3999 = vpop.f32.mrf.mxu0
    %v4000 = vadd.f32 0.0, %v3999
    %4001 = vmatmul.bf16.gmra.mxu0 %v3932
    %v4002 = vpop.f32.mrf.mxu0
    %v4003 = vadd.f32 0.0, %v4002
    %v4004 = vpop.f32.mrf.mxu0
    %v4005 = vadd.f32 0.0, %v4004
    %4006 = vdwg.mxu0
    %v4007 = vmul.f32 %v3968, 0.35355338
    %v4008 = vmul.f32 %v3970, 0.35355338
    %v4009 = vmul.f32 %v3973, 0.35355338
    %v4010 = vmul.f32 %v3975, 0.35355338
    %v4011 = vmul.f32 %v3978, 0.35355338
    %v4012 = vmul.f32 %v3980, 0.35355338
    %v4013 = vmul.f32 %v3983, 0.35355338
    %v4014 = vmul.f32 %v3985, 0.35355338
    %v4015 = vmul.f32 %v3988, 0.35355338
    %v4016 = vmul.f32 %v3990, 0.35355338
    %v4017 = vmul.f32 %v3993, 0.35355338
    %v4018 = vmul.f32 %v3995, 0.35355338
    %v4019 = vmul.f32 %v3998, 0.35355338
    %v4020 = vmul.f32 %v4000, 0.35355338
    %v4021 = vmul.f32 %v4003, 0.35355338
    %v4022 = vmul.f32 %v4005, 0.35355338
    %v4023 = vadd.f32 %v4007, %v77
    %v4024 = vadd.f32 %v4008, %v78
    %v4025 = vadd.f32 %v4009, %v79
    %v4026 = vadd.f32 %v4010, %v80
    %v4027 = vadd.f32 %v4011, %v81
    %v4028 = vadd.f32 %v4012, %v82
    %v4029 = vadd.f32 %v4013, %v83
    %v4030 = vadd.f32 %v4014, %v84
    %v4031 = vadd.f32 %v4015, %v85
    %v4032 = vadd.f32 %v4016, %v86
    %v4033 = vadd.f32 %v4017, %v87
    %v4034 = vadd.f32 %v4018, %v88
    %v4035 = vadd.f32 %v4019, %v89
    %v4036 = vadd.f32 %v4020, %v90
    %v4037 = vadd.f32 %v4021, %v91
    %v4038 = vadd.f32 %v4022, %v92
    %4039 = vmax.xlane.f32.xlu0 %v4023
    %v4040 = vpop.xlane.xlu0 %4039
    %4041 = vmax.xlane.f32.xlu0 %v4024
    %v4042 = vpop.xlane.xlu0 %4041
    %4043 = vmax.xlane.f32.xlu0 %v4025
    %v4044 = vpop.xlane.xlu0 %4043
    %4045 = vmax.xlane.f32.xlu0 %v4026
    %v4046 = vpop.xlane.xlu0 %4045
    %4047 = vmax.xlane.f32.xlu0 %v4027
    %v4048 = vpop.xlane.xlu0 %4047
    %4049 = vmax.xlane.f32.xlu0 %v4028
    %v4050 = vpop.xlane.xlu0 %4049
    %4051 = vmax.xlane.f32.xlu0 %v4029
    %v4052 = vpop.xlane.xlu0 %4051
    %4053 = vmax.xlane.f32.xlu0 %v4030
    %v4054 = vpop.xlane.xlu0 %4053
    %4055 = vmax.xlane.f32.xlu0 %v4031
    %v4056 = vpop.xlane.xlu0 %4055
    %4057 = vmax.xlane.f32.xlu0 %v4032
    %v4058 = vpop.xlane.xlu0 %4057
    %4059 = vmax.xlane.f32.xlu0 %v4033
    %v4060 = vpop.xlane.xlu0 %4059
    %4061 = vmax.xlane.f32.xlu0 %v4034
    %v4062 = vpop.xlane.xlu0 %4061
    %4063 = vmax.xlane.f32.xlu0 %v4035
    %v4064 = vpop.xlane.xlu0 %4063
    %4065 = vmax.xlane.f32.xlu0 %v4036
    %v4066 = vpop.xlane.xlu0 %4065
    %4067 = vmax.xlane.f32.xlu0 %v4037
    %v4068 = vpop.xlane.xlu0 %4067
    %4069 = vmax.xlane.f32.xlu0 %v4038
    %v4070 = vpop.xlane.xlu0 %4069
    %v4071 = vsub.f32 %v4023, %v4040
    %v4072 = vsub.f32 %v4024, %v4042
    %v4073 = vsub.f32 %v4025, %v4044
    %v4074 = vsub.f32 %v4026, %v4046
    %v4075 = vsub.f32 %v4027, %v4048
    %v4076 = vsub.f32 %v4028, %v4050
    %v4077 = vsub.f32 %v4029, %v4052
    %v4078 = vsub.f32 %v4030, %v4054
    %v4079 = vsub.f32 %v4031, %v4056
    %v4080 = vsub.f32 %v4032, %v4058
    %v4081 = vsub.f32 %v4033, %v4060
    %v4082 = vsub.f32 %v4034, %v4062
    %v4083 = vsub.f32 %v4035, %v4064
    %v4084 = vsub.f32 %v4036, %v4066
    %v4085 = vsub.f32 %v4037, %v4068
    %v4086 = vsub.f32 %v4038, %v4070
    %v4087 = vmul.f32 %v4071, 1.442695
    %v4088 = vpow.pop %v4087
    %v4089 = vmul.f32 %v4072, 1.442695
    %v4090 = vpow.pop %v4089
    %v4091 = vmul.f32 %v4073, 1.442695
    %v4092 = vpow.pop %v4091
    %v4093 = vmul.f32 %v4074, 1.442695
    %v4094 = vpow.pop %v4093
    %v4095 = vmul.f32 %v4075, 1.442695
    %v4096 = vpow.pop %v4095
    %v4097 = vmul.f32 %v4076, 1.442695
    %v4098 = vpow.pop %v4097
    %v4099 = vmul.f32 %v4077, 1.442695
    %v4100 = vpow.pop %v4099
    %v4101 = vmul.f32 %v4078, 1.442695
    %v4102 = vpow.pop %v4101
    %v4103 = vmul.f32 %v4079, 1.442695
    %v4104 = vpow.pop %v4103
    %v4105 = vmul.f32 %v4080, 1.442695
    %v4106 = vpow.pop %v4105
    %v4107 = vmul.f32 %v4081, 1.442695
    %v4108 = vpow.pop %v4107
    %v4109 = vmul.f32 %v4082, 1.442695
    %v4110 = vpow.pop %v4109
    %v4111 = vmul.f32 %v4083, 1.442695
    %v4112 = vpow.pop %v4111
    %v4113 = vmul.f32 %v4084, 1.442695
    %v4114 = vpow.pop %v4113
    %v4115 = vmul.f32 %v4085, 1.442695
    %v4116 = vpow.pop %v4115
    %v4117 = vmul.f32 %v4086, 1.442695
    %v4118 = vpow.pop %v4117
    %4119 = vadd.xlane.f32.xlu0 %v4088
    %v4120 = vpop.xlane.xlu0 %4119
    %4121 = vadd.xlane.f32.xlu0 %v4090
    %v4122 = vpop.xlane.xlu0 %4121
    %4123 = vadd.xlane.f32.xlu0 %v4092
    %v4124 = vpop.xlane.xlu0 %4123
    %4125 = vadd.xlane.f32.xlu0 %v4094
    %v4126 = vpop.xlane.xlu0 %4125
    %4127 = vadd.xlane.f32.xlu0 %v4096
    %v4128 = vpop.xlane.xlu0 %4127
    %4129 = vadd.xlane.f32.xlu0 %v4098
    %v4130 = vpop.xlane.xlu0 %4129
    %4131 = vadd.xlane.f32.xlu0 %v4100
    %v4132 = vpop.xlane.xlu0 %4131
    %4133 = vadd.xlane.f32.xlu0 %v4102
    %v4134 = vpop.xlane.xlu0 %4133
    %4135 = vadd.xlane.f32.xlu0 %v4104
    %v4136 = vpop.xlane.xlu0 %4135
    %4137 = vadd.xlane.f32.xlu0 %v4106
    %v4138 = vpop.xlane.xlu0 %4137
    %4139 = vadd.xlane.f32.xlu0 %v4108
    %v4140 = vpop.xlane.xlu0 %4139
    %4141 = vadd.xlane.f32.xlu0 %v4110
    %v4142 = vpop.xlane.xlu0 %4141
    %4143 = vadd.xlane.f32.xlu0 %v4112
    %v4144 = vpop.xlane.xlu0 %4143
    %4145 = vadd.xlane.f32.xlu0 %v4114
    %v4146 = vpop.xlane.xlu0 %4145
    %4147 = vadd.xlane.f32.xlu0 %v4116
    %v4148 = vpop.xlane.xlu0 %4147
    %4149 = vadd.xlane.f32.xlu0 %v4118
    %v4150 = vpop.xlane.xlu0 %4149
    %v4151 = vrcp.pop %v4120
    %v4152 = vrcp.pop %v4122
    %v4153 = vrcp.pop %v4124
    %v4154 = vrcp.pop %v4126
    %v4155 = vrcp.pop %v4128
    %v4156 = vrcp.pop %v4130
    %v4157 = vrcp.pop %v4132
    %v4158 = vrcp.pop %v4134
    %v4159 = vrcp.pop %v4136
    %v4160 = vrcp.pop %v4138
    %v4161 = vrcp.pop %v4140
    %v4162 = vrcp.pop %v4142
    %v4163 = vrcp.pop %v4144
    %v4164 = vrcp.pop %v4146
    %v4165 = vrcp.pop %v4148
    %v4166 = vrcp.pop %v4150
    %v4167 = vmul.f32 %v4088, %v4151
    %v4168 = vmul.f32 %v4090, %v4152
    %v4169 = vmul.f32 %v4092, %v4153
    %v4170 = vmul.f32 %v4094, %v4154
    %v4171 = vmul.f32 %v4096, %v4155
    %v4172 = vmul.f32 %v4098, %v4156
    %v4173 = vmul.f32 %v4100, %v4157
    %v4174 = vmul.f32 %v4102, %v4158
    %v4175 = vmul.f32 %v4104, %v4159
    %v4176 = vmul.f32 %v4106, %v4160
    %v4177 = vmul.f32 %v4108, %v4161
    %v4178 = vmul.f32 %v4110, %v4162
    %v4179 = vmul.f32 %v4112, %v4163
    %v4180 = vmul.f32 %v4114, %v4164
    %v4181 = vmul.f32 %v4116, %v4165
    %v4182 = vmul.f32 %v4118, %v4166
    %v4183 = vpack.c.bf16 %v4168, %v4167
    %v4184 = vpack.c.bf16 %v4170, %v4169
    %v4185 = vpack.c.bf16 %v4172, %v4171
    %v4186 = vpack.c.bf16 %v4174, %v4173
    %v4187 = vpack.c.bf16 %v4176, %v4175
    %v4188 = vpack.c.bf16 %v4178, %v4177
    %v4189 = vpack.c.bf16 %v4180, %v4179
    %v4190 = vpack.c.bf16 %v4182, %v4181
    %4191 = vrot.lane.b32.xlu0 %v3500, 56
    %v4192 = vpop.permute.xlu0 %4191
    %4193 = vrot.lane.b32.xlu0 %v3501, 56
    %v4194 = vpop.permute.xlu0 %4193
    %4195 = vrot.lane.b32.xlu0 %v3502, 56
    %v4196 = vpop.permute.xlu0 %4195
    %4197 = vrot.lane.b32.xlu0 %v3503, 56
    %v4198 = vpop.permute.xlu0 %4197
    %4199 = vrot.lane.b32.xlu0 %v3504, 56
    %v4200 = vpop.permute.xlu0 %4199
    %4201 = vrot.lane.b32.xlu0 %v3505, 56
    %v4202 = vpop.permute.xlu0 %4201
    %4203 = vrot.lane.b32.xlu0 %v3506, 56
    %v4204 = vpop.permute.xlu0 %4203
    %4205 = vrot.lane.b32.xlu0 %v3507, 56
    %v4206 = vpop.permute.xlu0 %4205
    %4215 = vmatpush.bf16.msra.mxu0 %v4206
    %4216 = vmatpush.bf16.msra.mxu0 %v4204
    %4217 = vmatpush.bf16.msra.mxu0 %v4202
    %4218 = vmatpush.bf16.msra.mxu0 %v4200
    %4219 = vmatpush.bf16.msra.mxu0 %v4198
    %4220 = vmatpush.bf16.msra.mxu0 %v4196
    %4221 = vmatpush.bf16.msra.mxu0 %v4194
    %4222 = vmatpush.bf16.msra.mxu0 %v4192
    %4223 = vmatmul.bf16.gmra.mxu0 %v4183
    %v4224 = vpop.f32.mrf.mxu0
    %v4225 = vadd.f32 0.0, %v4224
    %v4226 = vpop.f32.mrf.mxu0
    %v4227 = vadd.f32 0.0, %v4226
    %4228 = vmatmul.bf16.gmra.mxu0 %v4184
    %v4229 = vpop.f32.mrf.mxu0
    %v4230 = vadd.f32 0.0, %v4229
    %v4231 = vpop.f32.mrf.mxu0
    %v4232 = vadd.f32 0.0, %v4231
    %4233 = vmatmul.bf16.gmra.mxu0 %v4185
    %v4234 = vpop.f32.mrf.mxu0
    %v4235 = vadd.f32 0.0, %v4234
    %v4236 = vpop.f32.mrf.mxu0
    %v4237 = vadd.f32 0.0, %v4236
    %4238 = vmatmul.bf16.gmra.mxu0 %v4186
    %v4239 = vpop.f32.mrf.mxu0
    %v4240 = vadd.f32 0.0, %v4239
    %v4241 = vpop.f32.mrf.mxu0
    %v4242 = vadd.f32 0.0, %v4241
    %4243 = vmatmul.bf16.gmra.mxu0 %v4187
    %v4244 = vpop.f32.mrf.mxu0
    %v4245 = vadd.f32 0.0, %v4244
    %v4246 = vpop.f32.mrf.mxu0
    %v4247 = vadd.f32 0.0, %v4246
    %4248 = vmatmul.bf16.gmra.mxu0 %v4188
    %v4249 = vpop.f32.mrf.mxu0
    %v4250 = vadd.f32 0.0, %v4249
    %v4251 = vpop.f32.mrf.mxu0
    %v4252 = vadd.f32 0.0, %v4251
    %4253 = vmatmul.bf16.gmra.mxu0 %v4189
    %v4254 = vpop.f32.mrf.mxu0
    %v4255 = vadd.f32 0.0, %v4254
    %v4256 = vpop.f32.mrf.mxu0
    %v4257 = vadd.f32 0.0, %v4256
    %4258 = vmatmul.bf16.gmra.mxu0 %v4190
    %v4259 = vpop.f32.mrf.mxu0
    %v4260 = vadd.f32 0.0, %v4259
    %v4261 = vpop.f32.mrf.mxu0
    %v4262 = vadd.f32 0.0, %v4261
    %4263 = vdwg.mxu0
    %4264 = vrot.lane.b32.xlu0 %v3500, 112
    %v4265 = vpop.permute.xlu0 %4264
    %4266 = vrot.lane.b32.xlu0 %v3501, 112
    %v4267 = vpop.permute.xlu0 %4266
    %4268 = vrot.lane.b32.xlu0 %v3502, 112
    %v4269 = vpop.permute.xlu0 %4268
    %4270 = vrot.lane.b32.xlu0 %v3503, 112
    %v4271 = vpop.permute.xlu0 %4270
    %4272 = vrot.lane.b32.xlu0 %v3504, 112
    %v4273 = vpop.permute.xlu0 %4272
    %4274 = vrot.lane.b32.xlu0 %v3505, 112
    %v4275 = vpop.permute.xlu0 %4274
    %4276 = vrot.lane.b32.xlu0 %v3506, 112
    %v4277 = vpop.permute.xlu0 %4276
    %4278 = vrot.lane.b32.xlu0 %v3507, 112
    %v4279 = vpop.permute.xlu0 %4278
    %4280 = vrot.lane.b32.xlu0 %v3500, 80
    %v4281 = vpop.permute.xlu0 %4280
    %4282 = vrot.lane.b32.xlu0 %v3501, 80
    %v4283 = vpop.permute.xlu0 %4282
    %4284 = vrot.lane.b32.xlu0 %v3502, 80
    %v4285 = vpop.permute.xlu0 %4284
    %4286 = vrot.lane.b32.xlu0 %v3503, 80
    %v4287 = vpop.permute.xlu0 %4286
    %4288 = vrot.lane.b32.xlu0 %v3504, 80
    %v4289 = vpop.permute.xlu0 %4288
    %4290 = vrot.lane.b32.xlu0 %v3505, 80
    %v4291 = vpop.permute.xlu0 %4290
    %4292 = vrot.lane.b32.xlu0 %v3506, 80
    %v4293 = vpop.permute.xlu0 %4292
    %4294 = vrot.lane.b32.xlu0 %v3507, 80
    %v4295 = vpop.permute.xlu0 %4294
    %v4297 = vsel %vm428, %v4265, 0
    %v4300 = vsel %vm428, %v4267, 0
    %v4303 = vsel %vm428, %v4269, 0
    %v4306 = vsel %vm428, %v4271, 0
    %v4309 = vsel %vm428, %v4273, 0
    %v4312 = vsel %vm428, %v4275, 0
    %v4315 = vsel %vm428, %v4277, 0
    %v4318 = vsel %vm428, %v4279, 0
    %v4321 = vsel %vm428, %v4281, 0
    %v4324 = vsel %vm428, %v4283, 0
    %v4327 = vsel %vm428, %v4285, 0
    %v4330 = vsel %vm428, %v4287, 0
    %v4333 = vsel %vm428, %v4289, 0
    %v4336 = vsel %vm428, %v4291, 0
    %v4339 = vsel %vm428, %v4293, 0
    %v4342 = vsel %vm428, %v4295, 0
    %4344 = vmatpush.bf16.xpose.msra.mxu0 %v4342
    %4345 = vmatpush.bf16.xpose.msra.mxu0 %v4339
    %4346 = vmatpush.bf16.xpose.msra.mxu0 %v4336
    %4347 = vmatpush.bf16.xpose.msra.mxu0 %v4333
    %4348 = vmatpush.bf16.xpose.msra.mxu0 %v4330
    %4349 = vmatpush.bf16.xpose.msra.mxu0 %v4327
    %4350 = vmatpush.bf16.xpose.msra.mxu0 %v4324
    %4351 = vmatpush.bf16.xpose.msra.mxu0 %v4321
    %4352 = vmatmul.bf16.gmra.mxu0 %v4297
    %v4353 = vpop.f32.mrf.mxu0
    %v4354 = vadd.f32 0.0, %v4353
    %v4355 = vpop.f32.mrf.mxu0
    %v4356 = vadd.f32 0.0, %v4355
    %4357 = vmatmul.bf16.gmra.mxu0 %v4300
    %v4358 = vpop.f32.mrf.mxu0
    %v4359 = vadd.f32 0.0, %v4358
    %v4360 = vpop.f32.mrf.mxu0
    %v4361 = vadd.f32 0.0, %v4360
    %4362 = vmatmul.bf16.gmra.mxu0 %v4303
    %v4363 = vpop.f32.mrf.mxu0
    %v4364 = vadd.f32 0.0, %v4363
    %v4365 = vpop.f32.mrf.mxu0
    %v4366 = vadd.f32 0.0, %v4365
    %4367 = vmatmul.bf16.gmra.mxu0 %v4306
    %v4368 = vpop.f32.mrf.mxu0
    %v4369 = vadd.f32 0.0, %v4368
    %v4370 = vpop.f32.mrf.mxu0
    %v4371 = vadd.f32 0.0, %v4370
    %4372 = vmatmul.bf16.gmra.mxu0 %v4309
    %v4373 = vpop.f32.mrf.mxu0
    %v4374 = vadd.f32 0.0, %v4373
    %v4375 = vpop.f32.mrf.mxu0
    %v4376 = vadd.f32 0.0, %v4375
    %4377 = vmatmul.bf16.gmra.mxu0 %v4312
    %v4378 = vpop.f32.mrf.mxu0
    %v4379 = vadd.f32 0.0, %v4378
    %v4380 = vpop.f32.mrf.mxu0
    %v4381 = vadd.f32 0.0, %v4380
    %4382 = vmatmul.bf16.gmra.mxu0 %v4315
    %v4383 = vpop.f32.mrf.mxu0
    %v4384 = vadd.f32 0.0, %v4383
    %v4385 = vpop.f32.mrf.mxu0
    %v4386 = vadd.f32 0.0, %v4385
    %4387 = vmatmul.bf16.gmra.mxu0 %v4318
    %v4388 = vpop.f32.mrf.mxu0
    %v4389 = vadd.f32 0.0, %v4388
    %v4390 = vpop.f32.mrf.mxu0
    %v4391 = vadd.f32 0.0, %v4390
    %4392 = vdwg.mxu0
    %v4393 = vmul.f32 %v4354, 0.35355338
    %v4394 = vmul.f32 %v4356, 0.35355338
    %v4395 = vmul.f32 %v4359, 0.35355338
    %v4396 = vmul.f32 %v4361, 0.35355338
    %v4397 = vmul.f32 %v4364, 0.35355338
    %v4398 = vmul.f32 %v4366, 0.35355338
    %v4399 = vmul.f32 %v4369, 0.35355338
    %v4400 = vmul.f32 %v4371, 0.35355338
    %v4401 = vmul.f32 %v4374, 0.35355338
    %v4402 = vmul.f32 %v4376, 0.35355338
    %v4403 = vmul.f32 %v4379, 0.35355338
    %v4404 = vmul.f32 %v4381, 0.35355338
    %v4405 = vmul.f32 %v4384, 0.35355338
    %v4406 = vmul.f32 %v4386, 0.35355338
    %v4407 = vmul.f32 %v4389, 0.35355338
    %v4408 = vmul.f32 %v4391, 0.35355338
    %v4409 = vadd.f32 %v4393, %v77
    %v4410 = vadd.f32 %v4394, %v78
    %v4411 = vadd.f32 %v4395, %v79
    %v4412 = vadd.f32 %v4396, %v80
    %v4413 = vadd.f32 %v4397, %v81
    %v4414 = vadd.f32 %v4398, %v82
    %v4415 = vadd.f32 %v4399, %v83
    %v4416 = vadd.f32 %v4400, %v84
    %v4417 = vadd.f32 %v4401, %v85
    %v4418 = vadd.f32 %v4402, %v86
    %v4419 = vadd.f32 %v4403, %v87
    %v4420 = vadd.f32 %v4404, %v88
    %v4421 = vadd.f32 %v4405, %v89
    %v4422 = vadd.f32 %v4406, %v90
    %v4423 = vadd.f32 %v4407, %v91
    %v4424 = vadd.f32 %v4408, %v92
    %4425 = vmax.xlane.f32.xlu0 %v4409
    %v4426 = vpop.xlane.xlu0 %4425
    %4427 = vmax.xlane.f32.xlu0 %v4410
    %v4428 = vpop.xlane.xlu0 %4427
    %4429 = vmax.xlane.f32.xlu0 %v4411
    %v4430 = vpop.xlane.xlu0 %4429
    %4431 = vmax.xlane.f32.xlu0 %v4412
    %v4432 = vpop.xlane.xlu0 %4431
    %4433 = vmax.xlane.f32.xlu0 %v4413
    %v4434 = vpop.xlane.xlu0 %4433
    %4435 = vmax.xlane.f32.xlu0 %v4414
    %v4436 = vpop.xlane.xlu0 %4435
    %4437 = vmax.xlane.f32.xlu0 %v4415
    %v4438 = vpop.xlane.xlu0 %4437
    %4439 = vmax.xlane.f32.xlu0 %v4416
    %v4440 = vpop.xlane.xlu0 %4439
    %4441 = vmax.xlane.f32.xlu0 %v4417
    %v4442 = vpop.xlane.xlu0 %4441
    %4443 = vmax.xlane.f32.xlu0 %v4418
    %v4444 = vpop.xlane.xlu0 %4443
    %4445 = vmax.xlane.f32.xlu0 %v4419
    %v4446 = vpop.xlane.xlu0 %4445
    %4447 = vmax.xlane.f32.xlu0 %v4420
    %v4448 = vpop.xlane.xlu0 %4447
    %4449 = vmax.xlane.f32.xlu0 %v4421
    %v4450 = vpop.xlane.xlu0 %4449
    %4451 = vmax.xlane.f32.xlu0 %v4422
    %v4452 = vpop.xlane.xlu0 %4451
    %4453 = vmax.xlane.f32.xlu0 %v4423
    %v4454 = vpop.xlane.xlu0 %4453
    %4455 = vmax.xlane.f32.xlu0 %v4424
    %v4456 = vpop.xlane.xlu0 %4455
    %v4457 = vsub.f32 %v4409, %v4426
    %v4458 = vsub.f32 %v4410, %v4428
    %v4459 = vsub.f32 %v4411, %v4430
    %v4460 = vsub.f32 %v4412, %v4432
    %v4461 = vsub.f32 %v4413, %v4434
    %v4462 = vsub.f32 %v4414, %v4436
    %v4463 = vsub.f32 %v4415, %v4438
    %v4464 = vsub.f32 %v4416, %v4440
    %v4465 = vsub.f32 %v4417, %v4442
    %v4466 = vsub.f32 %v4418, %v4444
    %v4467 = vsub.f32 %v4419, %v4446
    %v4468 = vsub.f32 %v4420, %v4448
    %v4469 = vsub.f32 %v4421, %v4450
    %v4470 = vsub.f32 %v4422, %v4452
    %v4471 = vsub.f32 %v4423, %v4454
    %v4472 = vsub.f32 %v4424, %v4456
    %v4473 = vmul.f32 %v4457, 1.442695
    %v4474 = vpow.pop %v4473
    %v4475 = vmul.f32 %v4458, 1.442695
    %v4476 = vpow.pop %v4475
    %v4477 = vmul.f32 %v4459, 1.442695
    %v4478 = vpow.pop %v4477
    %v4479 = vmul.f32 %v4460, 1.442695
    %v4480 = vpow.pop %v4479
    %v4481 = vmul.f32 %v4461, 1.442695
    %v4482 = vpow.pop %v4481
    %v4483 = vmul.f32 %v4462, 1.442695
    %v4484 = vpow.pop %v4483
    %v4485 = vmul.f32 %v4463, 1.442695
    %v4486 = vpow.pop %v4485
    %v4487 = vmul.f32 %v4464, 1.442695
    %v4488 = vpow.pop %v4487
    %v4489 = vmul.f32 %v4465, 1.442695
    %v4490 = vpow.pop %v4489
    %v4491 = vmul.f32 %v4466, 1.442695
    %v4492 = vpow.pop %v4491
    %v4493 = vmul.f32 %v4467, 1.442695
    %v4494 = vpow.pop %v4493
    %v4495 = vmul.f32 %v4468, 1.442695
    %v4496 = vpow.pop %v4495
    %v4497 = vmul.f32 %v4469, 1.442695
    %v4498 = vpow.pop %v4497
    %v4499 = vmul.f32 %v4470, 1.442695
    %v4500 = vpow.pop %v4499
    %v4501 = vmul.f32 %v4471, 1.442695
    %v4502 = vpow.pop %v4501
    %v4503 = vmul.f32 %v4472, 1.442695
    %v4504 = vpow.pop %v4503
    %4505 = vadd.xlane.f32.xlu0 %v4474
    %v4506 = vpop.xlane.xlu0 %4505
    %4507 = vadd.xlane.f32.xlu0 %v4476
    %v4508 = vpop.xlane.xlu0 %4507
    %4509 = vadd.xlane.f32.xlu0 %v4478
    %v4510 = vpop.xlane.xlu0 %4509
    %4511 = vadd.xlane.f32.xlu0 %v4480
    %v4512 = vpop.xlane.xlu0 %4511
    %4513 = vadd.xlane.f32.xlu0 %v4482
    %v4514 = vpop.xlane.xlu0 %4513
    %4515 = vadd.xlane.f32.xlu0 %v4484
    %v4516 = vpop.xlane.xlu0 %4515
    %4517 = vadd.xlane.f32.xlu0 %v4486
    %v4518 = vpop.xlane.xlu0 %4517
    %4519 = vadd.xlane.f32.xlu0 %v4488
    %v4520 = vpop.xlane.xlu0 %4519
    %4521 = vadd.xlane.f32.xlu0 %v4490
    %v4522 = vpop.xlane.xlu0 %4521
    %4523 = vadd.xlane.f32.xlu0 %v4492
    %v4524 = vpop.xlane.xlu0 %4523
    %4525 = vadd.xlane.f32.xlu0 %v4494
    %v4526 = vpop.xlane.xlu0 %4525
    %4527 = vadd.xlane.f32.xlu0 %v4496
    %v4528 = vpop.xlane.xlu0 %4527
    %4529 = vadd.xlane.f32.xlu0 %v4498
    %v4530 = vpop.xlane.xlu0 %4529
    %4531 = vadd.xlane.f32.xlu0 %v4500
    %v4532 = vpop.xlane.xlu0 %4531
    %4533 = vadd.xlane.f32.xlu0 %v4502
    %v4534 = vpop.xlane.xlu0 %4533
    %4535 = vadd.xlane.f32.xlu0 %v4504
    %v4536 = vpop.xlane.xlu0 %4535
    %v4537 = vrcp.pop %v4506
    %v4538 = vrcp.pop %v4508
    %v4539 = vrcp.pop %v4510
    %v4540 = vrcp.pop %v4512
    %v4541 = vrcp.pop %v4514
    %v4542 = vrcp.pop %v4516
    %v4543 = vrcp.pop %v4518
    %v4544 = vrcp.pop %v4520
    %v4545 = vrcp.pop %v4522
    %v4546 = vrcp.pop %v4524
    %v4547 = vrcp.pop %v4526
    %v4548 = vrcp.pop %v4528
    %v4549 = vrcp.pop %v4530
    %v4550 = vrcp.pop %v4532
    %v4551 = vrcp.pop %v4534
    %v4552 = vrcp.pop %v4536
    %v4553 = vmul.f32 %v4474, %v4537
    %v4554 = vmul.f32 %v4476, %v4538
    %v4555 = vmul.f32 %v4478, %v4539
    %v4556 = vmul.f32 %v4480, %v4540
    %v4557 = vmul.f32 %v4482, %v4541
    %v4558 = vmul.f32 %v4484, %v4542
    %v4559 = vmul.f32 %v4486, %v4543
    %v4560 = vmul.f32 %v4488, %v4544
    %v4561 = vmul.f32 %v4490, %v4545
    %v4562 = vmul.f32 %v4492, %v4546
    %v4563 = vmul.f32 %v4494, %v4547
    %v4564 = vmul.f32 %v4496, %v4548
    %v4565 = vmul.f32 %v4498, %v4549
    %v4566 = vmul.f32 %v4500, %v4550
    %v4567 = vmul.f32 %v4502, %v4551
    %v4568 = vmul.f32 %v4504, %v4552
    %v4569 = vpack.c.bf16 %v4554, %v4553
    %v4570 = vpack.c.bf16 %v4556, %v4555
    %v4571 = vpack.c.bf16 %v4558, %v4557
    %v4572 = vpack.c.bf16 %v4560, %v4559
    %v4573 = vpack.c.bf16 %v4562, %v4561
    %v4574 = vpack.c.bf16 %v4564, %v4563
    %v4575 = vpack.c.bf16 %v4566, %v4565
    %v4576 = vpack.c.bf16 %v4568, %v4567
    %4577 = vrot.lane.b32.xlu0 %v3500, 48
    %v4578 = vpop.permute.xlu0 %4577
    %4579 = vrot.lane.b32.xlu0 %v3501, 48
    %v4580 = vpop.permute.xlu0 %4579
    %4581 = vrot.lane.b32.xlu0 %v3502, 48
    %v4582 = vpop.permute.xlu0 %4581
    %4583 = vrot.lane.b32.xlu0 %v3503, 48
    %v4584 = vpop.permute.xlu0 %4583
    %4585 = vrot.lane.b32.xlu0 %v3504, 48
    %v4586 = vpop.permute.xlu0 %4585
    %4587 = vrot.lane.b32.xlu0 %v3505, 48
    %v4588 = vpop.permute.xlu0 %4587
    %4589 = vrot.lane.b32.xlu0 %v3506, 48
    %v4590 = vpop.permute.xlu0 %4589
    %4591 = vrot.lane.b32.xlu0 %v3507, 48
    %v4592 = vpop.permute.xlu0 %4591
    %4601 = vmatpush.bf16.msra.mxu0 %v4592
    %4602 = vmatpush.bf16.msra.mxu0 %v4590
    %4603 = vmatpush.bf16.msra.mxu0 %v4588
    %4604 = vmatpush.bf16.msra.mxu0 %v4586
    %4605 = vmatpush.bf16.msra.mxu0 %v4584
    %4606 = vmatpush.bf16.msra.mxu0 %v4582
    %4607 = vmatpush.bf16.msra.mxu0 %v4580
    %4608 = vmatpush.bf16.msra.mxu0 %v4578
    %4609 = vmatmul.bf16.gmra.mxu0 %v4569
    %v4610 = vpop.f32.mrf.mxu0
    %v4611 = vadd.f32 0.0, %v4610
    %v4612 = vpop.f32.mrf.mxu0
    %v4613 = vadd.f32 0.0, %v4612
    %4614 = vmatmul.bf16.gmra.mxu0 %v4570
    %v4615 = vpop.f32.mrf.mxu0
    %v4616 = vadd.f32 0.0, %v4615
    %v4617 = vpop.f32.mrf.mxu0
    %v4618 = vadd.f32 0.0, %v4617
    %4619 = vmatmul.bf16.gmra.mxu0 %v4571
    %v4620 = vpop.f32.mrf.mxu0
    %v4621 = vadd.f32 0.0, %v4620
    %v4622 = vpop.f32.mrf.mxu0
    %v4623 = vadd.f32 0.0, %v4622
    %4624 = vmatmul.bf16.gmra.mxu0 %v4572
    %v4625 = vpop.f32.mrf.mxu0
    %v4626 = vadd.f32 0.0, %v4625
    %v4627 = vpop.f32.mrf.mxu0
    %v4628 = vadd.f32 0.0, %v4627
    %4629 = vmatmul.bf16.gmra.mxu0 %v4573
    %v4630 = vpop.f32.mrf.mxu0
    %v4631 = vadd.f32 0.0, %v4630
    %v4632 = vpop.f32.mrf.mxu0
    %v4633 = vadd.f32 0.0, %v4632
    %4634 = vmatmul.bf16.gmra.mxu0 %v4574
    %v4635 = vpop.f32.mrf.mxu0
    %v4636 = vadd.f32 0.0, %v4635
    %v4637 = vpop.f32.mrf.mxu0
    %v4638 = vadd.f32 0.0, %v4637
    %4639 = vmatmul.bf16.gmra.mxu0 %v4575
    %v4640 = vpop.f32.mrf.mxu0
    %v4641 = vadd.f32 0.0, %v4640
    %v4642 = vpop.f32.mrf.mxu0
    %v4643 = vadd.f32 0.0, %v4642
    %4644 = vmatmul.bf16.gmra.mxu0 %v4576
    %v4645 = vpop.f32.mrf.mxu0
    %v4646 = vadd.f32 0.0, %v4645
    %v4647 = vpop.f32.mrf.mxu0
    %v4648 = vadd.f32 0.0, %v4647
    %4649 = vdwg.mxu0
    %4650 = vrot.lane.b32.xlu0 %v3500, 104
    %v4651 = vpop.permute.xlu0 %4650
    %4652 = vrot.lane.b32.xlu0 %v3501, 104
    %v4653 = vpop.permute.xlu0 %4652
    %4654 = vrot.lane.b32.xlu0 %v3502, 104
    %v4655 = vpop.permute.xlu0 %4654
    %4656 = vrot.lane.b32.xlu0 %v3503, 104
    %v4657 = vpop.permute.xlu0 %4656
    %4658 = vrot.lane.b32.xlu0 %v3504, 104
    %v4659 = vpop.permute.xlu0 %4658
    %4660 = vrot.lane.b32.xlu0 %v3505, 104
    %v4661 = vpop.permute.xlu0 %4660
    %4662 = vrot.lane.b32.xlu0 %v3506, 104
    %v4663 = vpop.permute.xlu0 %4662
    %4664 = vrot.lane.b32.xlu0 %v3507, 104
    %v4665 = vpop.permute.xlu0 %4664
    %4666 = vrot.lane.b32.xlu0 %v3500, 72
    %v4667 = vpop.permute.xlu0 %4666
    %4668 = vrot.lane.b32.xlu0 %v3501, 72
    %v4669 = vpop.permute.xlu0 %4668
    %4670 = vrot.lane.b32.xlu0 %v3502, 72
    %v4671 = vpop.permute.xlu0 %4670
    %4672 = vrot.lane.b32.xlu0 %v3503, 72
    %v4673 = vpop.permute.xlu0 %4672
    %4674 = vrot.lane.b32.xlu0 %v3504, 72
    %v4675 = vpop.permute.xlu0 %4674
    %4676 = vrot.lane.b32.xlu0 %v3505, 72
    %v4677 = vpop.permute.xlu0 %4676
    %4678 = vrot.lane.b32.xlu0 %v3506, 72
    %v4679 = vpop.permute.xlu0 %4678
    %4680 = vrot.lane.b32.xlu0 %v3507, 72
    %v4681 = vpop.permute.xlu0 %4680
    %v4683 = vsel %vm428, %v4651, 0
    %v4686 = vsel %vm428, %v4653, 0
    %v4689 = vsel %vm428, %v4655, 0
    %v4692 = vsel %vm428, %v4657, 0
    %v4695 = vsel %vm428, %v4659, 0
    %v4698 = vsel %vm428, %v4661, 0
    %v4701 = vsel %vm428, %v4663, 0
    %v4704 = vsel %vm428, %v4665, 0
    %v4707 = vsel %vm428, %v4667, 0
    %v4710 = vsel %vm428, %v4669, 0
    %v4713 = vsel %vm428, %v4671, 0
    %v4716 = vsel %vm428, %v4673, 0
    %v4719 = vsel %vm428, %v4675, 0
    %v4722 = vsel %vm428, %v4677, 0
    %v4725 = vsel %vm428, %v4679, 0
    %v4728 = vsel %vm428, %v4681, 0
    %4730 = vmatpush.bf16.xpose.msra.mxu0 %v4728
    %4731 = vmatpush.bf16.xpose.msra.mxu0 %v4725
    %4732 = vmatpush.bf16.xpose.msra.mxu0 %v4722
    %4733 = vmatpush.bf16.xpose.msra.mxu0 %v4719
    %4734 = vmatpush.bf16.xpose.msra.mxu0 %v4716
    %4735 = vmatpush.bf16.xpose.msra.mxu0 %v4713
    %4736 = vmatpush.bf16.xpose.msra.mxu0 %v4710
    %4737 = vmatpush.bf16.xpose.msra.mxu0 %v4707
    %4738 = vmatmul.bf16.gmra.mxu0 %v4683
    %v4739 = vpop.f32.mrf.mxu0
    %v4740 = vadd.f32 0.0, %v4739
    %v4741 = vpop.f32.mrf.mxu0
    %v4742 = vadd.f32 0.0, %v4741
    %4743 = vmatmul.bf16.gmra.mxu0 %v4686
    %v4744 = vpop.f32.mrf.mxu0
    %v4745 = vadd.f32 0.0, %v4744
    %v4746 = vpop.f32.mrf.mxu0
    %v4747 = vadd.f32 0.0, %v4746
    %4748 = vmatmul.bf16.gmra.mxu0 %v4689
    %v4749 = vpop.f32.mrf.mxu0
    %v4750 = vadd.f32 0.0, %v4749
    %v4751 = vpop.f32.mrf.mxu0
    %v4752 = vadd.f32 0.0, %v4751
    %4753 = vmatmul.bf16.gmra.mxu0 %v4692
    %v4754 = vpop.f32.mrf.mxu0
    %v4755 = vadd.f32 0.0, %v4754
    %v4756 = vpop.f32.mrf.mxu0
    %v4757 = vadd.f32 0.0, %v4756
    %4758 = vmatmul.bf16.gmra.mxu0 %v4695
    %v4759 = vpop.f32.mrf.mxu0
    %v4760 = vadd.f32 0.0, %v4759
    %v4761 = vpop.f32.mrf.mxu0
    %v4762 = vadd.f32 0.0, %v4761
    %4763 = vmatmul.bf16.gmra.mxu0 %v4698
    %v4764 = vpop.f32.mrf.mxu0
    %v4765 = vadd.f32 0.0, %v4764
    %v4766 = vpop.f32.mrf.mxu0
    %v4767 = vadd.f32 0.0, %v4766
    %4768 = vmatmul.bf16.gmra.mxu0 %v4701
    %v4769 = vpop.f32.mrf.mxu0
    %v4770 = vadd.f32 0.0, %v4769
    %v4771 = vpop.f32.mrf.mxu0
    %v4772 = vadd.f32 0.0, %v4771
    %4773 = vmatmul.bf16.gmra.mxu0 %v4704
    %v4774 = vpop.f32.mrf.mxu0
    %v4775 = vadd.f32 0.0, %v4774
    %v4776 = vpop.f32.mrf.mxu0
    %v4777 = vadd.f32 0.0, %v4776
    %4778 = vdwg.mxu0
    %v4779 = vmul.f32 %v4740, 0.35355338
    %v4780 = vmul.f32 %v4742, 0.35355338
    %v4781 = vmul.f32 %v4745, 0.35355338
    %v4782 = vmul.f32 %v4747, 0.35355338
    %v4783 = vmul.f32 %v4750, 0.35355338
    %v4784 = vmul.f32 %v4752, 0.35355338
    %v4785 = vmul.f32 %v4755, 0.35355338
    %v4786 = vmul.f32 %v4757, 0.35355338
    %v4787 = vmul.f32 %v4760, 0.35355338
    %v4788 = vmul.f32 %v4762, 0.35355338
    %v4789 = vmul.f32 %v4765, 0.35355338
    %v4790 = vmul.f32 %v4767, 0.35355338
    %v4791 = vmul.f32 %v4770, 0.35355338
    %v4792 = vmul.f32 %v4772, 0.35355338
    %v4793 = vmul.f32 %v4775, 0.35355338
    %v4794 = vmul.f32 %v4777, 0.35355338
    %v4795 = vadd.f32 %v4779, %v77
    %v4796 = vadd.f32 %v4780, %v78
    %v4797 = vadd.f32 %v4781, %v79
    %v4798 = vadd.f32 %v4782, %v80
    %v4799 = vadd.f32 %v4783, %v81
    %v4800 = vadd.f32 %v4784, %v82
    %v4801 = vadd.f32 %v4785, %v83
    %v4802 = vadd.f32 %v4786, %v84
    %v4803 = vadd.f32 %v4787, %v85
    %v4804 = vadd.f32 %v4788, %v86
    %v4805 = vadd.f32 %v4789, %v87
    %v4806 = vadd.f32 %v4790, %v88
    %v4807 = vadd.f32 %v4791, %v89
    %v4808 = vadd.f32 %v4792, %v90
    %v4809 = vadd.f32 %v4793, %v91
    %v4810 = vadd.f32 %v4794, %v92
    %4811 = vmax.xlane.f32.xlu0 %v4795
    %v4812 = vpop.xlane.xlu0 %4811
    %4813 = vmax.xlane.f32.xlu0 %v4796
    %v4814 = vpop.xlane.xlu0 %4813
    %4815 = vmax.xlane.f32.xlu0 %v4797
    %v4816 = vpop.xlane.xlu0 %4815
    %4817 = vmax.xlane.f32.xlu0 %v4798
    %v4818 = vpop.xlane.xlu0 %4817
    %4819 = vmax.xlane.f32.xlu0 %v4799
    %v4820 = vpop.xlane.xlu0 %4819
    %4821 = vmax.xlane.f32.xlu0 %v4800
    %v4822 = vpop.xlane.xlu0 %4821
    %4823 = vmax.xlane.f32.xlu0 %v4801
    %v4824 = vpop.xlane.xlu0 %4823
    %4825 = vmax.xlane.f32.xlu0 %v4802
    %v4826 = vpop.xlane.xlu0 %4825
    %4827 = vmax.xlane.f32.xlu0 %v4803
    %v4828 = vpop.xlane.xlu0 %4827
    %4829 = vmax.xlane.f32.xlu0 %v4804
    %v4830 = vpop.xlane.xlu0 %4829
    %4831 = vmax.xlane.f32.xlu0 %v4805
    %v4832 = vpop.xlane.xlu0 %4831
    %4833 = vmax.xlane.f32.xlu0 %v4806
    %v4834 = vpop.xlane.xlu0 %4833
    %4835 = vmax.xlane.f32.xlu0 %v4807
    %v4836 = vpop.xlane.xlu0 %4835
    %4837 = vmax.xlane.f32.xlu0 %v4808
    %v4838 = vpop.xlane.xlu0 %4837
    %4839 = vmax.xlane.f32.xlu0 %v4809
    %v4840 = vpop.xlane.xlu0 %4839
    %4841 = vmax.xlane.f32.xlu0 %v4810
    %v4842 = vpop.xlane.xlu0 %4841
    %v4843 = vsub.f32 %v4795, %v4812
    %v4844 = vsub.f32 %v4796, %v4814
    %v4845 = vsub.f32 %v4797, %v4816
    %v4846 = vsub.f32 %v4798, %v4818
    %v4847 = vsub.f32 %v4799, %v4820
    %v4848 = vsub.f32 %v4800, %v4822
    %v4849 = vsub.f32 %v4801, %v4824
    %v4850 = vsub.f32 %v4802, %v4826
    %v4851 = vsub.f32 %v4803, %v4828
    %v4852 = vsub.f32 %v4804, %v4830
    %v4853 = vsub.f32 %v4805, %v4832
    %v4854 = vsub.f32 %v4806, %v4834
    %v4855 = vsub.f32 %v4807, %v4836
    %v4856 = vsub.f32 %v4808, %v4838
    %v4857 = vsub.f32 %v4809, %v4840
    %v4858 = vsub.f32 %v4810, %v4842
    %v4859 = vmul.f32 %v4843, 1.442695
    %v4860 = vpow.pop %v4859
    %v4861 = vmul.f32 %v4844, 1.442695
    %v4862 = vpow.pop %v4861
    %v4863 = vmul.f32 %v4845, 1.442695
    %v4864 = vpow.pop %v4863
    %v4865 = vmul.f32 %v4846, 1.442695
    %v4866 = vpow.pop %v4865
    %v4867 = vmul.f32 %v4847, 1.442695
    %v4868 = vpow.pop %v4867
    %v4869 = vmul.f32 %v4848, 1.442695
    %v4870 = vpow.pop %v4869
    %v4871 = vmul.f32 %v4849, 1.442695
    %v4872 = vpow.pop %v4871
    %v4873 = vmul.f32 %v4850, 1.442695
    %v4874 = vpow.pop %v4873
    %v4875 = vmul.f32 %v4851, 1.442695
    %v4876 = vpow.pop %v4875
    %v4877 = vmul.f32 %v4852, 1.442695
    %v4878 = vpow.pop %v4877
    %v4879 = vmul.f32 %v4853, 1.442695
    %v4880 = vpow.pop %v4879
    %v4881 = vmul.f32 %v4854, 1.442695
    %v4882 = vpow.pop %v4881
    %v4883 = vmul.f32 %v4855, 1.442695
    %v4884 = vpow.pop %v4883
    %v4885 = vmul.f32 %v4856, 1.442695
    %v4886 = vpow.pop %v4885
    %v4887 = vmul.f32 %v4857, 1.442695
    %v4888 = vpow.pop %v4887
    %v4889 = vmul.f32 %v4858, 1.442695
    %v4890 = vpow.pop %v4889
    %4891 = vadd.xlane.f32.xlu0 %v4860
    %v4892 = vpop.xlane.xlu0 %4891
    %4893 = vadd.xlane.f32.xlu0 %v4862
    %v4894 = vpop.xlane.xlu0 %4893
    %4895 = vadd.xlane.f32.xlu0 %v4864
    %v4896 = vpop.xlane.xlu0 %4895
    %4897 = vadd.xlane.f32.xlu0 %v4866
    %v4898 = vpop.xlane.xlu0 %4897
    %4899 = vadd.xlane.f32.xlu0 %v4868
    %v4900 = vpop.xlane.xlu0 %4899
    %4901 = vadd.xlane.f32.xlu0 %v4870
    %v4902 = vpop.xlane.xlu0 %4901
    %4903 = vadd.xlane.f32.xlu0 %v4872
    %v4904 = vpop.xlane.xlu0 %4903
    %4905 = vadd.xlane.f32.xlu0 %v4874
    %v4906 = vpop.xlane.xlu0 %4905
    %4907 = vadd.xlane.f32.xlu0 %v4876
    %v4908 = vpop.xlane.xlu0 %4907
    %4909 = vadd.xlane.f32.xlu0 %v4878
    %v4910 = vpop.xlane.xlu0 %4909
    %4911 = vadd.xlane.f32.xlu0 %v4880
    %v4912 = vpop.xlane.xlu0 %4911
    %4913 = vadd.xlane.f32.xlu0 %v4882
    %v4914 = vpop.xlane.xlu0 %4913
    %4915 = vadd.xlane.f32.xlu0 %v4884
    %v4916 = vpop.xlane.xlu0 %4915
    %4917 = vadd.xlane.f32.xlu0 %v4886
    %v4918 = vpop.xlane.xlu0 %4917
    %4919 = vadd.xlane.f32.xlu0 %v4888
    %v4920 = vpop.xlane.xlu0 %4919
    %4921 = vadd.xlane.f32.xlu0 %v4890
    %v4922 = vpop.xlane.xlu0 %4921
    %v4923 = vrcp.pop %v4892
    %v4924 = vrcp.pop %v4894
    %v4925 = vrcp.pop %v4896
    %v4926 = vrcp.pop %v4898
    %v4927 = vrcp.pop %v4900
    %v4928 = vrcp.pop %v4902
    %v4929 = vrcp.pop %v4904
    %v4930 = vrcp.pop %v4906
    %v4931 = vrcp.pop %v4908
    %v4932 = vrcp.pop %v4910
    %v4933 = vrcp.pop %v4912
    %v4934 = vrcp.pop %v4914
    %v4935 = vrcp.pop %v4916
    %v4936 = vrcp.pop %v4918
    %v4937 = vrcp.pop %v4920
    %v4938 = vrcp.pop %v4922
    %v4939 = vmul.f32 %v4860, %v4923
    %v4940 = vmul.f32 %v4862, %v4924
    %v4941 = vmul.f32 %v4864, %v4925
    %v4942 = vmul.f32 %v4866, %v4926
    %v4943 = vmul.f32 %v4868, %v4927
    %v4944 = vmul.f32 %v4870, %v4928
    %v4945 = vmul.f32 %v4872, %v4929
    %v4946 = vmul.f32 %v4874, %v4930
    %v4947 = vmul.f32 %v4876, %v4931
    %v4948 = vmul.f32 %v4878, %v4932
    %v4949 = vmul.f32 %v4880, %v4933
    %v4950 = vmul.f32 %v4882, %v4934
    %v4951 = vmul.f32 %v4884, %v4935
    %v4952 = vmul.f32 %v4886, %v4936
    %v4953 = vmul.f32 %v4888, %v4937
    %v4954 = vmul.f32 %v4890, %v4938
    %v4955 = vpack.c.bf16 %v4940, %v4939
    %v4956 = vpack.c.bf16 %v4942, %v4941
    %v4957 = vpack.c.bf16 %v4944, %v4943
    %v4958 = vpack.c.bf16 %v4946, %v4945
    %v4959 = vpack.c.bf16 %v4948, %v4947
    %v4960 = vpack.c.bf16 %v4950, %v4949
    %v4961 = vpack.c.bf16 %v4952, %v4951
    %v4962 = vpack.c.bf16 %v4954, %v4953
    %4963 = vrot.lane.b32.xlu0 %v3500, 40
    %v4964 = vpop.permute.xlu0 %4963
    %4965 = vrot.lane.b32.xlu0 %v3501, 40
    %v4966 = vpop.permute.xlu0 %4965
    %4967 = vrot.lane.b32.xlu0 %v3502, 40
    %v4968 = vpop.permute.xlu0 %4967
    %4969 = vrot.lane.b32.xlu0 %v3503, 40
    %v4970 = vpop.permute.xlu0 %4969
    %4971 = vrot.lane.b32.xlu0 %v3504, 40
    %v4972 = vpop.permute.xlu0 %4971
    %4973 = vrot.lane.b32.xlu0 %v3505, 40
    %v4974 = vpop.permute.xlu0 %4973
    %4975 = vrot.lane.b32.xlu0 %v3506, 40
    %v4976 = vpop.permute.xlu0 %4975
    %4977 = vrot.lane.b32.xlu0 %v3507, 40
    %v4978 = vpop.permute.xlu0 %4977
    %4987 = vmatpush.bf16.msra.mxu0 %v4978
    %4988 = vmatpush.bf16.msra.mxu0 %v4976
    %4989 = vmatpush.bf16.msra.mxu0 %v4974
    %4990 = vmatpush.bf16.msra.mxu0 %v4972
    %4991 = vmatpush.bf16.msra.mxu0 %v4970
    %4992 = vmatpush.bf16.msra.mxu0 %v4968
    %4993 = vmatpush.bf16.msra.mxu0 %v4966
    %4994 = vmatpush.bf16.msra.mxu0 %v4964
    %4995 = vmatmul.bf16.gmra.mxu0 %v4955
    %v4996 = vpop.f32.mrf.mxu0
    %v4997 = vadd.f32 0.0, %v4996
    %v4998 = vpop.f32.mrf.mxu0
    %v4999 = vadd.f32 0.0, %v4998
    %5000 = vmatmul.bf16.gmra.mxu0 %v4956
    %v5001 = vpop.f32.mrf.mxu0
    %v5002 = vadd.f32 0.0, %v5001
    %v5003 = vpop.f32.mrf.mxu0
    %v5004 = vadd.f32 0.0, %v5003
    %5005 = vmatmul.bf16.gmra.mxu0 %v4957
    %v5006 = vpop.f32.mrf.mxu0
    %v5007 = vadd.f32 0.0, %v5006
    %v5008 = vpop.f32.mrf.mxu0
    %v5009 = vadd.f32 0.0, %v5008
    %5010 = vmatmul.bf16.gmra.mxu0 %v4958
    %v5011 = vpop.f32.mrf.mxu0
    %v5012 = vadd.f32 0.0, %v5011
    %v5013 = vpop.f32.mrf.mxu0
    %v5014 = vadd.f32 0.0, %v5013
    %5015 = vmatmul.bf16.gmra.mxu0 %v4959
    %v5016 = vpop.f32.mrf.mxu0
    %v5017 = vadd.f32 0.0, %v5016
    %v5018 = vpop.f32.mrf.mxu0
    %v5019 = vadd.f32 0.0, %v5018
    %5020 = vmatmul.bf16.gmra.mxu0 %v4960
    %v5021 = vpop.f32.mrf.mxu0
    %v5022 = vadd.f32 0.0, %v5021
    %v5023 = vpop.f32.mrf.mxu0
    %v5024 = vadd.f32 0.0, %v5023
    %5025 = vmatmul.bf16.gmra.mxu0 %v4961
    %v5026 = vpop.f32.mrf.mxu0
    %v5027 = vadd.f32 0.0, %v5026
    %v5028 = vpop.f32.mrf.mxu0
    %v5029 = vadd.f32 0.0, %v5028
    %5030 = vmatmul.bf16.gmra.mxu0 %v4962
    %v5031 = vpop.f32.mrf.mxu0
    %v5032 = vadd.f32 0.0, %v5031
    %v5033 = vpop.f32.mrf.mxu0
    %v5034 = vadd.f32 0.0, %v5033
    %5035 = vdwg.mxu0
    %5052 = vrot.lane.b32.xlu0 %v4225, 8
    %v5053 = vpop.permute.xlu0 %5052
    %5054 = vrot.lane.b32.xlu0 %v4227, 8
    %v5055 = vpop.permute.xlu0 %5054
    %5056 = vrot.lane.b32.xlu0 %v4230, 8
    %v5057 = vpop.permute.xlu0 %5056
    %5058 = vrot.lane.b32.xlu0 %v4232, 8
    %v5059 = vpop.permute.xlu0 %5058
    %5060 = vrot.lane.b32.xlu0 %v4235, 8
    %v5061 = vpop.permute.xlu0 %5060
    %5062 = vrot.lane.b32.xlu0 %v4237, 8
    %v5063 = vpop.permute.xlu0 %5062
    %5064 = vrot.lane.b32.xlu0 %v4240, 8
    %v5065 = vpop.permute.xlu0 %5064
    %5066 = vrot.lane.b32.xlu0 %v4242, 8
    %v5067 = vpop.permute.xlu0 %5066
    %5068 = vrot.lane.b32.xlu0 %v4245, 8
    %v5069 = vpop.permute.xlu0 %5068
    %5070 = vrot.lane.b32.xlu0 %v4247, 8
    %v5071 = vpop.permute.xlu0 %5070
    %5072 = vrot.lane.b32.xlu0 %v4250, 8
    %v5073 = vpop.permute.xlu0 %5072
    %5074 = vrot.lane.b32.xlu0 %v4252, 8
    %v5075 = vpop.permute.xlu0 %5074
    %5076 = vrot.lane.b32.xlu0 %v4255, 8
    %v5077 = vpop.permute.xlu0 %5076
    %5078 = vrot.lane.b32.xlu0 %v4257, 8
    %v5079 = vpop.permute.xlu0 %5078
    %5080 = vrot.lane.b32.xlu0 %v4260, 8
    %v5081 = vpop.permute.xlu0 %5080
    %5082 = vrot.lane.b32.xlu0 %v4262, 8
    %v5083 = vpop.permute.xlu0 %5082
    %5116 = vrot.lane.b32.xlu0 %v4611, 16
    %v5117 = vpop.permute.xlu0 %5116
    %5118 = vrot.lane.b32.xlu0 %v4613, 16
    %v5119 = vpop.permute.xlu0 %5118
    %5120 = vrot.lane.b32.xlu0 %v4616, 16
    %v5121 = vpop.permute.xlu0 %5120
    %5122 = vrot.lane.b32.xlu0 %v4618, 16
    %v5123 = vpop.permute.xlu0 %5122
    %5124 = vrot.lane.b32.xlu0 %v4621, 16
    %v5125 = vpop.permute.xlu0 %5124
    %5126 = vrot.lane.b32.xlu0 %v4623, 16
    %v5127 = vpop.permute.xlu0 %5126
    %5128 = vrot.lane.b32.xlu0 %v4626, 16
    %v5129 = vpop.permute.xlu0 %5128
    %5130 = vrot.lane.b32.xlu0 %v4628, 16
    %v5131 = vpop.permute.xlu0 %5130
    %5132 = vrot.lane.b32.xlu0 %v4631, 16
    %v5133 = vpop.permute.xlu0 %5132
    %5134 = vrot.lane.b32.xlu0 %v4633, 16
    %v5135 = vpop.permute.xlu0 %5134
    %5136 = vrot.lane.b32.xlu0 %v4636, 16
    %v5137 = vpop.permute.xlu0 %5136
    %5138 = vrot.lane.b32.xlu0 %v4638, 16
    %v5139 = vpop.permute.xlu0 %5138
    %5140 = vrot.lane.b32.xlu0 %v4641, 16
    %v5141 = vpop.permute.xlu0 %5140
    %5142 = vrot.lane.b32.xlu0 %v4643, 16
    %v5143 = vpop.permute.xlu0 %5142
    %5144 = vrot.lane.b32.xlu0 %v4646, 16
    %v5145 = vpop.permute.xlu0 %5144
    %5146 = vrot.lane.b32.xlu0 %v4648, 16
    %v5147 = vpop.permute.xlu0 %5146
    %5180 = vrot.lane.b32.xlu0 %v4997, 24
    %v5181 = vpop.permute.xlu0 %5180
    %5182 = vrot.lane.b32.xlu0 %v4999, 24
    %v5183 = vpop.permute.xlu0 %5182
    %5184 = vrot.lane.b32.xlu0 %v5002, 24
    %v5185 = vpop.permute.xlu0 %5184
    %5186 = vrot.lane.b32.xlu0 %v5004, 24
    %v5187 = vpop.permute.xlu0 %5186
    %5188 = vrot.lane.b32.xlu0 %v5007, 24
    %v5189 = vpop.permute.xlu0 %5188
    %5190 = vrot.lane.b32.xlu0 %v5009, 24
    %v5191 = vpop.permute.xlu0 %5190
    %5192 = vrot.lane.b32.xlu0 %v5012, 24
    %v5193 = vpop.permute.xlu0 %5192
    %5194 = vrot.lane.b32.xlu0 %v5014, 24
    %v5195 = vpop.permute.xlu0 %5194
    %5196 = vrot.lane.b32.xlu0 %v5017, 24
    %v5197 = vpop.permute.xlu0 %5196
    %5198 = vrot.lane.b32.xlu0 %v5019, 24
    %v5199 = vpop.permute.xlu0 %5198
    %5200 = vrot.lane.b32.xlu0 %v5022, 24
    %v5201 = vpop.permute.xlu0 %5200
    %5202 = vrot.lane.b32.xlu0 %v5024, 24
    %v5203 = vpop.permute.xlu0 %5202
    %5204 = vrot.lane.b32.xlu0 %v5027, 24
    %v5205 = vpop.permute.xlu0 %5204
    %5206 = vrot.lane.b32.xlu0 %v5029, 24
    %v5207 = vpop.permute.xlu0 %5206
    %5208 = vrot.lane.b32.xlu0 %v5032, 24
    %v5209 = vpop.permute.xlu0 %5208
    %5210 = vrot.lane.b32.xlu0 %v5034, 24
    %v5211 = vpop.permute.xlu0 %5210
    %v5228 = vsel %vm428, %v3839, %v5053
    %v5229 = vsel %vm428, %v3841, %v5055
    %v5230 = vsel %vm428, %v3844, %v5057
    %v5231 = vsel %vm428, %v3846, %v5059
    %v5232 = vsel %vm428, %v3849, %v5061
    %v5233 = vsel %vm428, %v3851, %v5063
    %v5234 = vsel %vm428, %v3854, %v5065
    %v5235 = vsel %vm428, %v3856, %v5067
    %v5236 = vsel %vm428, %v3859, %v5069
    %v5237 = vsel %vm428, %v3861, %v5071
    %v5238 = vsel %vm428, %v3864, %v5073
    %v5239 = vsel %vm428, %v3866, %v5075
    %v5240 = vsel %vm428, %v3869, %v5077
    %v5241 = vsel %vm428, %v3871, %v5079
    %v5242 = vsel %vm428, %v3874, %v5081
    %v5243 = vsel %vm428, %v3876, %v5083
    %v5244 = vsel %vm2149, %v5228, %v5117
    %v5245 = vsel %vm2149, %v5229, %v5119
    %v5246 = vsel %vm2149, %v5230, %v5121
    %v5247 = vsel %vm2149, %v5231, %v5123
    %v5248 = vsel %vm2149, %v5232, %v5125
    %v5249 = vsel %vm2149, %v5233, %v5127
    %v5250 = vsel %vm2149, %v5234, %v5129
    %v5251 = vsel %vm2149, %v5235, %v5131
    %v5252 = vsel %vm2149, %v5236, %v5133
    %v5253 = vsel %vm2149, %v5237, %v5135
    %v5254 = vsel %vm2149, %v5238, %v5137
    %v5255 = vsel %vm2149, %v5239, %v5139
    %v5256 = vsel %vm2149, %v5240, %v5141
    %v5257 = vsel %vm2149, %v5241, %v5143
    %v5258 = vsel %vm2149, %v5242, %v5145
    %v5259 = vsel %vm2149, %v5243, %v5147
    %v5260 = vsel %vm2166, %v5244, %v5181
    %v5261 = vsel %vm2166, %v5245, %v5183
    %v5262 = vsel %vm2166, %v5246, %v5185
    %v5263 = vsel %vm2166, %v5247, %v5187
    %v5264 = vsel %vm2166, %v5248, %v5189
    %v5265 = vsel %vm2166, %v5249, %v5191
    %v5266 = vsel %vm2166, %v5250, %v5193
    %v5267 = vsel %vm2166, %v5251, %v5195
    %v5268 = vsel %vm2166, %v5252, %v5197
    %v5269 = vsel %vm2166, %v5253, %v5199
    %v5270 = vsel %vm2166, %v5254, %v5201
    %v5271 = vsel %vm2166, %v5255, %v5203
    %v5272 = vsel %vm2166, %v5256, %v5205
    %v5273 = vsel %vm2166, %v5257, %v5207
    %v5274 = vsel %vm2166, %v5258, %v5209
    %v5275 = vsel %vm2166, %v5259, %v5211
    %v5276 = vpack.c.bf16 %v5261, %v5260
    %v5277 = vpack.c.bf16 %v5263, %v5262
    %v5278 = vpack.c.bf16 %v5265, %v5264
    %v5279 = vpack.c.bf16 %v5267, %v5266
    %v5280 = vpack.c.bf16 %v5269, %v5268
    %v5281 = vpack.c.bf16 %v5271, %v5270
    %v5282 = vpack.c.bf16 %v5273, %v5272
    %v5283 = vpack.c.bf16 %v5275, %v5274
    %s5284 = scalar_lea.vmem %s8, 16
    %v5285 = vld [vmem:[%s5284] sm:$0xf]
    %v5286 = vld [vmem:[%s5284 + $0x4] sm:$0xf]
    %v5287 = vld [vmem:[%s5284 + $0x8] sm:$0xf]
    %v5288 = vld [vmem:[%s5284 + $0xc] sm:$0xf]
    %s5289 = scalar_lea.vmem %s9, 1
    %v5290 = vld [vmem:[%s5289] sm:$0x1]
    %v5292 = vperm.slane %v5290, 0
    %v5298 = vunpack.c.l.b16 %v5285
    %v5299 = vunpack.c.l.b16 %v5286
    %v5300 = vunpack.c.l.b16 %v5287
    %v5301 = vunpack.c.l.b16 %v5288
    %v5302 = vpack.c.b16 %v5299, %v5298
    %v5303 = vpack.c.b16 %v5301, %v5300
    %v5307 = vsel %vm181, %v5276, 0
    %v5310 = vsel %vm181, %v5277, 0
    %v5313 = vsel %vm181, %v5278, 0
    %v5316 = vsel %vm181, %v5279, 0
    %v5319 = vsel %vm181, %v5280, 0
    %v5322 = vsel %vm181, %v5281, 0
    %v5325 = vsel %vm181, %v5282, 0
    %v5328 = vsel %vm181, %v5283, 0
    %5330 = vmatpush.bf16.msra.mxu0 0
    %5331 = vmatpush.bf16.msra.mxu0 0
    %5332 = vmatpush.bf16.msra.mxu0 0
    %5333 = vmatpush.bf16.msra.mxu0 0
    %5334 = vmatpush.bf16.msra.mxu0 0
    %5335 = vmatpush.bf16.msra.mxu0 0
    %5336 = vmatpush.bf16.msra.mxu0 %v5303
    %5337 = vmatpush.bf16.msra.mxu0 %v5302
    %5338 = vmatmul.bf16.gmra.mxu0 %v5307
    %v5339 = vpop.f32.mrf.mxu0
    %v5340 = vadd.f32 %v5292, %v5339
    %v5341 = vpop.f32.mrf.mxu0
    %v5342 = vadd.f32 %v5292, %v5341
    %5343 = vmatmul.bf16.gmra.mxu0 %v5310
    %v5344 = vpop.f32.mrf.mxu0
    %v5345 = vadd.f32 %v5292, %v5344
    %v5346 = vpop.f32.mrf.mxu0
    %v5347 = vadd.f32 %v5292, %v5346
    %5348 = vmatmul.bf16.gmra.mxu0 %v5313
    %v5349 = vpop.f32.mrf.mxu0
    %v5350 = vadd.f32 %v5292, %v5349
    %v5351 = vpop.f32.mrf.mxu0
    %v5352 = vadd.f32 %v5292, %v5351
    %5353 = vmatmul.bf16.gmra.mxu0 %v5316
    %v5354 = vpop.f32.mrf.mxu0
    %v5355 = vadd.f32 %v5292, %v5354
    %v5356 = vpop.f32.mrf.mxu0
    %v5357 = vadd.f32 %v5292, %v5356
    %5358 = vmatmul.bf16.gmra.mxu0 %v5319
    %v5359 = vpop.f32.mrf.mxu0
    %v5360 = vadd.f32 %v5292, %v5359
    %v5361 = vpop.f32.mrf.mxu0
    %v5362 = vadd.f32 %v5292, %v5361
    %5363 = vmatmul.bf16.gmra.mxu0 %v5322
    %v5364 = vpop.f32.mrf.mxu0
    %v5365 = vadd.f32 %v5292, %v5364
    %v5366 = vpop.f32.mrf.mxu0
    %v5367 = vadd.f32 %v5292, %v5366
    %5368 = vmatmul.bf16.gmra.mxu0 %v5325
    %v5369 = vpop.f32.mrf.mxu0
    %v5370 = vadd.f32 %v5292, %v5369
    %v5371 = vpop.f32.mrf.mxu0
    %v5372 = vadd.f32 %v5292, %v5371
    %5373 = vmatmul.bf16.gmra.mxu0 %v5328
    %v5374 = vpop.f32.mrf.mxu0
    %v5375 = vadd.f32 %v5292, %v5374
    %v5376 = vpop.f32.mrf.mxu0
    %v5377 = vadd.f32 %v5292, %v5376
    %5378 = vdwg.mxu0
    %v5379 = vadd.f32 %v3333, %v5340
    %v5380 = vadd.f32 %v3334, %v5342
    %v5381 = vadd.f32 %v3335, %v5345
    %v5382 = vadd.f32 %v3336, %v5347
    %v5383 = vadd.f32 %v3337, %v5350
    %v5384 = vadd.f32 %v3338, %v5352
    %v5385 = vadd.f32 %v3339, %v5355
    %v5386 = vadd.f32 %v3340, %v5357
    %v5387 = vadd.f32 %v3341, %v5360
    %v5388 = vadd.f32 %v3342, %v5362
    %v5389 = vadd.f32 %v3343, %v5365
    %v5390 = vadd.f32 %v3344, %v5367
    %v5391 = vadd.f32 %v3345, %v5370
    %v5392 = vadd.f32 %v3346, %v5372
    %v5393 = vadd.f32 %v3347, %v5375
    %v5394 = vadd.f32 %v3348, %v5377
    %s5395 = scalar_lea.vmem %s10, 1
    %v5396 = vld [vmem:[%s5395] sm:$0x1]
    %s5397 = scalar_lea.vmem %s11, 1
    %v5398 = vld [vmem:[%s5397] sm:$0x1]
    %v5399 = vsel %vm181, %v5379, 0.0
    %5400 = vadd.xlane.f32.xlu0 %v5399
    %v5401 = vpop.xlane.xlu0 %5400
    %v5402 = vsel %vm181, %v5380, 0.0
    %5403 = vadd.xlane.f32.xlu0 %v5402
    %v5404 = vpop.xlane.xlu0 %5403
    %v5405 = vsel %vm181, %v5381, 0.0
    %5406 = vadd.xlane.f32.xlu0 %v5405
    %v5407 = vpop.xlane.xlu0 %5406
    %v5408 = vsel %vm181, %v5382, 0.0
    %5409 = vadd.xlane.f32.xlu0 %v5408
    %v5410 = vpop.xlane.xlu0 %5409
    %v5411 = vsel %vm181, %v5383, 0.0
    %5412 = vadd.xlane.f32.xlu0 %v5411
    %v5413 = vpop.xlane.xlu0 %5412
    %v5414 = vsel %vm181, %v5384, 0.0
    %5415 = vadd.xlane.f32.xlu0 %v5414
    %v5416 = vpop.xlane.xlu0 %5415
    %v5417 = vsel %vm181, %v5385, 0.0
    %5418 = vadd.xlane.f32.xlu0 %v5417
    %v5419 = vpop.xlane.xlu0 %5418
    %v5420 = vsel %vm181, %v5386, 0.0
    %5421 = vadd.xlane.f32.xlu0 %v5420
    %v5422 = vpop.xlane.xlu0 %5421
    %v5423 = vsel %vm181, %v5387, 0.0
    %5424 = vadd.xlane.f32.xlu0 %v5423
    %v5425 = vpop.xlane.xlu0 %5424
    %v5426 = vsel %vm181, %v5388, 0.0
    %5427 = vadd.xlane.f32.xlu0 %v5426
    %v5428 = vpop.xlane.xlu0 %5427
    %v5429 = vsel %vm181, %v5389, 0.0
    %5430 = vadd.xlane.f32.xlu0 %v5429
    %v5431 = vpop.xlane.xlu0 %5430
    %v5432 = vsel %vm181, %v5390, 0.0
    %5433 = vadd.xlane.f32.xlu0 %v5432
    %v5434 = vpop.xlane.xlu0 %5433
    %v5435 = vsel %vm181, %v5391, 0.0
    %5436 = vadd.xlane.f32.xlu0 %v5435
    %v5437 = vpop.xlane.xlu0 %5436
    %v5438 = vsel %vm181, %v5392, 0.0
    %5439 = vadd.xlane.f32.xlu0 %v5438
    %v5440 = vpop.xlane.xlu0 %5439
    %v5441 = vsel %vm181, %v5393, 0.0
    %5442 = vadd.xlane.f32.xlu0 %v5441
    %v5443 = vpop.xlane.xlu0 %5442
    %v5444 = vsel %vm181, %v5394, 0.0
    %5445 = vadd.xlane.f32.xlu0 %v5444
    %v5446 = vpop.xlane.xlu0 %5445
    %v5447 = vmul.f32 %v5401, %v2356
    %v5448 = vmul.f32 %v5404, %v2356
    %v5449 = vmul.f32 %v5407, %v2356
    %v5450 = vmul.f32 %v5410, %v2356
    %v5451 = vmul.f32 %v5413, %v2356
    %v5452 = vmul.f32 %v5416, %v2356
    %v5453 = vmul.f32 %v5419, %v2356
    %v5454 = vmul.f32 %v5422, %v2356
    %v5455 = vmul.f32 %v5425, %v2356
    %v5456 = vmul.f32 %v5428, %v2356
    %v5457 = vmul.f32 %v5431, %v2356
    %v5458 = vmul.f32 %v5434, %v2356
    %v5459 = vmul.f32 %v5437, %v2356
    %v5460 = vmul.f32 %v5440, %v2356
    %v5461 = vmul.f32 %v5443, %v2356
    %v5462 = vmul.f32 %v5446, %v2356
    %v5463 = vsub.f32 %v5379, %v5447
    %v5464 = vsub.f32 %v5380, %v5448
    %v5465 = vsub.f32 %v5381, %v5449
    %v5466 = vsub.f32 %v5382, %v5450
    %v5467 = vsub.f32 %v5383, %v5451
    %v5468 = vsub.f32 %v5384, %v5452
    %v5469 = vsub.f32 %v5385, %v5453
    %v5470 = vsub.f32 %v5386, %v5454
    %v5471 = vsub.f32 %v5387, %v5455
    %v5472 = vsub.f32 %v5388, %v5456
    %v5473 = vsub.f32 %v5389, %v5457
    %v5474 = vsub.f32 %v5390, %v5458
    %v5475 = vsub.f32 %v5391, %v5459
    %v5476 = vsub.f32 %v5392, %v5460
    %v5477 = vsub.f32 %v5393, %v5461
    %v5478 = vsub.f32 %v5394, %v5462
    %v5479 = vmul.f32 %v5463, %v5463
    %v5480 = vmul.f32 %v5464, %v5464
    %v5481 = vmul.f32 %v5465, %v5465
    %v5482 = vmul.f32 %v5466, %v5466
    %v5483 = vmul.f32 %v5467, %v5467
    %v5484 = vmul.f32 %v5468, %v5468
    %v5485 = vmul.f32 %v5469, %v5469
    %v5486 = vmul.f32 %v5470, %v5470
    %v5487 = vmul.f32 %v5471, %v5471
    %v5488 = vmul.f32 %v5472, %v5472
    %v5489 = vmul.f32 %v5473, %v5473
    %v5490 = vmul.f32 %v5474, %v5474
    %v5491 = vmul.f32 %v5475, %v5475
    %v5492 = vmul.f32 %v5476, %v5476
    %v5493 = vmul.f32 %v5477, %v5477
    %v5494 = vmul.f32 %v5478, %v5478
    %v5495 = vsel %vm181, %v5479, 0.0
    %5496 = vadd.xlane.f32.xlu0 %v5495
    %v5497 = vpop.xlane.xlu0 %5496
    %v5498 = vsel %vm181, %v5480, 0.0
    %5499 = vadd.xlane.f32.xlu0 %v5498
    %v5500 = vpop.xlane.xlu0 %5499
    %v5501 = vsel %vm181, %v5481, 0.0
    %5502 = vadd.xlane.f32.xlu0 %v5501
    %v5503 = vpop.xlane.xlu0 %5502
    %v5504 = vsel %vm181, %v5482, 0.0
    %5505 = vadd.xlane.f32.xlu0 %v5504
    %v5506 = vpop.xlane.xlu0 %5505
    %v5507 = vsel %vm181, %v5483, 0.0
    %5508 = vadd.xlane.f32.xlu0 %v5507
    %v5509 = vpop.xlane.xlu0 %5508
    %v5510 = vsel %vm181, %v5484, 0.0
    %5511 = vadd.xlane.f32.xlu0 %v5510
    %v5512 = vpop.xlane.xlu0 %5511
    %v5513 = vsel %vm181, %v5485, 0.0
    %5514 = vadd.xlane.f32.xlu0 %v5513
    %v5515 = vpop.xlane.xlu0 %5514
    %v5516 = vsel %vm181, %v5486, 0.0
    %5517 = vadd.xlane.f32.xlu0 %v5516
    %v5518 = vpop.xlane.xlu0 %5517
    %v5519 = vsel %vm181, %v5487, 0.0
    %5520 = vadd.xlane.f32.xlu0 %v5519
    %v5521 = vpop.xlane.xlu0 %5520
    %v5522 = vsel %vm181, %v5488, 0.0
    %5523 = vadd.xlane.f32.xlu0 %v5522
    %v5524 = vpop.xlane.xlu0 %5523
    %v5525 = vsel %vm181, %v5489, 0.0
    %5526 = vadd.xlane.f32.xlu0 %v5525
    %v5527 = vpop.xlane.xlu0 %5526
    %v5528 = vsel %vm181, %v5490, 0.0
    %5529 = vadd.xlane.f32.xlu0 %v5528
    %v5530 = vpop.xlane.xlu0 %5529
    %v5531 = vsel %vm181, %v5491, 0.0
    %5532 = vadd.xlane.f32.xlu0 %v5531
    %v5533 = vpop.xlane.xlu0 %5532
    %v5534 = vsel %vm181, %v5492, 0.0
    %5535 = vadd.xlane.f32.xlu0 %v5534
    %v5536 = vpop.xlane.xlu0 %5535
    %v5537 = vsel %vm181, %v5493, 0.0
    %5538 = vadd.xlane.f32.xlu0 %v5537
    %v5539 = vpop.xlane.xlu0 %5538
    %v5540 = vsel %vm181, %v5494, 0.0
    %5541 = vadd.xlane.f32.xlu0 %v5540
    %v5542 = vpop.xlane.xlu0 %5541
    %v5543 = vmul.f32 %v5497, %v2356
    %v5544 = vmul.f32 %v5500, %v2356
    %v5545 = vmul.f32 %v5503, %v2356
    %v5546 = vmul.f32 %v5506, %v2356
    %v5547 = vmul.f32 %v5509, %v2356
    %v5548 = vmul.f32 %v5512, %v2356
    %v5549 = vmul.f32 %v5515, %v2356
    %v5550 = vmul.f32 %v5518, %v2356
    %v5551 = vmul.f32 %v5521, %v2356
    %v5552 = vmul.f32 %v5524, %v2356
    %v5553 = vmul.f32 %v5527, %v2356
    %v5554 = vmul.f32 %v5530, %v2356
    %v5555 = vmul.f32 %v5533, %v2356
    %v5556 = vmul.f32 %v5536, %v2356
    %v5557 = vmul.f32 %v5539, %v2356
    %v5558 = vmul.f32 %v5542, %v2356
    %v5559 = vadd.f32 %v5543, 1e-05
    %v5560 = vadd.f32 %v5544, 1e-05
    %v5561 = vadd.f32 %v5545, 1e-05
    %v5562 = vadd.f32 %v5546, 1e-05
    %v5563 = vadd.f32 %v5547, 1e-05
    %v5564 = vadd.f32 %v5548, 1e-05
    %v5565 = vadd.f32 %v5549, 1e-05
    %v5566 = vadd.f32 %v5550, 1e-05
    %v5567 = vadd.f32 %v5551, 1e-05
    %v5568 = vadd.f32 %v5552, 1e-05
    %v5569 = vadd.f32 %v5553, 1e-05
    %v5570 = vadd.f32 %v5554, 1e-05
    %v5571 = vadd.f32 %v5555, 1e-05
    %v5572 = vadd.f32 %v5556, 1e-05
    %v5573 = vadd.f32 %v5557, 1e-05
    %v5574 = vadd.f32 %v5558, 1e-05
    %v5575 = vrsqrt.pop %v5559
    %v5576 = vmul.f32 %v5575, %v5559
    %v5577 = vmul.f32 %v5576, %v5575
    %v5578 = vmul.f32 0.5, %v5577
    %v5579 = vsub.f32 1.5, %v5578
    %v5580 = vmul.f32 %v5575, %v5579
    %vm5581 = vweird.f32 %v5559
    %vm5582 = vweird.f32 %v5575
    %vm5583 = vmor %vm5581, %vm5582
    %v5584 = vsel %vm5583, %v5575, %v5580
    %v5585 = vrsqrt.pop %v5560
    %v5586 = vmul.f32 %v5585, %v5560
    %v5587 = vmul.f32 %v5586, %v5585
    %v5588 = vmul.f32 0.5, %v5587
    %v5589 = vsub.f32 1.5, %v5588
    %v5590 = vmul.f32 %v5585, %v5589
    %vm5591 = vweird.f32 %v5560
    %vm5592 = vweird.f32 %v5585
    %vm5593 = vmor %vm5591, %vm5592
    %v5594 = vsel %vm5593, %v5585, %v5590
    %v5595 = vrsqrt.pop %v5561
    %v5596 = vmul.f32 %v5595, %v5561
    %v5597 = vmul.f32 %v5596, %v5595
    %v5598 = vmul.f32 0.5, %v5597
    %v5599 = vsub.f32 1.5, %v5598
    %v5600 = vmul.f32 %v5595, %v5599
    %vm5601 = vweird.f32 %v5561
    %vm5602 = vweird.f32 %v5595
    %vm5603 = vmor %vm5601, %vm5602
    %v5604 = vsel %vm5603, %v5595, %v5600
    %v5605 = vrsqrt.pop %v5562
    %v5606 = vmul.f32 %v5605, %v5562
    %v5607 = vmul.f32 %v5606, %v5605
    %v5608 = vmul.f32 0.5, %v5607
    %v5609 = vsub.f32 1.5, %v5608
    %v5610 = vmul.f32 %v5605, %v5609
    %vm5611 = vweird.f32 %v5562
    %vm5612 = vweird.f32 %v5605
    %vm5613 = vmor %vm5611, %vm5612
    %v5614 = vsel %vm5613, %v5605, %v5610
    %v5615 = vrsqrt.pop %v5563
    %v5616 = vmul.f32 %v5615, %v5563
    %v5617 = vmul.f32 %v5616, %v5615
    %v5618 = vmul.f32 0.5, %v5617
    %v5619 = vsub.f32 1.5, %v5618
    %v5620 = vmul.f32 %v5615, %v5619
    %vm5621 = vweird.f32 %v5563
    %vm5622 = vweird.f32 %v5615
    %vm5623 = vmor %vm5621, %vm5622
    %v5624 = vsel %vm5623, %v5615, %v5620
    %v5625 = vrsqrt.pop %v5564
    %v5626 = vmul.f32 %v5625, %v5564
    %v5627 = vmul.f32 %v5626, %v5625
    %v5628 = vmul.f32 0.5, %v5627
    %v5629 = vsub.f32 1.5, %v5628
    %v5630 = vmul.f32 %v5625, %v5629
    %vm5631 = vweird.f32 %v5564
    %vm5632 = vweird.f32 %v5625
    %vm5633 = vmor %vm5631, %vm5632
    %v5634 = vsel %vm5633, %v5625, %v5630
    %v5635 = vrsqrt.pop %v5565
    %v5636 = vmul.f32 %v5635, %v5565
    %v5637 = vmul.f32 %v5636, %v5635
    %v5638 = vmul.f32 0.5, %v5637
    %v5639 = vsub.f32 1.5, %v5638
    %v5640 = vmul.f32 %v5635, %v5639
    %vm5641 = vweird.f32 %v5565
    %vm5642 = vweird.f32 %v5635
    %vm5643 = vmor %vm5641, %vm5642
    %v5644 = vsel %vm5643, %v5635, %v5640
    %v5645 = vrsqrt.pop %v5566
    %v5646 = vmul.f32 %v5645, %v5566
    %v5647 = vmul.f32 %v5646, %v5645
    %v5648 = vmul.f32 0.5, %v5647
    %v5649 = vsub.f32 1.5, %v5648
    %v5650 = vmul.f32 %v5645, %v5649
    %vm5651 = vweird.f32 %v5566
    %vm5652 = vweird.f32 %v5645
    %vm5653 = vmor %vm5651, %vm5652
    %v5654 = vsel %vm5653, %v5645, %v5650
    %v5655 = vrsqrt.pop %v5567
    %v5656 = vmul.f32 %v5655, %v5567
    %v5657 = vmul.f32 %v5656, %v5655
    %v5658 = vmul.f32 0.5, %v5657
    %v5659 = vsub.f32 1.5, %v5658
    %v5660 = vmul.f32 %v5655, %v5659
    %vm5661 = vweird.f32 %v5567
    %vm5662 = vweird.f32 %v5655
    %vm5663 = vmor %vm5661, %vm5662
    %v5664 = vsel %vm5663, %v5655, %v5660
    %v5665 = vrsqrt.pop %v5568
    %v5666 = vmul.f32 %v5665, %v5568
    %v5667 = vmul.f32 %v5666, %v5665
    %v5668 = vmul.f32 0.5, %v5667
    %v5669 = vsub.f32 1.5, %v5668
    %v5670 = vmul.f32 %v5665, %v5669
    %vm5671 = vweird.f32 %v5568
    %vm5672 = vweird.f32 %v5665
    %vm5673 = vmor %vm5671, %vm5672
    %v5674 = vsel %vm5673, %v5665, %v5670
    %v5675 = vrsqrt.pop %v5569
    %v5676 = vmul.f32 %v5675, %v5569
    %v5677 = vmul.f32 %v5676, %v5675
    %v5678 = vmul.f32 0.5, %v5677
    %v5679 = vsub.f32 1.5, %v5678
    %v5680 = vmul.f32 %v5675, %v5679
    %vm5681 = vweird.f32 %v5569
    %vm5682 = vweird.f32 %v5675
    %vm5683 = vmor %vm5681, %vm5682
    %v5684 = vsel %vm5683, %v5675, %v5680
    %v5685 = vrsqrt.pop %v5570
    %v5686 = vmul.f32 %v5685, %v5570
    %v5687 = vmul.f32 %v5686, %v5685
    %v5688 = vmul.f32 0.5, %v5687
    %v5689 = vsub.f32 1.5, %v5688
    %v5690 = vmul.f32 %v5685, %v5689
    %vm5691 = vweird.f32 %v5570
    %vm5692 = vweird.f32 %v5685
    %vm5693 = vmor %vm5691, %vm5692
    %v5694 = vsel %vm5693, %v5685, %v5690
    %v5695 = vrsqrt.pop %v5571
    %v5696 = vmul.f32 %v5695, %v5571
    %v5697 = vmul.f32 %v5696, %v5695
    %v5698 = vmul.f32 0.5, %v5697
    %v5699 = vsub.f32 1.5, %v5698
    %v5700 = vmul.f32 %v5695, %v5699
    %vm5701 = vweird.f32 %v5571
    %vm5702 = vweird.f32 %v5695
    %vm5703 = vmor %vm5701, %vm5702
    %v5704 = vsel %vm5703, %v5695, %v5700
    %v5705 = vrsqrt.pop %v5572
    %v5706 = vmul.f32 %v5705, %v5572
    %v5707 = vmul.f32 %v5706, %v5705
    %v5708 = vmul.f32 0.5, %v5707
    %v5709 = vsub.f32 1.5, %v5708
    %v5710 = vmul.f32 %v5705, %v5709
    %vm5711 = vweird.f32 %v5572
    %vm5712 = vweird.f32 %v5705
    %vm5713 = vmor %vm5711, %vm5712
    %v5714 = vsel %vm5713, %v5705, %v5710
    %v5715 = vrsqrt.pop %v5573
    %v5716 = vmul.f32 %v5715, %v5573
    %v5717 = vmul.f32 %v5716, %v5715
    %v5718 = vmul.f32 0.5, %v5717
    %v5719 = vsub.f32 1.5, %v5718
    %v5720 = vmul.f32 %v5715, %v5719
    %vm5721 = vweird.f32 %v5573
    %vm5722 = vweird.f32 %v5715
    %vm5723 = vmor %vm5721, %vm5722
    %v5724 = vsel %vm5723, %v5715, %v5720
    %v5725 = vrsqrt.pop %v5574
    %v5726 = vmul.f32 %v5725, %v5574
    %v5727 = vmul.f32 %v5726, %v5725
    %v5728 = vmul.f32 0.5, %v5727
    %v5729 = vsub.f32 1.5, %v5728
    %v5730 = vmul.f32 %v5725, %v5729
    %vm5731 = vweird.f32 %v5574
    %vm5732 = vweird.f32 %v5725
    %vm5733 = vmor %vm5731, %vm5732
    %v5734 = vsel %vm5733, %v5725, %v5730
    %v5735 = vmul.f32 %v5463, %v5584
    %v5736 = vmul.f32 %v5464, %v5594
    %v5737 = vmul.f32 %v5465, %v5604
    %v5738 = vmul.f32 %v5466, %v5614
    %v5739 = vmul.f32 %v5467, %v5624
    %v5740 = vmul.f32 %v5468, %v5634
    %v5741 = vmul.f32 %v5469, %v5644
    %v5742 = vmul.f32 %v5470, %v5654
    %v5743 = vmul.f32 %v5471, %v5664
    %v5744 = vmul.f32 %v5472, %v5674
    %v5745 = vmul.f32 %v5473, %v5684
    %v5746 = vmul.f32 %v5474, %v5694
    %v5747 = vmul.f32 %v5475, %v5704
    %v5748 = vmul.f32 %v5476, %v5714
    %v5749 = vmul.f32 %v5477, %v5724
    %v5750 = vmul.f32 %v5478, %v5734
    %v5752 = vperm.slane %v5396, 0
    %v5754 = vmul.f32 %v5735, %v5752
    %v5755 = vmul.f32 %v5736, %v5752
    %v5756 = vmul.f32 %v5737, %v5752
    %v5757 = vmul.f32 %v5738, %v5752
    %v5758 = vmul.f32 %v5739, %v5752
    %v5759 = vmul.f32 %v5740, %v5752
    %v5760 = vmul.f32 %v5741, %v5752
    %v5761 = vmul.f32 %v5742, %v5752
    %v5762 = vmul.f32 %v5743, %v5752
    %v5763 = vmul.f32 %v5744, %v5752
    %v5764 = vmul.f32 %v5745, %v5752
    %v5765 = vmul.f32 %v5746, %v5752
    %v5766 = vmul.f32 %v5747, %v5752
    %v5767 = vmul.f32 %v5748, %v5752
    %v5768 = vmul.f32 %v5749, %v5752
    %v5769 = vmul.f32 %v5750, %v5752
    %v5771 = vperm.slane %v5398, 0
    %v5773 = vadd.f32 %v5754, %v5771
    %v5774 = vadd.f32 %v5755, %v5771
    %v5775 = vadd.f32 %v5756, %v5771
    %v5776 = vadd.f32 %v5757, %v5771
    %v5777 = vadd.f32 %v5758, %v5771
    %v5778 = vadd.f32 %v5759, %v5771
    %v5779 = vadd.f32 %v5760, %v5771
    %v5780 = vadd.f32 %v5761, %v5771
    %v5781 = vadd.f32 %v5762, %v5771
    %v5782 = vadd.f32 %v5763, %v5771
    %v5783 = vadd.f32 %v5764, %v5771
    %v5784 = vadd.f32 %v5765, %v5771
    %v5785 = vadd.f32 %v5766, %v5771
    %v5786 = vadd.f32 %v5767, %v5771
    %v5787 = vadd.f32 %v5768, %v5771
    %v5788 = vadd.f32 %v5769, %v5771
    %v5789 = vpack.c.bf16 %v5774, %v5773
    %v5790 = vpack.c.bf16 %v5776, %v5775
    %v5791 = vpack.c.bf16 %v5778, %v5777
    %v5792 = vpack.c.bf16 %v5780, %v5779
    %v5793 = vpack.c.bf16 %v5782, %v5781
    %v5794 = vpack.c.bf16 %v5784, %v5783
    %v5795 = vpack.c.bf16 %v5786, %v5785
    %v5796 = vpack.c.bf16 %v5788, %v5787
    %s5797 = scalar_lea.vmem %s12, 16
    %v5798 = vld [vmem:[%s5797] sm:$0xf]
    %v5799 = vld [vmem:[%s5797 + $0x4] sm:$0xf]
    %v5800 = vld [vmem:[%s5797 + $0x8] sm:$0xf]
    %v5801 = vld [vmem:[%s5797 + $0xc] sm:$0xf]
    %s5802 = scalar_lea.vmem %s13, 1
    %v5803 = vld [vmem:[%s5802] sm:$0x1]
    %v5805 = vperm.slane %v5803, 0
    %v5811 = vunpack.c.l.b16 %v5798
    %v5812 = vunpack.c.l.b16 %v5799
    %v5813 = vunpack.c.l.b16 %v5800
    %v5814 = vunpack.c.l.b16 %v5801
    %v5815 = vpack.c.b16 %v5812, %v5811
    %v5816 = vpack.c.b16 %v5814, %v5813
    %v5820 = vsel %vm181, %v5789, 0
    %v5823 = vsel %vm181, %v5790, 0
    %v5826 = vsel %vm181, %v5791, 0
    %v5829 = vsel %vm181, %v5792, 0
    %v5832 = vsel %vm181, %v5793, 0
    %v5835 = vsel %vm181, %v5794, 0
    %v5838 = vsel %vm181, %v5795, 0
    %v5841 = vsel %vm181, %v5796, 0
    %5843 = vmatpush.bf16.msra.mxu0 0
    %5844 = vmatpush.bf16.msra.mxu0 0
    %5845 = vmatpush.bf16.msra.mxu0 0
    %5846 = vmatpush.bf16.msra.mxu0 0
    %5847 = vmatpush.bf16.msra.mxu0 0
    %5848 = vmatpush.bf16.msra.mxu0 0
    %5849 = vmatpush.bf16.msra.mxu0 %v5816
    %5850 = vmatpush.bf16.msra.mxu0 %v5815
    %5851 = vmatmul.bf16.gmra.mxu0 %v5820
    %v5852 = vpop.f32.mrf.mxu0
    %v5853 = vadd.f32 %v5805, %v5852
    %v5854 = vpop.f32.mrf.mxu0
    %v5855 = vadd.f32 %v5805, %v5854
    %5856 = vmatmul.bf16.gmra.mxu0 %v5823
    %v5857 = vpop.f32.mrf.mxu0
    %v5858 = vadd.f32 %v5805, %v5857
    %v5859 = vpop.f32.mrf.mxu0
    %v5860 = vadd.f32 %v5805, %v5859
    %5861 = vmatmul.bf16.gmra.mxu0 %v5826
    %v5862 = vpop.f32.mrf.mxu0
    %v5863 = vadd.f32 %v5805, %v5862
    %v5864 = vpop.f32.mrf.mxu0
    %v5865 = vadd.f32 %v5805, %v5864
    %5866 = vmatmul.bf16.gmra.mxu0 %v5829
    %v5867 = vpop.f32.mrf.mxu0
    %v5868 = vadd.f32 %v5805, %v5867
    %v5869 = vpop.f32.mrf.mxu0
    %v5870 = vadd.f32 %v5805, %v5869
    %5871 = vmatmul.bf16.gmra.mxu0 %v5832
    %v5872 = vpop.f32.mrf.mxu0
    %v5873 = vadd.f32 %v5805, %v5872
    %v5874 = vpop.f32.mrf.mxu0
    %v5875 = vadd.f32 %v5805, %v5874
    %5876 = vmatmul.bf16.gmra.mxu0 %v5835
    %v5877 = vpop.f32.mrf.mxu0
    %v5878 = vadd.f32 %v5805, %v5877
    %v5879 = vpop.f32.mrf.mxu0
    %v5880 = vadd.f32 %v5805, %v5879
    %5881 = vmatmul.bf16.gmra.mxu0 %v5838
    %v5882 = vpop.f32.mrf.mxu0
    %v5883 = vadd.f32 %v5805, %v5882
    %v5884 = vpop.f32.mrf.mxu0
    %v5885 = vadd.f32 %v5805, %v5884
    %5886 = vmatmul.bf16.gmra.mxu0 %v5841
    %v5887 = vpop.f32.mrf.mxu0
    %v5888 = vadd.f32 %v5805, %v5887
    %v5889 = vpop.f32.mrf.mxu0
    %v5890 = vadd.f32 %v5805, %v5889
    %5891 = vdwg.mxu0
    %v5892 = vmax.f32 %v5853, 0.0
    %v5893 = vmax.f32 %v5855, 0.0
    %v5894 = vmax.f32 %v5858, 0.0
    %v5895 = vmax.f32 %v5860, 0.0
    %v5896 = vmax.f32 %v5863, 0.0
    %v5897 = vmax.f32 %v5865, 0.0
    %v5898 = vmax.f32 %v5868, 0.0
    %v5899 = vmax.f32 %v5870, 0.0
    %v5900 = vmax.f32 %v5873, 0.0
    %v5901 = vmax.f32 %v5875, 0.0
    %v5902 = vmax.f32 %v5878, 0.0
    %v5903 = vmax.f32 %v5880, 0.0
    %v5904 = vmax.f32 %v5883, 0.0
    %v5905 = vmax.f32 %v5885, 0.0
    %v5906 = vmax.f32 %v5888, 0.0
    %v5907 = vmax.f32 %v5890, 0.0
    %v5908 = vpack.c.bf16 %v5893, %v5892
    %v5909 = vpack.c.bf16 %v5895, %v5894
    %v5910 = vpack.c.bf16 %v5897, %v5896
    %v5911 = vpack.c.bf16 %v5899, %v5898
    %v5912 = vpack.c.bf16 %v5901, %v5900
    %v5913 = vpack.c.bf16 %v5903, %v5902
    %v5914 = vpack.c.bf16 %v5905, %v5904
    %v5915 = vpack.c.bf16 %v5907, %v5906
    %s5916 = scalar_lea.vmem %s14, 64
    %v5917 = vld [vmem:[%s5916] sm:$0xf]
    %v5918 = vld [vmem:[%s5916 + $0x4] sm:$0xf]
    %v5919 = vld [vmem:[%s5916 + $0x8] sm:$0xf]
    %v5920 = vld [vmem:[%s5916 + $0xc] sm:$0xf]
    %v5921 = vld [vmem:[%s5916 + $0x10] sm:$0xf]
    %v5922 = vld [vmem:[%s5916 + $0x14] sm:$0xf]
    %v5923 = vld [vmem:[%s5916 + $0x18] sm:$0xf]
    %v5924 = vld [vmem:[%s5916 + $0x1c] sm:$0xf]
    %v5925 = vld [vmem:[%s5916 + $0x20] sm:$0xf]
    %v5926 = vld [vmem:[%s5916 + $0x24] sm:$0xf]
    %v5927 = vld [vmem:[%s5916 + $0x28] sm:$0xf]
    %v5928 = vld [vmem:[%s5916 + $0x2c] sm:$0xf]
    %v5929 = vld [vmem:[%s5916 + $0x30] sm:$0xf]
    %v5930 = vld [vmem:[%s5916 + $0x34] sm:$0xf]
    %v5931 = vld [vmem:[%s5916 + $0x38] sm:$0xf]
    %v5932 = vld [vmem:[%s5916 + $0x3c] sm:$0xf]
    %s5933 = scalar_lea.vmem %s15, 1
    %v5934 = vld [vmem:[%s5933] sm:$0x1]
    %v5936 = vperm.slane %v5934, 0
    %v5954 = vunpack.c.l.b16 %v5917
    %v5955 = vunpack.c.l.b16 %v5918
    %v5956 = vunpack.c.l.b16 %v5919
    %v5957 = vunpack.c.l.b16 %v5920
    %v5958 = vunpack.c.l.b16 %v5921
    %v5959 = vunpack.c.l.b16 %v5922
    %v5960 = vunpack.c.l.b16 %v5923
    %v5961 = vunpack.c.l.b16 %v5924
    %v5962 = vunpack.c.l.b16 %v5925
    %v5963 = vunpack.c.l.b16 %v5926
    %v5964 = vunpack.c.l.b16 %v5927
    %v5965 = vunpack.c.l.b16 %v5928
    %v5966 = vunpack.c.l.b16 %v5929
    %v5967 = vunpack.c.l.b16 %v5930
    %v5968 = vunpack.c.l.b16 %v5931
    %v5969 = vunpack.c.l.b16 %v5932
    %v5970 = vpack.c.b16 %v5955, %v5954
    %v5971 = vpack.c.b16 %v5957, %v5956
    %v5972 = vpack.c.b16 %v5959, %v5958
    %v5973 = vpack.c.b16 %v5961, %v5960
    %v5974 = vpack.c.b16 %v5963, %v5962
    %v5975 = vpack.c.b16 %v5965, %v5964
    %v5976 = vpack.c.b16 %v5967, %v5966
    %v5977 = vpack.c.b16 %v5969, %v5968
    %5986 = vmatpush.bf16.msra.mxu0 %v5977
    %5987 = vmatpush.bf16.msra.mxu0 %v5976
    %5988 = vmatpush.bf16.msra.mxu0 %v5975
    %5989 = vmatpush.bf16.msra.mxu0 %v5974
    %5990 = vmatpush.bf16.msra.mxu0 %v5973
    %5991 = vmatpush.bf16.msra.mxu0 %v5972
    %5992 = vmatpush.bf16.msra.mxu0 %v5971
    %5993 = vmatpush.bf16.msra.mxu0 %v5970
    %5994 = vmatmul.bf16.gmra.mxu0 %v5908
    %v5995 = vpop.f32.mrf.mxu0
    %v5996 = vadd.f32 %v5936, %v5995
    %v5997 = vpop.f32.mrf.mxu0
    %v5998 = vadd.f32 %v5936, %v5997
    %5999 = vmatmul.bf16.gmra.mxu0 %v5909
    %v6000 = vpop.f32.mrf.mxu0
    %v6001 = vadd.f32 %v5936, %v6000
    %v6002 = vpop.f32.mrf.mxu0
    %v6003 = vadd.f32 %v5936, %v6002
    %6004 = vmatmul.bf16.gmra.mxu0 %v5910
    %v6005 = vpop.f32.mrf.mxu0
    %v6006 = vadd.f32 %v5936, %v6005
    %v6007 = vpop.f32.mrf.mxu0
    %v6008 = vadd.f32 %v5936, %v6007
    %6009 = vmatmul.bf16.gmra.mxu0 %v5911
    %v6010 = vpop.f32.mrf.mxu0
    %v6011 = vadd.f32 %v5936, %v6010
    %v6012 = vpop.f32.mrf.mxu0
    %v6013 = vadd.f32 %v5936, %v6012
    %6014 = vmatmul.bf16.gmra.mxu0 %v5912
    %v6015 = vpop.f32.mrf.mxu0
    %v6016 = vadd.f32 %v5936, %v6015
    %v6017 = vpop.f32.mrf.mxu0
    %v6018 = vadd.f32 %v5936, %v6017
    %6019 = vmatmul.bf16.gmra.mxu0 %v5913
    %v6020 = vpop.f32.mrf.mxu0
    %v6021 = vadd.f32 %v5936, %v6020
    %v6022 = vpop.f32.mrf.mxu0
    %v6023 = vadd.f32 %v5936, %v6022
    %6024 = vmatmul.bf16.gmra.mxu0 %v5914
    %v6025 = vpop.f32.mrf.mxu0
    %v6026 = vadd.f32 %v5936, %v6025
    %v6027 = vpop.f32.mrf.mxu0
    %v6028 = vadd.f32 %v5936, %v6027
    %6029 = vmatmul.bf16.gmra.mxu0 %v5915
    %v6030 = vpop.f32.mrf.mxu0
    %v6031 = vadd.f32 %v5936, %v6030
    %v6032 = vpop.f32.mrf.mxu0
    %v6033 = vadd.f32 %v5936, %v6032
    %6034 = vdwg.mxu0
    %v6035 = vadd.f32 %v5773, %v5996
    %v6036 = vadd.f32 %v5774, %v5998
    %v6037 = vadd.f32 %v5775, %v6001
    %v6038 = vadd.f32 %v5776, %v6003
    %v6039 = vadd.f32 %v5777, %v6006
    %v6040 = vadd.f32 %v5778, %v6008
    %v6041 = vadd.f32 %v5779, %v6011
    %v6042 = vadd.f32 %v5780, %v6013
    %v6043 = vadd.f32 %v5781, %v6016
    %v6044 = vadd.f32 %v5782, %v6018
    %v6045 = vadd.f32 %v5783, %v6021
    %v6046 = vadd.f32 %v5784, %v6023
    %v6047 = vadd.f32 %v5785, %v6026
    %v6048 = vadd.f32 %v5786, %v6028
    %v6049 = vadd.f32 %v5787, %v6031
    %v6050 = vadd.f32 %v5788, %v6033
    %s6051 = scalar_lea.vmem %s16, 1
    %v6052 = vld [vmem:[%s6051] sm:$0x1]
    %s6053 = scalar_lea.vmem %s17, 1
    %v6054 = vld [vmem:[%s6053] sm:$0x1]
    %v6055 = vsel %vm181, %v6035, 0.0
    %6056 = vadd.xlane.f32.xlu0 %v6055
    %v6057 = vpop.xlane.xlu0 %6056
    %v6058 = vsel %vm181, %v6036, 0.0
    %6059 = vadd.xlane.f32.xlu0 %v6058
    %v6060 = vpop.xlane.xlu0 %6059
    %v6061 = vsel %vm181, %v6037, 0.0
    %6062 = vadd.xlane.f32.xlu0 %v6061
    %v6063 = vpop.xlane.xlu0 %6062
    %v6064 = vsel %vm181, %v6038, 0.0
    %6065 = vadd.xlane.f32.xlu0 %v6064
    %v6066 = vpop.xlane.xlu0 %6065
    %v6067 = vsel %vm181, %v6039, 0.0
    %6068 = vadd.xlane.f32.xlu0 %v6067
    %v6069 = vpop.xlane.xlu0 %6068
    %v6070 = vsel %vm181, %v6040, 0.0
    %6071 = vadd.xlane.f32.xlu0 %v6070
    %v6072 = vpop.xlane.xlu0 %6071
    %v6073 = vsel %vm181, %v6041, 0.0
    %6074 = vadd.xlane.f32.xlu0 %v6073
    %v6075 = vpop.xlane.xlu0 %6074
    %v6076 = vsel %vm181, %v6042, 0.0
    %6077 = vadd.xlane.f32.xlu0 %v6076
    %v6078 = vpop.xlane.xlu0 %6077
    %v6079 = vsel %vm181, %v6043, 0.0
    %6080 = vadd.xlane.f32.xlu0 %v6079
    %v6081 = vpop.xlane.xlu0 %6080
    %v6082 = vsel %vm181, %v6044, 0.0
    %6083 = vadd.xlane.f32.xlu0 %v6082
    %v6084 = vpop.xlane.xlu0 %6083
    %v6085 = vsel %vm181, %v6045, 0.0
    %6086 = vadd.xlane.f32.xlu0 %v6085
    %v6087 = vpop.xlane.xlu0 %6086
    %v6088 = vsel %vm181, %v6046, 0.0
    %6089 = vadd.xlane.f32.xlu0 %v6088
    %v6090 = vpop.xlane.xlu0 %6089
    %v6091 = vsel %vm181, %v6047, 0.0
    %6092 = vadd.xlane.f32.xlu0 %v6091
    %v6093 = vpop.xlane.xlu0 %6092
    %v6094 = vsel %vm181, %v6048, 0.0
    %6095 = vadd.xlane.f32.xlu0 %v6094
    %v6096 = vpop.xlane.xlu0 %6095
    %v6097 = vsel %vm181, %v6049, 0.0
    %6098 = vadd.xlane.f32.xlu0 %v6097
    %v6099 = vpop.xlane.xlu0 %6098
    %v6100 = vsel %vm181, %v6050, 0.0
    %6101 = vadd.xlane.f32.xlu0 %v6100
    %v6102 = vpop.xlane.xlu0 %6101
    %v6103 = vmul.f32 %v6057, %v2356
    %v6104 = vmul.f32 %v6060, %v2356
    %v6105 = vmul.f32 %v6063, %v2356
    %v6106 = vmul.f32 %v6066, %v2356
    %v6107 = vmul.f32 %v6069, %v2356
    %v6108 = vmul.f32 %v6072, %v2356
    %v6109 = vmul.f32 %v6075, %v2356
    %v6110 = vmul.f32 %v6078, %v2356
    %v6111 = vmul.f32 %v6081, %v2356
    %v6112 = vmul.f32 %v6084, %v2356
    %v6113 = vmul.f32 %v6087, %v2356
    %v6114 = vmul.f32 %v6090, %v2356
    %v6115 = vmul.f32 %v6093, %v2356
    %v6116 = vmul.f32 %v6096, %v2356
    %v6117 = vmul.f32 %v6099, %v2356
    %v6118 = vmul.f32 %v6102, %v2356
    %v6119 = vsub.f32 %v6035, %v6103
    %v6120 = vsub.f32 %v6036, %v6104
    %v6121 = vsub.f32 %v6037, %v6105
    %v6122 = vsub.f32 %v6038, %v6106
    %v6123 = vsub.f32 %v6039, %v6107
    %v6124 = vsub.f32 %v6040, %v6108
    %v6125 = vsub.f32 %v6041, %v6109
    %v6126 = vsub.f32 %v6042, %v6110
    %v6127 = vsub.f32 %v6043, %v6111
    %v6128 = vsub.f32 %v6044, %v6112
    %v6129 = vsub.f32 %v6045, %v6113
    %v6130 = vsub.f32 %v6046, %v6114
    %v6131 = vsub.f32 %v6047, %v6115
    %v6132 = vsub.f32 %v6048, %v6116
    %v6133 = vsub.f32 %v6049, %v6117
    %v6134 = vsub.f32 %v6050, %v6118
    %v6135 = vmul.f32 %v6119, %v6119
    %v6136 = vmul.f32 %v6120, %v6120
    %v6137 = vmul.f32 %v6121, %v6121
    %v6138 = vmul.f32 %v6122, %v6122
    %v6139 = vmul.f32 %v6123, %v6123
    %v6140 = vmul.f32 %v6124, %v6124
    %v6141 = vmul.f32 %v6125, %v6125
    %v6142 = vmul.f32 %v6126, %v6126
    %v6143 = vmul.f32 %v6127, %v6127
    %v6144 = vmul.f32 %v6128, %v6128
    %v6145 = vmul.f32 %v6129, %v6129
    %v6146 = vmul.f32 %v6130, %v6130
    %v6147 = vmul.f32 %v6131, %v6131
    %v6148 = vmul.f32 %v6132, %v6132
    %v6149 = vmul.f32 %v6133, %v6133
    %v6150 = vmul.f32 %v6134, %v6134
    %v6151 = vsel %vm181, %v6135, 0.0
    %6152 = vadd.xlane.f32.xlu0 %v6151
    %v6153 = vpop.xlane.xlu0 %6152
    %v6154 = vsel %vm181, %v6136, 0.0
    %6155 = vadd.xlane.f32.xlu0 %v6154
    %v6156 = vpop.xlane.xlu0 %6155
    %v6157 = vsel %vm181, %v6137, 0.0
    %6158 = vadd.xlane.f32.xlu0 %v6157
    %v6159 = vpop.xlane.xlu0 %6158
    %v6160 = vsel %vm181, %v6138, 0.0
    %6161 = vadd.xlane.f32.xlu0 %v6160
    %v6162 = vpop.xlane.xlu0 %6161
    %v6163 = vsel %vm181, %v6139, 0.0
    %6164 = vadd.xlane.f32.xlu0 %v6163
    %v6165 = vpop.xlane.xlu0 %6164
    %v6166 = vsel %vm181, %v6140, 0.0
    %6167 = vadd.xlane.f32.xlu0 %v6166
    %v6168 = vpop.xlane.xlu0 %6167
    %v6169 = vsel %vm181, %v6141, 0.0
    %6170 = vadd.xlane.f32.xlu0 %v6169
    %v6171 = vpop.xlane.xlu0 %6170
    %v6172 = vsel %vm181, %v6142, 0.0
    %6173 = vadd.xlane.f32.xlu0 %v6172
    %v6174 = vpop.xlane.xlu0 %6173
    %v6175 = vsel %vm181, %v6143, 0.0
    %6176 = vadd.xlane.f32.xlu0 %v6175
    %v6177 = vpop.xlane.xlu0 %6176
    %v6178 = vsel %vm181, %v6144, 0.0
    %6179 = vadd.xlane.f32.xlu0 %v6178
    %v6180 = vpop.xlane.xlu0 %6179
    %v6181 = vsel %vm181, %v6145, 0.0
    %6182 = vadd.xlane.f32.xlu0 %v6181
    %v6183 = vpop.xlane.xlu0 %6182
    %v6184 = vsel %vm181, %v6146, 0.0
    %6185 = vadd.xlane.f32.xlu0 %v6184
    %v6186 = vpop.xlane.xlu0 %6185
    %v6187 = vsel %vm181, %v6147, 0.0
    %6188 = vadd.xlane.f32.xlu0 %v6187
    %v6189 = vpop.xlane.xlu0 %6188
    %v6190 = vsel %vm181, %v6148, 0.0
    %6191 = vadd.xlane.f32.xlu0 %v6190
    %v6192 = vpop.xlane.xlu0 %6191
    %v6193 = vsel %vm181, %v6149, 0.0
    %6194 = vadd.xlane.f32.xlu0 %v6193
    %v6195 = vpop.xlane.xlu0 %6194
    %v6196 = vsel %vm181, %v6150, 0.0
    %6197 = vadd.xlane.f32.xlu0 %v6196
    %v6198 = vpop.xlane.xlu0 %6197
    %v6199 = vmul.f32 %v6153, %v2356
    %v6200 = vmul.f32 %v6156, %v2356
    %v6201 = vmul.f32 %v6159, %v2356
    %v6202 = vmul.f32 %v6162, %v2356
    %v6203 = vmul.f32 %v6165, %v2356
    %v6204 = vmul.f32 %v6168, %v2356
    %v6205 = vmul.f32 %v6171, %v2356
    %v6206 = vmul.f32 %v6174, %v2356
    %v6207 = vmul.f32 %v6177, %v2356
    %v6208 = vmul.f32 %v6180, %v2356
    %v6209 = vmul.f32 %v6183, %v2356
    %v6210 = vmul.f32 %v6186, %v2356
    %v6211 = vmul.f32 %v6189, %v2356
    %v6212 = vmul.f32 %v6192, %v2356
    %v6213 = vmul.f32 %v6195, %v2356
    %v6214 = vmul.f32 %v6198, %v2356
    %v6215 = vadd.f32 %v6199, 1e-05
    %v6216 = vadd.f32 %v6200, 1e-05
    %v6217 = vadd.f32 %v6201, 1e-05
    %v6218 = vadd.f32 %v6202, 1e-05
    %v6219 = vadd.f32 %v6203, 1e-05
    %v6220 = vadd.f32 %v6204, 1e-05
    %v6221 = vadd.f32 %v6205, 1e-05
    %v6222 = vadd.f32 %v6206, 1e-05
    %v6223 = vadd.f32 %v6207, 1e-05
    %v6224 = vadd.f32 %v6208, 1e-05
    %v6225 = vadd.f32 %v6209, 1e-05
    %v6226 = vadd.f32 %v6210, 1e-05
    %v6227 = vadd.f32 %v6211, 1e-05
    %v6228 = vadd.f32 %v6212, 1e-05
    %v6229 = vadd.f32 %v6213, 1e-05
    %v6230 = vadd.f32 %v6214, 1e-05
    %v6231 = vrsqrt.pop %v6215
    %v6232 = vmul.f32 %v6231, %v6215
    %v6233 = vmul.f32 %v6232, %v6231
    %v6234 = vmul.f32 0.5, %v6233
    %v6235 = vsub.f32 1.5, %v6234
    %v6236 = vmul.f32 %v6231, %v6235
    %vm6237 = vweird.f32 %v6215
    %vm6238 = vweird.f32 %v6231
    %vm6239 = vmor %vm6237, %vm6238
    %v6240 = vsel %vm6239, %v6231, %v6236
    %v6241 = vrsqrt.pop %v6216
    %v6242 = vmul.f32 %v6241, %v6216
    %v6243 = vmul.f32 %v6242, %v6241
    %v6244 = vmul.f32 0.5, %v6243
    %v6245 = vsub.f32 1.5, %v6244
    %v6246 = vmul.f32 %v6241, %v6245
    %vm6247 = vweird.f32 %v6216
    %vm6248 = vweird.f32 %v6241
    %vm6249 = vmor %vm6247, %vm6248
    %v6250 = vsel %vm6249, %v6241, %v6246
    %v6251 = vrsqrt.pop %v6217
    %v6252 = vmul.f32 %v6251, %v6217
    %v6253 = vmul.f32 %v6252, %v6251
    %v6254 = vmul.f32 0.5, %v6253
    %v6255 = vsub.f32 1.5, %v6254
    %v6256 = vmul.f32 %v6251, %v6255
    %vm6257 = vweird.f32 %v6217
    %vm6258 = vweird.f32 %v6251
    %vm6259 = vmor %vm6257, %vm6258
    %v6260 = vsel %vm6259, %v6251, %v6256
    %v6261 = vrsqrt.pop %v6218
    %v6262 = vmul.f32 %v6261, %v6218
    %v6263 = vmul.f32 %v6262, %v6261
    %v6264 = vmul.f32 0.5, %v6263
    %v6265 = vsub.f32 1.5, %v6264
    %v6266 = vmul.f32 %v6261, %v6265
    %vm6267 = vweird.f32 %v6218
    %vm6268 = vweird.f32 %v6261
    %vm6269 = vmor %vm6267, %vm6268
    %v6270 = vsel %vm6269, %v6261, %v6266
    %v6271 = vrsqrt.pop %v6219
    %v6272 = vmul.f32 %v6271, %v6219
    %v6273 = vmul.f32 %v6272, %v6271
    %v6274 = vmul.f32 0.5, %v6273
    %v6275 = vsub.f32 1.5, %v6274
    %v6276 = vmul.f32 %v6271, %v6275
    %vm6277 = vweird.f32 %v6219
    %vm6278 = vweird.f32 %v6271
    %vm6279 = vmor %vm6277, %vm6278
    %v6280 = vsel %vm6279, %v6271, %v6276
    %v6281 = vrsqrt.pop %v6220
    %v6282 = vmul.f32 %v6281, %v6220
    %v6283 = vmul.f32 %v6282, %v6281
    %v6284 = vmul.f32 0.5, %v6283
    %v6285 = vsub.f32 1.5, %v6284
    %v6286 = vmul.f32 %v6281, %v6285
    %vm6287 = vweird.f32 %v6220
    %vm6288 = vweird.f32 %v6281
    %vm6289 = vmor %vm6287, %vm6288
    %v6290 = vsel %vm6289, %v6281, %v6286
    %v6291 = vrsqrt.pop %v6221
    %v6292 = vmul.f32 %v6291, %v6221
    %v6293 = vmul.f32 %v6292, %v6291
    %v6294 = vmul.f32 0.5, %v6293
    %v6295 = vsub.f32 1.5, %v6294
    %v6296 = vmul.f32 %v6291, %v6295
    %vm6297 = vweird.f32 %v6221
    %vm6298 = vweird.f32 %v6291
    %vm6299 = vmor %vm6297, %vm6298
    %v6300 = vsel %vm6299, %v6291, %v6296
    %v6301 = vrsqrt.pop %v6222
    %v6302 = vmul.f32 %v6301, %v6222
    %v6303 = vmul.f32 %v6302, %v6301
    %v6304 = vmul.f32 0.5, %v6303
    %v6305 = vsub.f32 1.5, %v6304
    %v6306 = vmul.f32 %v6301, %v6305
    %vm6307 = vweird.f32 %v6222
    %vm6308 = vweird.f32 %v6301
    %vm6309 = vmor %vm6307, %vm6308
    %v6310 = vsel %vm6309, %v6301, %v6306
    %v6311 = vrsqrt.pop %v6223
    %v6312 = vmul.f32 %v6311, %v6223
    %v6313 = vmul.f32 %v6312, %v6311
    %v6314 = vmul.f32 0.5, %v6313
    %v6315 = vsub.f32 1.5, %v6314
    %v6316 = vmul.f32 %v6311, %v6315
    %vm6317 = vweird.f32 %v6223
    %vm6318 = vweird.f32 %v6311
    %vm6319 = vmor %vm6317, %vm6318
    %v6320 = vsel %vm6319, %v6311, %v6316
    %v6321 = vrsqrt.pop %v6224
    %v6322 = vmul.f32 %v6321, %v6224
    %v6323 = vmul.f32 %v6322, %v6321
    %v6324 = vmul.f32 0.5, %v6323
    %v6325 = vsub.f32 1.5, %v6324
    %v6326 = vmul.f32 %v6321, %v6325
    %vm6327 = vweird.f32 %v6224
    %vm6328 = vweird.f32 %v6321
    %vm6329 = vmor %vm6327, %vm6328
    %v6330 = vsel %vm6329, %v6321, %v6326
    %v6331 = vrsqrt.pop %v6225
    %v6332 = vmul.f32 %v6331, %v6225
    %v6333 = vmul.f32 %v6332, %v6331
    %v6334 = vmul.f32 0.5, %v6333
    %v6335 = vsub.f32 1.5, %v6334
    %v6336 = vmul.f32 %v6331, %v6335
    %vm6337 = vweird.f32 %v6225
    %vm6338 = vweird.f32 %v6331
    %vm6339 = vmor %vm6337, %vm6338
    %v6340 = vsel %vm6339, %v6331, %v6336
    %v6341 = vrsqrt.pop %v6226
    %v6342 = vmul.f32 %v6341, %v6226
    %v6343 = vmul.f32 %v6342, %v6341
    %v6344 = vmul.f32 0.5, %v6343
    %v6345 = vsub.f32 1.5, %v6344
    %v6346 = vmul.f32 %v6341, %v6345
    %vm6347 = vweird.f32 %v6226
    %vm6348 = vweird.f32 %v6341
    %vm6349 = vmor %vm6347, %vm6348
    %v6350 = vsel %vm6349, %v6341, %v6346
    %v6351 = vrsqrt.pop %v6227
    %v6352 = vmul.f32 %v6351, %v6227
    %v6353 = vmul.f32 %v6352, %v6351
    %v6354 = vmul.f32 0.5, %v6353
    %v6355 = vsub.f32 1.5, %v6354
    %v6356 = vmul.f32 %v6351, %v6355
    %vm6357 = vweird.f32 %v6227
    %vm6358 = vweird.f32 %v6351
    %vm6359 = vmor %vm6357, %vm6358
    %v6360 = vsel %vm6359, %v6351, %v6356
    %v6361 = vrsqrt.pop %v6228
    %v6362 = vmul.f32 %v6361, %v6228
    %v6363 = vmul.f32 %v6362, %v6361
    %v6364 = vmul.f32 0.5, %v6363
    %v6365 = vsub.f32 1.5, %v6364
    %v6366 = vmul.f32 %v6361, %v6365
    %vm6367 = vweird.f32 %v6228
    %vm6368 = vweird.f32 %v6361
    %vm6369 = vmor %vm6367, %vm6368
    %v6370 = vsel %vm6369, %v6361, %v6366
    %v6371 = vrsqrt.pop %v6229
    %v6372 = vmul.f32 %v6371, %v6229
    %v6373 = vmul.f32 %v6372, %v6371
    %v6374 = vmul.f32 0.5, %v6373
    %v6375 = vsub.f32 1.5, %v6374
    %v6376 = vmul.f32 %v6371, %v6375
    %vm6377 = vweird.f32 %v6229
    %vm6378 = vweird.f32 %v6371
    %vm6379 = vmor %vm6377, %vm6378
    %v6380 = vsel %vm6379, %v6371, %v6376
    %v6381 = vrsqrt.pop %v6230
    %v6382 = vmul.f32 %v6381, %v6230
    %v6383 = vmul.f32 %v6382, %v6381
    %v6384 = vmul.f32 0.5, %v6383
    %v6385 = vsub.f32 1.5, %v6384
    %v6386 = vmul.f32 %v6381, %v6385
    %vm6387 = vweird.f32 %v6230
    %vm6388 = vweird.f32 %v6381
    %vm6389 = vmor %vm6387, %vm6388
    %v6390 = vsel %vm6389, %v6381, %v6386
    %v6391 = vmul.f32 %v6119, %v6240
    %v6392 = vmul.f32 %v6120, %v6250
    %v6393 = vmul.f32 %v6121, %v6260
    %v6394 = vmul.f32 %v6122, %v6270
    %v6395 = vmul.f32 %v6123, %v6280
    %v6396 = vmul.f32 %v6124, %v6290
    %v6397 = vmul.f32 %v6125, %v6300
    %v6398 = vmul.f32 %v6126, %v6310
    %v6399 = vmul.f32 %v6127, %v6320
    %v6400 = vmul.f32 %v6128, %v6330
    %v6401 = vmul.f32 %v6129, %v6340
    %v6402 = vmul.f32 %v6130, %v6350
    %v6403 = vmul.f32 %v6131, %v6360
    %v6404 = vmul.f32 %v6132, %v6370
    %v6405 = vmul.f32 %v6133, %v6380
    %v6406 = vmul.f32 %v6134, %v6390
    %v6408 = vperm.slane %v6052, 0
    %v6410 = vmul.f32 %v6391, %v6408
    %v6411 = vmul.f32 %v6392, %v6408
    %v6412 = vmul.f32 %v6393, %v6408
    %v6413 = vmul.f32 %v6394, %v6408
    %v6414 = vmul.f32 %v6395, %v6408
    %v6415 = vmul.f32 %v6396, %v6408
    %v6416 = vmul.f32 %v6397, %v6408
    %v6417 = vmul.f32 %v6398, %v6408
    %v6418 = vmul.f32 %v6399, %v6408
    %v6419 = vmul.f32 %v6400, %v6408
    %v6420 = vmul.f32 %v6401, %v6408
    %v6421 = vmul.f32 %v6402, %v6408
    %v6422 = vmul.f32 %v6403, %v6408
    %v6423 = vmul.f32 %v6404, %v6408
    %v6424 = vmul.f32 %v6405, %v6408
    %v6425 = vmul.f32 %v6406, %v6408
    %v6427 = vperm.slane %v6054, 0
    %v6429 = vadd.f32 %v6410, %v6427
    %v6430 = vadd.f32 %v6411, %v6427
    %v6431 = vadd.f32 %v6412, %v6427
    %v6432 = vadd.f32 %v6413, %v6427
    %v6433 = vadd.f32 %v6414, %v6427
    %v6434 = vadd.f32 %v6415, %v6427
    %v6435 = vadd.f32 %v6416, %v6427
    %v6436 = vadd.f32 %v6417, %v6427
    %v6437 = vadd.f32 %v6418, %v6427
    %v6438 = vadd.f32 %v6419, %v6427
    %v6439 = vadd.f32 %v6420, %v6427
    %v6440 = vadd.f32 %v6421, %v6427
    %v6441 = vadd.f32 %v6422, %v6427
    %v6442 = vadd.f32 %v6423, %v6427
    %v6443 = vadd.f32 %v6424, %v6427
    %v6444 = vadd.f32 %v6425, %v6427
    %v6445 = vld [vmem:[%s3] sm:$0x3]
    %6446 = vmatpush.msra.mxu0 %v6444
    %6447 = vmatpush.msra.mxu0 %v6443
    %6448 = vmatpush.msra.mxu0 %v6442
    %6449 = vmatpush.msra.mxu0 %v6441
    %6450 = vmatpush.msra.mxu0 %v6440
    %6451 = vmatpush.msra.mxu0 %v6439
    %6452 = vmatpush.msra.mxu0 %v6438
    %6453 = vmatpush.msra.mxu0 %v6437
    %6454 = vmatpush.msra.mxu0 %v6436
    %6455 = vmatpush.msra.mxu0 %v6435
    %6456 = vmatpush.msra.mxu0 %v6434
    %6457 = vmatpush.msra.mxu0 %v6433
    %6458 = vmatpush.msra.mxu0 %v6432
    %6459 = vmatpush.msra.mxu0 %v6431
    %6460 = vmatpush.msra.mxu0 %v6430
    %6461 = vmatpush.msra.mxu0 %v6429
    %6462 = vmatmul.f32.gmra.mxu0 %v6445
    %v6463 = vpop.f32.mrf.mxu0
    %v6464 = vadd.f32 0.0, %v6463
    %6465 = vdwg.mxu0
    %v6466 = vld [vmem:[%s4] sm:$0x3]
    %6467 = vmatpush.msra.mxu0 %v6444
    %6468 = vmatpush.msra.mxu0 %v6443
    %6469 = vmatpush.msra.mxu0 %v6442
    %6470 = vmatpush.msra.mxu0 %v6441
    %6471 = vmatpush.msra.mxu0 %v6440
    %6472 = vmatpush.msra.mxu0 %v6439
    %6473 = vmatpush.msra.mxu0 %v6438
    %6474 = vmatpush.msra.mxu0 %v6437
    %6475 = vmatpush.msra.mxu0 %v6436
    %6476 = vmatpush.msra.mxu0 %v6435
    %6477 = vmatpush.msra.mxu0 %v6434
    %6478 = vmatpush.msra.mxu0 %v6433
    %6479 = vmatpush.msra.mxu0 %v6432
    %6480 = vmatpush.msra.mxu0 %v6431
    %6481 = vmatpush.msra.mxu0 %v6430
    %6482 = vmatpush.msra.mxu0 %v6429
    %6483 = vmatmul.f32.gmra.mxu0 %v6466
    %v6484 = vpop.f32.mrf.mxu0
    %v6485 = vadd.f32 0.0, %v6484
    %6486 = vdwg.mxu0
    %v6487 = vld [vmem:[%s20] sm:$0x1]
    %v6489 = vperm.slane %v6487, 0
    %v6491 = vmul.f32 %v6464, %v6489
    %vm6492 = vcmask 254976
    %v6493 = vsel %vm6492, %v6491, 0.0
    %6494 = vadd.xlane.f32.xlu0 %v6493
    %v6495 = vpop.xlane.xlu0 %6494
    %v6496 = vld [vmem:[#allocation2] sm:$0x1]
    %v6498 = vperm.slane %v6496, 0
    %v6500 = vadd.f32 %v6495, %v6498
    %v6501 = vtanh.pop %v6500
    %vm6502 = vcmask 1024
    %6503 = vst.msk [vmem:[%s23] sm:$0x3] %vm6502, %v6501
    %v6504 = vld [vmem:[%s18] sm:$0xff]
    %v6505 = vld [vmem:[%s18 + $0x8] sm:$0xff]
    %v6506 = vld [vmem:[%s18 + $0x10] sm:$0xff]
    %v6507 = vld [vmem:[%s18 + $0x18] sm:$0xff]
    %v6508 = vld [vmem:[%s19] sm:$0x1]
    %v6510 = vperm.slane %v6508, 0
    %v6513 = vsel %vm181, %v6485, 0
    %6515 = vmatpush.msra.mxu0 0.0
    %6516 = vmatpush.msra.mxu0 0.0
    %6517 = vmatpush.msra.mxu0 0.0
    %6518 = vmatpush.msra.mxu0 0.0
    %6519 = vmatpush.msra.mxu0 0.0
    %6520 = vmatpush.msra.mxu0 0.0
    %6521 = vmatpush.msra.mxu0 0.0
    %6522 = vmatpush.msra.mxu0 0.0
    %6523 = vmatpush.msra.mxu0 0.0
    %6524 = vmatpush.msra.mxu0 0.0
    %6525 = vmatpush.msra.mxu0 0.0
    %6526 = vmatpush.msra.mxu0 0.0
    %6527 = vmatpush.msra.mxu0 %v6507
    %6528 = vmatpush.msra.mxu0 %v6506
    %6529 = vmatpush.msra.mxu0 %v6505
    %6530 = vmatpush.msra.mxu0 %v6504
    %6531 = vmatmul.f32.gmra.mxu0 %v6513
    %v6532 = vpop.f32.mrf.mxu0
    %v6533 = vadd.f32 %v6510, %v6532
    %6534 = vdwg.mxu0
    %6535 = vst [vmem:[#allocation3] sm:$0x3] %v6533
    // Predicated region
    $region90: #{govit_forward.1} parent=1 // pred_check
      _
    $region91: #{govit_forward.1} parent=1 // pred_check_branch
      %6537 = sbr.rel (0) target = $region93
    $region92: #{govit_forward.1} parent=1 // pred_region
      %6539 = vsyncadd [#allocation4], 0
      %s6541 = sshll.u32 [#allocation3], 4
      %s6542 = int_to_ptr.vmem [resolvable:$true] %s6541
      %s6543 = sshll.u32 %s22, 4
      %s6544 = int_to_ptr.hbm [resolvable:$true] %s6543
      %6546 = dma.vmem_to_hbm [thread:$0]  %s6542, 32, %s6544, [#allocation4]
    $region93: #{govit_forward.1} parent=1 // pred_fallthru
      _
    // Predicated region
    $region94: #{govit_forward.1} parent=1 // pred_check
      _
    $region95: #{govit_forward.1} parent=1 // pred_check_branch
      %6548 = sbr.rel (0) target = $region97
    $region96: #{govit_forward.1} parent=1 // pred_region
      _
    $region97: #{govit_forward.1} parent=1 // pred_fallthru
      _
    // Predicated region
    $region98: #{govit_forward.1} parent=1 // pred_check
      _
    $region99: #{govit_forward.1} parent=1 // pred_check_branch
      %6550 = sbr.rel (0) target = $region101
    $region100: #{govit_forward.1} parent=1 // pred_region
      %6552 = dma.done [#allocation4], 32
    $region101: #{govit_forward.1} parent=1 // pred_fallthru
      _
    // Predicated region
    $region102: #{govit_forward.1} parent=1 // pred_check
      _
    $region103: #{govit_forward.1} parent=1 // pred_check_branch
      %6554 = sbr.rel (0) target = $region105
    $region104: #{govit_forward.1} parent=1 // pred_region
      _
    $region105: #{govit_forward.1} parent=1 // pred_fallthru
      _
    %6555 = vsyncpa [#allocation4], 1

</llo_original>
